<compile_context>
chip_gen: v7x
topology: tpu7x:2x2x1
jax: 0.10.0
libtpu: 0.0.40
codegen_flags: <defaults>
</compile_context>

<pallas_src>
import functools

import jax
import jax.numpy as jnp
from jax import lax
from jax.experimental import pallas as pl
from jax.experimental.pallas import tpu as pltpu


# -----------------------------------------------------------------------------
# LSTM cell math (PyTorch gate order [i, f, g, o]; f32 elementwise, bf16 MXU)
# -----------------------------------------------------------------------------
def _apply_gates(gates, c, hid):
    i = jax.nn.sigmoid(gates[:, 0 * hid:1 * hid])
    f = jax.nn.sigmoid(gates[:, 1 * hid:2 * hid])
    g = jnp.tanh(gates[:, 2 * hid:3 * hid])
    o = jax.nn.sigmoid(gates[:, 3 * hid:4 * hid])
    c_new = f * c + i * g
    h_new = o * jnp.tanh(c_new)
    return h_new, c_new


def _lstm_cell_merged(x, h, c, w, b, hid):
    """x:(B,in), h/c:(B,H) f32, w:(in+H,4H) bf16, b:(1,4H) f32 — merged matmul."""
    xh = jnp.concatenate([x.astype(jnp.bfloat16), h.astype(jnp.bfloat16)],
                         axis=-1)
    gates = jnp.dot(xh, w, preferred_element_type=jnp.float32) + b
    return _apply_gates(gates, c, hid)


# -----------------------------------------------------------------------------
# Fused Seq2Seq kernel: encoder sequence + full decode loop, single invocation
# -----------------------------------------------------------------------------
def _make_seq2seq_kernel(n_layers, hid, vocab, src_len, trg_len):
    L = n_layers

    def kernel(*refs):
        tf_ref = refs[0]                      # (T,) int32 SMEM
        emb_src_ref = refs[1]                 # (Ts, B, E) bf16
        enc_w = refs[2:2 + L]                 # (in+H, 4H) bf16 each
        enc_b = refs[2 + L:2 + 2 * L]         # (1, 4H) f32 each
        p = 2 + 2 * L
        dec_wh0_ref = refs[p]                 # (H, 4H) bf16  (layer-0 Whh part)
        table_ref = refs[p + 1]               # (V, 4H) bf16  (dec_emb @ Wih0)
        dec_w_hi = refs[p + 2:p + 1 + L]      # layers 1..L-1, (2H, 4H) bf16
        dec_b = refs[p + 1 + L:p + 1 + 2 * L]  # (1, 4H) f32 each
        tg_ref = refs[p + 1 + 2 * L]          # (T, B, 4H) bf16 teacher gates
        fcw_ref = refs[p + 2 + 2 * L]         # (H, V) bf16
        fcb_ref = refs[p + 3 + 2 * L]         # (1, V) f32
        out_ref = refs[p + 4 + 2 * L]         # (T, B, V) f32

        B = out_ref.shape[1]

        # ---------------- encoder: whole src sequence, weights resident ------
        def enc_step(t, carry):
            hs, cs = carry
            x = emb_src_ref[t]                              # (B, E) bf16
            new_hs, new_cs = [], []
            for l in range(L):
                h, c = _lstm_cell_merged(x, hs[l], cs[l],
                                         enc_w[l][...], enc_b[l][...], hid)
                new_hs.append(h)
                new_cs.append(c)
                x = h
            return tuple(new_hs), tuple(new_cs)

        zeros = tuple(jnp.zeros((B, hid), jnp.float32) for _ in range(L))
        hs, cs = lax.fori_loop(0, src_len, enc_step, (zeros, zeros),
                               unroll=True)

        # ---------------- decoder: on-chip embedding/argmax/teacher-forcing --
        out_ref[0] = jnp.zeros((B, vocab), jnp.float32)     # outputs[0] stays 0
        iota_v = lax.broadcasted_iota(jnp.int32, (B, vocab), 1)   # hoisted

        def dec_step(s, carry):                             # produces t = s + 1
            hs, cs, x_gate = carry
            # Layer 0: x-contribution precomputed (emb @ Wih0) -> add recurrent.
            gates0 = (x_gate
                      + jnp.dot(hs[0].astype(jnp.bfloat16), dec_wh0_ref[...],
                                preferred_element_type=jnp.float32)
                      + dec_b[0][...])
            h_new, c_new = _apply_gates(gates0, cs[0], hid)
            new_hs, new_cs = [h_new], [c_new]
            x = h_new
            for l in range(1, L):
                h_new, c_new = _lstm_cell_merged(x, hs[l], cs[l],
                                                 dec_w_hi[l - 1][...],
                                                 dec_b[l][...], hid)
                new_hs.append(h_new)
                new_cs.append(c_new)
                x = h_new

            logits = (jnp.dot(x.astype(jnp.bfloat16), fcw_ref[...],
                              preferred_element_type=jnp.float32)
                      + fcb_ref[...])                       # (B, V) f32
            out_ref[s + 1] = logits

            # Greedy argmax (first max index, matches torch tie-breaking).
            m = jnp.max(logits, axis=-1, keepdims=True)
            top1 = jnp.min(jnp.where(logits == m, iota_v, vocab),
                           axis=-1, keepdims=True)          # (B, 1) int32
            onehot = (iota_v == top1).astype(jnp.bfloat16)  # (B, V)
            greedy_gate = jnp.dot(onehot, table_ref[...],
                                  preferred_element_type=jnp.float32)

            # Teacher-forcing select for the NEXT step input — all on-chip.
            teacher_gate = tg_ref[s + 1].astype(jnp.float32)
            use_teacher = tf_ref[s + 1] != 0
            x_gate_next = jnp.where(use_teacher, teacher_gate, greedy_gate)
            return tuple(new_hs), tuple(new_cs), x_gate_next

        x_gate0 = tg_ref[0].astype(jnp.float32)             # input at t=1 is trg[0]
        lax.fori_loop(0, trg_len - 1, dec_step, (hs, cs, x_gate0),
                      unroll=True)

    return kernel


# -----------------------------------------------------------------------------
# Wrapper: embedding lookups / layer-0 gate table precompute, one pallas_call
# -----------------------------------------------------------------------------
def seq2seq_forward(params, src, trg, tf_mask, hid_dim, n_layers):
    # TODO(synk): dropout omitted — forward semantics match eval mode.
    src_len, batch = src.shape
    trg_len, _ = trg.shape
    vocab, emb_dim = params["dec_emb"].shape

    emb_src = jnp.take(params["enc_emb"], src, axis=0)       # (Ts, B, E) bf16

    dec_w0 = params["dec_lstm"][0]["w"]                      # (E+H, 4H) bf16
    w_x0 = dec_w0[:emb_dim]                                  # (E, 4H)
    w_h0 = dec_w0[emb_dim:]                                  # (H, 4H)
    gate_table = jnp.dot(params["dec_emb"].astype(jnp.float32),
                         w_x0.astype(jnp.float32)).astype(jnp.bfloat16)  # (V,4H)
    teacher_gates = jnp.take(gate_table, trg, axis=0)        # (T, B, 4H) bf16

    enc_ws = [p["w"] for p in params["enc_lstm"]]
    enc_bs = [p["b"] for p in params["enc_lstm"]]
    dec_ws_hi = [p["w"] for p in params["dec_lstm"][1:]]
    dec_bs = [p["b"] for p in params["dec_lstm"]]

    inputs = [tf_mask.astype(jnp.int32), emb_src,
              *enc_ws, *enc_bs,
              w_h0, gate_table, *dec_ws_hi, *dec_bs,
              teacher_gates, params["fc_w_t"], params["fc_b"]]

    in_specs = ([pl.BlockSpec(memory_space=pltpu.MemorySpace.SMEM)]
                + [pl.BlockSpec(memory_space=pltpu.MemorySpace.VMEM)]
                * (len(inputs) - 1))

    out = pl.pallas_call(
        _make_seq2seq_kernel(n_layers, hid_dim, vocab, src_len, trg_len),
        in_specs=in_specs,
        out_specs=pl.BlockSpec(memory_space=pltpu.MemorySpace.VMEM),
        out_shape=jax.ShapeDtypeStruct((trg_len, batch, vocab), jnp.float32),
    )(*inputs)
    return out                                               # (trg_len, B, V)


# -----------------------------------------------------------------------------
# Parameter init (mirrors module __init__ shapes; bf16 MXU weights, f32 biases)
# -----------------------------------------------------------------------------
def _init_lstm_stack(key, in0_dim, hid_dim, n_layers):
    layers = []
    scale = hid_dim ** -0.5
    for l in range(n_layers):
        in_dim = in0_dim if l == 0 else hid_dim
        key, k1, k2, k3, k4 = jax.random.split(key, 5)
        wih = jax.random.uniform(k1, (4 * hid_dim, in_dim), jnp.float32,
                                 -scale, scale)
        whh = jax.random.uniform(k2, (4 * hid_dim, hid_dim), jnp.float32,
                                 -scale, scale)
        b_ih = jax.random.uniform(k3, (4 * hid_dim,), jnp.float32, -scale, scale)
        b_hh = jax.random.uniform(k4, (4 * hid_dim,), jnp.float32, -scale, scale)
        layers.append({
            # merged [Wih; Whh]^T -> (in_dim + H, 4H), bf16 for the MXU
            "w": jnp.concatenate([wih.T, whh.T], axis=0).astype(jnp.bfloat16),
            "b": (b_ih + b_hh).reshape(1, -1).astype(jnp.float32),
        })
    return layers, key


def init_params(key, vocab_size, emb_dim, hid_dim, n_layers):
    key, k_ee, k_de, k_fw, k_fb = jax.random.split(key, 5)
    params = {}
    params["enc_emb"] = jax.random.normal(
        k_ee, (vocab_size, emb_dim), jnp.float32).astype(jnp.bfloat16)
    params["dec_emb"] = jax.random.normal(
        k_de, (vocab_size, emb_dim), jnp.float32).astype(jnp.bfloat16)
    params["enc_lstm"], key = _init_lstm_stack(key, emb_dim, hid_dim, n_layers)
    params["dec_lstm"], key = _init_lstm_stack(key, emb_dim, hid_dim, n_layers)
    fs = hid_dim ** -0.5
    params["fc_w_t"] = jax.random.uniform(
        k_fw, (hid_dim, vocab_size), jnp.float32, -fs, fs).astype(jnp.bfloat16)
    params["fc_b"] = jax.random.uniform(k_fb, (1, vocab_size), jnp.float32,
                                        -fs, fs)
    return params


# -----------------------------------------------------------------------------
# Main
# -----------------------------------------------------------------------------
if __name__ == "__main__":
    VOCAB = 256     # lane-aligned vocab -> dense fc / one-hot tiles
    EMB = 128
    HID = 128       # 128-aligned hidden -> aligned gate slices
    N_LAYERS = 3
    BATCH = 8       # sublane-aligned batch
    SRC_LEN = 6
    TRG_LEN = 5

    key = jax.random.PRNGKey(0)
    key, k_params, k_src, k_trg, k_tf = jax.random.split(key, 5)

    params = init_params(k_params, VOCAB, EMB, HID, N_LAYERS)
    src = jax.random.randint(k_src, (SRC_LEN, BATCH), 0, VOCAB, jnp.int32)
    trg = jax.random.randint(k_trg, (TRG_LEN, BATCH), 0, VOCAB, jnp.int32)
    # TODO(synk): deterministic jax-PRNG stand-in for python random.random()
    # teacher-forcing stream (precomputed so the decode loop has no host sync).
    tf_mask = (jax.random.uniform(k_tf, (TRG_LEN,)) < 0.5).astype(jnp.int32)

    fwd = jax.jit(functools.partial(seq2seq_forward,
                                    hid_dim=HID, n_layers=N_LAYERS))
    out = fwd(params, src, trg, tf_mask)
    out = jax.block_until_ready(out)

    assert out.shape == (TRG_LEN, BATCH, VOCAB)
    assert bool(jnp.all(jnp.isfinite(out)))
    assert bool(jnp.all(out[0] == 0.0))
    print("KERNEL_OK")
</pallas_src>

<mosaic_0001>
module attributes {stable_mosaic.version = 11 : i64} {
  func.func @kernel(%arg0: memref<5xi32, #tpu.memory_space<smem>>, %arg1: memref<6x8x128xbf16, #tpu.memory_space<vmem>>, %arg2: memref<256x512xbf16, #tpu.memory_space<vmem>>, %arg3: memref<256x512xbf16, #tpu.memory_space<vmem>>, %arg4: memref<256x512xbf16, #tpu.memory_space<vmem>>, %arg5: memref<1x512xf32, #tpu.memory_space<vmem>>, %arg6: memref<1x512xf32, #tpu.memory_space<vmem>>, %arg7: memref<1x512xf32, #tpu.memory_space<vmem>>, %arg8: memref<128x512xbf16, #tpu.memory_space<vmem>>, %arg9: memref<256x512xbf16, #tpu.memory_space<vmem>>, %arg10: memref<256x512xbf16, #tpu.memory_space<vmem>>, %arg11: memref<256x512xbf16, #tpu.memory_space<vmem>>, %arg12: memref<1x512xf32, #tpu.memory_space<vmem>>, %arg13: memref<1x512xf32, #tpu.memory_space<vmem>>, %arg14: memref<1x512xf32, #tpu.memory_space<vmem>>, %arg15: memref<5x8x512xbf16, #tpu.memory_space<vmem>>, %arg16: memref<128x256xbf16, #tpu.memory_space<vmem>>, %arg17: memref<1x256xf32, #tpu.memory_space<vmem>>, %arg18: memref<5x8x256xf32, #tpu.memory_space<vmem>>) attributes {dimension_semantics = [], scalar_prefetch = 0 : i64, scratch_operands = 0 : i64, tpu.core_type = #tpu.core_type<tc>} {
    %cst = arith.constant 0.000000e+00 : f32
    %0 = vector.broadcast %cst : f32 to vector<8x128xf32>
    %cst_0 = arith.constant 0.000000e+00 : f32
    %1 = vector.broadcast %cst_0 : f32 to vector<8x128xf32>
    %cst_1 = arith.constant 0.000000e+00 : f32
    %2 = vector.broadcast %cst_1 : f32 to vector<8x128xf32>
    %c0_i32 = arith.constant 0 : i32
    %3 = arith.index_cast %c0_i32 : i32 to index
    %c0 = arith.constant 0 : index
    %c0_2 = arith.constant 0 : index
    %4 = vector.load %arg1[%3, %c0, %c0_2] : memref<6x8x128xbf16, #tpu.memory_space<vmem>>, vector<1x8x128xbf16>
    %5 = vector.shape_cast %4 : vector<1x8x128xbf16> to vector<8x128xbf16>
    %c0_3 = arith.constant 0 : index
    %c0_4 = arith.constant 0 : index
    %6 = vector.load %arg2[%c0_3, %c0_4] : memref<256x512xbf16, #tpu.memory_space<vmem>>, vector<256x512xbf16>
    %c0_5 = arith.constant 0 : index
    %c0_6 = arith.constant 0 : index
    %7 = vector.load %arg5[%c0_5, %c0_6] : memref<1x512xf32, #tpu.memory_space<vmem>>, vector<1x512xf32>
    %8 = arith.truncf %0 : vector<8x128xf32> to vector<8x128xbf16>
    %9 = tpu.concatenate %5, %8 in 1 : vector<8x128xbf16>, vector<8x128xbf16> -> vector<8x256xbf16>
    %cst_7 = arith.constant dense<0.000000e+00> : vector<8x512xf32>
    %10 = tpu.matmul %9, %6, %cst_7 {dimension_numbers = #tpu.dot_dimension_numbers<[1], [0], [0], [1], [0, 0, 1, 1], [], []>} : vector<8x256xbf16>, vector<256x512xbf16>, vector<8x512xf32> -> vector<8x512xf32>
    %11 = vector.broadcast %7 : vector<1x512xf32> to vector<8x512xf32>
    %12 = arith.addf %10, %11 : vector<8x512xf32>
    %13 = vector.extract_strided_slice %12 {offsets = [0, 0], sizes = [8, 128], strides = [1, 1]} : vector<8x512xf32> to vector<8x128xf32>
    %14 = arith.negf %13 : vector<8x128xf32>
    %15 = math.exp %14 : vector<8x128xf32>
    %cst_8 = arith.constant 1.000000e+00 : f32
    %16 = vector.broadcast %cst_8 : f32 to vector<8x128xf32>
    %17 = arith.addf %16, %15 : vector<8x128xf32>
    %18 = arith.divf %16, %17 : vector<8x128xf32>
    %19 = vector.extract_strided_slice %12 {offsets = [0, 128], sizes = [8, 128], strides = [1, 1]} : vector<8x512xf32> to vector<8x128xf32>
    %20 = arith.negf %19 : vector<8x128xf32>
    %21 = math.exp %20 : vector<8x128xf32>
    %cst_9 = arith.constant 1.000000e+00 : f32
    %22 = vector.broadcast %cst_9 : f32 to vector<8x128xf32>
    %23 = arith.addf %22, %21 : vector<8x128xf32>
    %24 = arith.divf %22, %23 : vector<8x128xf32>
    %25 = vector.extract_strided_slice %12 {offsets = [0, 256], sizes = [8, 128], strides = [1, 1]} : vector<8x512xf32> to vector<8x128xf32>
    %26 = math.tanh %25 : vector<8x128xf32>
    %27 = vector.extract_strided_slice %12 {offsets = [0, 384], sizes = [8, 128], strides = [1, 1]} : vector<8x512xf32> to vector<8x128xf32>
    %28 = arith.negf %27 : vector<8x128xf32>
    %29 = math.exp %28 : vector<8x128xf32>
    %cst_10 = arith.constant 1.000000e+00 : f32
    %30 = vector.broadcast %cst_10 : f32 to vector<8x128xf32>
    %31 = arith.addf %30, %29 : vector<8x128xf32>
    %32 = arith.divf %30, %31 : vector<8x128xf32>
    %33 = arith.mulf %24, %0 : vector<8x128xf32>
    %34 = arith.mulf %18, %26 : vector<8x128xf32>
    %35 = arith.addf %33, %34 : vector<8x128xf32>
    %36 = math.tanh %35 : vector<8x128xf32>
    %37 = arith.mulf %32, %36 : vector<8x128xf32>
    %c0_11 = arith.constant 0 : index
    %c0_12 = arith.constant 0 : index
    %38 = vector.load %arg3[%c0_11, %c0_12] : memref<256x512xbf16, #tpu.memory_space<vmem>>, vector<256x512xbf16>
    %c0_13 = arith.constant 0 : index
    %c0_14 = arith.constant 0 : index
    %39 = vector.load %arg6[%c0_13, %c0_14] : memref<1x512xf32, #tpu.memory_space<vmem>>, vector<1x512xf32>
    %40 = arith.truncf %37 : vector<8x128xf32> to vector<8x128xbf16>
    %41 = arith.truncf %1 : vector<8x128xf32> to vector<8x128xbf16>
    %42 = tpu.concatenate %40, %41 in 1 : vector<8x128xbf16>, vector<8x128xbf16> -> vector<8x256xbf16>
    %cst_15 = arith.constant dense<0.000000e+00> : vector<8x512xf32>
    %43 = tpu.matmul %42, %38, %cst_15 {dimension_numbers = #tpu.dot_dimension_numbers<[1], [0], [0], [1], [0, 0, 1, 1], [], []>} : vector<8x256xbf16>, vector<256x512xbf16>, vector<8x512xf32> -> vector<8x512xf32>
    %44 = vector.broadcast %39 : vector<1x512xf32> to vector<8x512xf32>
    %45 = arith.addf %43, %44 : vector<8x512xf32>
    %46 = vector.extract_strided_slice %45 {offsets = [0, 0], sizes = [8, 128], strides = [1, 1]} : vector<8x512xf32> to vector<8x128xf32>
    %47 = arith.negf %46 : vector<8x128xf32>
    %48 = math.exp %47 : vector<8x128xf32>
    %cst_16 = arith.constant 1.000000e+00 : f32
    %49 = vector.broadcast %cst_16 : f32 to vector<8x128xf32>
    %50 = arith.addf %49, %48 : vector<8x128xf32>
    %51 = arith.divf %49, %50 : vector<8x128xf32>
    %52 = vector.extract_strided_slice %45 {offsets = [0, 128], sizes = [8, 128], strides = [1, 1]} : vector<8x512xf32> to vector<8x128xf32>
    %53 = arith.negf %52 : vector<8x128xf32>
    %54 = math.exp %53 : vector<8x128xf32>
    %cst_17 = arith.constant 1.000000e+00 : f32
    %55 = vector.broadcast %cst_17 : f32 to vector<8x128xf32>
    %56 = arith.addf %55, %54 : vector<8x128xf32>
    %57 = arith.divf %55, %56 : vector<8x128xf32>
    %58 = vector.extract_strided_slice %45 {offsets = [0, 256], sizes = [8, 128], strides = [1, 1]} : vector<8x512xf32> to vector<8x128xf32>
    %59 = math.tanh %58 : vector<8x128xf32>
    %60 = vector.extract_strided_slice %45 {offsets = [0, 384], sizes = [8, 128], strides = [1, 1]} : vector<8x512xf32> to vector<8x128xf32>
    %61 = arith.negf %60 : vector<8x128xf32>
    %62 = math.exp %61 : vector<8x128xf32>
    %cst_18 = arith.constant 1.000000e+00 : f32
    %63 = vector.broadcast %cst_18 : f32 to vector<8x128xf32>
    %64 = arith.addf %63, %62 : vector<8x128xf32>
    %65 = arith.divf %63, %64 : vector<8x128xf32>
    %66 = arith.mulf %57, %1 : vector<8x128xf32>
    %67 = arith.mulf %51, %59 : vector<8x128xf32>
    %68 = arith.addf %66, %67 : vector<8x128xf32>
    %69 = math.tanh %68 : vector<8x128xf32>
    %70 = arith.mulf %65, %69 : vector<8x128xf32>
    %c0_19 = arith.constant 0 : index
    %c0_20 = arith.constant 0 : index
    %71 = vector.load %arg4[%c0_19, %c0_20] : memref<256x512xbf16, #tpu.memory_space<vmem>>, vector<256x512xbf16>
    %c0_21 = arith.constant 0 : index
    %c0_22 = arith.constant 0 : index
    %72 = vector.load %arg7[%c0_21, %c0_22] : memref<1x512xf32, #tpu.memory_space<vmem>>, vector<1x512xf32>
    %73 = arith.truncf %70 : vector<8x128xf32> to vector<8x128xbf16>
    %74 = arith.truncf %2 : vector<8x128xf32> to vector<8x128xbf16>
    %75 = tpu.concatenate %73, %74 in 1 : vector<8x128xbf16>, vector<8x128xbf16> -> vector<8x256xbf16>
    %cst_23 = arith.constant dense<0.000000e+00> : vector<8x512xf32>
    %76 = tpu.matmul %75, %71, %cst_23 {dimension_numbers = #tpu.dot_dimension_numbers<[1], [0], [0], [1], [0, 0, 1, 1], [], []>} : vector<8x256xbf16>, vector<256x512xbf16>, vector<8x512xf32> -> vector<8x512xf32>
    %77 = vector.broadcast %72 : vector<1x512xf32> to vector<8x512xf32>
    %78 = arith.addf %76, %77 : vector<8x512xf32>
    %79 = vector.extract_strided_slice %78 {offsets = [0, 0], sizes = [8, 128], strides = [1, 1]} : vector<8x512xf32> to vector<8x128xf32>
    %80 = arith.negf %79 : vector<8x128xf32>
    %81 = math.exp %80 : vector<8x128xf32>
    %cst_24 = arith.constant 1.000000e+00 : f32
    %82 = vector.broadcast %cst_24 : f32 to vector<8x128xf32>
    %83 = arith.addf %82, %81 : vector<8x128xf32>
    %84 = arith.divf %82, %83 : vector<8x128xf32>
    %85 = vector.extract_strided_slice %78 {offsets = [0, 128], sizes = [8, 128], strides = [1, 1]} : vector<8x512xf32> to vector<8x128xf32>
    %86 = arith.negf %85 : vector<8x128xf32>
    %87 = math.exp %86 : vector<8x128xf32>
    %cst_25 = arith.constant 1.000000e+00 : f32
    %88 = vector.broadcast %cst_25 : f32 to vector<8x128xf32>
    %89 = arith.addf %88, %87 : vector<8x128xf32>
    %90 = arith.divf %88, %89 : vector<8x128xf32>
    %91 = vector.extract_strided_slice %78 {offsets = [0, 256], sizes = [8, 128], strides = [1, 1]} : vector<8x512xf32> to vector<8x128xf32>
    %92 = math.tanh %91 : vector<8x128xf32>
    %93 = vector.extract_strided_slice %78 {offsets = [0, 384], sizes = [8, 128], strides = [1, 1]} : vector<8x512xf32> to vector<8x128xf32>
    %94 = arith.negf %93 : vector<8x128xf32>
    %95 = math.exp %94 : vector<8x128xf32>
    %cst_26 = arith.constant 1.000000e+00 : f32
    %96 = vector.broadcast %cst_26 : f32 to vector<8x128xf32>
    %97 = arith.addf %96, %95 : vector<8x128xf32>
    %98 = arith.divf %96, %97 : vector<8x128xf32>
    %99 = arith.mulf %90, %2 : vector<8x128xf32>
    %100 = arith.mulf %84, %92 : vector<8x128xf32>
    %101 = arith.addf %99, %100 : vector<8x128xf32>
    %102 = math.tanh %101 : vector<8x128xf32>
    %103 = arith.mulf %98, %102 : vector<8x128xf32>
    %c1_i32 = arith.constant 1 : i32
    %104 = arith.index_cast %c1_i32 : i32 to index
    %c0_27 = arith.constant 0 : index
    %c0_28 = arith.constant 0 : index
    %105 = vector.load %arg1[%104, %c0_27, %c0_28] : memref<6x8x128xbf16, #tpu.memory_space<vmem>>, vector<1x8x128xbf16>
    %106 = vector.shape_cast %105 : vector<1x8x128xbf16> to vector<8x128xbf16>
    %c0_29 = arith.constant 0 : index
    %c0_30 = arith.constant 0 : index
    %107 = vector.load %arg2[%c0_29, %c0_30] : memref<256x512xbf16, #tpu.memory_space<vmem>>, vector<256x512xbf16>
    %c0_31 = arith.constant 0 : index
    %c0_32 = arith.constant 0 : index
    %108 = vector.load %arg5[%c0_31, %c0_32] : memref<1x512xf32, #tpu.memory_space<vmem>>, vector<1x512xf32>
    %109 = arith.truncf %37 : vector<8x128xf32> to vector<8x128xbf16>
    %110 = tpu.concatenate %106, %109 in 1 : vector<8x128xbf16>, vector<8x128xbf16> -> vector<8x256xbf16>
    %cst_33 = arith.constant dense<0.000000e+00> : vector<8x512xf32>
    %111 = tpu.matmul %110, %107, %cst_33 {dimension_numbers = #tpu.dot_dimension_numbers<[1], [0], [0], [1], [0, 0, 1, 1], [], []>} : vector<8x256xbf16>, vector<256x512xbf16>, vector<8x512xf32> -> vector<8x512xf32>
    %112 = vector.broadcast %108 : vector<1x512xf32> to vector<8x512xf32>
    %113 = arith.addf %111, %112 : vector<8x512xf32>
    %114 = vector.extract_strided_slice %113 {offsets = [0, 0], sizes = [8, 128], strides = [1, 1]} : vector<8x512xf32> to vector<8x128xf32>
    %115 = arith.negf %114 : vector<8x128xf32>
    %116 = math.exp %115 : vector<8x128xf32>
    %cst_34 = arith.constant 1.000000e+00 : f32
    %117 = vector.broadcast %cst_34 : f32 to vector<8x128xf32>
    %118 = arith.addf %117, %116 : vector<8x128xf32>
    %119 = arith.divf %117, %118 : vector<8x128xf32>
    %120 = vector.extract_strided_slice %113 {offsets = [0, 128], sizes = [8, 128], strides = [1, 1]} : vector<8x512xf32> to vector<8x128xf32>
    %121 = arith.negf %120 : vector<8x128xf32>
    %122 = math.exp %121 : vector<8x128xf32>
    %cst_35 = arith.constant 1.000000e+00 : f32
    %123 = vector.broadcast %cst_35 : f32 to vector<8x128xf32>
    %124 = arith.addf %123, %122 : vector<8x128xf32>
    %125 = arith.divf %123, %124 : vector<8x128xf32>
    %126 = vector.extract_strided_slice %113 {offsets = [0, 256], sizes = [8, 128], strides = [1, 1]} : vector<8x512xf32> to vector<8x128xf32>
    %127 = math.tanh %126 : vector<8x128xf32>
    %128 = vector.extract_strided_slice %113 {offsets = [0, 384], sizes = [8, 128], strides = [1, 1]} : vector<8x512xf32> to vector<8x128xf32>
    %129 = arith.negf %128 : vector<8x128xf32>
    %130 = math.exp %129 : vector<8x128xf32>
    %cst_36 = arith.constant 1.000000e+00 : f32
    %131 = vector.broadcast %cst_36 : f32 to vector<8x128xf32>
    %132 = arith.addf %131, %130 : vector<8x128xf32>
    %133 = arith.divf %131, %132 : vector<8x128xf32>
    %134 = arith.mulf %125, %35 : vector<8x128xf32>
    %135 = arith.mulf %119, %127 : vector<8x128xf32>
    %136 = arith.addf %134, %135 : vector<8x128xf32>
    %137 = math.tanh %136 : vector<8x128xf32>
    %138 = arith.mulf %133, %137 : vector<8x128xf32>
    %c0_37 = arith.constant 0 : index
    %c0_38 = arith.constant 0 : index
    %139 = vector.load %arg3[%c0_37, %c0_38] : memref<256x512xbf16, #tpu.memory_space<vmem>>, vector<256x512xbf16>
    %c0_39 = arith.constant 0 : index
    %c0_40 = arith.constant 0 : index
    %140 = vector.load %arg6[%c0_39, %c0_40] : memref<1x512xf32, #tpu.memory_space<vmem>>, vector<1x512xf32>
    %141 = arith.truncf %138 : vector<8x128xf32> to vector<8x128xbf16>
    %142 = arith.truncf %70 : vector<8x128xf32> to vector<8x128xbf16>
    %143 = tpu.concatenate %141, %142 in 1 : vector<8x128xbf16>, vector<8x128xbf16> -> vector<8x256xbf16>
    %cst_41 = arith.constant dense<0.000000e+00> : vector<8x512xf32>
    %144 = tpu.matmul %143, %139, %cst_41 {dimension_numbers = #tpu.dot_dimension_numbers<[1], [0], [0], [1], [0, 0, 1, 1], [], []>} : vector<8x256xbf16>, vector<256x512xbf16>, vector<8x512xf32> -> vector<8x512xf32>
    %145 = vector.broadcast %140 : vector<1x512xf32> to vector<8x512xf32>
    %146 = arith.addf %144, %145 : vector<8x512xf32>
    %147 = vector.extract_strided_slice %146 {offsets = [0, 0], sizes = [8, 128], strides = [1, 1]} : vector<8x512xf32> to vector<8x128xf32>
    %148 = arith.negf %147 : vector<8x128xf32>
    %149 = math.exp %148 : vector<8x128xf32>
    %cst_42 = arith.constant 1.000000e+00 : f32
    %150 = vector.broadcast %cst_42 : f32 to vector<8x128xf32>
    %151 = arith.addf %150, %149 : vector<8x128xf32>
    %152 = arith.divf %150, %151 : vector<8x128xf32>
    %153 = vector.extract_strided_slice %146 {offsets = [0, 128], sizes = [8, 128], strides = [1, 1]} : vector<8x512xf32> to vector<8x128xf32>
    %154 = arith.negf %153 : vector<8x128xf32>
    %155 = math.exp %154 : vector<8x128xf32>
    %cst_43 = arith.constant 1.000000e+00 : f32
    %156 = vector.broadcast %cst_43 : f32 to vector<8x128xf32>
    %157 = arith.addf %156, %155 : vector<8x128xf32>
    %158 = arith.divf %156, %157 : vector<8x128xf32>
    %159 = vector.extract_strided_slice %146 {offsets = [0, 256], sizes = [8, 128], strides = [1, 1]} : vector<8x512xf32> to vector<8x128xf32>
    %160 = math.tanh %159 : vector<8x128xf32>
    %161 = vector.extract_strided_slice %146 {offsets = [0, 384], sizes = [8, 128], strides = [1, 1]} : vector<8x512xf32> to vector<8x128xf32>
    %162 = arith.negf %161 : vector<8x128xf32>
    %163 = math.exp %162 : vector<8x128xf32>
    %cst_44 = arith.constant 1.000000e+00 : f32
    %164 = vector.broadcast %cst_44 : f32 to vector<8x128xf32>
    %165 = arith.addf %164, %163 : vector<8x128xf32>
    %166 = arith.divf %164, %165 : vector<8x128xf32>
    %167 = arith.mulf %158, %68 : vector<8x128xf32>
    %168 = arith.mulf %152, %160 : vector<8x128xf32>
    %169 = arith.addf %167, %168 : vector<8x128xf32>
    %170 = math.tanh %169 : vector<8x128xf32>
    %171 = arith.mulf %166, %170 : vector<8x128xf32>
    %c0_45 = arith.constant 0 : index
    %c0_46 = arith.constant 0 : index
    %172 = vector.load %arg4[%c0_45, %c0_46] : memref<256x512xbf16, #tpu.memory_space<vmem>>, vector<256x512xbf16>
    %c0_47 = arith.constant 0 : index
    %c0_48 = arith.constant 0 : index
    %173 = vector.load %arg7[%c0_47, %c0_48] : memref<1x512xf32, #tpu.memory_space<vmem>>, vector<1x512xf32>
    %174 = arith.truncf %171 : vector<8x128xf32> to vector<8x128xbf16>
    %175 = arith.truncf %103 : vector<8x128xf32> to vector<8x128xbf16>
    %176 = tpu.concatenate %174, %175 in 1 : vector<8x128xbf16>, vector<8x128xbf16> -> vector<8x256xbf16>
    %cst_49 = arith.constant dense<0.000000e+00> : vector<8x512xf32>
    %177 = tpu.matmul %176, %172, %cst_49 {dimension_numbers = #tpu.dot_dimension_numbers<[1], [0], [0], [1], [0, 0, 1, 1], [], []>} : vector<8x256xbf16>, vector<256x512xbf16>, vector<8x512xf32> -> vector<8x512xf32>
    %178 = vector.broadcast %173 : vector<1x512xf32> to vector<8x512xf32>
    %179 = arith.addf %177, %178 : vector<8x512xf32>
    %180 = vector.extract_strided_slice %179 {offsets = [0, 0], sizes = [8, 128], strides = [1, 1]} : vector<8x512xf32> to vector<8x128xf32>
    %181 = arith.negf %180 : vector<8x128xf32>
    %182 = math.exp %181 : vector<8x128xf32>
    %cst_50 = arith.constant 1.000000e+00 : f32
    %183 = vector.broadcast %cst_50 : f32 to vector<8x128xf32>
    %184 = arith.addf %183, %182 : vector<8x128xf32>
    %185 = arith.divf %183, %184 : vector<8x128xf32>
    %186 = vector.extract_strided_slice %179 {offsets = [0, 128], sizes = [8, 128], strides = [1, 1]} : vector<8x512xf32> to vector<8x128xf32>
    %187 = arith.negf %186 : vector<8x128xf32>
    %188 = math.exp %187 : vector<8x128xf32>
    %cst_51 = arith.constant 1.000000e+00 : f32
    %189 = vector.broadcast %cst_51 : f32 to vector<8x128xf32>
    %190 = arith.addf %189, %188 : vector<8x128xf32>
    %191 = arith.divf %189, %190 : vector<8x128xf32>
    %192 = vector.extract_strided_slice %179 {offsets = [0, 256], sizes = [8, 128], strides = [1, 1]} : vector<8x512xf32> to vector<8x128xf32>
    %193 = math.tanh %192 : vector<8x128xf32>
    %194 = vector.extract_strided_slice %179 {offsets = [0, 384], sizes = [8, 128], strides = [1, 1]} : vector<8x512xf32> to vector<8x128xf32>
    %195 = arith.negf %194 : vector<8x128xf32>
    %196 = math.exp %195 : vector<8x128xf32>
    %cst_52 = arith.constant 1.000000e+00 : f32
    %197 = vector.broadcast %cst_52 : f32 to vector<8x128xf32>
    %198 = arith.addf %197, %196 : vector<8x128xf32>
    %199 = arith.divf %197, %198 : vector<8x128xf32>
    %200 = arith.mulf %191, %101 : vector<8x128xf32>
    %201 = arith.mulf %185, %193 : vector<8x128xf32>
    %202 = arith.addf %200, %201 : vector<8x128xf32>
    %203 = math.tanh %202 : vector<8x128xf32>
    %204 = arith.mulf %199, %203 : vector<8x128xf32>
    %c2_i32 = arith.constant 2 : i32
    %205 = arith.index_cast %c2_i32 : i32 to index
    %c0_53 = arith.constant 0 : index
    %c0_54 = arith.constant 0 : index
    %206 = vector.load %arg1[%205, %c0_53, %c0_54] : memref<6x8x128xbf16, #tpu.memory_space<vmem>>, vector<1x8x128xbf16>
    %207 = vector.shape_cast %206 : vector<1x8x128xbf16> to vector<8x128xbf16>
    %c0_55 = arith.constant 0 : index
    %c0_56 = arith.constant 0 : index
    %208 = vector.load %arg2[%c0_55, %c0_56] : memref<256x512xbf16, #tpu.memory_space<vmem>>, vector<256x512xbf16>
    %c0_57 = arith.constant 0 : index
    %c0_58 = arith.constant 0 : index
    %209 = vector.load %arg5[%c0_57, %c0_58] : memref<1x512xf32, #tpu.memory_space<vmem>>, vector<1x512xf32>
    %210 = arith.truncf %138 : vector<8x128xf32> to vector<8x128xbf16>
    %211 = tpu.concatenate %207, %210 in 1 : vector<8x128xbf16>, vector<8x128xbf16> -> vector<8x256xbf16>
    %cst_59 = arith.constant dense<0.000000e+00> : vector<8x512xf32>
    %212 = tpu.matmul %211, %208, %cst_59 {dimension_numbers = #tpu.dot_dimension_numbers<[1], [0], [0], [1], [0, 0, 1, 1], [], []>} : vector<8x256xbf16>, vector<256x512xbf16>, vector<8x512xf32> -> vector<8x512xf32>
    %213 = vector.broadcast %209 : vector<1x512xf32> to vector<8x512xf32>
    %214 = arith.addf %212, %213 : vector<8x512xf32>
    %215 = vector.extract_strided_slice %214 {offsets = [0, 0], sizes = [8, 128], strides = [1, 1]} : vector<8x512xf32> to vector<8x128xf32>
    %216 = arith.negf %215 : vector<8x128xf32>
    %217 = math.exp %216 : vector<8x128xf32>
    %cst_60 = arith.constant 1.000000e+00 : f32
    %218 = vector.broadcast %cst_60 : f32 to vector<8x128xf32>
    %219 = arith.addf %218, %217 : vector<8x128xf32>
    %220 = arith.divf %218, %219 : vector<8x128xf32>
    %221 = vector.extract_strided_slice %214 {offsets = [0, 128], sizes = [8, 128], strides = [1, 1]} : vector<8x512xf32> to vector<8x128xf32>
    %222 = arith.negf %221 : vector<8x128xf32>
    %223 = math.exp %222 : vector<8x128xf32>
    %cst_61 = arith.constant 1.000000e+00 : f32
    %224 = vector.broadcast %cst_61 : f32 to vector<8x128xf32>
    %225 = arith.addf %224, %223 : vector<8x128xf32>
    %226 = arith.divf %224, %225 : vector<8x128xf32>
    %227 = vector.extract_strided_slice %214 {offsets = [0, 256], sizes = [8, 128], strides = [1, 1]} : vector<8x512xf32> to vector<8x128xf32>
    %228 = math.tanh %227 : vector<8x128xf32>
    %229 = vector.extract_strided_slice %214 {offsets = [0, 384], sizes = [8, 128], strides = [1, 1]} : vector<8x512xf32> to vector<8x128xf32>
    %230 = arith.negf %229 : vector<8x128xf32>
    %231 = math.exp %230 : vector<8x128xf32>
    %cst_62 = arith.constant 1.000000e+00 : f32
    %232 = vector.broadcast %cst_62 : f32 to vector<8x128xf32>
    %233 = arith.addf %232, %231 : vector<8x128xf32>
    %234 = arith.divf %232, %233 : vector<8x128xf32>
    %235 = arith.mulf %226, %136 : vector<8x128xf32>
    %236 = arith.mulf %220, %228 : vector<8x128xf32>
    %237 = arith.addf %235, %236 : vector<8x128xf32>
    %238 = math.tanh %237 : vector<8x128xf32>
    %239 = arith.mulf %234, %238 : vector<8x128xf32>
    %c0_63 = arith.constant 0 : index
    %c0_64 = arith.constant 0 : index
    %240 = vector.load %arg3[%c0_63, %c0_64] : memref<256x512xbf16, #tpu.memory_space<vmem>>, vector<256x512xbf16>
    %c0_65 = arith.constant 0 : index
    %c0_66 = arith.constant 0 : index
    %241 = vector.load %arg6[%c0_65, %c0_66] : memref<1x512xf32, #tpu.memory_space<vmem>>, vector<1x512xf32>
    %242 = arith.truncf %239 : vector<8x128xf32> to vector<8x128xbf16>
    %243 = arith.truncf %171 : vector<8x128xf32> to vector<8x128xbf16>
    %244 = tpu.concatenate %242, %243 in 1 : vector<8x128xbf16>, vector<8x128xbf16> -> vector<8x256xbf16>
    %cst_67 = arith.constant dense<0.000000e+00> : vector<8x512xf32>
    %245 = tpu.matmul %244, %240, %cst_67 {dimension_numbers = #tpu.dot_dimension_numbers<[1], [0], [0], [1], [0, 0, 1, 1], [], []>} : vector<8x256xbf16>, vector<256x512xbf16>, vector<8x512xf32> -> vector<8x512xf32>
    %246 = vector.broadcast %241 : vector<1x512xf32> to vector<8x512xf32>
    %247 = arith.addf %245, %246 : vector<8x512xf32>
    %248 = vector.extract_strided_slice %247 {offsets = [0, 0], sizes = [8, 128], strides = [1, 1]} : vector<8x512xf32> to vector<8x128xf32>
    %249 = arith.negf %248 : vector<8x128xf32>
    %250 = math.exp %249 : vector<8x128xf32>
    %cst_68 = arith.constant 1.000000e+00 : f32
    %251 = vector.broadcast %cst_68 : f32 to vector<8x128xf32>
    %252 = arith.addf %251, %250 : vector<8x128xf32>
    %253 = arith.divf %251, %252 : vector<8x128xf32>
    %254 = vector.extract_strided_slice %247 {offsets = [0, 128], sizes = [8, 128], strides = [1, 1]} : vector<8x512xf32> to vector<8x128xf32>
    %255 = arith.negf %254 : vector<8x128xf32>
    %256 = math.exp %255 : vector<8x128xf32>
    %cst_69 = arith.constant 1.000000e+00 : f32
    %257 = vector.broadcast %cst_69 : f32 to vector<8x128xf32>
    %258 = arith.addf %257, %256 : vector<8x128xf32>
    %259 = arith.divf %257, %258 : vector<8x128xf32>
    %260 = vector.extract_strided_slice %247 {offsets = [0, 256], sizes = [8, 128], strides = [1, 1]} : vector<8x512xf32> to vector<8x128xf32>
    %261 = math.tanh %260 : vector<8x128xf32>
    %262 = vector.extract_strided_slice %247 {offsets = [0, 384], sizes = [8, 128], strides = [1, 1]} : vector<8x512xf32> to vector<8x128xf32>
    %263 = arith.negf %262 : vector<8x128xf32>
    %264 = math.exp %263 : vector<8x128xf32>
    %cst_70 = arith.constant 1.000000e+00 : f32
    %265 = vector.broadcast %cst_70 : f32 to vector<8x128xf32>
    %266 = arith.addf %265, %264 : vector<8x128xf32>
    %267 = arith.divf %265, %266 : vector<8x128xf32>
    %268 = arith.mulf %259, %169 : vector<8x128xf32>
    %269 = arith.mulf %253, %261 : vector<8x128xf32>
    %270 = arith.addf %268, %269 : vector<8x128xf32>
    %271 = math.tanh %270 : vector<8x128xf32>
    %272 = arith.mulf %267, %271 : vector<8x128xf32>
    %c0_71 = arith.constant 0 : index
    %c0_72 = arith.constant 0 : index
    %273 = vector.load %arg4[%c0_71, %c0_72] : memref<256x512xbf16, #tpu.memory_space<vmem>>, vector<256x512xbf16>
    %c0_73 = arith.constant 0 : index
    %c0_74 = arith.constant 0 : index
    %274 = vector.load %arg7[%c0_73, %c0_74] : memref<1x512xf32, #tpu.memory_space<vmem>>, vector<1x512xf32>
    %275 = arith.truncf %272 : vector<8x128xf32> to vector<8x128xbf16>
    %276 = arith.truncf %204 : vector<8x128xf32> to vector<8x128xbf16>
    %277 = tpu.concatenate %275, %276 in 1 : vector<8x128xbf16>, vector<8x128xbf16> -> vector<8x256xbf16>
    %cst_75 = arith.constant dense<0.000000e+00> : vector<8x512xf32>
    %278 = tpu.matmul %277, %273, %cst_75 {dimension_numbers = #tpu.dot_dimension_numbers<[1], [0], [0], [1], [0, 0, 1, 1], [], []>} : vector<8x256xbf16>, vector<256x512xbf16>, vector<8x512xf32> -> vector<8x512xf32>
    %279 = vector.broadcast %274 : vector<1x512xf32> to vector<8x512xf32>
    %280 = arith.addf %278, %279 : vector<8x512xf32>
    %281 = vector.extract_strided_slice %280 {offsets = [0, 0], sizes = [8, 128], strides = [1, 1]} : vector<8x512xf32> to vector<8x128xf32>
    %282 = arith.negf %281 : vector<8x128xf32>
    %283 = math.exp %282 : vector<8x128xf32>
    %cst_76 = arith.constant 1.000000e+00 : f32
    %284 = vector.broadcast %cst_76 : f32 to vector<8x128xf32>
    %285 = arith.addf %284, %283 : vector<8x128xf32>
    %286 = arith.divf %284, %285 : vector<8x128xf32>
    %287 = vector.extract_strided_slice %280 {offsets = [0, 128], sizes = [8, 128], strides = [1, 1]} : vector<8x512xf32> to vector<8x128xf32>
    %288 = arith.negf %287 : vector<8x128xf32>
    %289 = math.exp %288 : vector<8x128xf32>
    %cst_77 = arith.constant 1.000000e+00 : f32
    %290 = vector.broadcast %cst_77 : f32 to vector<8x128xf32>
    %291 = arith.addf %290, %289 : vector<8x128xf32>
    %292 = arith.divf %290, %291 : vector<8x128xf32>
    %293 = vector.extract_strided_slice %280 {offsets = [0, 256], sizes = [8, 128], strides = [1, 1]} : vector<8x512xf32> to vector<8x128xf32>
    %294 = math.tanh %293 : vector<8x128xf32>
    %295 = vector.extract_strided_slice %280 {offsets = [0, 384], sizes = [8, 128], strides = [1, 1]} : vector<8x512xf32> to vector<8x128xf32>
    %296 = arith.negf %295 : vector<8x128xf32>
    %297 = math.exp %296 : vector<8x128xf32>
    %cst_78 = arith.constant 1.000000e+00 : f32
    %298 = vector.broadcast %cst_78 : f32 to vector<8x128xf32>
    %299 = arith.addf %298, %297 : vector<8x128xf32>
    %300 = arith.divf %298, %299 : vector<8x128xf32>
    %301 = arith.mulf %292, %202 : vector<8x128xf32>
    %302 = arith.mulf %286, %294 : vector<8x128xf32>
    %303 = arith.addf %301, %302 : vector<8x128xf32>
    %304 = math.tanh %303 : vector<8x128xf32>
    %305 = arith.mulf %300, %304 : vector<8x128xf32>
    %c3_i32 = arith.constant 3 : i32
    %306 = arith.index_cast %c3_i32 : i32 to index
    %c0_79 = arith.constant 0 : index
    %c0_80 = arith.constant 0 : index
    %307 = vector.load %arg1[%306, %c0_79, %c0_80] : memref<6x8x128xbf16, #tpu.memory_space<vmem>>, vector<1x8x128xbf16>
    %308 = vector.shape_cast %307 : vector<1x8x128xbf16> to vector<8x128xbf16>
    %c0_81 = arith.constant 0 : index
    %c0_82 = arith.constant 0 : index
    %309 = vector.load %arg2[%c0_81, %c0_82] : memref<256x512xbf16, #tpu.memory_space<vmem>>, vector<256x512xbf16>
    %c0_83 = arith.constant 0 : index
    %c0_84 = arith.constant 0 : index
    %310 = vector.load %arg5[%c0_83, %c0_84] : memref<1x512xf32, #tpu.memory_space<vmem>>, vector<1x512xf32>
    %311 = arith.truncf %239 : vector<8x128xf32> to vector<8x128xbf16>
    %312 = tpu.concatenate %308, %311 in 1 : vector<8x128xbf16>, vector<8x128xbf16> -> vector<8x256xbf16>
    %cst_85 = arith.constant dense<0.000000e+00> : vector<8x512xf32>
    %313 = tpu.matmul %312, %309, %cst_85 {dimension_numbers = #tpu.dot_dimension_numbers<[1], [0], [0], [1], [0, 0, 1, 1], [], []>} : vector<8x256xbf16>, vector<256x512xbf16>, vector<8x512xf32> -> vector<8x512xf32>
    %314 = vector.broadcast %310 : vector<1x512xf32> to vector<8x512xf32>
    %315 = arith.addf %313, %314 : vector<8x512xf32>
    %316 = vector.extract_strided_slice %315 {offsets = [0, 0], sizes = [8, 128], strides = [1, 1]} : vector<8x512xf32> to vector<8x128xf32>
    %317 = arith.negf %316 : vector<8x128xf32>
    %318 = math.exp %317 : vector<8x128xf32>
    %cst_86 = arith.constant 1.000000e+00 : f32
    %319 = vector.broadcast %cst_86 : f32 to vector<8x128xf32>
    %320 = arith.addf %319, %318 : vector<8x128xf32>
    %321 = arith.divf %319, %320 : vector<8x128xf32>
    %322 = vector.extract_strided_slice %315 {offsets = [0, 128], sizes = [8, 128], strides = [1, 1]} : vector<8x512xf32> to vector<8x128xf32>
    %323 = arith.negf %322 : vector<8x128xf32>
    %324 = math.exp %323 : vector<8x128xf32>
    %cst_87 = arith.constant 1.000000e+00 : f32
    %325 = vector.broadcast %cst_87 : f32 to vector<8x128xf32>
    %326 = arith.addf %325, %324 : vector<8x128xf32>
    %327 = arith.divf %325, %326 : vector<8x128xf32>
    %328 = vector.extract_strided_slice %315 {offsets = [0, 256], sizes = [8, 128], strides = [1, 1]} : vector<8x512xf32> to vector<8x128xf32>
    %329 = math.tanh %328 : vector<8x128xf32>
    %330 = vector.extract_strided_slice %315 {offsets = [0, 384], sizes = [8, 128], strides = [1, 1]} : vector<8x512xf32> to vector<8x128xf32>
    %331 = arith.negf %330 : vector<8x128xf32>
    %332 = math.exp %331 : vector<8x128xf32>
    %cst_88 = arith.constant 1.000000e+00 : f32
    %333 = vector.broadcast %cst_88 : f32 to vector<8x128xf32>
    %334 = arith.addf %333, %332 : vector<8x128xf32>
    %335 = arith.divf %333, %334 : vector<8x128xf32>
    %336 = arith.mulf %327, %237 : vector<8x128xf32>
    %337 = arith.mulf %321, %329 : vector<8x128xf32>
    %338 = arith.addf %336, %337 : vector<8x128xf32>
    %339 = math.tanh %338 : vector<8x128xf32>
    %340 = arith.mulf %335, %339 : vector<8x128xf32>
    %c0_89 = arith.constant 0 : index
    %c0_90 = arith.constant 0 : index
    %341 = vector.load %arg3[%c0_89, %c0_90] : memref<256x512xbf16, #tpu.memory_space<vmem>>, vector<256x512xbf16>
    %c0_91 = arith.constant 0 : index
    %c0_92 = arith.constant 0 : index
    %342 = vector.load %arg6[%c0_91, %c0_92] : memref<1x512xf32, #tpu.memory_space<vmem>>, vector<1x512xf32>
    %343 = arith.truncf %340 : vector<8x128xf32> to vector<8x128xbf16>
    %344 = arith.truncf %272 : vector<8x128xf32> to vector<8x128xbf16>
    %345 = tpu.concatenate %343, %344 in 1 : vector<8x128xbf16>, vector<8x128xbf16> -> vector<8x256xbf16>
    %cst_93 = arith.constant dense<0.000000e+00> : vector<8x512xf32>
    %346 = tpu.matmul %345, %341, %cst_93 {dimension_numbers = #tpu.dot_dimension_numbers<[1], [0], [0], [1], [0, 0, 1, 1], [], []>} : vector<8x256xbf16>, vector<256x512xbf16>, vector<8x512xf32> -> vector<8x512xf32>
    %347 = vector.broadcast %342 : vector<1x512xf32> to vector<8x512xf32>
    %348 = arith.addf %346, %347 : vector<8x512xf32>
    %349 = vector.extract_strided_slice %348 {offsets = [0, 0], sizes = [8, 128], strides = [1, 1]} : vector<8x512xf32> to vector<8x128xf32>
    %350 = arith.negf %349 : vector<8x128xf32>
    %351 = math.exp %350 : vector<8x128xf32>
    %cst_94 = arith.constant 1.000000e+00 : f32
    %352 = vector.broadcast %cst_94 : f32 to vector<8x128xf32>
    %353 = arith.addf %352, %351 : vector<8x128xf32>
    %354 = arith.divf %352, %353 : vector<8x128xf32>
    %355 = vector.extract_strided_slice %348 {offsets = [0, 128], sizes = [8, 128], strides = [1, 1]} : vector<8x512xf32> to vector<8x128xf32>
    %356 = arith.negf %355 : vector<8x128xf32>
    %357 = math.exp %356 : vector<8x128xf32>
    %cst_95 = arith.constant 1.000000e+00 : f32
    %358 = vector.broadcast %cst_95 : f32 to vector<8x128xf32>
    %359 = arith.addf %358, %357 : vector<8x128xf32>
    %360 = arith.divf %358, %359 : vector<8x128xf32>
    %361 = vector.extract_strided_slice %348 {offsets = [0, 256], sizes = [8, 128], strides = [1, 1]} : vector<8x512xf32> to vector<8x128xf32>
    %362 = math.tanh %361 : vector<8x128xf32>
    %363 = vector.extract_strided_slice %348 {offsets = [0, 384], sizes = [8, 128], strides = [1, 1]} : vector<8x512xf32> to vector<8x128xf32>
    %364 = arith.negf %363 : vector<8x128xf32>
    %365 = math.exp %364 : vector<8x128xf32>
    %cst_96 = arith.constant 1.000000e+00 : f32
    %366 = vector.broadcast %cst_96 : f32 to vector<8x128xf32>
    %367 = arith.addf %366, %365 : vector<8x128xf32>
    %368 = arith.divf %366, %367 : vector<8x128xf32>
    %369 = arith.mulf %360, %270 : vector<8x128xf32>
    %370 = arith.mulf %354, %362 : vector<8x128xf32>
    %371 = arith.addf %369, %370 : vector<8x128xf32>
    %372 = math.tanh %371 : vector<8x128xf32>
    %373 = arith.mulf %368, %372 : vector<8x128xf32>
    %c0_97 = arith.constant 0 : index
    %c0_98 = arith.constant 0 : index
    %374 = vector.load %arg4[%c0_97, %c0_98] : memref<256x512xbf16, #tpu.memory_space<vmem>>, vector<256x512xbf16>
    %c0_99 = arith.constant 0 : index
    %c0_100 = arith.constant 0 : index
    %375 = vector.load %arg7[%c0_99, %c0_100] : memref<1x512xf32, #tpu.memory_space<vmem>>, vector<1x512xf32>
    %376 = arith.truncf %373 : vector<8x128xf32> to vector<8x128xbf16>
    %377 = arith.truncf %305 : vector<8x128xf32> to vector<8x128xbf16>
    %378 = tpu.concatenate %376, %377 in 1 : vector<8x128xbf16>, vector<8x128xbf16> -> vector<8x256xbf16>
    %cst_101 = arith.constant dense<0.000000e+00> : vector<8x512xf32>
    %379 = tpu.matmul %378, %374, %cst_101 {dimension_numbers = #tpu.dot_dimension_numbers<[1], [0], [0], [1], [0, 0, 1, 1], [], []>} : vector<8x256xbf16>, vector<256x512xbf16>, vector<8x512xf32> -> vector<8x512xf32>
    %380 = vector.broadcast %375 : vector<1x512xf32> to vector<8x512xf32>
    %381 = arith.addf %379, %380 : vector<8x512xf32>
    %382 = vector.extract_strided_slice %381 {offsets = [0, 0], sizes = [8, 128], strides = [1, 1]} : vector<8x512xf32> to vector<8x128xf32>
    %383 = arith.negf %382 : vector<8x128xf32>
    %384 = math.exp %383 : vector<8x128xf32>
    %cst_102 = arith.constant 1.000000e+00 : f32
    %385 = vector.broadcast %cst_102 : f32 to vector<8x128xf32>
    %386 = arith.addf %385, %384 : vector<8x128xf32>
    %387 = arith.divf %385, %386 : vector<8x128xf32>
    %388 = vector.extract_strided_slice %381 {offsets = [0, 128], sizes = [8, 128], strides = [1, 1]} : vector<8x512xf32> to vector<8x128xf32>
    %389 = arith.negf %388 : vector<8x128xf32>
    %390 = math.exp %389 : vector<8x128xf32>
    %cst_103 = arith.constant 1.000000e+00 : f32
    %391 = vector.broadcast %cst_103 : f32 to vector<8x128xf32>
    %392 = arith.addf %391, %390 : vector<8x128xf32>
    %393 = arith.divf %391, %392 : vector<8x128xf32>
    %394 = vector.extract_strided_slice %381 {offsets = [0, 256], sizes = [8, 128], strides = [1, 1]} : vector<8x512xf32> to vector<8x128xf32>
    %395 = math.tanh %394 : vector<8x128xf32>
    %396 = vector.extract_strided_slice %381 {offsets = [0, 384], sizes = [8, 128], strides = [1, 1]} : vector<8x512xf32> to vector<8x128xf32>
    %397 = arith.negf %396 : vector<8x128xf32>
    %398 = math.exp %397 : vector<8x128xf32>
    %cst_104 = arith.constant 1.000000e+00 : f32
    %399 = vector.broadcast %cst_104 : f32 to vector<8x128xf32>
    %400 = arith.addf %399, %398 : vector<8x128xf32>
    %401 = arith.divf %399, %400 : vector<8x128xf32>
    %402 = arith.mulf %393, %303 : vector<8x128xf32>
    %403 = arith.mulf %387, %395 : vector<8x128xf32>
    %404 = arith.addf %402, %403 : vector<8x128xf32>
    %405 = math.tanh %404 : vector<8x128xf32>
    %406 = arith.mulf %401, %405 : vector<8x128xf32>
    %c4_i32 = arith.constant 4 : i32
    %407 = arith.index_cast %c4_i32 : i32 to index
    %c0_105 = arith.constant 0 : index
    %c0_106 = arith.constant 0 : index
    %408 = vector.load %arg1[%407, %c0_105, %c0_106] : memref<6x8x128xbf16, #tpu.memory_space<vmem>>, vector<1x8x128xbf16>
    %409 = vector.shape_cast %408 : vector<1x8x128xbf16> to vector<8x128xbf16>
    %c0_107 = arith.constant 0 : index
    %c0_108 = arith.constant 0 : index
    %410 = vector.load %arg2[%c0_107, %c0_108] : memref<256x512xbf16, #tpu.memory_space<vmem>>, vector<256x512xbf16>
    %c0_109 = arith.constant 0 : index
    %c0_110 = arith.constant 0 : index
    %411 = vector.load %arg5[%c0_109, %c0_110] : memref<1x512xf32, #tpu.memory_space<vmem>>, vector<1x512xf32>
    %412 = arith.truncf %340 : vector<8x128xf32> to vector<8x128xbf16>
    %413 = tpu.concatenate %409, %412 in 1 : vector<8x128xbf16>, vector<8x128xbf16> -> vector<8x256xbf16>
    %cst_111 = arith.constant dense<0.000000e+00> : vector<8x512xf32>
    %414 = tpu.matmul %413, %410, %cst_111 {dimension_numbers = #tpu.dot_dimension_numbers<[1], [0], [0], [1], [0, 0, 1, 1], [], []>} : vector<8x256xbf16>, vector<256x512xbf16>, vector<8x512xf32> -> vector<8x512xf32>
    %415 = vector.broadcast %411 : vector<1x512xf32> to vector<8x512xf32>
    %416 = arith.addf %414, %415 : vector<8x512xf32>
    %417 = vector.extract_strided_slice %416 {offsets = [0, 0], sizes = [8, 128], strides = [1, 1]} : vector<8x512xf32> to vector<8x128xf32>
    %418 = arith.negf %417 : vector<8x128xf32>
    %419 = math.exp %418 : vector<8x128xf32>
    %cst_112 = arith.constant 1.000000e+00 : f32
    %420 = vector.broadcast %cst_112 : f32 to vector<8x128xf32>
    %421 = arith.addf %420, %419 : vector<8x128xf32>
    %422 = arith.divf %420, %421 : vector<8x128xf32>
    %423 = vector.extract_strided_slice %416 {offsets = [0, 128], sizes = [8, 128], strides = [1, 1]} : vector<8x512xf32> to vector<8x128xf32>
    %424 = arith.negf %423 : vector<8x128xf32>
    %425 = math.exp %424 : vector<8x128xf32>
    %cst_113 = arith.constant 1.000000e+00 : f32
    %426 = vector.broadcast %cst_113 : f32 to vector<8x128xf32>
    %427 = arith.addf %426, %425 : vector<8x128xf32>
    %428 = arith.divf %426, %427 : vector<8x128xf32>
    %429 = vector.extract_strided_slice %416 {offsets = [0, 256], sizes = [8, 128], strides = [1, 1]} : vector<8x512xf32> to vector<8x128xf32>
    %430 = math.tanh %429 : vector<8x128xf32>
    %431 = vector.extract_strided_slice %416 {offsets = [0, 384], sizes = [8, 128], strides = [1, 1]} : vector<8x512xf32> to vector<8x128xf32>
    %432 = arith.negf %431 : vector<8x128xf32>
    %433 = math.exp %432 : vector<8x128xf32>
    %cst_114 = arith.constant 1.000000e+00 : f32
    %434 = vector.broadcast %cst_114 : f32 to vector<8x128xf32>
    %435 = arith.addf %434, %433 : vector<8x128xf32>
    %436 = arith.divf %434, %435 : vector<8x128xf32>
    %437 = arith.mulf %428, %338 : vector<8x128xf32>
    %438 = arith.mulf %422, %430 : vector<8x128xf32>
    %439 = arith.addf %437, %438 : vector<8x128xf32>
    %440 = math.tanh %439 : vector<8x128xf32>
    %441 = arith.mulf %436, %440 : vector<8x128xf32>
    %c0_115 = arith.constant 0 : index
    %c0_116 = arith.constant 0 : index
    %442 = vector.load %arg3[%c0_115, %c0_116] : memref<256x512xbf16, #tpu.memory_space<vmem>>, vector<256x512xbf16>
    %c0_117 = arith.constant 0 : index
    %c0_118 = arith.constant 0 : index
    %443 = vector.load %arg6[%c0_117, %c0_118] : memref<1x512xf32, #tpu.memory_space<vmem>>, vector<1x512xf32>
    %444 = arith.truncf %441 : vector<8x128xf32> to vector<8x128xbf16>
    %445 = arith.truncf %373 : vector<8x128xf32> to vector<8x128xbf16>
    %446 = tpu.concatenate %444, %445 in 1 : vector<8x128xbf16>, vector<8x128xbf16> -> vector<8x256xbf16>
    %cst_119 = arith.constant dense<0.000000e+00> : vector<8x512xf32>
    %447 = tpu.matmul %446, %442, %cst_119 {dimension_numbers = #tpu.dot_dimension_numbers<[1], [0], [0], [1], [0, 0, 1, 1], [], []>} : vector<8x256xbf16>, vector<256x512xbf16>, vector<8x512xf32> -> vector<8x512xf32>
    %448 = vector.broadcast %443 : vector<1x512xf32> to vector<8x512xf32>
    %449 = arith.addf %447, %448 : vector<8x512xf32>
    %450 = vector.extract_strided_slice %449 {offsets = [0, 0], sizes = [8, 128], strides = [1, 1]} : vector<8x512xf32> to vector<8x128xf32>
    %451 = arith.negf %450 : vector<8x128xf32>
    %452 = math.exp %451 : vector<8x128xf32>
    %cst_120 = arith.constant 1.000000e+00 : f32
    %453 = vector.broadcast %cst_120 : f32 to vector<8x128xf32>
    %454 = arith.addf %453, %452 : vector<8x128xf32>
    %455 = arith.divf %453, %454 : vector<8x128xf32>
    %456 = vector.extract_strided_slice %449 {offsets = [0, 128], sizes = [8, 128], strides = [1, 1]} : vector<8x512xf32> to vector<8x128xf32>
    %457 = arith.negf %456 : vector<8x128xf32>
    %458 = math.exp %457 : vector<8x128xf32>
    %cst_121 = arith.constant 1.000000e+00 : f32
    %459 = vector.broadcast %cst_121 : f32 to vector<8x128xf32>
    %460 = arith.addf %459, %458 : vector<8x128xf32>
    %461 = arith.divf %459, %460 : vector<8x128xf32>
    %462 = vector.extract_strided_slice %449 {offsets = [0, 256], sizes = [8, 128], strides = [1, 1]} : vector<8x512xf32> to vector<8x128xf32>
    %463 = math.tanh %462 : vector<8x128xf32>
    %464 = vector.extract_strided_slice %449 {offsets = [0, 384], sizes = [8, 128], strides = [1, 1]} : vector<8x512xf32> to vector<8x128xf32>
    %465 = arith.negf %464 : vector<8x128xf32>
    %466 = math.exp %465 : vector<8x128xf32>
    %cst_122 = arith.constant 1.000000e+00 : f32
    %467 = vector.broadcast %cst_122 : f32 to vector<8x128xf32>
    %468 = arith.addf %467, %466 : vector<8x128xf32>
    %469 = arith.divf %467, %468 : vector<8x128xf32>
    %470 = arith.mulf %461, %371 : vector<8x128xf32>
    %471 = arith.mulf %455, %463 : vector<8x128xf32>
    %472 = arith.addf %470, %471 : vector<8x128xf32>
    %473 = math.tanh %472 : vector<8x128xf32>
    %474 = arith.mulf %469, %473 : vector<8x128xf32>
    %c0_123 = arith.constant 0 : index
    %c0_124 = arith.constant 0 : index
    %475 = vector.load %arg4[%c0_123, %c0_124] : memref<256x512xbf16, #tpu.memory_space<vmem>>, vector<256x512xbf16>
    %c0_125 = arith.constant 0 : index
    %c0_126 = arith.constant 0 : index
    %476 = vector.load %arg7[%c0_125, %c0_126] : memref<1x512xf32, #tpu.memory_space<vmem>>, vector<1x512xf32>
    %477 = arith.truncf %474 : vector<8x128xf32> to vector<8x128xbf16>
    %478 = arith.truncf %406 : vector<8x128xf32> to vector<8x128xbf16>
    %479 = tpu.concatenate %477, %478 in 1 : vector<8x128xbf16>, vector<8x128xbf16> -> vector<8x256xbf16>
    %cst_127 = arith.constant dense<0.000000e+00> : vector<8x512xf32>
    %480 = tpu.matmul %479, %475, %cst_127 {dimension_numbers = #tpu.dot_dimension_numbers<[1], [0], [0], [1], [0, 0, 1, 1], [], []>} : vector<8x256xbf16>, vector<256x512xbf16>, vector<8x512xf32> -> vector<8x512xf32>
    %481 = vector.broadcast %476 : vector<1x512xf32> to vector<8x512xf32>
    %482 = arith.addf %480, %481 : vector<8x512xf32>
    %483 = vector.extract_strided_slice %482 {offsets = [0, 0], sizes = [8, 128], strides = [1, 1]} : vector<8x512xf32> to vector<8x128xf32>
    %484 = arith.negf %483 : vector<8x128xf32>
    %485 = math.exp %484 : vector<8x128xf32>
    %cst_128 = arith.constant 1.000000e+00 : f32
    %486 = vector.broadcast %cst_128 : f32 to vector<8x128xf32>
    %487 = arith.addf %486, %485 : vector<8x128xf32>
    %488 = arith.divf %486, %487 : vector<8x128xf32>
    %489 = vector.extract_strided_slice %482 {offsets = [0, 128], sizes = [8, 128], strides = [1, 1]} : vector<8x512xf32> to vector<8x128xf32>
    %490 = arith.negf %489 : vector<8x128xf32>
    %491 = math.exp %490 : vector<8x128xf32>
    %cst_129 = arith.constant 1.000000e+00 : f32
    %492 = vector.broadcast %cst_129 : f32 to vector<8x128xf32>
    %493 = arith.addf %492, %491 : vector<8x128xf32>
    %494 = arith.divf %492, %493 : vector<8x128xf32>
    %495 = vector.extract_strided_slice %482 {offsets = [0, 256], sizes = [8, 128], strides = [1, 1]} : vector<8x512xf32> to vector<8x128xf32>
    %496 = math.tanh %495 : vector<8x128xf32>
    %497 = vector.extract_strided_slice %482 {offsets = [0, 384], sizes = [8, 128], strides = [1, 1]} : vector<8x512xf32> to vector<8x128xf32>
    %498 = arith.negf %497 : vector<8x128xf32>
    %499 = math.exp %498 : vector<8x128xf32>
    %cst_130 = arith.constant 1.000000e+00 : f32
    %500 = vector.broadcast %cst_130 : f32 to vector<8x128xf32>
    %501 = arith.addf %500, %499 : vector<8x128xf32>
    %502 = arith.divf %500, %501 : vector<8x128xf32>
    %503 = arith.mulf %494, %404 : vector<8x128xf32>
    %504 = arith.mulf %488, %496 : vector<8x128xf32>
    %505 = arith.addf %503, %504 : vector<8x128xf32>
    %506 = math.tanh %505 : vector<8x128xf32>
    %507 = arith.mulf %502, %506 : vector<8x128xf32>
    %c5_i32 = arith.constant 5 : i32
    %508 = arith.index_cast %c5_i32 : i32 to index
    %c0_131 = arith.constant 0 : index
    %c0_132 = arith.constant 0 : index
    %509 = vector.load %arg1[%508, %c0_131, %c0_132] : memref<6x8x128xbf16, #tpu.memory_space<vmem>>, vector<1x8x128xbf16>
    %510 = vector.shape_cast %509 : vector<1x8x128xbf16> to vector<8x128xbf16>
    %c0_133 = arith.constant 0 : index
    %c0_134 = arith.constant 0 : index
    %511 = vector.load %arg2[%c0_133, %c0_134] : memref<256x512xbf16, #tpu.memory_space<vmem>>, vector<256x512xbf16>
    %c0_135 = arith.constant 0 : index
    %c0_136 = arith.constant 0 : index
    %512 = vector.load %arg5[%c0_135, %c0_136] : memref<1x512xf32, #tpu.memory_space<vmem>>, vector<1x512xf32>
    %513 = arith.truncf %441 : vector<8x128xf32> to vector<8x128xbf16>
    %514 = tpu.concatenate %510, %513 in 1 : vector<8x128xbf16>, vector<8x128xbf16> -> vector<8x256xbf16>
    %cst_137 = arith.constant dense<0.000000e+00> : vector<8x512xf32>
    %515 = tpu.matmul %514, %511, %cst_137 {dimension_numbers = #tpu.dot_dimension_numbers<[1], [0], [0], [1], [0, 0, 1, 1], [], []>} : vector<8x256xbf16>, vector<256x512xbf16>, vector<8x512xf32> -> vector<8x512xf32>
    %516 = vector.broadcast %512 : vector<1x512xf32> to vector<8x512xf32>
    %517 = arith.addf %515, %516 : vector<8x512xf32>
    %518 = vector.extract_strided_slice %517 {offsets = [0, 0], sizes = [8, 128], strides = [1, 1]} : vector<8x512xf32> to vector<8x128xf32>
    %519 = arith.negf %518 : vector<8x128xf32>
    %520 = math.exp %519 : vector<8x128xf32>
    %cst_138 = arith.constant 1.000000e+00 : f32
    %521 = vector.broadcast %cst_138 : f32 to vector<8x128xf32>
    %522 = arith.addf %521, %520 : vector<8x128xf32>
    %523 = arith.divf %521, %522 : vector<8x128xf32>
    %524 = vector.extract_strided_slice %517 {offsets = [0, 128], sizes = [8, 128], strides = [1, 1]} : vector<8x512xf32> to vector<8x128xf32>
    %525 = arith.negf %524 : vector<8x128xf32>
    %526 = math.exp %525 : vector<8x128xf32>
    %cst_139 = arith.constant 1.000000e+00 : f32
    %527 = vector.broadcast %cst_139 : f32 to vector<8x128xf32>
    %528 = arith.addf %527, %526 : vector<8x128xf32>
    %529 = arith.divf %527, %528 : vector<8x128xf32>
    %530 = vector.extract_strided_slice %517 {offsets = [0, 256], sizes = [8, 128], strides = [1, 1]} : vector<8x512xf32> to vector<8x128xf32>
    %531 = math.tanh %530 : vector<8x128xf32>
    %532 = vector.extract_strided_slice %517 {offsets = [0, 384], sizes = [8, 128], strides = [1, 1]} : vector<8x512xf32> to vector<8x128xf32>
    %533 = arith.negf %532 : vector<8x128xf32>
    %534 = math.exp %533 : vector<8x128xf32>
    %cst_140 = arith.constant 1.000000e+00 : f32
    %535 = vector.broadcast %cst_140 : f32 to vector<8x128xf32>
    %536 = arith.addf %535, %534 : vector<8x128xf32>
    %537 = arith.divf %535, %536 : vector<8x128xf32>
    %538 = arith.mulf %529, %439 : vector<8x128xf32>
    %539 = arith.mulf %523, %531 : vector<8x128xf32>
    %540 = arith.addf %538, %539 : vector<8x128xf32>
    %541 = math.tanh %540 : vector<8x128xf32>
    %542 = arith.mulf %537, %541 : vector<8x128xf32>
    %c0_141 = arith.constant 0 : index
    %c0_142 = arith.constant 0 : index
    %543 = vector.load %arg3[%c0_141, %c0_142] : memref<256x512xbf16, #tpu.memory_space<vmem>>, vector<256x512xbf16>
    %c0_143 = arith.constant 0 : index
    %c0_144 = arith.constant 0 : index
    %544 = vector.load %arg6[%c0_143, %c0_144] : memref<1x512xf32, #tpu.memory_space<vmem>>, vector<1x512xf32>
    %545 = arith.truncf %542 : vector<8x128xf32> to vector<8x128xbf16>
    %546 = arith.truncf %474 : vector<8x128xf32> to vector<8x128xbf16>
    %547 = tpu.concatenate %545, %546 in 1 : vector<8x128xbf16>, vector<8x128xbf16> -> vector<8x256xbf16>
    %cst_145 = arith.constant dense<0.000000e+00> : vector<8x512xf32>
    %548 = tpu.matmul %547, %543, %cst_145 {dimension_numbers = #tpu.dot_dimension_numbers<[1], [0], [0], [1], [0, 0, 1, 1], [], []>} : vector<8x256xbf16>, vector<256x512xbf16>, vector<8x512xf32> -> vector<8x512xf32>
    %549 = vector.broadcast %544 : vector<1x512xf32> to vector<8x512xf32>
    %550 = arith.addf %548, %549 : vector<8x512xf32>
    %551 = vector.extract_strided_slice %550 {offsets = [0, 0], sizes = [8, 128], strides = [1, 1]} : vector<8x512xf32> to vector<8x128xf32>
    %552 = arith.negf %551 : vector<8x128xf32>
    %553 = math.exp %552 : vector<8x128xf32>
    %cst_146 = arith.constant 1.000000e+00 : f32
    %554 = vector.broadcast %cst_146 : f32 to vector<8x128xf32>
    %555 = arith.addf %554, %553 : vector<8x128xf32>
    %556 = arith.divf %554, %555 : vector<8x128xf32>
    %557 = vector.extract_strided_slice %550 {offsets = [0, 128], sizes = [8, 128], strides = [1, 1]} : vector<8x512xf32> to vector<8x128xf32>
    %558 = arith.negf %557 : vector<8x128xf32>
    %559 = math.exp %558 : vector<8x128xf32>
    %cst_147 = arith.constant 1.000000e+00 : f32
    %560 = vector.broadcast %cst_147 : f32 to vector<8x128xf32>
    %561 = arith.addf %560, %559 : vector<8x128xf32>
    %562 = arith.divf %560, %561 : vector<8x128xf32>
    %563 = vector.extract_strided_slice %550 {offsets = [0, 256], sizes = [8, 128], strides = [1, 1]} : vector<8x512xf32> to vector<8x128xf32>
    %564 = math.tanh %563 : vector<8x128xf32>
    %565 = vector.extract_strided_slice %550 {offsets = [0, 384], sizes = [8, 128], strides = [1, 1]} : vector<8x512xf32> to vector<8x128xf32>
    %566 = arith.negf %565 : vector<8x128xf32>
    %567 = math.exp %566 : vector<8x128xf32>
    %cst_148 = arith.constant 1.000000e+00 : f32
    %568 = vector.broadcast %cst_148 : f32 to vector<8x128xf32>
    %569 = arith.addf %568, %567 : vector<8x128xf32>
    %570 = arith.divf %568, %569 : vector<8x128xf32>
    %571 = arith.mulf %562, %472 : vector<8x128xf32>
    %572 = arith.mulf %556, %564 : vector<8x128xf32>
    %573 = arith.addf %571, %572 : vector<8x128xf32>
    %574 = math.tanh %573 : vector<8x128xf32>
    %575 = arith.mulf %570, %574 : vector<8x128xf32>
    %c0_149 = arith.constant 0 : index
    %c0_150 = arith.constant 0 : index
    %576 = vector.load %arg4[%c0_149, %c0_150] : memref<256x512xbf16, #tpu.memory_space<vmem>>, vector<256x512xbf16>
    %c0_151 = arith.constant 0 : index
    %c0_152 = arith.constant 0 : index
    %577 = vector.load %arg7[%c0_151, %c0_152] : memref<1x512xf32, #tpu.memory_space<vmem>>, vector<1x512xf32>
    %578 = arith.truncf %575 : vector<8x128xf32> to vector<8x128xbf16>
    %579 = arith.truncf %507 : vector<8x128xf32> to vector<8x128xbf16>
    %580 = tpu.concatenate %578, %579 in 1 : vector<8x128xbf16>, vector<8x128xbf16> -> vector<8x256xbf16>
    %cst_153 = arith.constant dense<0.000000e+00> : vector<8x512xf32>
    %581 = tpu.matmul %580, %576, %cst_153 {dimension_numbers = #tpu.dot_dimension_numbers<[1], [0], [0], [1], [0, 0, 1, 1], [], []>} : vector<8x256xbf16>, vector<256x512xbf16>, vector<8x512xf32> -> vector<8x512xf32>
    %582 = vector.broadcast %577 : vector<1x512xf32> to vector<8x512xf32>
    %583 = arith.addf %581, %582 : vector<8x512xf32>
    %584 = vector.extract_strided_slice %583 {offsets = [0, 0], sizes = [8, 128], strides = [1, 1]} : vector<8x512xf32> to vector<8x128xf32>
    %585 = arith.negf %584 : vector<8x128xf32>
    %586 = math.exp %585 : vector<8x128xf32>
    %cst_154 = arith.constant 1.000000e+00 : f32
    %587 = vector.broadcast %cst_154 : f32 to vector<8x128xf32>
    %588 = arith.addf %587, %586 : vector<8x128xf32>
    %589 = arith.divf %587, %588 : vector<8x128xf32>
    %590 = vector.extract_strided_slice %583 {offsets = [0, 128], sizes = [8, 128], strides = [1, 1]} : vector<8x512xf32> to vector<8x128xf32>
    %591 = arith.negf %590 : vector<8x128xf32>
    %592 = math.exp %591 : vector<8x128xf32>
    %cst_155 = arith.constant 1.000000e+00 : f32
    %593 = vector.broadcast %cst_155 : f32 to vector<8x128xf32>
    %594 = arith.addf %593, %592 : vector<8x128xf32>
    %595 = arith.divf %593, %594 : vector<8x128xf32>
    %596 = vector.extract_strided_slice %583 {offsets = [0, 256], sizes = [8, 128], strides = [1, 1]} : vector<8x512xf32> to vector<8x128xf32>
    %597 = math.tanh %596 : vector<8x128xf32>
    %598 = vector.extract_strided_slice %583 {offsets = [0, 384], sizes = [8, 128], strides = [1, 1]} : vector<8x512xf32> to vector<8x128xf32>
    %599 = arith.negf %598 : vector<8x128xf32>
    %600 = math.exp %599 : vector<8x128xf32>
    %cst_156 = arith.constant 1.000000e+00 : f32
    %601 = vector.broadcast %cst_156 : f32 to vector<8x128xf32>
    %602 = arith.addf %601, %600 : vector<8x128xf32>
    %603 = arith.divf %601, %602 : vector<8x128xf32>
    %604 = arith.mulf %595, %505 : vector<8x128xf32>
    %605 = arith.mulf %589, %597 : vector<8x128xf32>
    %606 = arith.addf %604, %605 : vector<8x128xf32>
    %607 = math.tanh %606 : vector<8x128xf32>
    %608 = arith.mulf %603, %607 : vector<8x128xf32>
    %c6_i32 = arith.constant 6 : i32
    %cst_157 = arith.constant 0.000000e+00 : f32
    %609 = vector.broadcast %cst_157 : f32 to vector<8x256xf32>
    %c0_158 = arith.constant 0 : index
    %c0_159 = arith.constant 0 : index
    %c0_160 = arith.constant 0 : index
    %610 = vector.load %arg18[%c0_158, %c0_159, %c0_160] : memref<5x8x256xf32, #tpu.memory_space<vmem>>, vector<1x8x256xf32>
    %611 = vector.shape_cast %610 : vector<1x8x256xf32> to vector<8x256xf32>
    %612 = vector.shape_cast %609 : vector<8x256xf32> to vector<1x8x256xf32>
    tpu.vector_store %arg18[%c0_158, %c0_159, %c0_160], %612 {strides = array<i32>} : memref<5x8x256xf32, #tpu.memory_space<vmem>>, vector<1x8x256xf32>,
    %613 = tpu.iota {dimensions = array<i32: 1>} : vector<8x256xi32>
    %c0_161 = arith.constant 0 : index
    %c0_162 = arith.constant 0 : index
    %c0_163 = arith.constant 0 : index
    %614 = vector.load %arg15[%c0_161, %c0_162, %c0_163] : memref<5x8x512xbf16, #tpu.memory_space<vmem>>, vector<1x8x512xbf16>
    %615 = vector.shape_cast %614 : vector<1x8x512xbf16> to vector<8x512xbf16>
    %616 = arith.extf %615 : vector<8x512xbf16> to vector<8x512xf32>
    %c0_i32_164 = arith.constant 0 : i32
    %617 = arith.truncf %542 : vector<8x128xf32> to vector<8x128xbf16>
    %c0_165 = arith.constant 0 : index
    %c0_166 = arith.constant 0 : index
    %618 = vector.load %arg8[%c0_165, %c0_166] : memref<128x512xbf16, #tpu.memory_space<vmem>>, vector<128x512xbf16>
    %cst_167 = arith.constant dense<0.000000e+00> : vector<8x512xf32>
    %619 = tpu.matmul %617, %618, %cst_167 {dimension_numbers = #tpu.dot_dimension_numbers<[1], [0], [0], [1], [0, 0, 1, 1], [], []>} : vector<8x128xbf16>, vector<128x512xbf16>, vector<8x512xf32> -> vector<8x512xf32>
    %620 = arith.addf %616, %619 : vector<8x512xf32>
    %c0_168 = arith.constant 0 : index
    %c0_169 = arith.constant 0 : index
    %621 = vector.load %arg12[%c0_168, %c0_169] : memref<1x512xf32, #tpu.memory_space<vmem>>, vector<1x512xf32>
    %622 = vector.broadcast %621 : vector<1x512xf32> to vector<8x512xf32>
    %623 = arith.addf %620, %622 : vector<8x512xf32>
    %624 = vector.extract_strided_slice %623 {offsets = [0, 0], sizes = [8, 128], strides = [1, 1]} : vector<8x512xf32> to vector<8x128xf32>
    %625 = arith.negf %624 : vector<8x128xf32>
    %626 = math.exp %625 : vector<8x128xf32>
    %cst_170 = arith.constant 1.000000e+00 : f32
    %627 = vector.broadcast %cst_170 : f32 to vector<8x128xf32>
    %628 = arith.addf %627, %626 : vector<8x128xf32>
    %629 = arith.divf %627, %628 : vector<8x128xf32>
    %630 = vector.extract_strided_slice %623 {offsets = [0, 128], sizes = [8, 128], strides = [1, 1]} : vector<8x512xf32> to vector<8x128xf32>
    %631 = arith.negf %630 : vector<8x128xf32>
    %632 = math.exp %631 : vector<8x128xf32>
    %cst_171 = arith.constant 1.000000e+00 : f32
    %633 = vector.broadcast %cst_171 : f32 to vector<8x128xf32>
    %634 = arith.addf %633, %632 : vector<8x128xf32>
    %635 = arith.divf %633, %634 : vector<8x128xf32>
    %636 = vector.extract_strided_slice %623 {offsets = [0, 256], sizes = [8, 128], strides = [1, 1]} : vector<8x512xf32> to vector<8x128xf32>
    %637 = math.tanh %636 : vector<8x128xf32>
    %638 = vector.extract_strided_slice %623 {offsets = [0, 384], sizes = [8, 128], strides = [1, 1]} : vector<8x512xf32> to vector<8x128xf32>
    %639 = arith.negf %638 : vector<8x128xf32>
    %640 = math.exp %639 : vector<8x128xf32>
    %cst_172 = arith.constant 1.000000e+00 : f32
    %641 = vector.broadcast %cst_172 : f32 to vector<8x128xf32>
    %642 = arith.addf %641, %640 : vector<8x128xf32>
    %643 = arith.divf %641, %642 : vector<8x128xf32>
    %644 = arith.mulf %635, %540 : vector<8x128xf32>
    %645 = arith.mulf %629, %637 : vector<8x128xf32>
    %646 = arith.addf %644, %645 : vector<8x128xf32>
    %647 = math.tanh %646 : vector<8x128xf32>
    %648 = arith.mulf %643, %647 : vector<8x128xf32>
    %c0_173 = arith.constant 0 : index
    %c0_174 = arith.constant 0 : index
    %649 = vector.load %arg10[%c0_173, %c0_174] : memref<256x512xbf16, #tpu.memory_space<vmem>>, vector<256x512xbf16>
    %c0_175 = arith.constant 0 : index
    %c0_176 = arith.constant 0 : index
    %650 = vector.load %arg13[%c0_175, %c0_176] : memref<1x512xf32, #tpu.memory_space<vmem>>, vector<1x512xf32>
    %651 = arith.truncf %648 : vector<8x128xf32> to vector<8x128xbf16>
    %652 = arith.truncf %575 : vector<8x128xf32> to vector<8x128xbf16>
    %653 = tpu.concatenate %651, %652 in 1 : vector<8x128xbf16>, vector<8x128xbf16> -> vector<8x256xbf16>
    %cst_177 = arith.constant dense<0.000000e+00> : vector<8x512xf32>
    %654 = tpu.matmul %653, %649, %cst_177 {dimension_numbers = #tpu.dot_dimension_numbers<[1], [0], [0], [1], [0, 0, 1, 1], [], []>} : vector<8x256xbf16>, vector<256x512xbf16>, vector<8x512xf32> -> vector<8x512xf32>
    %655 = vector.broadcast %650 : vector<1x512xf32> to vector<8x512xf32>
    %656 = arith.addf %654, %655 : vector<8x512xf32>
    %657 = vector.extract_strided_slice %656 {offsets = [0, 0], sizes = [8, 128], strides = [1, 1]} : vector<8x512xf32> to vector<8x128xf32>
    %658 = arith.negf %657 : vector<8x128xf32>
    %659 = math.exp %658 : vector<8x128xf32>
    %cst_178 = arith.constant 1.000000e+00 : f32
    %660 = vector.broadcast %cst_178 : f32 to vector<8x128xf32>
    %661 = arith.addf %660, %659 : vector<8x128xf32>
    %662 = arith.divf %660, %661 : vector<8x128xf32>
    %663 = vector.extract_strided_slice %656 {offsets = [0, 128], sizes = [8, 128], strides = [1, 1]} : vector<8x512xf32> to vector<8x128xf32>
    %664 = arith.negf %663 : vector<8x128xf32>
    %665 = math.exp %664 : vector<8x128xf32>
    %cst_179 = arith.constant 1.000000e+00 : f32
    %666 = vector.broadcast %cst_179 : f32 to vector<8x128xf32>
    %667 = arith.addf %666, %665 : vector<8x128xf32>
    %668 = arith.divf %666, %667 : vector<8x128xf32>
    %669 = vector.extract_strided_slice %656 {offsets = [0, 256], sizes = [8, 128], strides = [1, 1]} : vector<8x512xf32> to vector<8x128xf32>
    %670 = math.tanh %669 : vector<8x128xf32>
    %671 = vector.extract_strided_slice %656 {offsets = [0, 384], sizes = [8, 128], strides = [1, 1]} : vector<8x512xf32> to vector<8x128xf32>
    %672 = arith.negf %671 : vector<8x128xf32>
    %673 = math.exp %672 : vector<8x128xf32>
    %cst_180 = arith.constant 1.000000e+00 : f32
    %674 = vector.broadcast %cst_180 : f32 to vector<8x128xf32>
    %675 = arith.addf %674, %673 : vector<8x128xf32>
    %676 = arith.divf %674, %675 : vector<8x128xf32>
    %677 = arith.mulf %668, %573 : vector<8x128xf32>
    %678 = arith.mulf %662, %670 : vector<8x128xf32>
    %679 = arith.addf %677, %678 : vector<8x128xf32>
    %680 = math.tanh %679 : vector<8x128xf32>
    %681 = arith.mulf %676, %680 : vector<8x128xf32>
    %c0_181 = arith.constant 0 : index
    %c0_182 = arith.constant 0 : index
    %682 = vector.load %arg11[%c0_181, %c0_182] : memref<256x512xbf16, #tpu.memory_space<vmem>>, vector<256x512xbf16>
    %c0_183 = arith.constant 0 : index
    %c0_184 = arith.constant 0 : index
    %683 = vector.load %arg14[%c0_183, %c0_184] : memref<1x512xf32, #tpu.memory_space<vmem>>, vector<1x512xf32>
    %684 = arith.truncf %681 : vector<8x128xf32> to vector<8x128xbf16>
    %685 = arith.truncf %608 : vector<8x128xf32> to vector<8x128xbf16>
    %686 = tpu.concatenate %684, %685 in 1 : vector<8x128xbf16>, vector<8x128xbf16> -> vector<8x256xbf16>
    %cst_185 = arith.constant dense<0.000000e+00> : vector<8x512xf32>
    %687 = tpu.matmul %686, %682, %cst_185 {dimension_numbers = #tpu.dot_dimension_numbers<[1], [0], [0], [1], [0, 0, 1, 1], [], []>} : vector<8x256xbf16>, vector<256x512xbf16>, vector<8x512xf32> -> vector<8x512xf32>
    %688 = vector.broadcast %683 : vector<1x512xf32> to vector<8x512xf32>
    %689 = arith.addf %687, %688 : vector<8x512xf32>
    %690 = vector.extract_strided_slice %689 {offsets = [0, 0], sizes = [8, 128], strides = [1, 1]} : vector<8x512xf32> to vector<8x128xf32>
    %691 = arith.negf %690 : vector<8x128xf32>
    %692 = math.exp %691 : vector<8x128xf32>
    %cst_186 = arith.constant 1.000000e+00 : f32
    %693 = vector.broadcast %cst_186 : f32 to vector<8x128xf32>
    %694 = arith.addf %693, %692 : vector<8x128xf32>
    %695 = arith.divf %693, %694 : vector<8x128xf32>
    %696 = vector.extract_strided_slice %689 {offsets = [0, 128], sizes = [8, 128], strides = [1, 1]} : vector<8x512xf32> to vector<8x128xf32>
    %697 = arith.negf %696 : vector<8x128xf32>
    %698 = math.exp %697 : vector<8x128xf32>
    %cst_187 = arith.constant 1.000000e+00 : f32
    %699 = vector.broadcast %cst_187 : f32 to vector<8x128xf32>
    %700 = arith.addf %699, %698 : vector<8x128xf32>
    %701 = arith.divf %699, %700 : vector<8x128xf32>
    %702 = vector.extract_strided_slice %689 {offsets = [0, 256], sizes = [8, 128], strides = [1, 1]} : vector<8x512xf32> to vector<8x128xf32>
    %703 = math.tanh %702 : vector<8x128xf32>
    %704 = vector.extract_strided_slice %689 {offsets = [0, 384], sizes = [8, 128], strides = [1, 1]} : vector<8x512xf32> to vector<8x128xf32>
    %705 = arith.negf %704 : vector<8x128xf32>
    %706 = math.exp %705 : vector<8x128xf32>
    %cst_188 = arith.constant 1.000000e+00 : f32
    %707 = vector.broadcast %cst_188 : f32 to vector<8x128xf32>
    %708 = arith.addf %707, %706 : vector<8x128xf32>
    %709 = arith.divf %707, %708 : vector<8x128xf32>
    %710 = arith.mulf %701, %606 : vector<8x128xf32>
    %711 = arith.mulf %695, %703 : vector<8x128xf32>
    %712 = arith.addf %710, %711 : vector<8x128xf32>
    %713 = math.tanh %712 : vector<8x128xf32>
    %714 = arith.mulf %709, %713 : vector<8x128xf32>
    %715 = arith.truncf %714 : vector<8x128xf32> to vector<8x128xbf16>
    %c0_189 = arith.constant 0 : index
    %c0_190 = arith.constant 0 : index
    %716 = vector.load %arg16[%c0_189, %c0_190] : memref<128x256xbf16, #tpu.memory_space<vmem>>, vector<128x256xbf16>
    %cst_191 = arith.constant dense<0.000000e+00> : vector<8x256xf32>
    %717 = tpu.matmul %715, %716, %cst_191 {dimension_numbers = #tpu.dot_dimension_numbers<[1], [0], [0], [1], [0, 0, 1, 1], [], []>} : vector<8x128xbf16>, vector<128x256xbf16>, vector<8x256xf32> -> vector<8x256xf32>
    %c0_192 = arith.constant 0 : index
    %c0_193 = arith.constant 0 : index
    %718 = vector.load %arg17[%c0_192, %c0_193] : memref<1x256xf32, #tpu.memory_space<vmem>>, vector<1x256xf32>
    %719 = vector.broadcast %718 : vector<1x256xf32> to vector<8x256xf32>
    %720 = arith.addf %717, %719 : vector<8x256xf32>
    %c1_i32_194 = arith.constant 1 : i32
    %721 = arith.addi %c0_i32_164, %c1_i32_194 : i32
    %722 = arith.index_cast %721 : i32 to index
    %c0_195 = arith.constant 0 : index
    %c0_196 = arith.constant 0 : index
    %723 = vector.load %arg18[%722, %c0_195, %c0_196] : memref<5x8x256xf32, #tpu.memory_space<vmem>>, vector<1x8x256xf32>
    %724 = vector.shape_cast %723 : vector<1x8x256xf32> to vector<8x256xf32>
    %725 = vector.shape_cast %720 : vector<8x256xf32> to vector<1x8x256xf32>
    tpu.vector_store %arg18[%722, %c0_195, %c0_196], %725 {strides = array<i32>} : memref<5x8x256xf32, #tpu.memory_space<vmem>>, vector<1x8x256xf32>,
    %cst_197 = arith.constant dense<0xFF800000> : vector<8xf32>
    %726 = vector.multi_reduction <maximumf>, %720, %cst_197 [1] : vector<8x256xf32> to vector<8xf32>
    %727 = vector.shape_cast %726 : vector<8xf32> to vector<8x1xf32>
    %728 = vector.broadcast %727 : vector<8x1xf32> to vector<8x256xf32>
    %729 = arith.cmpf oeq, %720, %728 : vector<8x256xf32>
    %c256_i32 = arith.constant 256 : i32
    %730 = vector.broadcast %c256_i32 : i32 to vector<8x256xi32>
    %731 = arith.select %729, %613, %730 : vector<8x256xi1>, vector<8x256xi32>
    %cst_198 = arith.constant dense<2147483647> : vector<8xi32>
    %732 = vector.multi_reduction <minsi>, %731, %cst_198 [1] : vector<8x256xi32> to vector<8xi32>
    %733 = vector.shape_cast %732 : vector<8xi32> to vector<8x1xi32>
    %734 = vector.broadcast %733 : vector<8x1xi32> to vector<8x256xi32>
    %735 = arith.cmpi eq, %613, %734 : vector<8x256xi32>
    %736 = arith.extui %735 : vector<8x256xi1> to vector<8x256xi32>
    %737 = arith.sitofp %736 : vector<8x256xi32> to vector<8x256xf32>
    %738 = arith.truncf %737 : vector<8x256xf32> to vector<8x256xbf16>
    %c0_199 = arith.constant 0 : index
    %c0_200 = arith.constant 0 : index
    %739 = vector.load %arg9[%c0_199, %c0_200] : memref<256x512xbf16, #tpu.memory_space<vmem>>, vector<256x512xbf16>
    %cst_201 = arith.constant dense<0.000000e+00> : vector<8x512xf32>
    %740 = tpu.matmul %738, %739, %cst_201 {dimension_numbers = #tpu.dot_dimension_numbers<[1], [0], [0], [1], [0, 0, 1, 1], [], []>} : vector<8x256xbf16>, vector<256x512xbf16>, vector<8x512xf32> -> vector<8x512xf32>
    %c1_i32_202 = arith.constant 1 : i32
    %741 = arith.addi %c0_i32_164, %c1_i32_202 : i32
    %742 = arith.index_cast %741 : i32 to index
    %c0_203 = arith.constant 0 : index
    %c0_204 = arith.constant 0 : index
    %743 = vector.load %arg15[%742, %c0_203, %c0_204] : memref<5x8x512xbf16, #tpu.memory_space<vmem>>, vector<1x8x512xbf16>
    %744 = vector.shape_cast %743 : vector<1x8x512xbf16> to vector<8x512xbf16>
    %745 = arith.extf %744 : vector<8x512xbf16> to vector<8x512xf32>
    %c1_i32_205 = arith.constant 1 : i32
    %746 = arith.addi %c0_i32_164, %c1_i32_205 : i32
    %747 = arith.index_cast %746 : i32 to index
    %748 = memref.load %arg0[%747] : memref<5xi32, #tpu.memory_space<smem>>
    %c0_i32_206 = arith.constant 0 : i32
    %749 = arith.cmpi ne, %748, %c0_i32_206 : i32
    %750 = arith.select %749, %745, %740 : vector<8x512xf32>
    %c1_i32_207 = arith.constant 1 : i32
    %751 = arith.truncf %648 : vector<8x128xf32> to vector<8x128xbf16>
    %c0_208 = arith.constant 0 : index
    %c0_209 = arith.constant 0 : index
    %752 = vector.load %arg8[%c0_208, %c0_209] : memref<128x512xbf16, #tpu.memory_space<vmem>>, vector<128x512xbf16>
    %cst_210 = arith.constant dense<0.000000e+00> : vector<8x512xf32>
    %753 = tpu.matmul %751, %752, %cst_210 {dimension_numbers = #tpu.dot_dimension_numbers<[1], [0], [0], [1], [0, 0, 1, 1], [], []>} : vector<8x128xbf16>, vector<128x512xbf16>, vector<8x512xf32> -> vector<8x512xf32>
    %754 = arith.addf %750, %753 : vector<8x512xf32>
    %c0_211 = arith.constant 0 : index
    %c0_212 = arith.constant 0 : index
    %755 = vector.load %arg12[%c0_211, %c0_212] : memref<1x512xf32, #tpu.memory_space<vmem>>, vector<1x512xf32>
    %756 = vector.broadcast %755 : vector<1x512xf32> to vector<8x512xf32>
    %757 = arith.addf %754, %756 : vector<8x512xf32>
    %758 = vector.extract_strided_slice %757 {offsets = [0, 0], sizes = [8, 128], strides = [1, 1]} : vector<8x512xf32> to vector<8x128xf32>
    %759 = arith.negf %758 : vector<8x128xf32>
    %760 = math.exp %759 : vector<8x128xf32>
    %cst_213 = arith.constant 1.000000e+00 : f32
    %761 = vector.broadcast %cst_213 : f32 to vector<8x128xf32>
    %762 = arith.addf %761, %760 : vector<8x128xf32>
    %763 = arith.divf %761, %762 : vector<8x128xf32>
    %764 = vector.extract_strided_slice %757 {offsets = [0, 128], sizes = [8, 128], strides = [1, 1]} : vector<8x512xf32> to vector<8x128xf32>
    %765 = arith.negf %764 : vector<8x128xf32>
    %766 = math.exp %765 : vector<8x128xf32>
    %cst_214 = arith.constant 1.000000e+00 : f32
    %767 = vector.broadcast %cst_214 : f32 to vector<8x128xf32>
    %768 = arith.addf %767, %766 : vector<8x128xf32>
    %769 = arith.divf %767, %768 : vector<8x128xf32>
    %770 = vector.extract_strided_slice %757 {offsets = [0, 256], sizes = [8, 128], strides = [1, 1]} : vector<8x512xf32> to vector<8x128xf32>
    %771 = math.tanh %770 : vector<8x128xf32>
    %772 = vector.extract_strided_slice %757 {offsets = [0, 384], sizes = [8, 128], strides = [1, 1]} : vector<8x512xf32> to vector<8x128xf32>
    %773 = arith.negf %772 : vector<8x128xf32>
    %774 = math.exp %773 : vector<8x128xf32>
    %cst_215 = arith.constant 1.000000e+00 : f32
    %775 = vector.broadcast %cst_215 : f32 to vector<8x128xf32>
    %776 = arith.addf %775, %774 : vector<8x128xf32>
    %777 = arith.divf %775, %776 : vector<8x128xf32>
    %778 = arith.mulf %769, %646 : vector<8x128xf32>
    %779 = arith.mulf %763, %771 : vector<8x128xf32>
    %780 = arith.addf %778, %779 : vector<8x128xf32>
    %781 = math.tanh %780 : vector<8x128xf32>
    %782 = arith.mulf %777, %781 : vector<8x128xf32>
    %c0_216 = arith.constant 0 : index
    %c0_217 = arith.constant 0 : index
    %783 = vector.load %arg10[%c0_216, %c0_217] : memref<256x512xbf16, #tpu.memory_space<vmem>>, vector<256x512xbf16>
    %c0_218 = arith.constant 0 : index
    %c0_219 = arith.constant 0 : index
    %784 = vector.load %arg13[%c0_218, %c0_219] : memref<1x512xf32, #tpu.memory_space<vmem>>, vector<1x512xf32>
    %785 = arith.truncf %782 : vector<8x128xf32> to vector<8x128xbf16>
    %786 = arith.truncf %681 : vector<8x128xf32> to vector<8x128xbf16>
    %787 = tpu.concatenate %785, %786 in 1 : vector<8x128xbf16>, vector<8x128xbf16> -> vector<8x256xbf16>
    %cst_220 = arith.constant dense<0.000000e+00> : vector<8x512xf32>
    %788 = tpu.matmul %787, %783, %cst_220 {dimension_numbers = #tpu.dot_dimension_numbers<[1], [0], [0], [1], [0, 0, 1, 1], [], []>} : vector<8x256xbf16>, vector<256x512xbf16>, vector<8x512xf32> -> vector<8x512xf32>
    %789 = vector.broadcast %784 : vector<1x512xf32> to vector<8x512xf32>
    %790 = arith.addf %788, %789 : vector<8x512xf32>
    %791 = vector.extract_strided_slice %790 {offsets = [0, 0], sizes = [8, 128], strides = [1, 1]} : vector<8x512xf32> to vector<8x128xf32>
    %792 = arith.negf %791 : vector<8x128xf32>
    %793 = math.exp %792 : vector<8x128xf32>
    %cst_221 = arith.constant 1.000000e+00 : f32
    %794 = vector.broadcast %cst_221 : f32 to vector<8x128xf32>
    %795 = arith.addf %794, %793 : vector<8x128xf32>
    %796 = arith.divf %794, %795 : vector<8x128xf32>
    %797 = vector.extract_strided_slice %790 {offsets = [0, 128], sizes = [8, 128], strides = [1, 1]} : vector<8x512xf32> to vector<8x128xf32>
    %798 = arith.negf %797 : vector<8x128xf32>
    %799 = math.exp %798 : vector<8x128xf32>
    %cst_222 = arith.constant 1.000000e+00 : f32
    %800 = vector.broadcast %cst_222 : f32 to vector<8x128xf32>
    %801 = arith.addf %800, %799 : vector<8x128xf32>
    %802 = arith.divf %800, %801 : vector<8x128xf32>
    %803 = vector.extract_strided_slice %790 {offsets = [0, 256], sizes = [8, 128], strides = [1, 1]} : vector<8x512xf32> to vector<8x128xf32>
    %804 = math.tanh %803 : vector<8x128xf32>
    %805 = vector.extract_strided_slice %790 {offsets = [0, 384], sizes = [8, 128], strides = [1, 1]} : vector<8x512xf32> to vector<8x128xf32>
    %806 = arith.negf %805 : vector<8x128xf32>
    %807 = math.exp %806 : vector<8x128xf32>
    %cst_223 = arith.constant 1.000000e+00 : f32
    %808 = vector.broadcast %cst_223 : f32 to vector<8x128xf32>
    %809 = arith.addf %808, %807 : vector<8x128xf32>
    %810 = arith.divf %808, %809 : vector<8x128xf32>
    %811 = arith.mulf %802, %679 : vector<8x128xf32>
    %812 = arith.mulf %796, %804 : vector<8x128xf32>
    %813 = arith.addf %811, %812 : vector<8x128xf32>
    %814 = math.tanh %813 : vector<8x128xf32>
    %815 = arith.mulf %810, %814 : vector<8x128xf32>
    %c0_224 = arith.constant 0 : index
    %c0_225 = arith.constant 0 : index
    %816 = vector.load %arg11[%c0_224, %c0_225] : memref<256x512xbf16, #tpu.memory_space<vmem>>, vector<256x512xbf16>
    %c0_226 = arith.constant 0 : index
    %c0_227 = arith.constant 0 : index
    %817 = vector.load %arg14[%c0_226, %c0_227] : memref<1x512xf32, #tpu.memory_space<vmem>>, vector<1x512xf32>
    %818 = arith.truncf %815 : vector<8x128xf32> to vector<8x128xbf16>
    %819 = arith.truncf %714 : vector<8x128xf32> to vector<8x128xbf16>
    %820 = tpu.concatenate %818, %819 in 1 : vector<8x128xbf16>, vector<8x128xbf16> -> vector<8x256xbf16>
    %cst_228 = arith.constant dense<0.000000e+00> : vector<8x512xf32>
    %821 = tpu.matmul %820, %816, %cst_228 {dimension_numbers = #tpu.dot_dimension_numbers<[1], [0], [0], [1], [0, 0, 1, 1], [], []>} : vector<8x256xbf16>, vector<256x512xbf16>, vector<8x512xf32> -> vector<8x512xf32>
    %822 = vector.broadcast %817 : vector<1x512xf32> to vector<8x512xf32>
    %823 = arith.addf %821, %822 : vector<8x512xf32>
    %824 = vector.extract_strided_slice %823 {offsets = [0, 0], sizes = [8, 128], strides = [1, 1]} : vector<8x512xf32> to vector<8x128xf32>
    %825 = arith.negf %824 : vector<8x128xf32>
    %826 = math.exp %825 : vector<8x128xf32>
    %cst_229 = arith.constant 1.000000e+00 : f32
    %827 = vector.broadcast %cst_229 : f32 to vector<8x128xf32>
    %828 = arith.addf %827, %826 : vector<8x128xf32>
    %829 = arith.divf %827, %828 : vector<8x128xf32>
    %830 = vector.extract_strided_slice %823 {offsets = [0, 128], sizes = [8, 128], strides = [1, 1]} : vector<8x512xf32> to vector<8x128xf32>
    %831 = arith.negf %830 : vector<8x128xf32>
    %832 = math.exp %831 : vector<8x128xf32>
    %cst_230 = arith.constant 1.000000e+00 : f32
    %833 = vector.broadcast %cst_230 : f32 to vector<8x128xf32>
    %834 = arith.addf %833, %832 : vector<8x128xf32>
    %835 = arith.divf %833, %834 : vector<8x128xf32>
    %836 = vector.extract_strided_slice %823 {offsets = [0, 256], sizes = [8, 128], strides = [1, 1]} : vector<8x512xf32> to vector<8x128xf32>
    %837 = math.tanh %836 : vector<8x128xf32>
    %838 = vector.extract_strided_slice %823 {offsets = [0, 384], sizes = [8, 128], strides = [1, 1]} : vector<8x512xf32> to vector<8x128xf32>
    %839 = arith.negf %838 : vector<8x128xf32>
    %840 = math.exp %839 : vector<8x128xf32>
    %cst_231 = arith.constant 1.000000e+00 : f32
    %841 = vector.broadcast %cst_231 : f32 to vector<8x128xf32>
    %842 = arith.addf %841, %840 : vector<8x128xf32>
    %843 = arith.divf %841, %842 : vector<8x128xf32>
    %844 = arith.mulf %835, %712 : vector<8x128xf32>
    %845 = arith.mulf %829, %837 : vector<8x128xf32>
    %846 = arith.addf %844, %845 : vector<8x128xf32>
    %847 = math.tanh %846 : vector<8x128xf32>
    %848 = arith.mulf %843, %847 : vector<8x128xf32>
    %849 = arith.truncf %848 : vector<8x128xf32> to vector<8x128xbf16>
    %c0_232 = arith.constant 0 : index
    %c0_233 = arith.constant 0 : index
    %850 = vector.load %arg16[%c0_232, %c0_233] : memref<128x256xbf16, #tpu.memory_space<vmem>>, vector<128x256xbf16>
    %cst_234 = arith.constant dense<0.000000e+00> : vector<8x256xf32>
    %851 = tpu.matmul %849, %850, %cst_234 {dimension_numbers = #tpu.dot_dimension_numbers<[1], [0], [0], [1], [0, 0, 1, 1], [], []>} : vector<8x128xbf16>, vector<128x256xbf16>, vector<8x256xf32> -> vector<8x256xf32>
    %c0_235 = arith.constant 0 : index
    %c0_236 = arith.constant 0 : index
    %852 = vector.load %arg17[%c0_235, %c0_236] : memref<1x256xf32, #tpu.memory_space<vmem>>, vector<1x256xf32>
    %853 = vector.broadcast %852 : vector<1x256xf32> to vector<8x256xf32>
    %854 = arith.addf %851, %853 : vector<8x256xf32>
    %c1_i32_237 = arith.constant 1 : i32
    %855 = arith.addi %c1_i32_207, %c1_i32_237 : i32
    %856 = arith.index_cast %855 : i32 to index
    %c0_238 = arith.constant 0 : index
    %c0_239 = arith.constant 0 : index
    %857 = vector.load %arg18[%856, %c0_238, %c0_239] : memref<5x8x256xf32, #tpu.memory_space<vmem>>, vector<1x8x256xf32>
    %858 = vector.shape_cast %857 : vector<1x8x256xf32> to vector<8x256xf32>
    %859 = vector.shape_cast %854 : vector<8x256xf32> to vector<1x8x256xf32>
    tpu.vector_store %arg18[%856, %c0_238, %c0_239], %859 {strides = array<i32>} : memref<5x8x256xf32, #tpu.memory_space<vmem>>, vector<1x8x256xf32>,
    %cst_240 = arith.constant dense<0xFF800000> : vector<8xf32>
    %860 = vector.multi_reduction <maximumf>, %854, %cst_240 [1] : vector<8x256xf32> to vector<8xf32>
    %861 = vector.shape_cast %860 : vector<8xf32> to vector<8x1xf32>
    %862 = vector.broadcast %861 : vector<8x1xf32> to vector<8x256xf32>
    %863 = arith.cmpf oeq, %854, %862 : vector<8x256xf32>
    %c256_i32_241 = arith.constant 256 : i32
    %864 = vector.broadcast %c256_i32_241 : i32 to vector<8x256xi32>
    %865 = arith.select %863, %613, %864 : vector<8x256xi1>, vector<8x256xi32>
    %cst_242 = arith.constant dense<2147483647> : vector<8xi32>
    %866 = vector.multi_reduction <minsi>, %865, %cst_242 [1] : vector<8x256xi32> to vector<8xi32>
    %867 = vector.shape_cast %866 : vector<8xi32> to vector<8x1xi32>
    %868 = vector.broadcast %867 : vector<8x1xi32> to vector<8x256xi32>
    %869 = arith.cmpi eq, %613, %868 : vector<8x256xi32>
    %870 = arith.extui %869 : vector<8x256xi1> to vector<8x256xi32>
    %871 = arith.sitofp %870 : vector<8x256xi32> to vector<8x256xf32>
    %872 = arith.truncf %871 : vector<8x256xf32> to vector<8x256xbf16>
    %c0_243 = arith.constant 0 : index
    %c0_244 = arith.constant 0 : index
    %873 = vector.load %arg9[%c0_243, %c0_244] : memref<256x512xbf16, #tpu.memory_space<vmem>>, vector<256x512xbf16>
    %cst_245 = arith.constant dense<0.000000e+00> : vector<8x512xf32>
    %874 = tpu.matmul %872, %873, %cst_245 {dimension_numbers = #tpu.dot_dimension_numbers<[1], [0], [0], [1], [0, 0, 1, 1], [], []>} : vector<8x256xbf16>, vector<256x512xbf16>, vector<8x512xf32> -> vector<8x512xf32>
    %c1_i32_246 = arith.constant 1 : i32
    %875 = arith.addi %c1_i32_207, %c1_i32_246 : i32
    %876 = arith.index_cast %875 : i32 to index
    %c0_247 = arith.constant 0 : index
    %c0_248 = arith.constant 0 : index
    %877 = vector.load %arg15[%876, %c0_247, %c0_248] : memref<5x8x512xbf16, #tpu.memory_space<vmem>>, vector<1x8x512xbf16>
    %878 = vector.shape_cast %877 : vector<1x8x512xbf16> to vector<8x512xbf16>
    %879 = arith.extf %878 : vector<8x512xbf16> to vector<8x512xf32>
    %c1_i32_249 = arith.constant 1 : i32
    %880 = arith.addi %c1_i32_207, %c1_i32_249 : i32
    %881 = arith.index_cast %880 : i32 to index
    %882 = memref.load %arg0[%881] : memref<5xi32, #tpu.memory_space<smem>>
    %c0_i32_250 = arith.constant 0 : i32
    %883 = arith.cmpi ne, %882, %c0_i32_250 : i32
    %884 = arith.select %883, %879, %874 : vector<8x512xf32>
    %c2_i32_251 = arith.constant 2 : i32
    %885 = arith.truncf %782 : vector<8x128xf32> to vector<8x128xbf16>
    %c0_252 = arith.constant 0 : index
    %c0_253 = arith.constant 0 : index
    %886 = vector.load %arg8[%c0_252, %c0_253] : memref<128x512xbf16, #tpu.memory_space<vmem>>, vector<128x512xbf16>
    %cst_254 = arith.constant dense<0.000000e+00> : vector<8x512xf32>
    %887 = tpu.matmul %885, %886, %cst_254 {dimension_numbers = #tpu.dot_dimension_numbers<[1], [0], [0], [1], [0, 0, 1, 1], [], []>} : vector<8x128xbf16>, vector<128x512xbf16>, vector<8x512xf32> -> vector<8x512xf32>
    %888 = arith.addf %884, %887 : vector<8x512xf32>
    %c0_255 = arith.constant 0 : index
    %c0_256 = arith.constant 0 : index
    %889 = vector.load %arg12[%c0_255, %c0_256] : memref<1x512xf32, #tpu.memory_space<vmem>>, vector<1x512xf32>
    %890 = vector.broadcast %889 : vector<1x512xf32> to vector<8x512xf32>
    %891 = arith.addf %888, %890 : vector<8x512xf32>
    %892 = vector.extract_strided_slice %891 {offsets = [0, 0], sizes = [8, 128], strides = [1, 1]} : vector<8x512xf32> to vector<8x128xf32>
    %893 = arith.negf %892 : vector<8x128xf32>
    %894 = math.exp %893 : vector<8x128xf32>
    %cst_257 = arith.constant 1.000000e+00 : f32
    %895 = vector.broadcast %cst_257 : f32 to vector<8x128xf32>
    %896 = arith.addf %895, %894 : vector<8x128xf32>
    %897 = arith.divf %895, %896 : vector<8x128xf32>
    %898 = vector.extract_strided_slice %891 {offsets = [0, 128], sizes = [8, 128], strides = [1, 1]} : vector<8x512xf32> to vector<8x128xf32>
    %899 = arith.negf %898 : vector<8x128xf32>
    %900 = math.exp %899 : vector<8x128xf32>
    %cst_258 = arith.constant 1.000000e+00 : f32
    %901 = vector.broadcast %cst_258 : f32 to vector<8x128xf32>
    %902 = arith.addf %901, %900 : vector<8x128xf32>
    %903 = arith.divf %901, %902 : vector<8x128xf32>
    %904 = vector.extract_strided_slice %891 {offsets = [0, 256], sizes = [8, 128], strides = [1, 1]} : vector<8x512xf32> to vector<8x128xf32>
    %905 = math.tanh %904 : vector<8x128xf32>
    %906 = vector.extract_strided_slice %891 {offsets = [0, 384], sizes = [8, 128], strides = [1, 1]} : vector<8x512xf32> to vector<8x128xf32>
    %907 = arith.negf %906 : vector<8x128xf32>
    %908 = math.exp %907 : vector<8x128xf32>
    %cst_259 = arith.constant 1.000000e+00 : f32
    %909 = vector.broadcast %cst_259 : f32 to vector<8x128xf32>
    %910 = arith.addf %909, %908 : vector<8x128xf32>
    %911 = arith.divf %909, %910 : vector<8x128xf32>
    %912 = arith.mulf %903, %780 : vector<8x128xf32>
    %913 = arith.mulf %897, %905 : vector<8x128xf32>
    %914 = arith.addf %912, %913 : vector<8x128xf32>
    %915 = math.tanh %914 : vector<8x128xf32>
    %916 = arith.mulf %911, %915 : vector<8x128xf32>
    %c0_260 = arith.constant 0 : index
    %c0_261 = arith.constant 0 : index
    %917 = vector.load %arg10[%c0_260, %c0_261] : memref<256x512xbf16, #tpu.memory_space<vmem>>, vector<256x512xbf16>
    %c0_262 = arith.constant 0 : index
    %c0_263 = arith.constant 0 : index
    %918 = vector.load %arg13[%c0_262, %c0_263] : memref<1x512xf32, #tpu.memory_space<vmem>>, vector<1x512xf32>
    %919 = arith.truncf %916 : vector<8x128xf32> to vector<8x128xbf16>
    %920 = arith.truncf %815 : vector<8x128xf32> to vector<8x128xbf16>
    %921 = tpu.concatenate %919, %920 in 1 : vector<8x128xbf16>, vector<8x128xbf16> -> vector<8x256xbf16>
    %cst_264 = arith.constant dense<0.000000e+00> : vector<8x512xf32>
    %922 = tpu.matmul %921, %917, %cst_264 {dimension_numbers = #tpu.dot_dimension_numbers<[1], [0], [0], [1], [0, 0, 1, 1], [], []>} : vector<8x256xbf16>, vector<256x512xbf16>, vector<8x512xf32> -> vector<8x512xf32>
    %923 = vector.broadcast %918 : vector<1x512xf32> to vector<8x512xf32>
    %924 = arith.addf %922, %923 : vector<8x512xf32>
    %925 = vector.extract_strided_slice %924 {offsets = [0, 0], sizes = [8, 128], strides = [1, 1]} : vector<8x512xf32> to vector<8x128xf32>
    %926 = arith.negf %925 : vector<8x128xf32>
    %927 = math.exp %926 : vector<8x128xf32>
    %cst_265 = arith.constant 1.000000e+00 : f32
    %928 = vector.broadcast %cst_265 : f32 to vector<8x128xf32>
    %929 = arith.addf %928, %927 : vector<8x128xf32>
    %930 = arith.divf %928, %929 : vector<8x128xf32>
    %931 = vector.extract_strided_slice %924 {offsets = [0, 128], sizes = [8, 128], strides = [1, 1]} : vector<8x512xf32> to vector<8x128xf32>
    %932 = arith.negf %931 : vector<8x128xf32>
    %933 = math.exp %932 : vector<8x128xf32>
    %cst_266 = arith.constant 1.000000e+00 : f32
    %934 = vector.broadcast %cst_266 : f32 to vector<8x128xf32>
    %935 = arith.addf %934, %933 : vector<8x128xf32>
    %936 = arith.divf %934, %935 : vector<8x128xf32>
    %937 = vector.extract_strided_slice %924 {offsets = [0, 256], sizes = [8, 128], strides = [1, 1]} : vector<8x512xf32> to vector<8x128xf32>
    %938 = math.tanh %937 : vector<8x128xf32>
    %939 = vector.extract_strided_slice %924 {offsets = [0, 384], sizes = [8, 128], strides = [1, 1]} : vector<8x512xf32> to vector<8x128xf32>
    %940 = arith.negf %939 : vector<8x128xf32>
    %941 = math.exp %940 : vector<8x128xf32>
    %cst_267 = arith.constant 1.000000e+00 : f32
    %942 = vector.broadcast %cst_267 : f32 to vector<8x128xf32>
    %943 = arith.addf %942, %941 : vector<8x128xf32>
    %944 = arith.divf %942, %943 : vector<8x128xf32>
    %945 = arith.mulf %936, %813 : vector<8x128xf32>
    %946 = arith.mulf %930, %938 : vector<8x128xf32>
    %947 = arith.addf %945, %946 : vector<8x128xf32>
    %948 = math.tanh %947 : vector<8x128xf32>
    %949 = arith.mulf %944, %948 : vector<8x128xf32>
    %c0_268 = arith.constant 0 : index
    %c0_269 = arith.constant 0 : index
    %950 = vector.load %arg11[%c0_268, %c0_269] : memref<256x512xbf16, #tpu.memory_space<vmem>>, vector<256x512xbf16>
    %c0_270 = arith.constant 0 : index
    %c0_271 = arith.constant 0 : index
    %951 = vector.load %arg14[%c0_270, %c0_271] : memref<1x512xf32, #tpu.memory_space<vmem>>, vector<1x512xf32>
    %952 = arith.truncf %949 : vector<8x128xf32> to vector<8x128xbf16>
    %953 = arith.truncf %848 : vector<8x128xf32> to vector<8x128xbf16>
    %954 = tpu.concatenate %952, %953 in 1 : vector<8x128xbf16>, vector<8x128xbf16> -> vector<8x256xbf16>
    %cst_272 = arith.constant dense<0.000000e+00> : vector<8x512xf32>
    %955 = tpu.matmul %954, %950, %cst_272 {dimension_numbers = #tpu.dot_dimension_numbers<[1], [0], [0], [1], [0, 0, 1, 1], [], []>} : vector<8x256xbf16>, vector<256x512xbf16>, vector<8x512xf32> -> vector<8x512xf32>
    %956 = vector.broadcast %951 : vector<1x512xf32> to vector<8x512xf32>
    %957 = arith.addf %955, %956 : vector<8x512xf32>
    %958 = vector.extract_strided_slice %957 {offsets = [0, 0], sizes = [8, 128], strides = [1, 1]} : vector<8x512xf32> to vector<8x128xf32>
    %959 = arith.negf %958 : vector<8x128xf32>
    %960 = math.exp %959 : vector<8x128xf32>
    %cst_273 = arith.constant 1.000000e+00 : f32
    %961 = vector.broadcast %cst_273 : f32 to vector<8x128xf32>
    %962 = arith.addf %961, %960 : vector<8x128xf32>
    %963 = arith.divf %961, %962 : vector<8x128xf32>
    %964 = vector.extract_strided_slice %957 {offsets = [0, 128], sizes = [8, 128], strides = [1, 1]} : vector<8x512xf32> to vector<8x128xf32>
    %965 = arith.negf %964 : vector<8x128xf32>
    %966 = math.exp %965 : vector<8x128xf32>
    %cst_274 = arith.constant 1.000000e+00 : f32
    %967 = vector.broadcast %cst_274 : f32 to vector<8x128xf32>
    %968 = arith.addf %967, %966 : vector<8x128xf32>
    %969 = arith.divf %967, %968 : vector<8x128xf32>
    %970 = vector.extract_strided_slice %957 {offsets = [0, 256], sizes = [8, 128], strides = [1, 1]} : vector<8x512xf32> to vector<8x128xf32>
    %971 = math.tanh %970 : vector<8x128xf32>
    %972 = vector.extract_strided_slice %957 {offsets = [0, 384], sizes = [8, 128], strides = [1, 1]} : vector<8x512xf32> to vector<8x128xf32>
    %973 = arith.negf %972 : vector<8x128xf32>
    %974 = math.exp %973 : vector<8x128xf32>
    %cst_275 = arith.constant 1.000000e+00 : f32
    %975 = vector.broadcast %cst_275 : f32 to vector<8x128xf32>
    %976 = arith.addf %975, %974 : vector<8x128xf32>
    %977 = arith.divf %975, %976 : vector<8x128xf32>
    %978 = arith.mulf %969, %846 : vector<8x128xf32>
    %979 = arith.mulf %963, %971 : vector<8x128xf32>
    %980 = arith.addf %978, %979 : vector<8x128xf32>
    %981 = math.tanh %980 : vector<8x128xf32>
    %982 = arith.mulf %977, %981 : vector<8x128xf32>
    %983 = arith.truncf %982 : vector<8x128xf32> to vector<8x128xbf16>
    %c0_276 = arith.constant 0 : index
    %c0_277 = arith.constant 0 : index
    %984 = vector.load %arg16[%c0_276, %c0_277] : memref<128x256xbf16, #tpu.memory_space<vmem>>, vector<128x256xbf16>
    %cst_278 = arith.constant dense<0.000000e+00> : vector<8x256xf32>
    %985 = tpu.matmul %983, %984, %cst_278 {dimension_numbers = #tpu.dot_dimension_numbers<[1], [0], [0], [1], [0, 0, 1, 1], [], []>} : vector<8x128xbf16>, vector<128x256xbf16>, vector<8x256xf32> -> vector<8x256xf32>
    %c0_279 = arith.constant 0 : index
    %c0_280 = arith.constant 0 : index
    %986 = vector.load %arg17[%c0_279, %c0_280] : memref<1x256xf32, #tpu.memory_space<vmem>>, vector<1x256xf32>
    %987 = vector.broadcast %986 : vector<1x256xf32> to vector<8x256xf32>
    %988 = arith.addf %985, %987 : vector<8x256xf32>
    %c1_i32_281 = arith.constant 1 : i32
    %989 = arith.addi %c2_i32_251, %c1_i32_281 : i32
    %990 = arith.index_cast %989 : i32 to index
    %c0_282 = arith.constant 0 : index
    %c0_283 = arith.constant 0 : index
    %991 = vector.load %arg18[%990, %c0_282, %c0_283] : memref<5x8x256xf32, #tpu.memory_space<vmem>>, vector<1x8x256xf32>
    %992 = vector.shape_cast %991 : vector<1x8x256xf32> to vector<8x256xf32>
    %993 = vector.shape_cast %988 : vector<8x256xf32> to vector<1x8x256xf32>
    tpu.vector_store %arg18[%990, %c0_282, %c0_283], %993 {strides = array<i32>} : memref<5x8x256xf32, #tpu.memory_space<vmem>>, vector<1x8x256xf32>,
    %cst_284 = arith.constant dense<0xFF800000> : vector<8xf32>
    %994 = vector.multi_reduction <maximumf>, %988, %cst_284 [1] : vector<8x256xf32> to vector<8xf32>
    %995 = vector.shape_cast %994 : vector<8xf32> to vector<8x1xf32>
    %996 = vector.broadcast %995 : vector<8x1xf32> to vector<8x256xf32>
    %997 = arith.cmpf oeq, %988, %996 : vector<8x256xf32>
    %c256_i32_285 = arith.constant 256 : i32
    %998 = vector.broadcast %c256_i32_285 : i32 to vector<8x256xi32>
    %999 = arith.select %997, %613, %998 : vector<8x256xi1>, vector<8x256xi32>
    %cst_286 = arith.constant dense<2147483647> : vector<8xi32>
    %1000 = vector.multi_reduction <minsi>, %999, %cst_286 [1] : vector<8x256xi32> to vector<8xi32>
    %1001 = vector.shape_cast %1000 : vector<8xi32> to vector<8x1xi32>
    %1002 = vector.broadcast %1001 : vector<8x1xi32> to vector<8x256xi32>
    %1003 = arith.cmpi eq, %613, %1002 : vector<8x256xi32>
    %1004 = arith.extui %1003 : vector<8x256xi1> to vector<8x256xi32>
    %1005 = arith.sitofp %1004 : vector<8x256xi32> to vector<8x256xf32>
    %1006 = arith.truncf %1005 : vector<8x256xf32> to vector<8x256xbf16>
    %c0_287 = arith.constant 0 : index
    %c0_288 = arith.constant 0 : index
    %1007 = vector.load %arg9[%c0_287, %c0_288] : memref<256x512xbf16, #tpu.memory_space<vmem>>, vector<256x512xbf16>
    %cst_289 = arith.constant dense<0.000000e+00> : vector<8x512xf32>
    %1008 = tpu.matmul %1006, %1007, %cst_289 {dimension_numbers = #tpu.dot_dimension_numbers<[1], [0], [0], [1], [0, 0, 1, 1], [], []>} : vector<8x256xbf16>, vector<256x512xbf16>, vector<8x512xf32> -> vector<8x512xf32>
    %c1_i32_290 = arith.constant 1 : i32
    %1009 = arith.addi %c2_i32_251, %c1_i32_290 : i32
    %1010 = arith.index_cast %1009 : i32 to index
    %c0_291 = arith.constant 0 : index
    %c0_292 = arith.constant 0 : index
    %1011 = vector.load %arg15[%1010, %c0_291, %c0_292] : memref<5x8x512xbf16, #tpu.memory_space<vmem>>, vector<1x8x512xbf16>
    %1012 = vector.shape_cast %1011 : vector<1x8x512xbf16> to vector<8x512xbf16>
    %1013 = arith.extf %1012 : vector<8x512xbf16> to vector<8x512xf32>
    %c1_i32_293 = arith.constant 1 : i32
    %1014 = arith.addi %c2_i32_251, %c1_i32_293 : i32
    %1015 = arith.index_cast %1014 : i32 to index
    %1016 = memref.load %arg0[%1015] : memref<5xi32, #tpu.memory_space<smem>>
    %c0_i32_294 = arith.constant 0 : i32
    %1017 = arith.cmpi ne, %1016, %c0_i32_294 : i32
    %1018 = arith.select %1017, %1013, %1008 : vector<8x512xf32>
    %c3_i32_295 = arith.constant 3 : i32
    %1019 = arith.truncf %916 : vector<8x128xf32> to vector<8x128xbf16>
    %c0_296 = arith.constant 0 : index
    %c0_297 = arith.constant 0 : index
    %1020 = vector.load %arg8[%c0_296, %c0_297] : memref<128x512xbf16, #tpu.memory_space<vmem>>, vector<128x512xbf16>
    %cst_298 = arith.constant dense<0.000000e+00> : vector<8x512xf32>
    %1021 = tpu.matmul %1019, %1020, %cst_298 {dimension_numbers = #tpu.dot_dimension_numbers<[1], [0], [0], [1], [0, 0, 1, 1], [], []>} : vector<8x128xbf16>, vector<128x512xbf16>, vector<8x512xf32> -> vector<8x512xf32>
    %1022 = arith.addf %1018, %1021 : vector<8x512xf32>
    %c0_299 = arith.constant 0 : index
    %c0_300 = arith.constant 0 : index
    %1023 = vector.load %arg12[%c0_299, %c0_300] : memref<1x512xf32, #tpu.memory_space<vmem>>, vector<1x512xf32>
    %1024 = vector.broadcast %1023 : vector<1x512xf32> to vector<8x512xf32>
    %1025 = arith.addf %1022, %1024 : vector<8x512xf32>
    %1026 = vector.extract_strided_slice %1025 {offsets = [0, 0], sizes = [8, 128], strides = [1, 1]} : vector<8x512xf32> to vector<8x128xf32>
    %1027 = arith.negf %1026 : vector<8x128xf32>
    %1028 = math.exp %1027 : vector<8x128xf32>
    %cst_301 = arith.constant 1.000000e+00 : f32
    %1029 = vector.broadcast %cst_301 : f32 to vector<8x128xf32>
    %1030 = arith.addf %1029, %1028 : vector<8x128xf32>
    %1031 = arith.divf %1029, %1030 : vector<8x128xf32>
    %1032 = vector.extract_strided_slice %1025 {offsets = [0, 128], sizes = [8, 128], strides = [1, 1]} : vector<8x512xf32> to vector<8x128xf32>
    %1033 = arith.negf %1032 : vector<8x128xf32>
    %1034 = math.exp %1033 : vector<8x128xf32>
    %cst_302 = arith.constant 1.000000e+00 : f32
    %1035 = vector.broadcast %cst_302 : f32 to vector<8x128xf32>
    %1036 = arith.addf %1035, %1034 : vector<8x128xf32>
    %1037 = arith.divf %1035, %1036 : vector<8x128xf32>
    %1038 = vector.extract_strided_slice %1025 {offsets = [0, 256], sizes = [8, 128], strides = [1, 1]} : vector<8x512xf32> to vector<8x128xf32>
    %1039 = math.tanh %1038 : vector<8x128xf32>
    %1040 = vector.extract_strided_slice %1025 {offsets = [0, 384], sizes = [8, 128], strides = [1, 1]} : vector<8x512xf32> to vector<8x128xf32>
    %1041 = arith.negf %1040 : vector<8x128xf32>
    %1042 = math.exp %1041 : vector<8x128xf32>
    %cst_303 = arith.constant 1.000000e+00 : f32
    %1043 = vector.broadcast %cst_303 : f32 to vector<8x128xf32>
    %1044 = arith.addf %1043, %1042 : vector<8x128xf32>
    %1045 = arith.divf %1043, %1044 : vector<8x128xf32>
    %1046 = arith.mulf %1037, %914 : vector<8x128xf32>
    %1047 = arith.mulf %1031, %1039 : vector<8x128xf32>
    %1048 = arith.addf %1046, %1047 : vector<8x128xf32>
    %1049 = math.tanh %1048 : vector<8x128xf32>
    %1050 = arith.mulf %1045, %1049 : vector<8x128xf32>
    %c0_304 = arith.constant 0 : index
    %c0_305 = arith.constant 0 : index
    %1051 = vector.load %arg10[%c0_304, %c0_305] : memref<256x512xbf16, #tpu.memory_space<vmem>>, vector<256x512xbf16>
    %c0_306 = arith.constant 0 : index
    %c0_307 = arith.constant 0 : index
    %1052 = vector.load %arg13[%c0_306, %c0_307] : memref<1x512xf32, #tpu.memory_space<vmem>>, vector<1x512xf32>
    %1053 = arith.truncf %1050 : vector<8x128xf32> to vector<8x128xbf16>
    %1054 = arith.truncf %949 : vector<8x128xf32> to vector<8x128xbf16>
    %1055 = tpu.concatenate %1053, %1054 in 1 : vector<8x128xbf16>, vector<8x128xbf16> -> vector<8x256xbf16>
    %cst_308 = arith.constant dense<0.000000e+00> : vector<8x512xf32>
    %1056 = tpu.matmul %1055, %1051, %cst_308 {dimension_numbers = #tpu.dot_dimension_numbers<[1], [0], [0], [1], [0, 0, 1, 1], [], []>} : vector<8x256xbf16>, vector<256x512xbf16>, vector<8x512xf32> -> vector<8x512xf32>
    %1057 = vector.broadcast %1052 : vector<1x512xf32> to vector<8x512xf32>
    %1058 = arith.addf %1056, %1057 : vector<8x512xf32>
    %1059 = vector.extract_strided_slice %1058 {offsets = [0, 0], sizes = [8, 128], strides = [1, 1]} : vector<8x512xf32> to vector<8x128xf32>
    %1060 = arith.negf %1059 : vector<8x128xf32>
    %1061 = math.exp %1060 : vector<8x128xf32>
    %cst_309 = arith.constant 1.000000e+00 : f32
    %1062 = vector.broadcast %cst_309 : f32 to vector<8x128xf32>
    %1063 = arith.addf %1062, %1061 : vector<8x128xf32>
    %1064 = arith.divf %1062, %1063 : vector<8x128xf32>
    %1065 = vector.extract_strided_slice %1058 {offsets = [0, 128], sizes = [8, 128], strides = [1, 1]} : vector<8x512xf32> to vector<8x128xf32>
    %1066 = arith.negf %1065 : vector<8x128xf32>
    %1067 = math.exp %1066 : vector<8x128xf32>
    %cst_310 = arith.constant 1.000000e+00 : f32
    %1068 = vector.broadcast %cst_310 : f32 to vector<8x128xf32>
    %1069 = arith.addf %1068, %1067 : vector<8x128xf32>
    %1070 = arith.divf %1068, %1069 : vector<8x128xf32>
    %1071 = vector.extract_strided_slice %1058 {offsets = [0, 256], sizes = [8, 128], strides = [1, 1]} : vector<8x512xf32> to vector<8x128xf32>
    %1072 = math.tanh %1071 : vector<8x128xf32>
    %1073 = vector.extract_strided_slice %1058 {offsets = [0, 384], sizes = [8, 128], strides = [1, 1]} : vector<8x512xf32> to vector<8x128xf32>
    %1074 = arith.negf %1073 : vector<8x128xf32>
    %1075 = math.exp %1074 : vector<8x128xf32>
    %cst_311 = arith.constant 1.000000e+00 : f32
    %1076 = vector.broadcast %cst_311 : f32 to vector<8x128xf32>
    %1077 = arith.addf %1076, %1075 : vector<8x128xf32>
    %1078 = arith.divf %1076, %1077 : vector<8x128xf32>
    %1079 = arith.mulf %1070, %947 : vector<8x128xf32>
    %1080 = arith.mulf %1064, %1072 : vector<8x128xf32>
    %1081 = arith.addf %1079, %1080 : vector<8x128xf32>
    %1082 = math.tanh %1081 : vector<8x128xf32>
    %1083 = arith.mulf %1078, %1082 : vector<8x128xf32>
    %c0_312 = arith.constant 0 : index
    %c0_313 = arith.constant 0 : index
    %1084 = vector.load %arg11[%c0_312, %c0_313] : memref<256x512xbf16, #tpu.memory_space<vmem>>, vector<256x512xbf16>
    %c0_314 = arith.constant 0 : index
    %c0_315 = arith.constant 0 : index
    %1085 = vector.load %arg14[%c0_314, %c0_315] : memref<1x512xf32, #tpu.memory_space<vmem>>, vector<1x512xf32>
    %1086 = arith.truncf %1083 : vector<8x128xf32> to vector<8x128xbf16>
    %1087 = arith.truncf %982 : vector<8x128xf32> to vector<8x128xbf16>
    %1088 = tpu.concatenate %1086, %1087 in 1 : vector<8x128xbf16>, vector<8x128xbf16> -> vector<8x256xbf16>
    %cst_316 = arith.constant dense<0.000000e+00> : vector<8x512xf32>
    %1089 = tpu.matmul %1088, %1084, %cst_316 {dimension_numbers = #tpu.dot_dimension_numbers<[1], [0], [0], [1], [0, 0, 1, 1], [], []>} : vector<8x256xbf16>, vector<256x512xbf16>, vector<8x512xf32> -> vector<8x512xf32>
    %1090 = vector.broadcast %1085 : vector<1x512xf32> to vector<8x512xf32>
    %1091 = arith.addf %1089, %1090 : vector<8x512xf32>
    %1092 = vector.extract_strided_slice %1091 {offsets = [0, 0], sizes = [8, 128], strides = [1, 1]} : vector<8x512xf32> to vector<8x128xf32>
    %1093 = arith.negf %1092 : vector<8x128xf32>
    %1094 = math.exp %1093 : vector<8x128xf32>
    %cst_317 = arith.constant 1.000000e+00 : f32
    %1095 = vector.broadcast %cst_317 : f32 to vector<8x128xf32>
    %1096 = arith.addf %1095, %1094 : vector<8x128xf32>
    %1097 = arith.divf %1095, %1096 : vector<8x128xf32>
    %1098 = vector.extract_strided_slice %1091 {offsets = [0, 128], sizes = [8, 128], strides = [1, 1]} : vector<8x512xf32> to vector<8x128xf32>
    %1099 = arith.negf %1098 : vector<8x128xf32>
    %1100 = math.exp %1099 : vector<8x128xf32>
    %cst_318 = arith.constant 1.000000e+00 : f32
    %1101 = vector.broadcast %cst_318 : f32 to vector<8x128xf32>
    %1102 = arith.addf %1101, %1100 : vector<8x128xf32>
    %1103 = arith.divf %1101, %1102 : vector<8x128xf32>
    %1104 = vector.extract_strided_slice %1091 {offsets = [0, 256], sizes = [8, 128], strides = [1, 1]} : vector<8x512xf32> to vector<8x128xf32>
    %1105 = math.tanh %1104 : vector<8x128xf32>
    %1106 = vector.extract_strided_slice %1091 {offsets = [0, 384], sizes = [8, 128], strides = [1, 1]} : vector<8x512xf32> to vector<8x128xf32>
    %1107 = arith.negf %1106 : vector<8x128xf32>
    %1108 = math.exp %1107 : vector<8x128xf32>
    %cst_319 = arith.constant 1.000000e+00 : f32
    %1109 = vector.broadcast %cst_319 : f32 to vector<8x128xf32>
    %1110 = arith.addf %1109, %1108 : vector<8x128xf32>
    %1111 = arith.divf %1109, %1110 : vector<8x128xf32>
    %1112 = arith.mulf %1103, %980 : vector<8x128xf32>
    %1113 = arith.mulf %1097, %1105 : vector<8x128xf32>
    %1114 = arith.addf %1112, %1113 : vector<8x128xf32>
    %1115 = math.tanh %1114 : vector<8x128xf32>
    %1116 = arith.mulf %1111, %1115 : vector<8x128xf32>
    %1117 = arith.truncf %1116 : vector<8x128xf32> to vector<8x128xbf16>
    %c0_320 = arith.constant 0 : index
    %c0_321 = arith.constant 0 : index
    %1118 = vector.load %arg16[%c0_320, %c0_321] : memref<128x256xbf16, #tpu.memory_space<vmem>>, vector<128x256xbf16>
    %cst_322 = arith.constant dense<0.000000e+00> : vector<8x256xf32>
    %1119 = tpu.matmul %1117, %1118, %cst_322 {dimension_numbers = #tpu.dot_dimension_numbers<[1], [0], [0], [1], [0, 0, 1, 1], [], []>} : vector<8x128xbf16>, vector<128x256xbf16>, vector<8x256xf32> -> vector<8x256xf32>
    %c0_323 = arith.constant 0 : index
    %c0_324 = arith.constant 0 : index
    %1120 = vector.load %arg17[%c0_323, %c0_324] : memref<1x256xf32, #tpu.memory_space<vmem>>, vector<1x256xf32>
    %1121 = vector.broadcast %1120 : vector<1x256xf32> to vector<8x256xf32>
    %1122 = arith.addf %1119, %1121 : vector<8x256xf32>
    %c1_i32_325 = arith.constant 1 : i32
    %1123 = arith.addi %c3_i32_295, %c1_i32_325 : i32
    %1124 = arith.index_cast %1123 : i32 to index
    %c0_326 = arith.constant 0 : index
    %c0_327 = arith.constant 0 : index
    %1125 = vector.load %arg18[%1124, %c0_326, %c0_327] : memref<5x8x256xf32, #tpu.memory_space<vmem>>, vector<1x8x256xf32>
    %1126 = vector.shape_cast %1125 : vector<1x8x256xf32> to vector<8x256xf32>
    %1127 = vector.shape_cast %1122 : vector<8x256xf32> to vector<1x8x256xf32>
    tpu.vector_store %arg18[%1124, %c0_326, %c0_327], %1127 {strides = array<i32>} : memref<5x8x256xf32, #tpu.memory_space<vmem>>, vector<1x8x256xf32>,
    %cst_328 = arith.constant dense<0xFF800000> : vector<8xf32>
    %1128 = vector.multi_reduction <maximumf>, %1122, %cst_328 [1] : vector<8x256xf32> to vector<8xf32>
    %1129 = vector.shape_cast %1128 : vector<8xf32> to vector<8x1xf32>
    %1130 = vector.broadcast %1129 : vector<8x1xf32> to vector<8x256xf32>
    %1131 = arith.cmpf oeq, %1122, %1130 : vector<8x256xf32>
    %c256_i32_329 = arith.constant 256 : i32
    %1132 = vector.broadcast %c256_i32_329 : i32 to vector<8x256xi32>
    %1133 = arith.select %1131, %613, %1132 : vector<8x256xi1>, vector<8x256xi32>
    %cst_330 = arith.constant dense<2147483647> : vector<8xi32>
    %1134 = vector.multi_reduction <minsi>, %1133, %cst_330 [1] : vector<8x256xi32> to vector<8xi32>
    %1135 = vector.shape_cast %1134 : vector<8xi32> to vector<8x1xi32>
    %1136 = vector.broadcast %1135 : vector<8x1xi32> to vector<8x256xi32>
    %1137 = arith.cmpi eq, %613, %1136 : vector<8x256xi32>
    %1138 = arith.extui %1137 : vector<8x256xi1> to vector<8x256xi32>
    %1139 = arith.sitofp %1138 : vector<8x256xi32> to vector<8x256xf32>
    %1140 = arith.truncf %1139 : vector<8x256xf32> to vector<8x256xbf16>
    %c0_331 = arith.constant 0 : index
    %c0_332 = arith.constant 0 : index
    %1141 = vector.load %arg9[%c0_331, %c0_332] : memref<256x512xbf16, #tpu.memory_space<vmem>>, vector<256x512xbf16>
    %cst_333 = arith.constant dense<0.000000e+00> : vector<8x512xf32>
    %1142 = tpu.matmul %1140, %1141, %cst_333 {dimension_numbers = #tpu.dot_dimension_numbers<[1], [0], [0], [1], [0, 0, 1, 1], [], []>} : vector<8x256xbf16>, vector<256x512xbf16>, vector<8x512xf32> -> vector<8x512xf32>
    %c1_i32_334 = arith.constant 1 : i32
    %1143 = arith.addi %c3_i32_295, %c1_i32_334 : i32
    %1144 = arith.index_cast %1143 : i32 to index
    %c0_335 = arith.constant 0 : index
    %c0_336 = arith.constant 0 : index
    %1145 = vector.load %arg15[%1144, %c0_335, %c0_336] : memref<5x8x512xbf16, #tpu.memory_space<vmem>>, vector<1x8x512xbf16>
    %1146 = vector.shape_cast %1145 : vector<1x8x512xbf16> to vector<8x512xbf16>
    %1147 = arith.extf %1146 : vector<8x512xbf16> to vector<8x512xf32>
    %c1_i32_337 = arith.constant 1 : i32
    %1148 = arith.addi %c3_i32_295, %c1_i32_337 : i32
    %1149 = arith.index_cast %1148 : i32 to index
    %1150 = memref.load %arg0[%1149] : memref<5xi32, #tpu.memory_space<smem>>
    %c0_i32_338 = arith.constant 0 : i32
    %1151 = arith.cmpi ne, %1150, %c0_i32_338 : i32
    %1152 = arith.select %1151, %1147, %1142 : vector<8x512xf32>
    %c4_i32_339 = arith.constant 4 : i32
    return
  }
}

</mosaic_0001>

<llo_original>
// kernel: seq2seq_forward.1
$region0: #{seq2seq_forward.1}
  #allocation0 [shape = 'u32[]', space=smem, size = 0x4, offset = 0x4, fixed_abs, tag = 'smem constant byte address 0x4 - core index']
  #allocation1 [shape = 'u32[144,128]{1,0:T(1,128)}', space=vmem, size = 0x12000, scoped, tag = 'internal scratch']
  %s0 = inlined_call_operand.vmem [shape: s32[5], index: 0, kind: input, shape index: {}]
  %s1 = inlined_call_operand.vmem [shape: bf16[6,8,128], index: 1, kind: input, shape index: {}]
  %s2 = inlined_call_operand.vmem [shape: bf16[256,512], index: 2, kind: input, shape index: {}]
  %s3 = inlined_call_operand.vmem [shape: bf16[256,512], index: 3, kind: input, shape index: {}]
  %s4 = inlined_call_operand.vmem [shape: bf16[256,512], index: 4, kind: input, shape index: {}]
  %s5 = inlined_call_operand.vmem [shape: f32[1,512], index: 5, kind: input, shape index: {}]
  %s6 = inlined_call_operand.vmem [shape: f32[1,512], index: 6, kind: input, shape index: {}]
  %s7 = inlined_call_operand.vmem [shape: f32[1,512], index: 7, kind: input, shape index: {}]
  %s8 = inlined_call_operand.vmem [shape: bf16[128,512], index: 8, kind: input, shape index: {}]
  %s9 = inlined_call_operand.vmem [shape: bf16[256,512], index: 9, kind: input, shape index: {}]
  %s10 = inlined_call_operand.vmem [shape: bf16[256,512], index: 10, kind: input, shape index: {}]
  %s11 = inlined_call_operand.hbm [shape: bf16[256,512], index: 11, kind: input, shape index: {}]
  %s12 = inlined_call_operand.vmem [shape: f32[1,512], index: 12, kind: input, shape index: {}]
  %s13 = inlined_call_operand.vmem [shape: f32[1,512], index: 13, kind: input, shape index: {}]
  %s14 = inlined_call_operand.vmem [shape: f32[1,512], index: 14, kind: input, shape index: {}]
  %s15 = inlined_call_operand.vmem [shape: bf16[5,8,512], index: 15, kind: input, shape index: {}]
  %s16 = inlined_call_operand.vmem [shape: bf16[128,256], index: 16, kind: input, shape index: {}]
  %s17 = inlined_call_operand.vmem [shape: f32[1,256], index: 17, kind: input, shape index: {}]
  %s18 = inlined_call_operand.hbm [shape: f32[5,8,256], index: 18, kind: output, shape index: {}]
  %s19 = sld [smem:[#allocation0]]
  $region90: #{seq2seq_forward.1} parent=0
    _
  %s21 = ssub.s32 1, %s19
  %s22 = scalar_select 0, %s21, %s19
  $region1: #{seq2seq_forward.1} parent=0
    #allocation2 [shape = 'u8[512]{0}', space=smem, size = 0x200, scoped, tag = 'input window, operand 0, single buffered']
    #allocation3 [shape = 's32[1]{0}', space=sflag, size = 0x4, scoped, tag = 'scoped memory for seq2seq_forward.1']
    #allocation4 [shape = 's32[1]{0}', space=sflag, size = 0x4, scoped, tag = 'scoped memory for seq2seq_forward.1']
    #allocation5 [shape = 's32[1]{0}', space=sflag, size = 0x4, scoped, tag = 'scoped memory for seq2seq_forward.1']
    #allocation6 [shape = 'u8[262144]{0}', space=vmem, size = 0x40000, scoped, tag = 'input window, operand 11, single buffered']
    #allocation7 [shape = 'u8[40960]{0}', space=vmem, size = 0xa000, scoped, tag = 'output window, operand 0, single buffered']
    %23 = vsyncpa [#allocation5], 0
    %24 = vsyncpa [#allocation3], 0
    %25 = vsyncpa [#allocation4], 0
    // Predicated region
    $region2: #{seq2seq_forward.1} parent=1 // pred_check
      _
    $region3: #{seq2seq_forward.1} parent=1 // pred_check_branch
      %27 = sbr.rel (0) target = $region5
    $region4: #{seq2seq_forward.1} parent=1 // pred_region
      %s29 = ssub.s32 16, 16
      %30 = vsyncadd [#allocation5], %s29
      %s32 = sshll.u32 %s0, 4
      %s33 = int_to_ptr.vmem [resolvable:$true] %s32
      %35 = dma.vmem_to_smem %s33, 16, [#allocation2], [#allocation5]
    $region5: #{seq2seq_forward.1} parent=1 // pred_fallthru
      _
    // Predicated region
    $region6: #{seq2seq_forward.1} parent=1 // pred_check
      _
    $region7: #{seq2seq_forward.1} parent=1 // pred_check_branch
      %37 = sbr.rel (0) target = $region9
    $region8: #{seq2seq_forward.1} parent=1 // pred_region
      _
    $region9: #{seq2seq_forward.1} parent=1 // pred_fallthru
      _
    // Predicated region
    $region10: #{seq2seq_forward.1} parent=1 // pred_check
      _
    $region11: #{seq2seq_forward.1} parent=1 // pred_check_branch
      %39 = sbr.rel (0) target = $region13
    $region12: #{seq2seq_forward.1} parent=1 // pred_region
      _
    $region13: #{seq2seq_forward.1} parent=1 // pred_fallthru
      _
    // Predicated region
    $region14: #{seq2seq_forward.1} parent=1 // pred_check
      _
    $region15: #{seq2seq_forward.1} parent=1 // pred_check_branch
      %41 = sbr.rel (0) target = $region17
    $region16: #{seq2seq_forward.1} parent=1 // pred_region
      _
    $region17: #{seq2seq_forward.1} parent=1 // pred_fallthru
      _
    // Predicated region
    $region18: #{seq2seq_forward.1} parent=1 // pred_check
      _
    $region19: #{seq2seq_forward.1} parent=1 // pred_check_branch
      %43 = sbr.rel (0) target = $region21
    $region20: #{seq2seq_forward.1} parent=1 // pred_region
      _
    $region21: #{seq2seq_forward.1} parent=1 // pred_fallthru
      _
    // Predicated region
    $region22: #{seq2seq_forward.1} parent=1 // pred_check
      _
    $region23: #{seq2seq_forward.1} parent=1 // pred_check_branch
      %45 = sbr.rel (0) target = $region25
    $region24: #{seq2seq_forward.1} parent=1 // pred_region
      _
    $region25: #{seq2seq_forward.1} parent=1 // pred_fallthru
      _
    // Predicated region
    $region26: #{seq2seq_forward.1} parent=1 // pred_check
      _
    $region27: #{seq2seq_forward.1} parent=1 // pred_check_branch
      %47 = sbr.rel (0) target = $region29
    $region28: #{seq2seq_forward.1} parent=1 // pred_region
      _
    $region29: #{seq2seq_forward.1} parent=1 // pred_fallthru
      _
    // Predicated region
    $region30: #{seq2seq_forward.1} parent=1 // pred_check
      _
    $region31: #{seq2seq_forward.1} parent=1 // pred_check_branch
      %49 = sbr.rel (0) target = $region33
    $region32: #{seq2seq_forward.1} parent=1 // pred_region
      _
    $region33: #{seq2seq_forward.1} parent=1 // pred_fallthru
      _
    // Predicated region
    $region34: #{seq2seq_forward.1} parent=1 // pred_check
      _
    $region35: #{seq2seq_forward.1} parent=1 // pred_check_branch
      %51 = sbr.rel (0) target = $region37
    $region36: #{seq2seq_forward.1} parent=1 // pred_region
      _
    $region37: #{seq2seq_forward.1} parent=1 // pred_fallthru
      _
    // Predicated region
    $region38: #{seq2seq_forward.1} parent=1 // pred_check
      _
    $region39: #{seq2seq_forward.1} parent=1 // pred_check_branch
      %53 = sbr.rel (0) target = $region41
    $region40: #{seq2seq_forward.1} parent=1 // pred_region
      _
    $region41: #{seq2seq_forward.1} parent=1 // pred_fallthru
      _
    // Predicated region
    $region42: #{seq2seq_forward.1} parent=1 // pred_check
      _
    $region43: #{seq2seq_forward.1} parent=1 // pred_check_branch
      %55 = sbr.rel (0) target = $region45
    $region44: #{seq2seq_forward.1} parent=1 // pred_region
      _
    $region45: #{seq2seq_forward.1} parent=1 // pred_fallthru
      _
    // Predicated region
    $region46: #{seq2seq_forward.1} parent=1 // pred_check
      _
    $region47: #{seq2seq_forward.1} parent=1 // pred_check_branch
      %57 = sbr.rel (0) target = $region49
    $region48: #{seq2seq_forward.1} parent=1 // pred_region
      %s59 = ssub.s32 8192, 8192
      %60 = vsyncadd [#allocation3], %s59
      %s61 = sshll.u32 [#allocation6], 4
      %s62 = int_to_ptr.vmem [resolvable:$true] %s61
      %67 = dma.hbm_to_vmem [thread:$0]  %s11, 8192, %s62, [#allocation3], 256, 256, 16
    $region49: #{seq2seq_forward.1} parent=1 // pred_fallthru
      _
    // Predicated region
    $region50: #{seq2seq_forward.1} parent=1 // pred_check
      _
    $region51: #{seq2seq_forward.1} parent=1 // pred_check_branch
      %69 = sbr.rel (0) target = $region53
    $region52: #{seq2seq_forward.1} parent=1 // pred_region
      _
    $region53: #{seq2seq_forward.1} parent=1 // pred_fallthru
      _
    // Predicated region
    $region54: #{seq2seq_forward.1} parent=1 // pred_check
      _
    $region55: #{seq2seq_forward.1} parent=1 // pred_check_branch
      %71 = sbr.rel (0) target = $region57
    $region56: #{seq2seq_forward.1} parent=1 // pred_region
      _
    $region57: #{seq2seq_forward.1} parent=1 // pred_fallthru
      _
    // Predicated region
    $region58: #{seq2seq_forward.1} parent=1 // pred_check
      _
    $region59: #{seq2seq_forward.1} parent=1 // pred_check_branch
      %73 = sbr.rel (0) target = $region61
    $region60: #{seq2seq_forward.1} parent=1 // pred_region
      _
    $region61: #{seq2seq_forward.1} parent=1 // pred_fallthru
      _
    // Predicated region
    $region62: #{seq2seq_forward.1} parent=1 // pred_check
      _
    $region63: #{seq2seq_forward.1} parent=1 // pred_check_branch
      %75 = sbr.rel (0) target = $region65
    $region64: #{seq2seq_forward.1} parent=1 // pred_region
      _
    $region65: #{seq2seq_forward.1} parent=1 // pred_fallthru
      _
    // Predicated region
    $region66: #{seq2seq_forward.1} parent=1 // pred_check
      _
    $region67: #{seq2seq_forward.1} parent=1 // pred_check_branch
      %77 = sbr.rel (0) target = $region69
    $region68: #{seq2seq_forward.1} parent=1 // pred_region
      _
    $region69: #{seq2seq_forward.1} parent=1 // pred_fallthru
      _
    // Predicated region
    $region70: #{seq2seq_forward.1} parent=1 // pred_check
      _
    $region71: #{seq2seq_forward.1} parent=1 // pred_check_branch
      %79 = sbr.rel (0) target = $region73
    $region72: #{seq2seq_forward.1} parent=1 // pred_region
      _
    $region73: #{seq2seq_forward.1} parent=1 // pred_fallthru
      _
    // Predicated region
    $region74: #{seq2seq_forward.1} parent=1 // pred_check
      _
    $region75: #{seq2seq_forward.1} parent=1 // pred_check_branch
      %81 = sbr.rel (0) target = $region77
    $region76: #{seq2seq_forward.1} parent=1 // pred_region
      %82 = dma.done [#allocation5], 16
    $region77: #{seq2seq_forward.1} parent=1 // pred_fallthru
      _
    // Predicated region
    $region78: #{seq2seq_forward.1} parent=1 // pred_check
      _
    $region79: #{seq2seq_forward.1} parent=1 // pred_check_branch
      %84 = sbr.rel (0) target = $region81
    $region80: #{seq2seq_forward.1} parent=1 // pred_region
      %85 = dma.done [#allocation3], 8192
    $region81: #{seq2seq_forward.1} parent=1 // pred_fallthru
      _
    %86 = sfence
    %v88 = vld [vmem:[%s1] sm:$0xf]
    %v89 = vld [vmem:[%s2] sm:$0xff]
    %v90 = vld [vmem:[%s2 + $0x8] sm:$0xff]
    %v91 = vld [vmem:[%s2 + $0x10] sm:$0xff]
    %v92 = vld [vmem:[%s2 + $0x18] sm:$0xff]
    %v93 = vld [vmem:[%s2 + $0x20] sm:$0xff]
    %v94 = vld [vmem:[%s2 + $0x28] sm:$0xff]
    %v95 = vld [vmem:[%s2 + $0x30] sm:$0xff]
    %v96 = vld [vmem:[%s2 + $0x38] sm:$0xff]
    %v97 = vld [vmem:[%s2 + $0x40] sm:$0xff]
    %v98 = vld [vmem:[%s2 + $0x48] sm:$0xff]
    %v99 = vld [vmem:[%s2 + $0x50] sm:$0xff]
    %v100 = vld [vmem:[%s2 + $0x58] sm:$0xff]
    %v101 = vld [vmem:[%s2 + $0x60] sm:$0xff]
    %v102 = vld [vmem:[%s2 + $0x68] sm:$0xff]
    %v103 = vld [vmem:[%s2 + $0x70] sm:$0xff]
    %v104 = vld [vmem:[%s2 + $0x78] sm:$0xff]
    %v105 = vld [vmem:[%s2 + $0x80] sm:$0xff]
    %v106 = vld [vmem:[%s2 + $0x88] sm:$0xff]
    %v107 = vld [vmem:[%s2 + $0x90] sm:$0xff]
    %v108 = vld [vmem:[%s2 + $0x98] sm:$0xff]
    %v109 = vld [vmem:[%s2 + $0xa0] sm:$0xff]
    %v110 = vld [vmem:[%s2 + $0xa8] sm:$0xff]
    %v111 = vld [vmem:[%s2 + $0xb0] sm:$0xff]
    %v112 = vld [vmem:[%s2 + $0xb8] sm:$0xff]
    %v113 = vld [vmem:[%s2 + $0xc0] sm:$0xff]
    %v114 = vld [vmem:[%s2 + $0xc8] sm:$0xff]
    %v115 = vld [vmem:[%s2 + $0xd0] sm:$0xff]
    %v116 = vld [vmem:[%s2 + $0xd8] sm:$0xff]
    %v117 = vld [vmem:[%s2 + $0xe0] sm:$0xff]
    %v118 = vld [vmem:[%s2 + $0xe8] sm:$0xff]
    %v119 = vld [vmem:[%s2 + $0xf0] sm:$0xff]
    %v120 = vld [vmem:[%s2 + $0xf8] sm:$0xff]
    %v121 = vld [vmem:[%s2 + $0x100] sm:$0xff]
    %v122 = vld [vmem:[%s2 + $0x108] sm:$0xff]
    %v123 = vld [vmem:[%s2 + $0x110] sm:$0xff]
    %v124 = vld [vmem:[%s2 + $0x118] sm:$0xff]
    %v125 = vld [vmem:[%s2 + $0x120] sm:$0xff]
    %v126 = vld [vmem:[%s2 + $0x128] sm:$0xff]
    %v127 = vld [vmem:[%s2 + $0x130] sm:$0xff]
    %v128 = vld [vmem:[%s2 + $0x138] sm:$0xff]
    %v129 = vld [vmem:[%s2 + $0x140] sm:$0xff]
    %v130 = vld [vmem:[%s2 + $0x148] sm:$0xff]
    %v131 = vld [vmem:[%s2 + $0x150] sm:$0xff]
    %v132 = vld [vmem:[%s2 + $0x158] sm:$0xff]
    %v133 = vld [vmem:[%s2 + $0x160] sm:$0xff]
    %v134 = vld [vmem:[%s2 + $0x168] sm:$0xff]
    %v135 = vld [vmem:[%s2 + $0x170] sm:$0xff]
    %v136 = vld [vmem:[%s2 + $0x178] sm:$0xff]
    %v137 = vld [vmem:[%s2 + $0x180] sm:$0xff]
    %v138 = vld [vmem:[%s2 + $0x188] sm:$0xff]
    %v139 = vld [vmem:[%s2 + $0x190] sm:$0xff]
    %v140 = vld [vmem:[%s2 + $0x198] sm:$0xff]
    %v141 = vld [vmem:[%s2 + $0x1a0] sm:$0xff]
    %v142 = vld [vmem:[%s2 + $0x1a8] sm:$0xff]
    %v143 = vld [vmem:[%s2 + $0x1b0] sm:$0xff]
    %v144 = vld [vmem:[%s2 + $0x1b8] sm:$0xff]
    %v145 = vld [vmem:[%s2 + $0x1c0] sm:$0xff]
    %v146 = vld [vmem:[%s2 + $0x1c8] sm:$0xff]
    %v147 = vld [vmem:[%s2 + $0x1d0] sm:$0xff]
    %v148 = vld [vmem:[%s2 + $0x1d8] sm:$0xff]
    %v149 = vld [vmem:[%s2 + $0x1e0] sm:$0xff]
    %v150 = vld [vmem:[%s2 + $0x1e8] sm:$0xff]
    %v151 = vld [vmem:[%s2 + $0x1f0] sm:$0xff]
    %v152 = vld [vmem:[%s2 + $0x1f8] sm:$0xff]
    %v153 = vld [vmem:[%s5] sm:$0xf]
    %v155 = vlaneseq
    %v156 = vshrl.u32 %v155, 7
    %v157 = vsub.s32 0, %v156
    %v158 = vrot.slane %v153, %v157
    %v159 = vlaneseq
    %v160 = vshrl.u32 %v159, 7
    %v161 = vsub.s32 1, %v160
    %v162 = vrot.slane %v153, %v161
    %v163 = vlaneseq
    %v164 = vshrl.u32 %v163, 7
    %v165 = vsub.s32 2, %v164
    %v166 = vrot.slane %v153, %v165
    %v167 = vlaneseq
    %v168 = vshrl.u32 %v167, 7
    %v169 = vsub.s32 3, %v168
    %v170 = vrot.slane %v153, %v169
    %v239 = vunpack.c.l.b16 %v89
    %v240 = vunpack.c.h.b16 %v89
    %v241 = vunpack.c.l.b16 %v90
    %v242 = vunpack.c.h.b16 %v90
    %v243 = vunpack.c.l.b16 %v91
    %v244 = vunpack.c.h.b16 %v91
    %v245 = vunpack.c.l.b16 %v92
    %v246 = vunpack.c.h.b16 %v92
    %v247 = vunpack.c.l.b16 %v93
    %v248 = vunpack.c.h.b16 %v93
    %v249 = vunpack.c.l.b16 %v94
    %v250 = vunpack.c.h.b16 %v94
    %v251 = vunpack.c.l.b16 %v95
    %v252 = vunpack.c.h.b16 %v95
    %v253 = vunpack.c.l.b16 %v96
    %v254 = vunpack.c.h.b16 %v96
    %v255 = vunpack.c.l.b16 %v97
    %v256 = vunpack.c.h.b16 %v97
    %v257 = vunpack.c.l.b16 %v98
    %v258 = vunpack.c.h.b16 %v98
    %v259 = vunpack.c.l.b16 %v99
    %v260 = vunpack.c.h.b16 %v99
    %v261 = vunpack.c.l.b16 %v100
    %v262 = vunpack.c.h.b16 %v100
    %v263 = vunpack.c.l.b16 %v101
    %v264 = vunpack.c.h.b16 %v101
    %v265 = vunpack.c.l.b16 %v102
    %v266 = vunpack.c.h.b16 %v102
    %v267 = vunpack.c.l.b16 %v103
    %v268 = vunpack.c.h.b16 %v103
    %v269 = vunpack.c.l.b16 %v104
    %v270 = vunpack.c.h.b16 %v104
    %v271 = vunpack.c.l.b16 %v105
    %v272 = vunpack.c.h.b16 %v105
    %v273 = vunpack.c.l.b16 %v106
    %v274 = vunpack.c.h.b16 %v106
    %v275 = vunpack.c.l.b16 %v107
    %v276 = vunpack.c.h.b16 %v107
    %v277 = vunpack.c.l.b16 %v108
    %v278 = vunpack.c.h.b16 %v108
    %v279 = vunpack.c.l.b16 %v109
    %v280 = vunpack.c.h.b16 %v109
    %v281 = vunpack.c.l.b16 %v110
    %v282 = vunpack.c.h.b16 %v110
    %v283 = vunpack.c.l.b16 %v111
    %v284 = vunpack.c.h.b16 %v111
    %v285 = vunpack.c.l.b16 %v112
    %v286 = vunpack.c.h.b16 %v112
    %v287 = vunpack.c.l.b16 %v113
    %v288 = vunpack.c.h.b16 %v113
    %v289 = vunpack.c.l.b16 %v114
    %v290 = vunpack.c.h.b16 %v114
    %v291 = vunpack.c.l.b16 %v115
    %v292 = vunpack.c.h.b16 %v115
    %v293 = vunpack.c.l.b16 %v116
    %v294 = vunpack.c.h.b16 %v116
    %v295 = vunpack.c.l.b16 %v117
    %v296 = vunpack.c.h.b16 %v117
    %v297 = vunpack.c.l.b16 %v118
    %v298 = vunpack.c.h.b16 %v118
    %v299 = vunpack.c.l.b16 %v119
    %v300 = vunpack.c.h.b16 %v119
    %v301 = vunpack.c.l.b16 %v120
    %v302 = vunpack.c.h.b16 %v120
    %v303 = vunpack.c.l.b16 %v121
    %v304 = vunpack.c.h.b16 %v121
    %v305 = vunpack.c.l.b16 %v122
    %v306 = vunpack.c.h.b16 %v122
    %v307 = vunpack.c.l.b16 %v123
    %v308 = vunpack.c.h.b16 %v123
    %v309 = vunpack.c.l.b16 %v124
    %v310 = vunpack.c.h.b16 %v124
    %v311 = vunpack.c.l.b16 %v125
    %v312 = vunpack.c.h.b16 %v125
    %v313 = vunpack.c.l.b16 %v126
    %v314 = vunpack.c.h.b16 %v126
    %v315 = vunpack.c.l.b16 %v127
    %v316 = vunpack.c.h.b16 %v127
    %v317 = vunpack.c.l.b16 %v128
    %v318 = vunpack.c.h.b16 %v128
    %v319 = vunpack.c.l.b16 %v129
    %v320 = vunpack.c.h.b16 %v129
    %v321 = vunpack.c.l.b16 %v130
    %v322 = vunpack.c.h.b16 %v130
    %v323 = vunpack.c.l.b16 %v131
    %v324 = vunpack.c.h.b16 %v131
    %v325 = vunpack.c.l.b16 %v132
    %v326 = vunpack.c.h.b16 %v132
    %v327 = vunpack.c.l.b16 %v133
    %v328 = vunpack.c.h.b16 %v133
    %v329 = vunpack.c.l.b16 %v134
    %v330 = vunpack.c.h.b16 %v134
    %v331 = vunpack.c.l.b16 %v135
    %v332 = vunpack.c.h.b16 %v135
    %v333 = vunpack.c.l.b16 %v136
    %v334 = vunpack.c.h.b16 %v136
    %v335 = vunpack.c.l.b16 %v137
    %v336 = vunpack.c.h.b16 %v137
    %v337 = vunpack.c.l.b16 %v138
    %v338 = vunpack.c.h.b16 %v138
    %v339 = vunpack.c.l.b16 %v139
    %v340 = vunpack.c.h.b16 %v139
    %v341 = vunpack.c.l.b16 %v140
    %v342 = vunpack.c.h.b16 %v140
    %v343 = vunpack.c.l.b16 %v141
    %v344 = vunpack.c.h.b16 %v141
    %v345 = vunpack.c.l.b16 %v142
    %v346 = vunpack.c.h.b16 %v142
    %v347 = vunpack.c.l.b16 %v143
    %v348 = vunpack.c.h.b16 %v143
    %v349 = vunpack.c.l.b16 %v144
    %v350 = vunpack.c.h.b16 %v144
    %v351 = vunpack.c.l.b16 %v145
    %v352 = vunpack.c.h.b16 %v145
    %v353 = vunpack.c.l.b16 %v146
    %v354 = vunpack.c.h.b16 %v146
    %v355 = vunpack.c.l.b16 %v147
    %v356 = vunpack.c.h.b16 %v147
    %v357 = vunpack.c.l.b16 %v148
    %v358 = vunpack.c.h.b16 %v148
    %v359 = vunpack.c.l.b16 %v149
    %v360 = vunpack.c.h.b16 %v149
    %v361 = vunpack.c.l.b16 %v150
    %v362 = vunpack.c.h.b16 %v150
    %v363 = vunpack.c.l.b16 %v151
    %v364 = vunpack.c.h.b16 %v151
    %v365 = vunpack.c.l.b16 %v152
    %v366 = vunpack.c.h.b16 %v152
    %v367 = vpack.c.b16 %v243, %v239
    %v368 = vpack.c.b16 %v244, %v240
    %v369 = vpack.c.b16 %v245, %v241
    %v370 = vpack.c.b16 %v246, %v242
    %v371 = vpack.c.b16 %v251, %v247
    %v372 = vpack.c.b16 %v252, %v248
    %v373 = vpack.c.b16 %v253, %v249
    %v374 = vpack.c.b16 %v254, %v250
    %v375 = vpack.c.b16 %v259, %v255
    %v376 = vpack.c.b16 %v260, %v256
    %v377 = vpack.c.b16 %v261, %v257
    %v378 = vpack.c.b16 %v262, %v258
    %v379 = vpack.c.b16 %v267, %v263
    %v380 = vpack.c.b16 %v268, %v264
    %v381 = vpack.c.b16 %v269, %v265
    %v382 = vpack.c.b16 %v270, %v266
    %v383 = vpack.c.b16 %v275, %v271
    %v384 = vpack.c.b16 %v276, %v272
    %v385 = vpack.c.b16 %v277, %v273
    %v386 = vpack.c.b16 %v278, %v274
    %v387 = vpack.c.b16 %v283, %v279
    %v388 = vpack.c.b16 %v284, %v280
    %v389 = vpack.c.b16 %v285, %v281
    %v390 = vpack.c.b16 %v286, %v282
    %v391 = vpack.c.b16 %v291, %v287
    %v392 = vpack.c.b16 %v292, %v288
    %v393 = vpack.c.b16 %v293, %v289
    %v394 = vpack.c.b16 %v294, %v290
    %v395 = vpack.c.b16 %v299, %v295
    %v396 = vpack.c.b16 %v300, %v296
    %v397 = vpack.c.b16 %v301, %v297
    %v398 = vpack.c.b16 %v302, %v298
    %v399 = vpack.c.b16 %v307, %v303
    %v400 = vpack.c.b16 %v308, %v304
    %v401 = vpack.c.b16 %v309, %v305
    %v402 = vpack.c.b16 %v310, %v306
    %v403 = vpack.c.b16 %v315, %v311
    %v404 = vpack.c.b16 %v316, %v312
    %v405 = vpack.c.b16 %v317, %v313
    %v406 = vpack.c.b16 %v318, %v314
    %v407 = vpack.c.b16 %v323, %v319
    %v408 = vpack.c.b16 %v324, %v320
    %v409 = vpack.c.b16 %v325, %v321
    %v410 = vpack.c.b16 %v326, %v322
    %v411 = vpack.c.b16 %v331, %v327
    %v412 = vpack.c.b16 %v332, %v328
    %v413 = vpack.c.b16 %v333, %v329
    %v414 = vpack.c.b16 %v334, %v330
    %v415 = vpack.c.b16 %v339, %v335
    %v416 = vpack.c.b16 %v340, %v336
    %v417 = vpack.c.b16 %v341, %v337
    %v418 = vpack.c.b16 %v342, %v338
    %v419 = vpack.c.b16 %v347, %v343
    %v420 = vpack.c.b16 %v348, %v344
    %v421 = vpack.c.b16 %v349, %v345
    %v422 = vpack.c.b16 %v350, %v346
    %v423 = vpack.c.b16 %v355, %v351
    %v424 = vpack.c.b16 %v356, %v352
    %v425 = vpack.c.b16 %v357, %v353
    %v426 = vpack.c.b16 %v358, %v354
    %v427 = vpack.c.b16 %v363, %v359
    %v428 = vpack.c.b16 %v364, %v360
    %v429 = vpack.c.b16 %v365, %v361
    %v430 = vpack.c.b16 %v366, %v362
    %495 = vmatprep.subr.bf16.mxu0 %v368
    %496 = vmatpush1.bf16.msra.mxu0 %v367
    %497 = vmatprep.subr.bf16.mxu0 %v372
    %498 = vmatpush1.bf16.msra.mxu0 %v371
    %499 = vmatprep.subr.bf16.mxu0 %v376
    %500 = vmatpush1.bf16.msra.mxu0 %v375
    %501 = vmatprep.subr.bf16.mxu0 %v380
    %502 = vmatpush1.bf16.msra.mxu0 %v379
    %503 = vmatprep.subr.bf16.mxu0 %v384
    %504 = vmatpush1.bf16.msra.mxu0 %v383
    %505 = vmatprep.subr.bf16.mxu0 %v388
    %506 = vmatpush1.bf16.msra.mxu0 %v387
    %507 = vmatprep.subr.bf16.mxu0 %v392
    %508 = vmatpush1.bf16.msra.mxu0 %v391
    %509 = vmatprep.subr.bf16.mxu0 %v396
    %510 = vmatpush1.bf16.msra.mxu0 %v395
    %511 = vmatprep.subr.bf16.mxu0 %v400
    %512 = vmatpush1.bf16.msra.mxu0 %v399
    %513 = vmatprep.subr.bf16.mxu0 %v404
    %514 = vmatpush1.bf16.msra.mxu0 %v403
    %515 = vmatprep.subr.bf16.mxu0 %v408
    %516 = vmatpush1.bf16.msra.mxu0 %v407
    %517 = vmatprep.subr.bf16.mxu0 %v412
    %518 = vmatpush1.bf16.msra.mxu0 %v411
    %519 = vmatprep.subr.bf16.mxu0 %v416
    %520 = vmatpush1.bf16.msra.mxu0 %v415
    %521 = vmatprep.subr.bf16.mxu0 %v420
    %522 = vmatpush1.bf16.msra.mxu0 %v419
    %523 = vmatprep.subr.bf16.mxu0 %v424
    %524 = vmatpush1.bf16.msra.mxu0 %v423
    %525 = vmatprep.subr.bf16.mxu0 %v428
    %526 = vmatpush1.bf16.msra.mxu0 %v427
    %527 = vmatprep.mubr.bf16.mxu0 0
    %528 = vmatmul.mubr.bf16.gmra.mrb[0].mxu0 %v88
    %v529 = vpop.f32.mrb[0].mxu0
    %v530 = vadd.f32 %v158, %v529
    %v531 = vpop.f32.mrb[0].mxu0
    %v532 = vadd.f32 %v162, %v531
    %v533 = vpop.f32.mrb[0].mxu0
    %v534 = vpop.f32.mrb[0].mxu0
    %535 = vdwg.mxu0
    %536 = vmatprep.subr.bf16.mxu0 %v370
    %537 = vmatpush1.bf16.msra.mxu0 %v369
    %538 = vmatprep.subr.bf16.mxu0 %v374
    %539 = vmatpush1.bf16.msra.mxu0 %v373
    %540 = vmatprep.subr.bf16.mxu0 %v378
    %541 = vmatpush1.bf16.msra.mxu0 %v377
    %542 = vmatprep.subr.bf16.mxu0 %v382
    %543 = vmatpush1.bf16.msra.mxu0 %v381
    %544 = vmatprep.subr.bf16.mxu0 %v386
    %545 = vmatpush1.bf16.msra.mxu0 %v385
    %546 = vmatprep.subr.bf16.mxu0 %v390
    %547 = vmatpush1.bf16.msra.mxu0 %v389
    %548 = vmatprep.subr.bf16.mxu0 %v394
    %549 = vmatpush1.bf16.msra.mxu0 %v393
    %550 = vmatprep.subr.bf16.mxu0 %v398
    %551 = vmatpush1.bf16.msra.mxu0 %v397
    %552 = vmatprep.subr.bf16.mxu0 %v402
    %553 = vmatpush1.bf16.msra.mxu0 %v401
    %554 = vmatprep.subr.bf16.mxu0 %v406
    %555 = vmatpush1.bf16.msra.mxu0 %v405
    %556 = vmatprep.subr.bf16.mxu0 %v410
    %557 = vmatpush1.bf16.msra.mxu0 %v409
    %558 = vmatprep.subr.bf16.mxu0 %v414
    %559 = vmatpush1.bf16.msra.mxu0 %v413
    %560 = vmatprep.subr.bf16.mxu0 %v418
    %561 = vmatpush1.bf16.msra.mxu0 %v417
    %562 = vmatprep.subr.bf16.mxu0 %v422
    %563 = vmatpush1.bf16.msra.mxu0 %v421
    %564 = vmatprep.subr.bf16.mxu0 %v426
    %565 = vmatpush1.bf16.msra.mxu0 %v425
    %566 = vmatprep.subr.bf16.mxu0 %v430
    %567 = vmatpush1.bf16.msra.mxu0 %v429
    %568 = vmatprep.mubr.bf16.mxu0 0
    %569 = vmatmul.mubr.bf16.gmra.mrb[0].mxu0 %v88
    %v570 = vpop.f32.mrb[0].mxu0
    %v571 = vadd.f32 %v166, %v570
    %v572 = vpop.f32.mrb[0].mxu0
    %v573 = vadd.f32 %v170, %v572
    %v574 = vpop.f32.mrb[0].mxu0
    %v575 = vpop.f32.mrb[0].mxu0
    %576 = vdwg.mxu0
    %v577 = vxor.u32 %v530, 2147483648
    %v578 = vmul.f32 %v577, 1.442695
    %v579 = vpow.pop %v578
    %v580 = vadd.f32 %v579, 1.0
    %v581 = vrcp.pop %v580
    %v582 = vmul.f32 1.0, %v581
    %v583 = vxor.u32 %v532, 2147483648
    %v584 = vmul.f32 %v583, 1.442695
    %v585 = vpow.pop %v584
    %v586 = vadd.f32 %v585, 1.0
    %v587 = vrcp.pop %v586
    %v588 = vmul.f32 1.0, %v587
    %v589 = vtanh.pop %v571
    %v590 = vxor.u32 %v573, 2147483648
    %v591 = vmul.f32 %v590, 1.442695
    %v592 = vpow.pop %v591
    %v593 = vadd.f32 %v592, 1.0
    %v594 = vrcp.pop %v593
    %v595 = vmul.f32 1.0, %v594
    %v596 = vmul.f32 %v588, 0.0
    %v597 = vmul.f32 %v582, %v589
    %v598 = vadd.f32 %v596, %v597
    %v599 = vtanh.pop %v598
    %v600 = vmul.f32 %v595, %v599
    %v601 = vld [vmem:[%s3] sm:$0xff]
    %v602 = vld [vmem:[%s3 + $0x8] sm:$0xff]
    %v603 = vld [vmem:[%s3 + $0x10] sm:$0xff]
    %v604 = vld [vmem:[%s3 + $0x18] sm:$0xff]
    %v605 = vld [vmem:[%s3 + $0x20] sm:$0xff]
    %v606 = vld [vmem:[%s3 + $0x28] sm:$0xff]
    %v607 = vld [vmem:[%s3 + $0x30] sm:$0xff]
    %v608 = vld [vmem:[%s3 + $0x38] sm:$0xff]
    %v609 = vld [vmem:[%s3 + $0x40] sm:$0xff]
    %v610 = vld [vmem:[%s3 + $0x48] sm:$0xff]
    %v611 = vld [vmem:[%s3 + $0x50] sm:$0xff]
    %v612 = vld [vmem:[%s3 + $0x58] sm:$0xff]
    %v613 = vld [vmem:[%s3 + $0x60] sm:$0xff]
    %v614 = vld [vmem:[%s3 + $0x68] sm:$0xff]
    %v615 = vld [vmem:[%s3 + $0x70] sm:$0xff]
    %v616 = vld [vmem:[%s3 + $0x78] sm:$0xff]
    %v617 = vld [vmem:[%s3 + $0x80] sm:$0xff]
    %v618 = vld [vmem:[%s3 + $0x88] sm:$0xff]
    %v619 = vld [vmem:[%s3 + $0x90] sm:$0xff]
    %v620 = vld [vmem:[%s3 + $0x98] sm:$0xff]
    %v621 = vld [vmem:[%s3 + $0xa0] sm:$0xff]
    %v622 = vld [vmem:[%s3 + $0xa8] sm:$0xff]
    %v623 = vld [vmem:[%s3 + $0xb0] sm:$0xff]
    %v624 = vld [vmem:[%s3 + $0xb8] sm:$0xff]
    %v625 = vld [vmem:[%s3 + $0xc0] sm:$0xff]
    %v626 = vld [vmem:[%s3 + $0xc8] sm:$0xff]
    %v627 = vld [vmem:[%s3 + $0xd0] sm:$0xff]
    %v628 = vld [vmem:[%s3 + $0xd8] sm:$0xff]
    %v629 = vld [vmem:[%s3 + $0xe0] sm:$0xff]
    %v630 = vld [vmem:[%s3 + $0xe8] sm:$0xff]
    %v631 = vld [vmem:[%s3 + $0xf0] sm:$0xff]
    %v632 = vld [vmem:[%s3 + $0xf8] sm:$0xff]
    %v633 = vld [vmem:[%s3 + $0x100] sm:$0xff]
    %v634 = vld [vmem:[%s3 + $0x108] sm:$0xff]
    %v635 = vld [vmem:[%s3 + $0x110] sm:$0xff]
    %v636 = vld [vmem:[%s3 + $0x118] sm:$0xff]
    %v637 = vld [vmem:[%s3 + $0x120] sm:$0xff]
    %v638 = vld [vmem:[%s3 + $0x128] sm:$0xff]
    %v639 = vld [vmem:[%s3 + $0x130] sm:$0xff]
    %v640 = vld [vmem:[%s3 + $0x138] sm:$0xff]
    %v641 = vld [vmem:[%s3 + $0x140] sm:$0xff]
    %v642 = vld [vmem:[%s3 + $0x148] sm:$0xff]
    %v643 = vld [vmem:[%s3 + $0x150] sm:$0xff]
    %v644 = vld [vmem:[%s3 + $0x158] sm:$0xff]
    %v645 = vld [vmem:[%s3 + $0x160] sm:$0xff]
    %v646 = vld [vmem:[%s3 + $0x168] sm:$0xff]
    %v647 = vld [vmem:[%s3 + $0x170] sm:$0xff]
    %v648 = vld [vmem:[%s3 + $0x178] sm:$0xff]
    %v649 = vld [vmem:[%s3 + $0x180] sm:$0xff]
    %v650 = vld [vmem:[%s3 + $0x188] sm:$0xff]
    %v651 = vld [vmem:[%s3 + $0x190] sm:$0xff]
    %v652 = vld [vmem:[%s3 + $0x198] sm:$0xff]
    %v653 = vld [vmem:[%s3 + $0x1a0] sm:$0xff]
    %v654 = vld [vmem:[%s3 + $0x1a8] sm:$0xff]
    %v655 = vld [vmem:[%s3 + $0x1b0] sm:$0xff]
    %v656 = vld [vmem:[%s3 + $0x1b8] sm:$0xff]
    %v657 = vld [vmem:[%s3 + $0x1c0] sm:$0xff]
    %v658 = vld [vmem:[%s3 + $0x1c8] sm:$0xff]
    %v659 = vld [vmem:[%s3 + $0x1d0] sm:$0xff]
    %v660 = vld [vmem:[%s3 + $0x1d8] sm:$0xff]
    %v661 = vld [vmem:[%s3 + $0x1e0] sm:$0xff]
    %v662 = vld [vmem:[%s3 + $0x1e8] sm:$0xff]
    %v663 = vld [vmem:[%s3 + $0x1f0] sm:$0xff]
    %v664 = vld [vmem:[%s3 + $0x1f8] sm:$0xff]
    %v665 = vld [vmem:[%s6] sm:$0xf]
    %v666 = vpack.c.bf16 %v600, %v600
    %v668 = vlaneseq
    %v669 = vshrl.u32 %v668, 7
    %v670 = vsub.s32 0, %v669
    %v671 = vrot.slane %v665, %v670
    %v672 = vlaneseq
    %v673 = vshrl.u32 %v672, 7
    %v674 = vsub.s32 1, %v673
    %v675 = vrot.slane %v665, %v674
    %v676 = vlaneseq
    %v677 = vshrl.u32 %v676, 7
    %v678 = vsub.s32 2, %v677
    %v679 = vrot.slane %v665, %v678
    %v680 = vlaneseq
    %v681 = vshrl.u32 %v680, 7
    %v682 = vsub.s32 3, %v681
    %v683 = vrot.slane %v665, %v682
    %v752 = vunpack.c.l.b16 %v601
    %v753 = vunpack.c.h.b16 %v601
    %v754 = vunpack.c.l.b16 %v602
    %v755 = vunpack.c.h.b16 %v602
    %v756 = vunpack.c.l.b16 %v603
    %v757 = vunpack.c.h.b16 %v603
    %v758 = vunpack.c.l.b16 %v604
    %v759 = vunpack.c.h.b16 %v604
    %v760 = vunpack.c.l.b16 %v605
    %v761 = vunpack.c.h.b16 %v605
    %v762 = vunpack.c.l.b16 %v606
    %v763 = vunpack.c.h.b16 %v606
    %v764 = vunpack.c.l.b16 %v607
    %v765 = vunpack.c.h.b16 %v607
    %v766 = vunpack.c.l.b16 %v608
    %v767 = vunpack.c.h.b16 %v608
    %v768 = vunpack.c.l.b16 %v609
    %v769 = vunpack.c.h.b16 %v609
    %v770 = vunpack.c.l.b16 %v610
    %v771 = vunpack.c.h.b16 %v610
    %v772 = vunpack.c.l.b16 %v611
    %v773 = vunpack.c.h.b16 %v611
    %v774 = vunpack.c.l.b16 %v612
    %v775 = vunpack.c.h.b16 %v612
    %v776 = vunpack.c.l.b16 %v613
    %v777 = vunpack.c.h.b16 %v613
    %v778 = vunpack.c.l.b16 %v614
    %v779 = vunpack.c.h.b16 %v614
    %v780 = vunpack.c.l.b16 %v615
    %v781 = vunpack.c.h.b16 %v615
    %v782 = vunpack.c.l.b16 %v616
    %v783 = vunpack.c.h.b16 %v616
    %v784 = vunpack.c.l.b16 %v617
    %v785 = vunpack.c.h.b16 %v617
    %v786 = vunpack.c.l.b16 %v618
    %v787 = vunpack.c.h.b16 %v618
    %v788 = vunpack.c.l.b16 %v619
    %v789 = vunpack.c.h.b16 %v619
    %v790 = vunpack.c.l.b16 %v620
    %v791 = vunpack.c.h.b16 %v620
    %v792 = vunpack.c.l.b16 %v621
    %v793 = vunpack.c.h.b16 %v621
    %v794 = vunpack.c.l.b16 %v622
    %v795 = vunpack.c.h.b16 %v622
    %v796 = vunpack.c.l.b16 %v623
    %v797 = vunpack.c.h.b16 %v623
    %v798 = vunpack.c.l.b16 %v624
    %v799 = vunpack.c.h.b16 %v624
    %v800 = vunpack.c.l.b16 %v625
    %v801 = vunpack.c.h.b16 %v625
    %v802 = vunpack.c.l.b16 %v626
    %v803 = vunpack.c.h.b16 %v626
    %v804 = vunpack.c.l.b16 %v627
    %v805 = vunpack.c.h.b16 %v627
    %v806 = vunpack.c.l.b16 %v628
    %v807 = vunpack.c.h.b16 %v628
    %v808 = vunpack.c.l.b16 %v629
    %v809 = vunpack.c.h.b16 %v629
    %v810 = vunpack.c.l.b16 %v630
    %v811 = vunpack.c.h.b16 %v630
    %v812 = vunpack.c.l.b16 %v631
    %v813 = vunpack.c.h.b16 %v631
    %v814 = vunpack.c.l.b16 %v632
    %v815 = vunpack.c.h.b16 %v632
    %v816 = vunpack.c.l.b16 %v633
    %v817 = vunpack.c.h.b16 %v633
    %v818 = vunpack.c.l.b16 %v634
    %v819 = vunpack.c.h.b16 %v634
    %v820 = vunpack.c.l.b16 %v635
    %v821 = vunpack.c.h.b16 %v635
    %v822 = vunpack.c.l.b16 %v636
    %v823 = vunpack.c.h.b16 %v636
    %v824 = vunpack.c.l.b16 %v637
    %v825 = vunpack.c.h.b16 %v637
    %v826 = vunpack.c.l.b16 %v638
    %v827 = vunpack.c.h.b16 %v638
    %v828 = vunpack.c.l.b16 %v639
    %v829 = vunpack.c.h.b16 %v639
    %v830 = vunpack.c.l.b16 %v640
    %v831 = vunpack.c.h.b16 %v640
    %v832 = vunpack.c.l.b16 %v641
    %v833 = vunpack.c.h.b16 %v641
    %v834 = vunpack.c.l.b16 %v642
    %v835 = vunpack.c.h.b16 %v642
    %v836 = vunpack.c.l.b16 %v643
    %v837 = vunpack.c.h.b16 %v643
    %v838 = vunpack.c.l.b16 %v644
    %v839 = vunpack.c.h.b16 %v644
    %v840 = vunpack.c.l.b16 %v645
    %v841 = vunpack.c.h.b16 %v645
    %v842 = vunpack.c.l.b16 %v646
    %v843 = vunpack.c.h.b16 %v646
    %v844 = vunpack.c.l.b16 %v647
    %v845 = vunpack.c.h.b16 %v647
    %v846 = vunpack.c.l.b16 %v648
    %v847 = vunpack.c.h.b16 %v648
    %v848 = vunpack.c.l.b16 %v649
    %v849 = vunpack.c.h.b16 %v649
    %v850 = vunpack.c.l.b16 %v650
    %v851 = vunpack.c.h.b16 %v650
    %v852 = vunpack.c.l.b16 %v651
    %v853 = vunpack.c.h.b16 %v651
    %v854 = vunpack.c.l.b16 %v652
    %v855 = vunpack.c.h.b16 %v652
    %v856 = vunpack.c.l.b16 %v653
    %v857 = vunpack.c.h.b16 %v653
    %v858 = vunpack.c.l.b16 %v654
    %v859 = vunpack.c.h.b16 %v654
    %v860 = vunpack.c.l.b16 %v655
    %v861 = vunpack.c.h.b16 %v655
    %v862 = vunpack.c.l.b16 %v656
    %v863 = vunpack.c.h.b16 %v656
    %v864 = vunpack.c.l.b16 %v657
    %v865 = vunpack.c.h.b16 %v657
    %v866 = vunpack.c.l.b16 %v658
    %v867 = vunpack.c.h.b16 %v658
    %v868 = vunpack.c.l.b16 %v659
    %v869 = vunpack.c.h.b16 %v659
    %v870 = vunpack.c.l.b16 %v660
    %v871 = vunpack.c.h.b16 %v660
    %v872 = vunpack.c.l.b16 %v661
    %v873 = vunpack.c.h.b16 %v661
    %v874 = vunpack.c.l.b16 %v662
    %v875 = vunpack.c.h.b16 %v662
    %v876 = vunpack.c.l.b16 %v663
    %v877 = vunpack.c.h.b16 %v663
    %v878 = vunpack.c.l.b16 %v664
    %v879 = vunpack.c.h.b16 %v664
    %v880 = vpack.c.b16 %v756, %v752
    %v881 = vpack.c.b16 %v757, %v753
    %v882 = vpack.c.b16 %v758, %v754
    %v883 = vpack.c.b16 %v759, %v755
    %v884 = vpack.c.b16 %v764, %v760
    %v885 = vpack.c.b16 %v765, %v761
    %v886 = vpack.c.b16 %v766, %v762
    %v887 = vpack.c.b16 %v767, %v763
    %v888 = vpack.c.b16 %v772, %v768
    %v889 = vpack.c.b16 %v773, %v769
    %v890 = vpack.c.b16 %v774, %v770
    %v891 = vpack.c.b16 %v775, %v771
    %v892 = vpack.c.b16 %v780, %v776
    %v893 = vpack.c.b16 %v781, %v777
    %v894 = vpack.c.b16 %v782, %v778
    %v895 = vpack.c.b16 %v783, %v779
    %v896 = vpack.c.b16 %v788, %v784
    %v897 = vpack.c.b16 %v789, %v785
    %v898 = vpack.c.b16 %v790, %v786
    %v899 = vpack.c.b16 %v791, %v787
    %v900 = vpack.c.b16 %v796, %v792
    %v901 = vpack.c.b16 %v797, %v793
    %v902 = vpack.c.b16 %v798, %v794
    %v903 = vpack.c.b16 %v799, %v795
    %v904 = vpack.c.b16 %v804, %v800
    %v905 = vpack.c.b16 %v805, %v801
    %v906 = vpack.c.b16 %v806, %v802
    %v907 = vpack.c.b16 %v807, %v803
    %v908 = vpack.c.b16 %v812, %v808
    %v909 = vpack.c.b16 %v813, %v809
    %v910 = vpack.c.b16 %v814, %v810
    %v911 = vpack.c.b16 %v815, %v811
    %v912 = vpack.c.b16 %v820, %v816
    %v913 = vpack.c.b16 %v821, %v817
    %v914 = vpack.c.b16 %v822, %v818
    %v915 = vpack.c.b16 %v823, %v819
    %v916 = vpack.c.b16 %v828, %v824
    %v917 = vpack.c.b16 %v829, %v825
    %v918 = vpack.c.b16 %v830, %v826
    %v919 = vpack.c.b16 %v831, %v827
    %v920 = vpack.c.b16 %v836, %v832
    %v921 = vpack.c.b16 %v837, %v833
    %v922 = vpack.c.b16 %v838, %v834
    %v923 = vpack.c.b16 %v839, %v835
    %v924 = vpack.c.b16 %v844, %v840
    %v925 = vpack.c.b16 %v845, %v841
    %v926 = vpack.c.b16 %v846, %v842
    %v927 = vpack.c.b16 %v847, %v843
    %v928 = vpack.c.b16 %v852, %v848
    %v929 = vpack.c.b16 %v853, %v849
    %v930 = vpack.c.b16 %v854, %v850
    %v931 = vpack.c.b16 %v855, %v851
    %v932 = vpack.c.b16 %v860, %v856
    %v933 = vpack.c.b16 %v861, %v857
    %v934 = vpack.c.b16 %v862, %v858
    %v935 = vpack.c.b16 %v863, %v859
    %v936 = vpack.c.b16 %v868, %v864
    %v937 = vpack.c.b16 %v869, %v865
    %v938 = vpack.c.b16 %v870, %v866
    %v939 = vpack.c.b16 %v871, %v867
    %v940 = vpack.c.b16 %v876, %v872
    %v941 = vpack.c.b16 %v877, %v873
    %v942 = vpack.c.b16 %v878, %v874
    %v943 = vpack.c.b16 %v879, %v875
    %1008 = vmatprep.subr.bf16.mxu0 %v881
    %1009 = vmatpush1.bf16.msra.mxu0 %v880
    %1010 = vmatprep.subr.bf16.mxu0 %v885
    %1011 = vmatpush1.bf16.msra.mxu0 %v884
    %1012 = vmatprep.subr.bf16.mxu0 %v889
    %1013 = vmatpush1.bf16.msra.mxu0 %v888
    %1014 = vmatprep.subr.bf16.mxu0 %v893
    %1015 = vmatpush1.bf16.msra.mxu0 %v892
    %1016 = vmatprep.subr.bf16.mxu0 %v897
    %1017 = vmatpush1.bf16.msra.mxu0 %v896
    %1018 = vmatprep.subr.bf16.mxu0 %v901
    %1019 = vmatpush1.bf16.msra.mxu0 %v900
    %1020 = vmatprep.subr.bf16.mxu0 %v905
    %1021 = vmatpush1.bf16.msra.mxu0 %v904
    %1022 = vmatprep.subr.bf16.mxu0 %v909
    %1023 = vmatpush1.bf16.msra.mxu0 %v908
    %1024 = vmatprep.subr.bf16.mxu0 %v913
    %1025 = vmatpush1.bf16.msra.mxu0 %v912
    %1026 = vmatprep.subr.bf16.mxu0 %v917
    %1027 = vmatpush1.bf16.msra.mxu0 %v916
    %1028 = vmatprep.subr.bf16.mxu0 %v921
    %1029 = vmatpush1.bf16.msra.mxu0 %v920
    %1030 = vmatprep.subr.bf16.mxu0 %v925
    %1031 = vmatpush1.bf16.msra.mxu0 %v924
    %1032 = vmatprep.subr.bf16.mxu0 %v929
    %1033 = vmatpush1.bf16.msra.mxu0 %v928
    %1034 = vmatprep.subr.bf16.mxu0 %v933
    %1035 = vmatpush1.bf16.msra.mxu0 %v932
    %1036 = vmatprep.subr.bf16.mxu0 %v937
    %1037 = vmatpush1.bf16.msra.mxu0 %v936
    %1038 = vmatprep.subr.bf16.mxu0 %v941
    %1039 = vmatpush1.bf16.msra.mxu0 %v940
    %1040 = vmatprep.mubr.bf16.mxu0 0
    %1041 = vmatmul.mubr.bf16.gmra.mrb[0].mxu0 %v666
    %v1042 = vpop.f32.mrb[0].mxu0
    %v1043 = vadd.f32 %v671, %v1042
    %v1044 = vpop.f32.mrb[0].mxu0
    %v1045 = vadd.f32 %v675, %v1044
    %v1046 = vpop.f32.mrb[0].mxu0
    %v1047 = vpop.f32.mrb[0].mxu0
    %1048 = vdwg.mxu0
    %1049 = vmatprep.subr.bf16.mxu0 %v883
    %1050 = vmatpush1.bf16.msra.mxu0 %v882
    %1051 = vmatprep.subr.bf16.mxu0 %v887
    %1052 = vmatpush1.bf16.msra.mxu0 %v886
    %1053 = vmatprep.subr.bf16.mxu0 %v891
    %1054 = vmatpush1.bf16.msra.mxu0 %v890
    %1055 = vmatprep.subr.bf16.mxu0 %v895
    %1056 = vmatpush1.bf16.msra.mxu0 %v894
    %1057 = vmatprep.subr.bf16.mxu0 %v899
    %1058 = vmatpush1.bf16.msra.mxu0 %v898
    %1059 = vmatprep.subr.bf16.mxu0 %v903
    %1060 = vmatpush1.bf16.msra.mxu0 %v902
    %1061 = vmatprep.subr.bf16.mxu0 %v907
    %1062 = vmatpush1.bf16.msra.mxu0 %v906
    %1063 = vmatprep.subr.bf16.mxu0 %v911
    %1064 = vmatpush1.bf16.msra.mxu0 %v910
    %1065 = vmatprep.subr.bf16.mxu0 %v915
    %1066 = vmatpush1.bf16.msra.mxu0 %v914
    %1067 = vmatprep.subr.bf16.mxu0 %v919
    %1068 = vmatpush1.bf16.msra.mxu0 %v918
    %1069 = vmatprep.subr.bf16.mxu0 %v923
    %1070 = vmatpush1.bf16.msra.mxu0 %v922
    %1071 = vmatprep.subr.bf16.mxu0 %v927
    %1072 = vmatpush1.bf16.msra.mxu0 %v926
    %1073 = vmatprep.subr.bf16.mxu0 %v931
    %1074 = vmatpush1.bf16.msra.mxu0 %v930
    %1075 = vmatprep.subr.bf16.mxu0 %v935
    %1076 = vmatpush1.bf16.msra.mxu0 %v934
    %1077 = vmatprep.subr.bf16.mxu0 %v939
    %1078 = vmatpush1.bf16.msra.mxu0 %v938
    %1079 = vmatprep.subr.bf16.mxu0 %v943
    %1080 = vmatpush1.bf16.msra.mxu0 %v942
    %1081 = vmatprep.mubr.bf16.mxu0 0
    %1082 = vmatmul.mubr.bf16.gmra.mrb[0].mxu0 %v666
    %v1083 = vpop.f32.mrb[0].mxu0
    %v1084 = vadd.f32 %v679, %v1083
    %v1085 = vpop.f32.mrb[0].mxu0
    %v1086 = vadd.f32 %v683, %v1085
    %v1087 = vpop.f32.mrb[0].mxu0
    %v1088 = vpop.f32.mrb[0].mxu0
    %1089 = vdwg.mxu0
    %v1090 = vxor.u32 %v1043, 2147483648
    %v1091 = vmul.f32 %v1090, 1.442695
    %v1092 = vpow.pop %v1091
    %v1093 = vadd.f32 %v1092, 1.0
    %v1094 = vrcp.pop %v1093
    %v1095 = vmul.f32 1.0, %v1094
    %v1096 = vxor.u32 %v1045, 2147483648
    %v1097 = vmul.f32 %v1096, 1.442695
    %v1098 = vpow.pop %v1097
    %v1099 = vadd.f32 %v1098, 1.0
    %v1100 = vrcp.pop %v1099
    %v1101 = vmul.f32 1.0, %v1100
    %v1102 = vtanh.pop %v1084
    %v1103 = vxor.u32 %v1086, 2147483648
    %v1104 = vmul.f32 %v1103, 1.442695
    %v1105 = vpow.pop %v1104
    %v1106 = vadd.f32 %v1105, 1.0
    %v1107 = vrcp.pop %v1106
    %v1108 = vmul.f32 1.0, %v1107
    %v1109 = vmul.f32 %v1101, 0.0
    %v1110 = vmul.f32 %v1095, %v1102
    %v1111 = vadd.f32 %v1109, %v1110
    %v1112 = vtanh.pop %v1111
    %v1113 = vmul.f32 %v1108, %v1112
    %v1114 = vld [vmem:[%s4] sm:$0xff]
    %v1115 = vld [vmem:[%s4 + $0x8] sm:$0xff]
    %v1116 = vld [vmem:[%s4 + $0x10] sm:$0xff]
    %v1117 = vld [vmem:[%s4 + $0x18] sm:$0xff]
    %v1118 = vld [vmem:[%s4 + $0x20] sm:$0xff]
    %v1119 = vld [vmem:[%s4 + $0x28] sm:$0xff]
    %v1120 = vld [vmem:[%s4 + $0x30] sm:$0xff]
    %v1121 = vld [vmem:[%s4 + $0x38] sm:$0xff]
    %v1122 = vld [vmem:[%s4 + $0x40] sm:$0xff]
    %v1123 = vld [vmem:[%s4 + $0x48] sm:$0xff]
    %v1124 = vld [vmem:[%s4 + $0x50] sm:$0xff]
    %v1125 = vld [vmem:[%s4 + $0x58] sm:$0xff]
    %v1126 = vld [vmem:[%s4 + $0x60] sm:$0xff]
    %v1127 = vld [vmem:[%s4 + $0x68] sm:$0xff]
    %v1128 = vld [vmem:[%s4 + $0x70] sm:$0xff]
    %v1129 = vld [vmem:[%s4 + $0x78] sm:$0xff]
    %v1130 = vld [vmem:[%s4 + $0x80] sm:$0xff]
    %v1131 = vld [vmem:[%s4 + $0x88] sm:$0xff]
    %v1132 = vld [vmem:[%s4 + $0x90] sm:$0xff]
    %v1133 = vld [vmem:[%s4 + $0x98] sm:$0xff]
    %v1134 = vld [vmem:[%s4 + $0xa0] sm:$0xff]
    %v1135 = vld [vmem:[%s4 + $0xa8] sm:$0xff]
    %v1136 = vld [vmem:[%s4 + $0xb0] sm:$0xff]
    %v1137 = vld [vmem:[%s4 + $0xb8] sm:$0xff]
    %v1138 = vld [vmem:[%s4 + $0xc0] sm:$0xff]
    %v1139 = vld [vmem:[%s4 + $0xc8] sm:$0xff]
    %v1140 = vld [vmem:[%s4 + $0xd0] sm:$0xff]
    %v1141 = vld [vmem:[%s4 + $0xd8] sm:$0xff]
    %v1142 = vld [vmem:[%s4 + $0xe0] sm:$0xff]
    %v1143 = vld [vmem:[%s4 + $0xe8] sm:$0xff]
    %v1144 = vld [vmem:[%s4 + $0xf0] sm:$0xff]
    %v1145 = vld [vmem:[%s4 + $0xf8] sm:$0xff]
    %v1146 = vld [vmem:[%s4 + $0x100] sm:$0xff]
    %v1147 = vld [vmem:[%s4 + $0x108] sm:$0xff]
    %v1148 = vld [vmem:[%s4 + $0x110] sm:$0xff]
    %v1149 = vld [vmem:[%s4 + $0x118] sm:$0xff]
    %v1150 = vld [vmem:[%s4 + $0x120] sm:$0xff]
    %v1151 = vld [vmem:[%s4 + $0x128] sm:$0xff]
    %v1152 = vld [vmem:[%s4 + $0x130] sm:$0xff]
    %v1153 = vld [vmem:[%s4 + $0x138] sm:$0xff]
    %v1154 = vld [vmem:[%s4 + $0x140] sm:$0xff]
    %v1155 = vld [vmem:[%s4 + $0x148] sm:$0xff]
    %v1156 = vld [vmem:[%s4 + $0x150] sm:$0xff]
    %v1157 = vld [vmem:[%s4 + $0x158] sm:$0xff]
    %v1158 = vld [vmem:[%s4 + $0x160] sm:$0xff]
    %v1159 = vld [vmem:[%s4 + $0x168] sm:$0xff]
    %v1160 = vld [vmem:[%s4 + $0x170] sm:$0xff]
    %v1161 = vld [vmem:[%s4 + $0x178] sm:$0xff]
    %v1162 = vld [vmem:[%s4 + $0x180] sm:$0xff]
    %v1163 = vld [vmem:[%s4 + $0x188] sm:$0xff]
    %v1164 = vld [vmem:[%s4 + $0x190] sm:$0xff]
    %v1165 = vld [vmem:[%s4 + $0x198] sm:$0xff]
    %v1166 = vld [vmem:[%s4 + $0x1a0] sm:$0xff]
    %v1167 = vld [vmem:[%s4 + $0x1a8] sm:$0xff]
    %v1168 = vld [vmem:[%s4 + $0x1b0] sm:$0xff]
    %v1169 = vld [vmem:[%s4 + $0x1b8] sm:$0xff]
    %v1170 = vld [vmem:[%s4 + $0x1c0] sm:$0xff]
    %v1171 = vld [vmem:[%s4 + $0x1c8] sm:$0xff]
    %v1172 = vld [vmem:[%s4 + $0x1d0] sm:$0xff]
    %v1173 = vld [vmem:[%s4 + $0x1d8] sm:$0xff]
    %v1174 = vld [vmem:[%s4 + $0x1e0] sm:$0xff]
    %v1175 = vld [vmem:[%s4 + $0x1e8] sm:$0xff]
    %v1176 = vld [vmem:[%s4 + $0x1f0] sm:$0xff]
    %v1177 = vld [vmem:[%s4 + $0x1f8] sm:$0xff]
    %v1178 = vld [vmem:[%s7] sm:$0xf]
    %v1179 = vpack.c.bf16 %v1113, %v1113
    %v1181 = vlaneseq
    %v1182 = vshrl.u32 %v1181, 7
    %v1183 = vsub.s32 0, %v1182
    %v1184 = vrot.slane %v1178, %v1183
    %v1185 = vlaneseq
    %v1186 = vshrl.u32 %v1185, 7
    %v1187 = vsub.s32 1, %v1186
    %v1188 = vrot.slane %v1178, %v1187
    %v1189 = vlaneseq
    %v1190 = vshrl.u32 %v1189, 7
    %v1191 = vsub.s32 2, %v1190
    %v1192 = vrot.slane %v1178, %v1191
    %v1193 = vlaneseq
    %v1194 = vshrl.u32 %v1193, 7
    %v1195 = vsub.s32 3, %v1194
    %v1196 = vrot.slane %v1178, %v1195
    %v1265 = vunpack.c.l.b16 %v1114
    %v1266 = vunpack.c.h.b16 %v1114
    %v1267 = vunpack.c.l.b16 %v1115
    %v1268 = vunpack.c.h.b16 %v1115
    %v1269 = vunpack.c.l.b16 %v1116
    %v1270 = vunpack.c.h.b16 %v1116
    %v1271 = vunpack.c.l.b16 %v1117
    %v1272 = vunpack.c.h.b16 %v1117
    %v1273 = vunpack.c.l.b16 %v1118
    %v1274 = vunpack.c.h.b16 %v1118
    %v1275 = vunpack.c.l.b16 %v1119
    %v1276 = vunpack.c.h.b16 %v1119
    %v1277 = vunpack.c.l.b16 %v1120
    %v1278 = vunpack.c.h.b16 %v1120
    %v1279 = vunpack.c.l.b16 %v1121
    %v1280 = vunpack.c.h.b16 %v1121
    %v1281 = vunpack.c.l.b16 %v1122
    %v1282 = vunpack.c.h.b16 %v1122
    %v1283 = vunpack.c.l.b16 %v1123
    %v1284 = vunpack.c.h.b16 %v1123
    %v1285 = vunpack.c.l.b16 %v1124
    %v1286 = vunpack.c.h.b16 %v1124
    %v1287 = vunpack.c.l.b16 %v1125
    %v1288 = vunpack.c.h.b16 %v1125
    %v1289 = vunpack.c.l.b16 %v1126
    %v1290 = vunpack.c.h.b16 %v1126
    %v1291 = vunpack.c.l.b16 %v1127
    %v1292 = vunpack.c.h.b16 %v1127
    %v1293 = vunpack.c.l.b16 %v1128
    %v1294 = vunpack.c.h.b16 %v1128
    %v1295 = vunpack.c.l.b16 %v1129
    %v1296 = vunpack.c.h.b16 %v1129
    %v1297 = vunpack.c.l.b16 %v1130
    %v1298 = vunpack.c.h.b16 %v1130
    %v1299 = vunpack.c.l.b16 %v1131
    %v1300 = vunpack.c.h.b16 %v1131
    %v1301 = vunpack.c.l.b16 %v1132
    %v1302 = vunpack.c.h.b16 %v1132
    %v1303 = vunpack.c.l.b16 %v1133
    %v1304 = vunpack.c.h.b16 %v1133
    %v1305 = vunpack.c.l.b16 %v1134
    %v1306 = vunpack.c.h.b16 %v1134
    %v1307 = vunpack.c.l.b16 %v1135
    %v1308 = vunpack.c.h.b16 %v1135
    %v1309 = vunpack.c.l.b16 %v1136
    %v1310 = vunpack.c.h.b16 %v1136
    %v1311 = vunpack.c.l.b16 %v1137
    %v1312 = vunpack.c.h.b16 %v1137
    %v1313 = vunpack.c.l.b16 %v1138
    %v1314 = vunpack.c.h.b16 %v1138
    %v1315 = vunpack.c.l.b16 %v1139
    %v1316 = vunpack.c.h.b16 %v1139
    %v1317 = vunpack.c.l.b16 %v1140
    %v1318 = vunpack.c.h.b16 %v1140
    %v1319 = vunpack.c.l.b16 %v1141
    %v1320 = vunpack.c.h.b16 %v1141
    %v1321 = vunpack.c.l.b16 %v1142
    %v1322 = vunpack.c.h.b16 %v1142
    %v1323 = vunpack.c.l.b16 %v1143
    %v1324 = vunpack.c.h.b16 %v1143
    %v1325 = vunpack.c.l.b16 %v1144
    %v1326 = vunpack.c.h.b16 %v1144
    %v1327 = vunpack.c.l.b16 %v1145
    %v1328 = vunpack.c.h.b16 %v1145
    %v1329 = vunpack.c.l.b16 %v1146
    %v1330 = vunpack.c.h.b16 %v1146
    %v1331 = vunpack.c.l.b16 %v1147
    %v1332 = vunpack.c.h.b16 %v1147
    %v1333 = vunpack.c.l.b16 %v1148
    %v1334 = vunpack.c.h.b16 %v1148
    %v1335 = vunpack.c.l.b16 %v1149
    %v1336 = vunpack.c.h.b16 %v1149
    %v1337 = vunpack.c.l.b16 %v1150
    %v1338 = vunpack.c.h.b16 %v1150
    %v1339 = vunpack.c.l.b16 %v1151
    %v1340 = vunpack.c.h.b16 %v1151
    %v1341 = vunpack.c.l.b16 %v1152
    %v1342 = vunpack.c.h.b16 %v1152
    %v1343 = vunpack.c.l.b16 %v1153
    %v1344 = vunpack.c.h.b16 %v1153
    %v1345 = vunpack.c.l.b16 %v1154
    %v1346 = vunpack.c.h.b16 %v1154
    %v1347 = vunpack.c.l.b16 %v1155
    %v1348 = vunpack.c.h.b16 %v1155
    %v1349 = vunpack.c.l.b16 %v1156
    %v1350 = vunpack.c.h.b16 %v1156
    %v1351 = vunpack.c.l.b16 %v1157
    %v1352 = vunpack.c.h.b16 %v1157
    %v1353 = vunpack.c.l.b16 %v1158
    %v1354 = vunpack.c.h.b16 %v1158
    %v1355 = vunpack.c.l.b16 %v1159
    %v1356 = vunpack.c.h.b16 %v1159
    %v1357 = vunpack.c.l.b16 %v1160
    %v1358 = vunpack.c.h.b16 %v1160
    %v1359 = vunpack.c.l.b16 %v1161
    %v1360 = vunpack.c.h.b16 %v1161
    %v1361 = vunpack.c.l.b16 %v1162
    %v1362 = vunpack.c.h.b16 %v1162
    %v1363 = vunpack.c.l.b16 %v1163
    %v1364 = vunpack.c.h.b16 %v1163
    %v1365 = vunpack.c.l.b16 %v1164
    %v1366 = vunpack.c.h.b16 %v1164
    %v1367 = vunpack.c.l.b16 %v1165
    %v1368 = vunpack.c.h.b16 %v1165
    %v1369 = vunpack.c.l.b16 %v1166
    %v1370 = vunpack.c.h.b16 %v1166
    %v1371 = vunpack.c.l.b16 %v1167
    %v1372 = vunpack.c.h.b16 %v1167
    %v1373 = vunpack.c.l.b16 %v1168
    %v1374 = vunpack.c.h.b16 %v1168
    %v1375 = vunpack.c.l.b16 %v1169
    %v1376 = vunpack.c.h.b16 %v1169
    %v1377 = vunpack.c.l.b16 %v1170
    %v1378 = vunpack.c.h.b16 %v1170
    %v1379 = vunpack.c.l.b16 %v1171
    %v1380 = vunpack.c.h.b16 %v1171
    %v1381 = vunpack.c.l.b16 %v1172
    %v1382 = vunpack.c.h.b16 %v1172
    %v1383 = vunpack.c.l.b16 %v1173
    %v1384 = vunpack.c.h.b16 %v1173
    %v1385 = vunpack.c.l.b16 %v1174
    %v1386 = vunpack.c.h.b16 %v1174
    %v1387 = vunpack.c.l.b16 %v1175
    %v1388 = vunpack.c.h.b16 %v1175
    %v1389 = vunpack.c.l.b16 %v1176
    %v1390 = vunpack.c.h.b16 %v1176
    %v1391 = vunpack.c.l.b16 %v1177
    %v1392 = vunpack.c.h.b16 %v1177
    %v1393 = vpack.c.b16 %v1269, %v1265
    %v1394 = vpack.c.b16 %v1270, %v1266
    %v1395 = vpack.c.b16 %v1271, %v1267
    %v1396 = vpack.c.b16 %v1272, %v1268
    %v1397 = vpack.c.b16 %v1277, %v1273
    %v1398 = vpack.c.b16 %v1278, %v1274
    %v1399 = vpack.c.b16 %v1279, %v1275
    %v1400 = vpack.c.b16 %v1280, %v1276
    %v1401 = vpack.c.b16 %v1285, %v1281
    %v1402 = vpack.c.b16 %v1286, %v1282
    %v1403 = vpack.c.b16 %v1287, %v1283
    %v1404 = vpack.c.b16 %v1288, %v1284
    %v1405 = vpack.c.b16 %v1293, %v1289
    %v1406 = vpack.c.b16 %v1294, %v1290
    %v1407 = vpack.c.b16 %v1295, %v1291
    %v1408 = vpack.c.b16 %v1296, %v1292
    %v1409 = vpack.c.b16 %v1301, %v1297
    %v1410 = vpack.c.b16 %v1302, %v1298
    %v1411 = vpack.c.b16 %v1303, %v1299
    %v1412 = vpack.c.b16 %v1304, %v1300
    %v1413 = vpack.c.b16 %v1309, %v1305
    %v1414 = vpack.c.b16 %v1310, %v1306
    %v1415 = vpack.c.b16 %v1311, %v1307
    %v1416 = vpack.c.b16 %v1312, %v1308
    %v1417 = vpack.c.b16 %v1317, %v1313
    %v1418 = vpack.c.b16 %v1318, %v1314
    %v1419 = vpack.c.b16 %v1319, %v1315
    %v1420 = vpack.c.b16 %v1320, %v1316
    %v1421 = vpack.c.b16 %v1325, %v1321
    %v1422 = vpack.c.b16 %v1326, %v1322
    %v1423 = vpack.c.b16 %v1327, %v1323
    %v1424 = vpack.c.b16 %v1328, %v1324
    %v1425 = vpack.c.b16 %v1333, %v1329
    %v1426 = vpack.c.b16 %v1334, %v1330
    %v1427 = vpack.c.b16 %v1335, %v1331
    %v1428 = vpack.c.b16 %v1336, %v1332
    %v1429 = vpack.c.b16 %v1341, %v1337
    %v1430 = vpack.c.b16 %v1342, %v1338
    %v1431 = vpack.c.b16 %v1343, %v1339
    %v1432 = vpack.c.b16 %v1344, %v1340
    %v1433 = vpack.c.b16 %v1349, %v1345
    %v1434 = vpack.c.b16 %v1350, %v1346
    %v1435 = vpack.c.b16 %v1351, %v1347
    %v1436 = vpack.c.b16 %v1352, %v1348
    %v1437 = vpack.c.b16 %v1357, %v1353
    %v1438 = vpack.c.b16 %v1358, %v1354
    %v1439 = vpack.c.b16 %v1359, %v1355
    %v1440 = vpack.c.b16 %v1360, %v1356
    %v1441 = vpack.c.b16 %v1365, %v1361
    %v1442 = vpack.c.b16 %v1366, %v1362
    %v1443 = vpack.c.b16 %v1367, %v1363
    %v1444 = vpack.c.b16 %v1368, %v1364
    %v1445 = vpack.c.b16 %v1373, %v1369
    %v1446 = vpack.c.b16 %v1374, %v1370
    %v1447 = vpack.c.b16 %v1375, %v1371
    %v1448 = vpack.c.b16 %v1376, %v1372
    %v1449 = vpack.c.b16 %v1381, %v1377
    %v1450 = vpack.c.b16 %v1382, %v1378
    %v1451 = vpack.c.b16 %v1383, %v1379
    %v1452 = vpack.c.b16 %v1384, %v1380
    %v1453 = vpack.c.b16 %v1389, %v1385
    %v1454 = vpack.c.b16 %v1390, %v1386
    %v1455 = vpack.c.b16 %v1391, %v1387
    %v1456 = vpack.c.b16 %v1392, %v1388
    %1521 = vmatprep.subr.bf16.mxu0 %v1394
    %1522 = vmatpush1.bf16.msra.mxu0 %v1393
    %1523 = vmatprep.subr.bf16.mxu0 %v1398
    %1524 = vmatpush1.bf16.msra.mxu0 %v1397
    %1525 = vmatprep.subr.bf16.mxu0 %v1402
    %1526 = vmatpush1.bf16.msra.mxu0 %v1401
    %1527 = vmatprep.subr.bf16.mxu0 %v1406
    %1528 = vmatpush1.bf16.msra.mxu0 %v1405
    %1529 = vmatprep.subr.bf16.mxu0 %v1410
    %1530 = vmatpush1.bf16.msra.mxu0 %v1409
    %1531 = vmatprep.subr.bf16.mxu0 %v1414
    %1532 = vmatpush1.bf16.msra.mxu0 %v1413
    %1533 = vmatprep.subr.bf16.mxu0 %v1418
    %1534 = vmatpush1.bf16.msra.mxu0 %v1417
    %1535 = vmatprep.subr.bf16.mxu0 %v1422
    %1536 = vmatpush1.bf16.msra.mxu0 %v1421
    %1537 = vmatprep.subr.bf16.mxu0 %v1426
    %1538 = vmatpush1.bf16.msra.mxu0 %v1425
    %1539 = vmatprep.subr.bf16.mxu0 %v1430
    %1540 = vmatpush1.bf16.msra.mxu0 %v1429
    %1541 = vmatprep.subr.bf16.mxu0 %v1434
    %1542 = vmatpush1.bf16.msra.mxu0 %v1433
    %1543 = vmatprep.subr.bf16.mxu0 %v1438
    %1544 = vmatpush1.bf16.msra.mxu0 %v1437
    %1545 = vmatprep.subr.bf16.mxu0 %v1442
    %1546 = vmatpush1.bf16.msra.mxu0 %v1441
    %1547 = vmatprep.subr.bf16.mxu0 %v1446
    %1548 = vmatpush1.bf16.msra.mxu0 %v1445
    %1549 = vmatprep.subr.bf16.mxu0 %v1450
    %1550 = vmatpush1.bf16.msra.mxu0 %v1449
    %1551 = vmatprep.subr.bf16.mxu0 %v1454
    %1552 = vmatpush1.bf16.msra.mxu0 %v1453
    %1553 = vmatprep.mubr.bf16.mxu0 0
    %1554 = vmatmul.mubr.bf16.gmra.mrb[0].mxu0 %v1179
    %v1555 = vpop.f32.mrb[0].mxu0
    %v1556 = vadd.f32 %v1184, %v1555
    %v1557 = vpop.f32.mrb[0].mxu0
    %v1558 = vadd.f32 %v1188, %v1557
    %v1559 = vpop.f32.mrb[0].mxu0
    %v1560 = vpop.f32.mrb[0].mxu0
    %1561 = vdwg.mxu0
    %1562 = vmatprep.subr.bf16.mxu0 %v1396
    %1563 = vmatpush1.bf16.msra.mxu0 %v1395
    %1564 = vmatprep.subr.bf16.mxu0 %v1400
    %1565 = vmatpush1.bf16.msra.mxu0 %v1399
    %1566 = vmatprep.subr.bf16.mxu0 %v1404
    %1567 = vmatpush1.bf16.msra.mxu0 %v1403
    %1568 = vmatprep.subr.bf16.mxu0 %v1408
    %1569 = vmatpush1.bf16.msra.mxu0 %v1407
    %1570 = vmatprep.subr.bf16.mxu0 %v1412
    %1571 = vmatpush1.bf16.msra.mxu0 %v1411
    %1572 = vmatprep.subr.bf16.mxu0 %v1416
    %1573 = vmatpush1.bf16.msra.mxu0 %v1415
    %1574 = vmatprep.subr.bf16.mxu0 %v1420
    %1575 = vmatpush1.bf16.msra.mxu0 %v1419
    %1576 = vmatprep.subr.bf16.mxu0 %v1424
    %1577 = vmatpush1.bf16.msra.mxu0 %v1423
    %1578 = vmatprep.subr.bf16.mxu0 %v1428
    %1579 = vmatpush1.bf16.msra.mxu0 %v1427
    %1580 = vmatprep.subr.bf16.mxu0 %v1432
    %1581 = vmatpush1.bf16.msra.mxu0 %v1431
    %1582 = vmatprep.subr.bf16.mxu0 %v1436
    %1583 = vmatpush1.bf16.msra.mxu0 %v1435
    %1584 = vmatprep.subr.bf16.mxu0 %v1440
    %1585 = vmatpush1.bf16.msra.mxu0 %v1439
    %1586 = vmatprep.subr.bf16.mxu0 %v1444
    %1587 = vmatpush1.bf16.msra.mxu0 %v1443
    %1588 = vmatprep.subr.bf16.mxu0 %v1448
    %1589 = vmatpush1.bf16.msra.mxu0 %v1447
    %1590 = vmatprep.subr.bf16.mxu0 %v1452
    %1591 = vmatpush1.bf16.msra.mxu0 %v1451
    %1592 = vmatprep.subr.bf16.mxu0 %v1456
    %1593 = vmatpush1.bf16.msra.mxu0 %v1455
    %1594 = vmatprep.mubr.bf16.mxu0 0
    %1595 = vmatmul.mubr.bf16.gmra.mrb[0].mxu0 %v1179
    %v1596 = vpop.f32.mrb[0].mxu0
    %v1597 = vadd.f32 %v1192, %v1596
    %v1598 = vpop.f32.mrb[0].mxu0
    %v1599 = vadd.f32 %v1196, %v1598
    %v1600 = vpop.f32.mrb[0].mxu0
    %v1601 = vpop.f32.mrb[0].mxu0
    %1602 = vdwg.mxu0
    %v1603 = vxor.u32 %v1556, 2147483648
    %v1604 = vmul.f32 %v1603, 1.442695
    %v1605 = vpow.pop %v1604
    %v1606 = vadd.f32 %v1605, 1.0
    %v1607 = vrcp.pop %v1606
    %v1608 = vmul.f32 1.0, %v1607
    %v1609 = vxor.u32 %v1558, 2147483648
    %v1610 = vmul.f32 %v1609, 1.442695
    %v1611 = vpow.pop %v1610
    %v1612 = vadd.f32 %v1611, 1.0
    %v1613 = vrcp.pop %v1612
    %v1614 = vmul.f32 1.0, %v1613
    %v1615 = vtanh.pop %v1597
    %v1616 = vxor.u32 %v1599, 2147483648
    %v1617 = vmul.f32 %v1616, 1.442695
    %v1618 = vpow.pop %v1617
    %v1619 = vadd.f32 %v1618, 1.0
    %v1620 = vrcp.pop %v1619
    %v1621 = vmul.f32 1.0, %v1620
    %v1622 = vmul.f32 %v1614, 0.0
    %v1623 = vmul.f32 %v1608, %v1615
    %v1624 = vadd.f32 %v1622, %v1623
    %v1625 = vtanh.pop %v1624
    %v1626 = vmul.f32 %v1621, %v1625
    %s1627 = scalar_lea.vmem %s1, 4
    %v1628 = vld [vmem:[%s1627] sm:$0xf]
    %1629 = vmatprep.subr.bf16.mxu0 %v368
    %1630 = vmatpush1.bf16.msra.mxu0 %v367
    %1631 = vmatprep.subr.bf16.mxu0 %v372
    %1632 = vmatpush1.bf16.msra.mxu0 %v371
    %1633 = vmatprep.subr.bf16.mxu0 %v376
    %1634 = vmatpush1.bf16.msra.mxu0 %v375
    %1635 = vmatprep.subr.bf16.mxu0 %v380
    %1636 = vmatpush1.bf16.msra.mxu0 %v379
    %1637 = vmatprep.subr.bf16.mxu0 %v384
    %1638 = vmatpush1.bf16.msra.mxu0 %v383
    %1639 = vmatprep.subr.bf16.mxu0 %v388
    %1640 = vmatpush1.bf16.msra.mxu0 %v387
    %1641 = vmatprep.subr.bf16.mxu0 %v392
    %1642 = vmatpush1.bf16.msra.mxu0 %v391
    %1643 = vmatprep.subr.bf16.mxu0 %v396
    %1644 = vmatpush1.bf16.msra.mxu0 %v395
    %1645 = vmatprep.subr.bf16.mxu0 %v400
    %1646 = vmatpush1.bf16.msra.mxu0 %v399
    %1647 = vmatprep.subr.bf16.mxu0 %v404
    %1648 = vmatpush1.bf16.msra.mxu0 %v403
    %1649 = vmatprep.subr.bf16.mxu0 %v408
    %1650 = vmatpush1.bf16.msra.mxu0 %v407
    %1651 = vmatprep.subr.bf16.mxu0 %v412
    %1652 = vmatpush1.bf16.msra.mxu0 %v411
    %1653 = vmatprep.subr.bf16.mxu0 %v416
    %1654 = vmatpush1.bf16.msra.mxu0 %v415
    %1655 = vmatprep.subr.bf16.mxu0 %v420
    %1656 = vmatpush1.bf16.msra.mxu0 %v419
    %1657 = vmatprep.subr.bf16.mxu0 %v424
    %1658 = vmatpush1.bf16.msra.mxu0 %v423
    %1659 = vmatprep.subr.bf16.mxu0 %v428
    %1660 = vmatpush1.bf16.msra.mxu0 %v427
    %1661 = vmatprep.mubr.bf16.mxu0 %v666
    %1662 = vmatmul.mubr.bf16.gmra.mrb[0].mxu0 %v1628
    %v1663 = vpop.f32.mrb[0].mxu0
    %v1664 = vadd.f32 %v158, %v1663
    %v1665 = vpop.f32.mrb[0].mxu0
    %v1666 = vadd.f32 %v162, %v1665
    %v1667 = vpop.f32.mrb[0].mxu0
    %v1668 = vpop.f32.mrb[0].mxu0
    %1669 = vdwg.mxu0
    %1670 = vmatprep.subr.bf16.mxu0 %v370
    %1671 = vmatpush1.bf16.msra.mxu0 %v369
    %1672 = vmatprep.subr.bf16.mxu0 %v374
    %1673 = vmatpush1.bf16.msra.mxu0 %v373
    %1674 = vmatprep.subr.bf16.mxu0 %v378
    %1675 = vmatpush1.bf16.msra.mxu0 %v377
    %1676 = vmatprep.subr.bf16.mxu0 %v382
    %1677 = vmatpush1.bf16.msra.mxu0 %v381
    %1678 = vmatprep.subr.bf16.mxu0 %v386
    %1679 = vmatpush1.bf16.msra.mxu0 %v385
    %1680 = vmatprep.subr.bf16.mxu0 %v390
    %1681 = vmatpush1.bf16.msra.mxu0 %v389
    %1682 = vmatprep.subr.bf16.mxu0 %v394
    %1683 = vmatpush1.bf16.msra.mxu0 %v393
    %1684 = vmatprep.subr.bf16.mxu0 %v398
    %1685 = vmatpush1.bf16.msra.mxu0 %v397
    %1686 = vmatprep.subr.bf16.mxu0 %v402
    %1687 = vmatpush1.bf16.msra.mxu0 %v401
    %1688 = vmatprep.subr.bf16.mxu0 %v406
    %1689 = vmatpush1.bf16.msra.mxu0 %v405
    %1690 = vmatprep.subr.bf16.mxu0 %v410
    %1691 = vmatpush1.bf16.msra.mxu0 %v409
    %1692 = vmatprep.subr.bf16.mxu0 %v414
    %1693 = vmatpush1.bf16.msra.mxu0 %v413
    %1694 = vmatprep.subr.bf16.mxu0 %v418
    %1695 = vmatpush1.bf16.msra.mxu0 %v417
    %1696 = vmatprep.subr.bf16.mxu0 %v422
    %1697 = vmatpush1.bf16.msra.mxu0 %v421
    %1698 = vmatprep.subr.bf16.mxu0 %v426
    %1699 = vmatpush1.bf16.msra.mxu0 %v425
    %1700 = vmatprep.subr.bf16.mxu0 %v430
    %1701 = vmatpush1.bf16.msra.mxu0 %v429
    %1702 = vmatprep.mubr.bf16.mxu0 %v666
    %1703 = vmatmul.mubr.bf16.gmra.mrb[0].mxu0 %v1628
    %v1704 = vpop.f32.mrb[0].mxu0
    %v1705 = vadd.f32 %v166, %v1704
    %v1706 = vpop.f32.mrb[0].mxu0
    %v1707 = vadd.f32 %v170, %v1706
    %v1708 = vpop.f32.mrb[0].mxu0
    %v1709 = vpop.f32.mrb[0].mxu0
    %1710 = vdwg.mxu0
    %v1711 = vxor.u32 %v1664, 2147483648
    %v1712 = vmul.f32 %v1711, 1.442695
    %v1713 = vpow.pop %v1712
    %v1714 = vadd.f32 %v1713, 1.0
    %v1715 = vrcp.pop %v1714
    %v1716 = vmul.f32 1.0, %v1715
    %v1717 = vxor.u32 %v1666, 2147483648
    %v1718 = vmul.f32 %v1717, 1.442695
    %v1719 = vpow.pop %v1718
    %v1720 = vadd.f32 %v1719, 1.0
    %v1721 = vrcp.pop %v1720
    %v1722 = vmul.f32 1.0, %v1721
    %v1723 = vtanh.pop %v1705
    %v1724 = vxor.u32 %v1707, 2147483648
    %v1725 = vmul.f32 %v1724, 1.442695
    %v1726 = vpow.pop %v1725
    %v1727 = vadd.f32 %v1726, 1.0
    %v1728 = vrcp.pop %v1727
    %v1729 = vmul.f32 1.0, %v1728
    %v1730 = vmul.f32 %v1722, %v598
    %v1731 = vmul.f32 %v1716, %v1723
    %v1732 = vadd.f32 %v1730, %v1731
    %v1733 = vtanh.pop %v1732
    %v1734 = vmul.f32 %v1729, %v1733
    %v1735 = vpack.c.bf16 %v1734, %v1734
    %1736 = vmatprep.subr.bf16.mxu0 %v881
    %1737 = vmatpush1.bf16.msra.mxu0 %v880
    %1738 = vmatprep.subr.bf16.mxu0 %v885
    %1739 = vmatpush1.bf16.msra.mxu0 %v884
    %1740 = vmatprep.subr.bf16.mxu0 %v889
    %1741 = vmatpush1.bf16.msra.mxu0 %v888
    %1742 = vmatprep.subr.bf16.mxu0 %v893
    %1743 = vmatpush1.bf16.msra.mxu0 %v892
    %1744 = vmatprep.subr.bf16.mxu0 %v897
    %1745 = vmatpush1.bf16.msra.mxu0 %v896
    %1746 = vmatprep.subr.bf16.mxu0 %v901
    %1747 = vmatpush1.bf16.msra.mxu0 %v900
    %1748 = vmatprep.subr.bf16.mxu0 %v905
    %1749 = vmatpush1.bf16.msra.mxu0 %v904
    %1750 = vmatprep.subr.bf16.mxu0 %v909
    %1751 = vmatpush1.bf16.msra.mxu0 %v908
    %1752 = vmatprep.subr.bf16.mxu0 %v913
    %1753 = vmatpush1.bf16.msra.mxu0 %v912
    %1754 = vmatprep.subr.bf16.mxu0 %v917
    %1755 = vmatpush1.bf16.msra.mxu0 %v916
    %1756 = vmatprep.subr.bf16.mxu0 %v921
    %1757 = vmatpush1.bf16.msra.mxu0 %v920
    %1758 = vmatprep.subr.bf16.mxu0 %v925
    %1759 = vmatpush1.bf16.msra.mxu0 %v924
    %1760 = vmatprep.subr.bf16.mxu0 %v929
    %1761 = vmatpush1.bf16.msra.mxu0 %v928
    %1762 = vmatprep.subr.bf16.mxu0 %v933
    %1763 = vmatpush1.bf16.msra.mxu0 %v932
    %1764 = vmatprep.subr.bf16.mxu0 %v937
    %1765 = vmatpush1.bf16.msra.mxu0 %v936
    %1766 = vmatprep.subr.bf16.mxu0 %v941
    %1767 = vmatpush1.bf16.msra.mxu0 %v940
    %1768 = vmatprep.mubr.bf16.mxu0 %v1179
    %1769 = vmatmul.mubr.bf16.gmra.mrb[0].mxu0 %v1735
    %v1770 = vpop.f32.mrb[0].mxu0
    %v1771 = vadd.f32 %v671, %v1770
    %v1772 = vpop.f32.mrb[0].mxu0
    %v1773 = vadd.f32 %v675, %v1772
    %v1774 = vpop.f32.mrb[0].mxu0
    %v1775 = vpop.f32.mrb[0].mxu0
    %1776 = vdwg.mxu0
    %1777 = vmatprep.subr.bf16.mxu0 %v883
    %1778 = vmatpush1.bf16.msra.mxu0 %v882
    %1779 = vmatprep.subr.bf16.mxu0 %v887
    %1780 = vmatpush1.bf16.msra.mxu0 %v886
    %1781 = vmatprep.subr.bf16.mxu0 %v891
    %1782 = vmatpush1.bf16.msra.mxu0 %v890
    %1783 = vmatprep.subr.bf16.mxu0 %v895
    %1784 = vmatpush1.bf16.msra.mxu0 %v894
    %1785 = vmatprep.subr.bf16.mxu0 %v899
    %1786 = vmatpush1.bf16.msra.mxu0 %v898
    %1787 = vmatprep.subr.bf16.mxu0 %v903
    %1788 = vmatpush1.bf16.msra.mxu0 %v902
    %1789 = vmatprep.subr.bf16.mxu0 %v907
    %1790 = vmatpush1.bf16.msra.mxu0 %v906
    %1791 = vmatprep.subr.bf16.mxu0 %v911
    %1792 = vmatpush1.bf16.msra.mxu0 %v910
    %1793 = vmatprep.subr.bf16.mxu0 %v915
    %1794 = vmatpush1.bf16.msra.mxu0 %v914
    %1795 = vmatprep.subr.bf16.mxu0 %v919
    %1796 = vmatpush1.bf16.msra.mxu0 %v918
    %1797 = vmatprep.subr.bf16.mxu0 %v923
    %1798 = vmatpush1.bf16.msra.mxu0 %v922
    %1799 = vmatprep.subr.bf16.mxu0 %v927
    %1800 = vmatpush1.bf16.msra.mxu0 %v926
    %1801 = vmatprep.subr.bf16.mxu0 %v931
    %1802 = vmatpush1.bf16.msra.mxu0 %v930
    %1803 = vmatprep.subr.bf16.mxu0 %v935
    %1804 = vmatpush1.bf16.msra.mxu0 %v934
    %1805 = vmatprep.subr.bf16.mxu0 %v939
    %1806 = vmatpush1.bf16.msra.mxu0 %v938
    %1807 = vmatprep.subr.bf16.mxu0 %v943
    %1808 = vmatpush1.bf16.msra.mxu0 %v942
    %1809 = vmatprep.mubr.bf16.mxu0 %v1179
    %1810 = vmatmul.mubr.bf16.gmra.mrb[0].mxu0 %v1735
    %v1811 = vpop.f32.mrb[0].mxu0
    %v1812 = vadd.f32 %v679, %v1811
    %v1813 = vpop.f32.mrb[0].mxu0
    %v1814 = vadd.f32 %v683, %v1813
    %v1815 = vpop.f32.mrb[0].mxu0
    %v1816 = vpop.f32.mrb[0].mxu0
    %1817 = vdwg.mxu0
    %v1818 = vxor.u32 %v1771, 2147483648
    %v1819 = vmul.f32 %v1818, 1.442695
    %v1820 = vpow.pop %v1819
    %v1821 = vadd.f32 %v1820, 1.0
    %v1822 = vrcp.pop %v1821
    %v1823 = vmul.f32 1.0, %v1822
    %v1824 = vxor.u32 %v1773, 2147483648
    %v1825 = vmul.f32 %v1824, 1.442695
    %v1826 = vpow.pop %v1825
    %v1827 = vadd.f32 %v1826, 1.0
    %v1828 = vrcp.pop %v1827
    %v1829 = vmul.f32 1.0, %v1828
    %v1830 = vtanh.pop %v1812
    %v1831 = vxor.u32 %v1814, 2147483648
    %v1832 = vmul.f32 %v1831, 1.442695
    %v1833 = vpow.pop %v1832
    %v1834 = vadd.f32 %v1833, 1.0
    %v1835 = vrcp.pop %v1834
    %v1836 = vmul.f32 1.0, %v1835
    %v1837 = vmul.f32 %v1829, %v1111
    %v1838 = vmul.f32 %v1823, %v1830
    %v1839 = vadd.f32 %v1837, %v1838
    %v1840 = vtanh.pop %v1839
    %v1841 = vmul.f32 %v1836, %v1840
    %v1842 = vpack.c.bf16 %v1841, %v1841
    %v1843 = vpack.c.bf16 %v1626, %v1626
    %1844 = vmatprep.subr.bf16.mxu0 %v1394
    %1845 = vmatpush1.bf16.msra.mxu0 %v1393
    %1846 = vmatprep.subr.bf16.mxu0 %v1398
    %1847 = vmatpush1.bf16.msra.mxu0 %v1397
    %1848 = vmatprep.subr.bf16.mxu0 %v1402
    %1849 = vmatpush1.bf16.msra.mxu0 %v1401
    %1850 = vmatprep.subr.bf16.mxu0 %v1406
    %1851 = vmatpush1.bf16.msra.mxu0 %v1405
    %1852 = vmatprep.subr.bf16.mxu0 %v1410
    %1853 = vmatpush1.bf16.msra.mxu0 %v1409
    %1854 = vmatprep.subr.bf16.mxu0 %v1414
    %1855 = vmatpush1.bf16.msra.mxu0 %v1413
    %1856 = vmatprep.subr.bf16.mxu0 %v1418
    %1857 = vmatpush1.bf16.msra.mxu0 %v1417
    %1858 = vmatprep.subr.bf16.mxu0 %v1422
    %1859 = vmatpush1.bf16.msra.mxu0 %v1421
    %1860 = vmatprep.subr.bf16.mxu0 %v1426
    %1861 = vmatpush1.bf16.msra.mxu0 %v1425
    %1862 = vmatprep.subr.bf16.mxu0 %v1430
    %1863 = vmatpush1.bf16.msra.mxu0 %v1429
    %1864 = vmatprep.subr.bf16.mxu0 %v1434
    %1865 = vmatpush1.bf16.msra.mxu0 %v1433
    %1866 = vmatprep.subr.bf16.mxu0 %v1438
    %1867 = vmatpush1.bf16.msra.mxu0 %v1437
    %1868 = vmatprep.subr.bf16.mxu0 %v1442
    %1869 = vmatpush1.bf16.msra.mxu0 %v1441
    %1870 = vmatprep.subr.bf16.mxu0 %v1446
    %1871 = vmatpush1.bf16.msra.mxu0 %v1445
    %1872 = vmatprep.subr.bf16.mxu0 %v1450
    %1873 = vmatpush1.bf16.msra.mxu0 %v1449
    %1874 = vmatprep.subr.bf16.mxu0 %v1454
    %1875 = vmatpush1.bf16.msra.mxu0 %v1453
    %1876 = vmatprep.mubr.bf16.mxu0 %v1843
    %1877 = vmatmul.mubr.bf16.gmra.mrb[0].mxu0 %v1842
    %v1878 = vpop.f32.mrb[0].mxu0
    %v1879 = vadd.f32 %v1184, %v1878
    %v1880 = vpop.f32.mrb[0].mxu0
    %v1881 = vadd.f32 %v1188, %v1880
    %v1882 = vpop.f32.mrb[0].mxu0
    %v1883 = vpop.f32.mrb[0].mxu0
    %1884 = vdwg.mxu0
    %1885 = vmatprep.subr.bf16.mxu0 %v1396
    %1886 = vmatpush1.bf16.msra.mxu0 %v1395
    %1887 = vmatprep.subr.bf16.mxu0 %v1400
    %1888 = vmatpush1.bf16.msra.mxu0 %v1399
    %1889 = vmatprep.subr.bf16.mxu0 %v1404
    %1890 = vmatpush1.bf16.msra.mxu0 %v1403
    %1891 = vmatprep.subr.bf16.mxu0 %v1408
    %1892 = vmatpush1.bf16.msra.mxu0 %v1407
    %1893 = vmatprep.subr.bf16.mxu0 %v1412
    %1894 = vmatpush1.bf16.msra.mxu0 %v1411
    %1895 = vmatprep.subr.bf16.mxu0 %v1416
    %1896 = vmatpush1.bf16.msra.mxu0 %v1415
    %1897 = vmatprep.subr.bf16.mxu0 %v1420
    %1898 = vmatpush1.bf16.msra.mxu0 %v1419
    %1899 = vmatprep.subr.bf16.mxu0 %v1424
    %1900 = vmatpush1.bf16.msra.mxu0 %v1423
    %1901 = vmatprep.subr.bf16.mxu0 %v1428
    %1902 = vmatpush1.bf16.msra.mxu0 %v1427
    %1903 = vmatprep.subr.bf16.mxu0 %v1432
    %1904 = vmatpush1.bf16.msra.mxu0 %v1431
    %1905 = vmatprep.subr.bf16.mxu0 %v1436
    %1906 = vmatpush1.bf16.msra.mxu0 %v1435
    %1907 = vmatprep.subr.bf16.mxu0 %v1440
    %1908 = vmatpush1.bf16.msra.mxu0 %v1439
    %1909 = vmatprep.subr.bf16.mxu0 %v1444
    %1910 = vmatpush1.bf16.msra.mxu0 %v1443
    %1911 = vmatprep.subr.bf16.mxu0 %v1448
    %1912 = vmatpush1.bf16.msra.mxu0 %v1447
    %1913 = vmatprep.subr.bf16.mxu0 %v1452
    %1914 = vmatpush1.bf16.msra.mxu0 %v1451
    %1915 = vmatprep.subr.bf16.mxu0 %v1456
    %1916 = vmatpush1.bf16.msra.mxu0 %v1455
    %1917 = vmatprep.mubr.bf16.mxu0 %v1843
    %1918 = vmatmul.mubr.bf16.gmra.mrb[0].mxu0 %v1842
    %v1919 = vpop.f32.mrb[0].mxu0
    %v1920 = vadd.f32 %v1192, %v1919
    %v1921 = vpop.f32.mrb[0].mxu0
    %v1922 = vadd.f32 %v1196, %v1921
    %v1923 = vpop.f32.mrb[0].mxu0
    %v1924 = vpop.f32.mrb[0].mxu0
    %1925 = vdwg.mxu0
    %v1926 = vxor.u32 %v1879, 2147483648
    %v1927 = vmul.f32 %v1926, 1.442695
    %v1928 = vpow.pop %v1927
    %v1929 = vadd.f32 %v1928, 1.0
    %v1930 = vrcp.pop %v1929
    %v1931 = vmul.f32 1.0, %v1930
    %v1932 = vxor.u32 %v1881, 2147483648
    %v1933 = vmul.f32 %v1932, 1.442695
    %v1934 = vpow.pop %v1933
    %v1935 = vadd.f32 %v1934, 1.0
    %v1936 = vrcp.pop %v1935
    %v1937 = vmul.f32 1.0, %v1936
    %v1938 = vtanh.pop %v1920
    %v1939 = vxor.u32 %v1922, 2147483648
    %v1940 = vmul.f32 %v1939, 1.442695
    %v1941 = vpow.pop %v1940
    %v1942 = vadd.f32 %v1941, 1.0
    %v1943 = vrcp.pop %v1942
    %v1944 = vmul.f32 1.0, %v1943
    %v1945 = vmul.f32 %v1937, %v1624
    %v1946 = vmul.f32 %v1931, %v1938
    %v1947 = vadd.f32 %v1945, %v1946
    %v1948 = vtanh.pop %v1947
    %v1949 = vmul.f32 %v1944, %v1948
    %s1950 = scalar_lea.vmem %s1, 8
    %v1951 = vld [vmem:[%s1950] sm:$0xf]
    %1952 = vmatprep.subr.bf16.mxu0 %v368
    %1953 = vmatpush1.bf16.msra.mxu0 %v367
    %1954 = vmatprep.subr.bf16.mxu0 %v372
    %1955 = vmatpush1.bf16.msra.mxu0 %v371
    %1956 = vmatprep.subr.bf16.mxu0 %v376
    %1957 = vmatpush1.bf16.msra.mxu0 %v375
    %1958 = vmatprep.subr.bf16.mxu0 %v380
    %1959 = vmatpush1.bf16.msra.mxu0 %v379
    %1960 = vmatprep.subr.bf16.mxu0 %v384
    %1961 = vmatpush1.bf16.msra.mxu0 %v383
    %1962 = vmatprep.subr.bf16.mxu0 %v388
    %1963 = vmatpush1.bf16.msra.mxu0 %v387
    %1964 = vmatprep.subr.bf16.mxu0 %v392
    %1965 = vmatpush1.bf16.msra.mxu0 %v391
    %1966 = vmatprep.subr.bf16.mxu0 %v396
    %1967 = vmatpush1.bf16.msra.mxu0 %v395
    %1968 = vmatprep.subr.bf16.mxu0 %v400
    %1969 = vmatpush1.bf16.msra.mxu0 %v399
    %1970 = vmatprep.subr.bf16.mxu0 %v404
    %1971 = vmatpush1.bf16.msra.mxu0 %v403
    %1972 = vmatprep.subr.bf16.mxu0 %v408
    %1973 = vmatpush1.bf16.msra.mxu0 %v407
    %1974 = vmatprep.subr.bf16.mxu0 %v412
    %1975 = vmatpush1.bf16.msra.mxu0 %v411
    %1976 = vmatprep.subr.bf16.mxu0 %v416
    %1977 = vmatpush1.bf16.msra.mxu0 %v415
    %1978 = vmatprep.subr.bf16.mxu0 %v420
    %1979 = vmatpush1.bf16.msra.mxu0 %v419
    %1980 = vmatprep.subr.bf16.mxu0 %v424
    %1981 = vmatpush1.bf16.msra.mxu0 %v423
    %1982 = vmatprep.subr.bf16.mxu0 %v428
    %1983 = vmatpush1.bf16.msra.mxu0 %v427
    %1984 = vmatprep.mubr.bf16.mxu0 %v1735
    %1985 = vmatmul.mubr.bf16.gmra.mrb[0].mxu0 %v1951
    %v1986 = vpop.f32.mrb[0].mxu0
    %v1987 = vadd.f32 %v158, %v1986
    %v1988 = vpop.f32.mrb[0].mxu0
    %v1989 = vadd.f32 %v162, %v1988
    %v1990 = vpop.f32.mrb[0].mxu0
    %v1991 = vpop.f32.mrb[0].mxu0
    %1992 = vdwg.mxu0
    %1993 = vmatprep.subr.bf16.mxu0 %v370
    %1994 = vmatpush1.bf16.msra.mxu0 %v369
    %1995 = vmatprep.subr.bf16.mxu0 %v374
    %1996 = vmatpush1.bf16.msra.mxu0 %v373
    %1997 = vmatprep.subr.bf16.mxu0 %v378
    %1998 = vmatpush1.bf16.msra.mxu0 %v377
    %1999 = vmatprep.subr.bf16.mxu0 %v382
    %2000 = vmatpush1.bf16.msra.mxu0 %v381
    %2001 = vmatprep.subr.bf16.mxu0 %v386
    %2002 = vmatpush1.bf16.msra.mxu0 %v385
    %2003 = vmatprep.subr.bf16.mxu0 %v390
    %2004 = vmatpush1.bf16.msra.mxu0 %v389
    %2005 = vmatprep.subr.bf16.mxu0 %v394
    %2006 = vmatpush1.bf16.msra.mxu0 %v393
    %2007 = vmatprep.subr.bf16.mxu0 %v398
    %2008 = vmatpush1.bf16.msra.mxu0 %v397
    %2009 = vmatprep.subr.bf16.mxu0 %v402
    %2010 = vmatpush1.bf16.msra.mxu0 %v401
    %2011 = vmatprep.subr.bf16.mxu0 %v406
    %2012 = vmatpush1.bf16.msra.mxu0 %v405
    %2013 = vmatprep.subr.bf16.mxu0 %v410
    %2014 = vmatpush1.bf16.msra.mxu0 %v409
    %2015 = vmatprep.subr.bf16.mxu0 %v414
    %2016 = vmatpush1.bf16.msra.mxu0 %v413
    %2017 = vmatprep.subr.bf16.mxu0 %v418
    %2018 = vmatpush1.bf16.msra.mxu0 %v417
    %2019 = vmatprep.subr.bf16.mxu0 %v422
    %2020 = vmatpush1.bf16.msra.mxu0 %v421
    %2021 = vmatprep.subr.bf16.mxu0 %v426
    %2022 = vmatpush1.bf16.msra.mxu0 %v425
    %2023 = vmatprep.subr.bf16.mxu0 %v430
    %2024 = vmatpush1.bf16.msra.mxu0 %v429
    %2025 = vmatprep.mubr.bf16.mxu0 %v1735
    %2026 = vmatmul.mubr.bf16.gmra.mrb[0].mxu0 %v1951
    %v2027 = vpop.f32.mrb[0].mxu0
    %v2028 = vadd.f32 %v166, %v2027
    %v2029 = vpop.f32.mrb[0].mxu0
    %v2030 = vadd.f32 %v170, %v2029
    %v2031 = vpop.f32.mrb[0].mxu0
    %v2032 = vpop.f32.mrb[0].mxu0
    %2033 = vdwg.mxu0
    %v2034 = vxor.u32 %v1987, 2147483648
    %v2035 = vmul.f32 %v2034, 1.442695
    %v2036 = vpow.pop %v2035
    %v2037 = vadd.f32 %v2036, 1.0
    %v2038 = vrcp.pop %v2037
    %v2039 = vmul.f32 1.0, %v2038
    %v2040 = vxor.u32 %v1989, 2147483648
    %v2041 = vmul.f32 %v2040, 1.442695
    %v2042 = vpow.pop %v2041
    %v2043 = vadd.f32 %v2042, 1.0
    %v2044 = vrcp.pop %v2043
    %v2045 = vmul.f32 1.0, %v2044
    %v2046 = vtanh.pop %v2028
    %v2047 = vxor.u32 %v2030, 2147483648
    %v2048 = vmul.f32 %v2047, 1.442695
    %v2049 = vpow.pop %v2048
    %v2050 = vadd.f32 %v2049, 1.0
    %v2051 = vrcp.pop %v2050
    %v2052 = vmul.f32 1.0, %v2051
    %v2053 = vmul.f32 %v2045, %v1732
    %v2054 = vmul.f32 %v2039, %v2046
    %v2055 = vadd.f32 %v2053, %v2054
    %v2056 = vtanh.pop %v2055
    %v2057 = vmul.f32 %v2052, %v2056
    %v2058 = vpack.c.bf16 %v2057, %v2057
    %2059 = vmatprep.subr.bf16.mxu0 %v881
    %2060 = vmatpush1.bf16.msra.mxu0 %v880
    %2061 = vmatprep.subr.bf16.mxu0 %v885
    %2062 = vmatpush1.bf16.msra.mxu0 %v884
    %2063 = vmatprep.subr.bf16.mxu0 %v889
    %2064 = vmatpush1.bf16.msra.mxu0 %v888
    %2065 = vmatprep.subr.bf16.mxu0 %v893
    %2066 = vmatpush1.bf16.msra.mxu0 %v892
    %2067 = vmatprep.subr.bf16.mxu0 %v897
    %2068 = vmatpush1.bf16.msra.mxu0 %v896
    %2069 = vmatprep.subr.bf16.mxu0 %v901
    %2070 = vmatpush1.bf16.msra.mxu0 %v900
    %2071 = vmatprep.subr.bf16.mxu0 %v905
    %2072 = vmatpush1.bf16.msra.mxu0 %v904
    %2073 = vmatprep.subr.bf16.mxu0 %v909
    %2074 = vmatpush1.bf16.msra.mxu0 %v908
    %2075 = vmatprep.subr.bf16.mxu0 %v913
    %2076 = vmatpush1.bf16.msra.mxu0 %v912
    %2077 = vmatprep.subr.bf16.mxu0 %v917
    %2078 = vmatpush1.bf16.msra.mxu0 %v916
    %2079 = vmatprep.subr.bf16.mxu0 %v921
    %2080 = vmatpush1.bf16.msra.mxu0 %v920
    %2081 = vmatprep.subr.bf16.mxu0 %v925
    %2082 = vmatpush1.bf16.msra.mxu0 %v924
    %2083 = vmatprep.subr.bf16.mxu0 %v929
    %2084 = vmatpush1.bf16.msra.mxu0 %v928
    %2085 = vmatprep.subr.bf16.mxu0 %v933
    %2086 = vmatpush1.bf16.msra.mxu0 %v932
    %2087 = vmatprep.subr.bf16.mxu0 %v937
    %2088 = vmatpush1.bf16.msra.mxu0 %v936
    %2089 = vmatprep.subr.bf16.mxu0 %v941
    %2090 = vmatpush1.bf16.msra.mxu0 %v940
    %2091 = vmatprep.mubr.bf16.mxu0 %v1842
    %2092 = vmatmul.mubr.bf16.gmra.mrb[0].mxu0 %v2058
    %v2093 = vpop.f32.mrb[0].mxu0
    %v2094 = vadd.f32 %v671, %v2093
    %v2095 = vpop.f32.mrb[0].mxu0
    %v2096 = vadd.f32 %v675, %v2095
    %v2097 = vpop.f32.mrb[0].mxu0
    %v2098 = vpop.f32.mrb[0].mxu0
    %2099 = vdwg.mxu0
    %2100 = vmatprep.subr.bf16.mxu0 %v883
    %2101 = vmatpush1.bf16.msra.mxu0 %v882
    %2102 = vmatprep.subr.bf16.mxu0 %v887
    %2103 = vmatpush1.bf16.msra.mxu0 %v886
    %2104 = vmatprep.subr.bf16.mxu0 %v891
    %2105 = vmatpush1.bf16.msra.mxu0 %v890
    %2106 = vmatprep.subr.bf16.mxu0 %v895
    %2107 = vmatpush1.bf16.msra.mxu0 %v894
    %2108 = vmatprep.subr.bf16.mxu0 %v899
    %2109 = vmatpush1.bf16.msra.mxu0 %v898
    %2110 = vmatprep.subr.bf16.mxu0 %v903
    %2111 = vmatpush1.bf16.msra.mxu0 %v902
    %2112 = vmatprep.subr.bf16.mxu0 %v907
    %2113 = vmatpush1.bf16.msra.mxu0 %v906
    %2114 = vmatprep.subr.bf16.mxu0 %v911
    %2115 = vmatpush1.bf16.msra.mxu0 %v910
    %2116 = vmatprep.subr.bf16.mxu0 %v915
    %2117 = vmatpush1.bf16.msra.mxu0 %v914
    %2118 = vmatprep.subr.bf16.mxu0 %v919
    %2119 = vmatpush1.bf16.msra.mxu0 %v918
    %2120 = vmatprep.subr.bf16.mxu0 %v923
    %2121 = vmatpush1.bf16.msra.mxu0 %v922
    %2122 = vmatprep.subr.bf16.mxu0 %v927
    %2123 = vmatpush1.bf16.msra.mxu0 %v926
    %2124 = vmatprep.subr.bf16.mxu0 %v931
    %2125 = vmatpush1.bf16.msra.mxu0 %v930
    %2126 = vmatprep.subr.bf16.mxu0 %v935
    %2127 = vmatpush1.bf16.msra.mxu0 %v934
    %2128 = vmatprep.subr.bf16.mxu0 %v939
    %2129 = vmatpush1.bf16.msra.mxu0 %v938
    %2130 = vmatprep.subr.bf16.mxu0 %v943
    %2131 = vmatpush1.bf16.msra.mxu0 %v942
    %2132 = vmatprep.mubr.bf16.mxu0 %v1842
    %2133 = vmatmul.mubr.bf16.gmra.mrb[0].mxu0 %v2058
    %v2134 = vpop.f32.mrb[0].mxu0
    %v2135 = vadd.f32 %v679, %v2134
    %v2136 = vpop.f32.mrb[0].mxu0
    %v2137 = vadd.f32 %v683, %v2136
    %v2138 = vpop.f32.mrb[0].mxu0
    %v2139 = vpop.f32.mrb[0].mxu0
    %2140 = vdwg.mxu0
    %v2141 = vxor.u32 %v2094, 2147483648
    %v2142 = vmul.f32 %v2141, 1.442695
    %v2143 = vpow.pop %v2142
    %v2144 = vadd.f32 %v2143, 1.0
    %v2145 = vrcp.pop %v2144
    %v2146 = vmul.f32 1.0, %v2145
    %v2147 = vxor.u32 %v2096, 2147483648
    %v2148 = vmul.f32 %v2147, 1.442695
    %v2149 = vpow.pop %v2148
    %v2150 = vadd.f32 %v2149, 1.0
    %v2151 = vrcp.pop %v2150
    %v2152 = vmul.f32 1.0, %v2151
    %v2153 = vtanh.pop %v2135
    %v2154 = vxor.u32 %v2137, 2147483648
    %v2155 = vmul.f32 %v2154, 1.442695
    %v2156 = vpow.pop %v2155
    %v2157 = vadd.f32 %v2156, 1.0
    %v2158 = vrcp.pop %v2157
    %v2159 = vmul.f32 1.0, %v2158
    %v2160 = vmul.f32 %v2152, %v1839
    %v2161 = vmul.f32 %v2146, %v2153
    %v2162 = vadd.f32 %v2160, %v2161
    %v2163 = vtanh.pop %v2162
    %v2164 = vmul.f32 %v2159, %v2163
    %v2165 = vpack.c.bf16 %v2164, %v2164
    %v2166 = vpack.c.bf16 %v1949, %v1949
    %2167 = vmatprep.subr.bf16.mxu0 %v1394
    %2168 = vmatpush1.bf16.msra.mxu0 %v1393
    %2169 = vmatprep.subr.bf16.mxu0 %v1398
    %2170 = vmatpush1.bf16.msra.mxu0 %v1397
    %2171 = vmatprep.subr.bf16.mxu0 %v1402
    %2172 = vmatpush1.bf16.msra.mxu0 %v1401
    %2173 = vmatprep.subr.bf16.mxu0 %v1406
    %2174 = vmatpush1.bf16.msra.mxu0 %v1405
    %2175 = vmatprep.subr.bf16.mxu0 %v1410
    %2176 = vmatpush1.bf16.msra.mxu0 %v1409
    %2177 = vmatprep.subr.bf16.mxu0 %v1414
    %2178 = vmatpush1.bf16.msra.mxu0 %v1413
    %2179 = vmatprep.subr.bf16.mxu0 %v1418
    %2180 = vmatpush1.bf16.msra.mxu0 %v1417
    %2181 = vmatprep.subr.bf16.mxu0 %v1422
    %2182 = vmatpush1.bf16.msra.mxu0 %v1421
    %2183 = vmatprep.subr.bf16.mxu0 %v1426
    %2184 = vmatpush1.bf16.msra.mxu0 %v1425
    %2185 = vmatprep.subr.bf16.mxu0 %v1430
    %2186 = vmatpush1.bf16.msra.mxu0 %v1429
    %2187 = vmatprep.subr.bf16.mxu0 %v1434
    %2188 = vmatpush1.bf16.msra.mxu0 %v1433
    %2189 = vmatprep.subr.bf16.mxu0 %v1438
    %2190 = vmatpush1.bf16.msra.mxu0 %v1437
    %2191 = vmatprep.subr.bf16.mxu0 %v1442
    %2192 = vmatpush1.bf16.msra.mxu0 %v1441
    %2193 = vmatprep.subr.bf16.mxu0 %v1446
    %2194 = vmatpush1.bf16.msra.mxu0 %v1445
    %2195 = vmatprep.subr.bf16.mxu0 %v1450
    %2196 = vmatpush1.bf16.msra.mxu0 %v1449
    %2197 = vmatprep.subr.bf16.mxu0 %v1454
    %2198 = vmatpush1.bf16.msra.mxu0 %v1453
    %2199 = vmatprep.mubr.bf16.mxu0 %v2166
    %2200 = vmatmul.mubr.bf16.gmra.mrb[0].mxu0 %v2165
    %v2201 = vpop.f32.mrb[0].mxu0
    %v2202 = vadd.f32 %v1184, %v2201
    %v2203 = vpop.f32.mrb[0].mxu0
    %v2204 = vadd.f32 %v1188, %v2203
    %v2205 = vpop.f32.mrb[0].mxu0
    %v2206 = vpop.f32.mrb[0].mxu0
    %2207 = vdwg.mxu0
    %2208 = vmatprep.subr.bf16.mxu0 %v1396
    %2209 = vmatpush1.bf16.msra.mxu0 %v1395
    %2210 = vmatprep.subr.bf16.mxu0 %v1400
    %2211 = vmatpush1.bf16.msra.mxu0 %v1399
    %2212 = vmatprep.subr.bf16.mxu0 %v1404
    %2213 = vmatpush1.bf16.msra.mxu0 %v1403
    %2214 = vmatprep.subr.bf16.mxu0 %v1408
    %2215 = vmatpush1.bf16.msra.mxu0 %v1407
    %2216 = vmatprep.subr.bf16.mxu0 %v1412
    %2217 = vmatpush1.bf16.msra.mxu0 %v1411
    %2218 = vmatprep.subr.bf16.mxu0 %v1416
    %2219 = vmatpush1.bf16.msra.mxu0 %v1415
    %2220 = vmatprep.subr.bf16.mxu0 %v1420
    %2221 = vmatpush1.bf16.msra.mxu0 %v1419
    %2222 = vmatprep.subr.bf16.mxu0 %v1424
    %2223 = vmatpush1.bf16.msra.mxu0 %v1423
    %2224 = vmatprep.subr.bf16.mxu0 %v1428
    %2225 = vmatpush1.bf16.msra.mxu0 %v1427
    %2226 = vmatprep.subr.bf16.mxu0 %v1432
    %2227 = vmatpush1.bf16.msra.mxu0 %v1431
    %2228 = vmatprep.subr.bf16.mxu0 %v1436
    %2229 = vmatpush1.bf16.msra.mxu0 %v1435
    %2230 = vmatprep.subr.bf16.mxu0 %v1440
    %2231 = vmatpush1.bf16.msra.mxu0 %v1439
    %2232 = vmatprep.subr.bf16.mxu0 %v1444
    %2233 = vmatpush1.bf16.msra.mxu0 %v1443
    %2234 = vmatprep.subr.bf16.mxu0 %v1448
    %2235 = vmatpush1.bf16.msra.mxu0 %v1447
    %2236 = vmatprep.subr.bf16.mxu0 %v1452
    %2237 = vmatpush1.bf16.msra.mxu0 %v1451
    %2238 = vmatprep.subr.bf16.mxu0 %v1456
    %2239 = vmatpush1.bf16.msra.mxu0 %v1455
    %2240 = vmatprep.mubr.bf16.mxu0 %v2166
    %2241 = vmatmul.mubr.bf16.gmra.mrb[0].mxu0 %v2165
    %v2242 = vpop.f32.mrb[0].mxu0
    %v2243 = vadd.f32 %v1192, %v2242
    %v2244 = vpop.f32.mrb[0].mxu0
    %v2245 = vadd.f32 %v1196, %v2244
    %v2246 = vpop.f32.mrb[0].mxu0
    %v2247 = vpop.f32.mrb[0].mxu0
    %2248 = vdwg.mxu0
    %v2249 = vxor.u32 %v2202, 2147483648
    %v2250 = vmul.f32 %v2249, 1.442695
    %v2251 = vpow.pop %v2250
    %v2252 = vadd.f32 %v2251, 1.0
    %v2253 = vrcp.pop %v2252
    %v2254 = vmul.f32 1.0, %v2253
    %v2255 = vxor.u32 %v2204, 2147483648
    %v2256 = vmul.f32 %v2255, 1.442695
    %v2257 = vpow.pop %v2256
    %v2258 = vadd.f32 %v2257, 1.0
    %v2259 = vrcp.pop %v2258
    %v2260 = vmul.f32 1.0, %v2259
    %v2261 = vtanh.pop %v2243
    %v2262 = vxor.u32 %v2245, 2147483648
    %v2263 = vmul.f32 %v2262, 1.442695
    %v2264 = vpow.pop %v2263
    %v2265 = vadd.f32 %v2264, 1.0
    %v2266 = vrcp.pop %v2265
    %v2267 = vmul.f32 1.0, %v2266
    %v2268 = vmul.f32 %v2260, %v1947
    %v2269 = vmul.f32 %v2254, %v2261
    %v2270 = vadd.f32 %v2268, %v2269
    %v2271 = vtanh.pop %v2270
    %v2272 = vmul.f32 %v2267, %v2271
    %s2273 = scalar_lea.vmem %s1, 12
    %v2274 = vld [vmem:[%s2273] sm:$0xf]
    %2275 = vmatprep.subr.bf16.mxu0 %v368
    %2276 = vmatpush1.bf16.msra.mxu0 %v367
    %2277 = vmatprep.subr.bf16.mxu0 %v372
    %2278 = vmatpush1.bf16.msra.mxu0 %v371
    %2279 = vmatprep.subr.bf16.mxu0 %v376
    %2280 = vmatpush1.bf16.msra.mxu0 %v375
    %2281 = vmatprep.subr.bf16.mxu0 %v380
    %2282 = vmatpush1.bf16.msra.mxu0 %v379
    %2283 = vmatprep.subr.bf16.mxu0 %v384
    %2284 = vmatpush1.bf16.msra.mxu0 %v383
    %2285 = vmatprep.subr.bf16.mxu0 %v388
    %2286 = vmatpush1.bf16.msra.mxu0 %v387
    %2287 = vmatprep.subr.bf16.mxu0 %v392
    %2288 = vmatpush1.bf16.msra.mxu0 %v391
    %2289 = vmatprep.subr.bf16.mxu0 %v396
    %2290 = vmatpush1.bf16.msra.mxu0 %v395
    %2291 = vmatprep.subr.bf16.mxu0 %v400
    %2292 = vmatpush1.bf16.msra.mxu0 %v399
    %2293 = vmatprep.subr.bf16.mxu0 %v404
    %2294 = vmatpush1.bf16.msra.mxu0 %v403
    %2295 = vmatprep.subr.bf16.mxu0 %v408
    %2296 = vmatpush1.bf16.msra.mxu0 %v407
    %2297 = vmatprep.subr.bf16.mxu0 %v412
    %2298 = vmatpush1.bf16.msra.mxu0 %v411
    %2299 = vmatprep.subr.bf16.mxu0 %v416
    %2300 = vmatpush1.bf16.msra.mxu0 %v415
    %2301 = vmatprep.subr.bf16.mxu0 %v420
    %2302 = vmatpush1.bf16.msra.mxu0 %v419
    %2303 = vmatprep.subr.bf16.mxu0 %v424
    %2304 = vmatpush1.bf16.msra.mxu0 %v423
    %2305 = vmatprep.subr.bf16.mxu0 %v428
    %2306 = vmatpush1.bf16.msra.mxu0 %v427
    %2307 = vmatprep.mubr.bf16.mxu0 %v2058
    %2308 = vmatmul.mubr.bf16.gmra.mrb[0].mxu0 %v2274
    %v2309 = vpop.f32.mrb[0].mxu0
    %v2310 = vadd.f32 %v158, %v2309
    %v2311 = vpop.f32.mrb[0].mxu0
    %v2312 = vadd.f32 %v162, %v2311
    %v2313 = vpop.f32.mrb[0].mxu0
    %v2314 = vpop.f32.mrb[0].mxu0
    %2315 = vdwg.mxu0
    %2316 = vmatprep.subr.bf16.mxu0 %v370
    %2317 = vmatpush1.bf16.msra.mxu0 %v369
    %2318 = vmatprep.subr.bf16.mxu0 %v374
    %2319 = vmatpush1.bf16.msra.mxu0 %v373
    %2320 = vmatprep.subr.bf16.mxu0 %v378
    %2321 = vmatpush1.bf16.msra.mxu0 %v377
    %2322 = vmatprep.subr.bf16.mxu0 %v382
    %2323 = vmatpush1.bf16.msra.mxu0 %v381
    %2324 = vmatprep.subr.bf16.mxu0 %v386
    %2325 = vmatpush1.bf16.msra.mxu0 %v385
    %2326 = vmatprep.subr.bf16.mxu0 %v390
    %2327 = vmatpush1.bf16.msra.mxu0 %v389
    %2328 = vmatprep.subr.bf16.mxu0 %v394
    %2329 = vmatpush1.bf16.msra.mxu0 %v393
    %2330 = vmatprep.subr.bf16.mxu0 %v398
    %2331 = vmatpush1.bf16.msra.mxu0 %v397
    %2332 = vmatprep.subr.bf16.mxu0 %v402
    %2333 = vmatpush1.bf16.msra.mxu0 %v401
    %2334 = vmatprep.subr.bf16.mxu0 %v406
    %2335 = vmatpush1.bf16.msra.mxu0 %v405
    %2336 = vmatprep.subr.bf16.mxu0 %v410
    %2337 = vmatpush1.bf16.msra.mxu0 %v409
    %2338 = vmatprep.subr.bf16.mxu0 %v414
    %2339 = vmatpush1.bf16.msra.mxu0 %v413
    %2340 = vmatprep.subr.bf16.mxu0 %v418
    %2341 = vmatpush1.bf16.msra.mxu0 %v417
    %2342 = vmatprep.subr.bf16.mxu0 %v422
    %2343 = vmatpush1.bf16.msra.mxu0 %v421
    %2344 = vmatprep.subr.bf16.mxu0 %v426
    %2345 = vmatpush1.bf16.msra.mxu0 %v425
    %2346 = vmatprep.subr.bf16.mxu0 %v430
    %2347 = vmatpush1.bf16.msra.mxu0 %v429
    %2348 = vmatprep.mubr.bf16.mxu0 %v2058
    %2349 = vmatmul.mubr.bf16.gmra.mrb[0].mxu0 %v2274
    %v2350 = vpop.f32.mrb[0].mxu0
    %v2351 = vadd.f32 %v166, %v2350
    %v2352 = vpop.f32.mrb[0].mxu0
    %v2353 = vadd.f32 %v170, %v2352
    %v2354 = vpop.f32.mrb[0].mxu0
    %v2355 = vpop.f32.mrb[0].mxu0
    %2356 = vdwg.mxu0
    %v2357 = vxor.u32 %v2310, 2147483648
    %v2358 = vmul.f32 %v2357, 1.442695
    %v2359 = vpow.pop %v2358
    %v2360 = vadd.f32 %v2359, 1.0
    %v2361 = vrcp.pop %v2360
    %v2362 = vmul.f32 1.0, %v2361
    %v2363 = vxor.u32 %v2312, 2147483648
    %v2364 = vmul.f32 %v2363, 1.442695
    %v2365 = vpow.pop %v2364
    %v2366 = vadd.f32 %v2365, 1.0
    %v2367 = vrcp.pop %v2366
    %v2368 = vmul.f32 1.0, %v2367
    %v2369 = vtanh.pop %v2351
    %v2370 = vxor.u32 %v2353, 2147483648
    %v2371 = vmul.f32 %v2370, 1.442695
    %v2372 = vpow.pop %v2371
    %v2373 = vadd.f32 %v2372, 1.0
    %v2374 = vrcp.pop %v2373
    %v2375 = vmul.f32 1.0, %v2374
    %v2376 = vmul.f32 %v2368, %v2055
    %v2377 = vmul.f32 %v2362, %v2369
    %v2378 = vadd.f32 %v2376, %v2377
    %v2379 = vtanh.pop %v2378
    %v2380 = vmul.f32 %v2375, %v2379
    %v2381 = vpack.c.bf16 %v2380, %v2380
    %2382 = vmatprep.subr.bf16.mxu0 %v881
    %2383 = vmatpush1.bf16.msra.mxu0 %v880
    %2384 = vmatprep.subr.bf16.mxu0 %v885
    %2385 = vmatpush1.bf16.msra.mxu0 %v884
    %2386 = vmatprep.subr.bf16.mxu0 %v889
    %2387 = vmatpush1.bf16.msra.mxu0 %v888
    %2388 = vmatprep.subr.bf16.mxu0 %v893
    %2389 = vmatpush1.bf16.msra.mxu0 %v892
    %2390 = vmatprep.subr.bf16.mxu0 %v897
    %2391 = vmatpush1.bf16.msra.mxu0 %v896
    %2392 = vmatprep.subr.bf16.mxu0 %v901
    %2393 = vmatpush1.bf16.msra.mxu0 %v900
    %2394 = vmatprep.subr.bf16.mxu0 %v905
    %2395 = vmatpush1.bf16.msra.mxu0 %v904
    %2396 = vmatprep.subr.bf16.mxu0 %v909
    %2397 = vmatpush1.bf16.msra.mxu0 %v908
    %2398 = vmatprep.subr.bf16.mxu0 %v913
    %2399 = vmatpush1.bf16.msra.mxu0 %v912
    %2400 = vmatprep.subr.bf16.mxu0 %v917
    %2401 = vmatpush1.bf16.msra.mxu0 %v916
    %2402 = vmatprep.subr.bf16.mxu0 %v921
    %2403 = vmatpush1.bf16.msra.mxu0 %v920
    %2404 = vmatprep.subr.bf16.mxu0 %v925
    %2405 = vmatpush1.bf16.msra.mxu0 %v924
    %2406 = vmatprep.subr.bf16.mxu0 %v929
    %2407 = vmatpush1.bf16.msra.mxu0 %v928
    %2408 = vmatprep.subr.bf16.mxu0 %v933
    %2409 = vmatpush1.bf16.msra.mxu0 %v932
    %2410 = vmatprep.subr.bf16.mxu0 %v937
    %2411 = vmatpush1.bf16.msra.mxu0 %v936
    %2412 = vmatprep.subr.bf16.mxu0 %v941
    %2413 = vmatpush1.bf16.msra.mxu0 %v940
    %2414 = vmatprep.mubr.bf16.mxu0 %v2165
    %2415 = vmatmul.mubr.bf16.gmra.mrb[0].mxu0 %v2381
    %v2416 = vpop.f32.mrb[0].mxu0
    %v2417 = vadd.f32 %v671, %v2416
    %v2418 = vpop.f32.mrb[0].mxu0
    %v2419 = vadd.f32 %v675, %v2418
    %v2420 = vpop.f32.mrb[0].mxu0
    %v2421 = vpop.f32.mrb[0].mxu0
    %2422 = vdwg.mxu0
    %2423 = vmatprep.subr.bf16.mxu0 %v883
    %2424 = vmatpush1.bf16.msra.mxu0 %v882
    %2425 = vmatprep.subr.bf16.mxu0 %v887
    %2426 = vmatpush1.bf16.msra.mxu0 %v886
    %2427 = vmatprep.subr.bf16.mxu0 %v891
    %2428 = vmatpush1.bf16.msra.mxu0 %v890
    %2429 = vmatprep.subr.bf16.mxu0 %v895
    %2430 = vmatpush1.bf16.msra.mxu0 %v894
    %2431 = vmatprep.subr.bf16.mxu0 %v899
    %2432 = vmatpush1.bf16.msra.mxu0 %v898
    %2433 = vmatprep.subr.bf16.mxu0 %v903
    %2434 = vmatpush1.bf16.msra.mxu0 %v902
    %2435 = vmatprep.subr.bf16.mxu0 %v907
    %2436 = vmatpush1.bf16.msra.mxu0 %v906
    %2437 = vmatprep.subr.bf16.mxu0 %v911
    %2438 = vmatpush1.bf16.msra.mxu0 %v910
    %2439 = vmatprep.subr.bf16.mxu0 %v915
    %2440 = vmatpush1.bf16.msra.mxu0 %v914
    %2441 = vmatprep.subr.bf16.mxu0 %v919
    %2442 = vmatpush1.bf16.msra.mxu0 %v918
    %2443 = vmatprep.subr.bf16.mxu0 %v923
    %2444 = vmatpush1.bf16.msra.mxu0 %v922
    %2445 = vmatprep.subr.bf16.mxu0 %v927
    %2446 = vmatpush1.bf16.msra.mxu0 %v926
    %2447 = vmatprep.subr.bf16.mxu0 %v931
    %2448 = vmatpush1.bf16.msra.mxu0 %v930
    %2449 = vmatprep.subr.bf16.mxu0 %v935
    %2450 = vmatpush1.bf16.msra.mxu0 %v934
    %2451 = vmatprep.subr.bf16.mxu0 %v939
    %2452 = vmatpush1.bf16.msra.mxu0 %v938
    %2453 = vmatprep.subr.bf16.mxu0 %v943
    %2454 = vmatpush1.bf16.msra.mxu0 %v942
    %2455 = vmatprep.mubr.bf16.mxu0 %v2165
    %2456 = vmatmul.mubr.bf16.gmra.mrb[0].mxu0 %v2381
    %v2457 = vpop.f32.mrb[0].mxu0
    %v2458 = vadd.f32 %v679, %v2457
    %v2459 = vpop.f32.mrb[0].mxu0
    %v2460 = vadd.f32 %v683, %v2459
    %v2461 = vpop.f32.mrb[0].mxu0
    %v2462 = vpop.f32.mrb[0].mxu0
    %2463 = vdwg.mxu0
    %v2464 = vxor.u32 %v2417, 2147483648
    %v2465 = vmul.f32 %v2464, 1.442695
    %v2466 = vpow.pop %v2465
    %v2467 = vadd.f32 %v2466, 1.0
    %v2468 = vrcp.pop %v2467
    %v2469 = vmul.f32 1.0, %v2468
    %v2470 = vxor.u32 %v2419, 2147483648
    %v2471 = vmul.f32 %v2470, 1.442695
    %v2472 = vpow.pop %v2471
    %v2473 = vadd.f32 %v2472, 1.0
    %v2474 = vrcp.pop %v2473
    %v2475 = vmul.f32 1.0, %v2474
    %v2476 = vtanh.pop %v2458
    %v2477 = vxor.u32 %v2460, 2147483648
    %v2478 = vmul.f32 %v2477, 1.442695
    %v2479 = vpow.pop %v2478
    %v2480 = vadd.f32 %v2479, 1.0
    %v2481 = vrcp.pop %v2480
    %v2482 = vmul.f32 1.0, %v2481
    %v2483 = vmul.f32 %v2475, %v2162
    %v2484 = vmul.f32 %v2469, %v2476
    %v2485 = vadd.f32 %v2483, %v2484
    %v2486 = vtanh.pop %v2485
    %v2487 = vmul.f32 %v2482, %v2486
    %v2488 = vpack.c.bf16 %v2487, %v2487
    %v2489 = vpack.c.bf16 %v2272, %v2272
    %2490 = vmatprep.subr.bf16.mxu0 %v1394
    %2491 = vmatpush1.bf16.msra.mxu0 %v1393
    %2492 = vmatprep.subr.bf16.mxu0 %v1398
    %2493 = vmatpush1.bf16.msra.mxu0 %v1397
    %2494 = vmatprep.subr.bf16.mxu0 %v1402
    %2495 = vmatpush1.bf16.msra.mxu0 %v1401
    %2496 = vmatprep.subr.bf16.mxu0 %v1406
    %2497 = vmatpush1.bf16.msra.mxu0 %v1405
    %2498 = vmatprep.subr.bf16.mxu0 %v1410
    %2499 = vmatpush1.bf16.msra.mxu0 %v1409
    %2500 = vmatprep.subr.bf16.mxu0 %v1414
    %2501 = vmatpush1.bf16.msra.mxu0 %v1413
    %2502 = vmatprep.subr.bf16.mxu0 %v1418
    %2503 = vmatpush1.bf16.msra.mxu0 %v1417
    %2504 = vmatprep.subr.bf16.mxu0 %v1422
    %2505 = vmatpush1.bf16.msra.mxu0 %v1421
    %2506 = vmatprep.subr.bf16.mxu0 %v1426
    %2507 = vmatpush1.bf16.msra.mxu0 %v1425
    %2508 = vmatprep.subr.bf16.mxu0 %v1430
    %2509 = vmatpush1.bf16.msra.mxu0 %v1429
    %2510 = vmatprep.subr.bf16.mxu0 %v1434
    %2511 = vmatpush1.bf16.msra.mxu0 %v1433
    %2512 = vmatprep.subr.bf16.mxu0 %v1438
    %2513 = vmatpush1.bf16.msra.mxu0 %v1437
    %2514 = vmatprep.subr.bf16.mxu0 %v1442
    %2515 = vmatpush1.bf16.msra.mxu0 %v1441
    %2516 = vmatprep.subr.bf16.mxu0 %v1446
    %2517 = vmatpush1.bf16.msra.mxu0 %v1445
    %2518 = vmatprep.subr.bf16.mxu0 %v1450
    %2519 = vmatpush1.bf16.msra.mxu0 %v1449
    %2520 = vmatprep.subr.bf16.mxu0 %v1454
    %2521 = vmatpush1.bf16.msra.mxu0 %v1453
    %2522 = vmatprep.mubr.bf16.mxu0 %v2489
    %2523 = vmatmul.mubr.bf16.gmra.mrb[0].mxu0 %v2488
    %v2524 = vpop.f32.mrb[0].mxu0
    %v2525 = vadd.f32 %v1184, %v2524
    %v2526 = vpop.f32.mrb[0].mxu0
    %v2527 = vadd.f32 %v1188, %v2526
    %v2528 = vpop.f32.mrb[0].mxu0
    %v2529 = vpop.f32.mrb[0].mxu0
    %2530 = vdwg.mxu0
    %2531 = vmatprep.subr.bf16.mxu0 %v1396
    %2532 = vmatpush1.bf16.msra.mxu0 %v1395
    %2533 = vmatprep.subr.bf16.mxu0 %v1400
    %2534 = vmatpush1.bf16.msra.mxu0 %v1399
    %2535 = vmatprep.subr.bf16.mxu0 %v1404
    %2536 = vmatpush1.bf16.msra.mxu0 %v1403
    %2537 = vmatprep.subr.bf16.mxu0 %v1408
    %2538 = vmatpush1.bf16.msra.mxu0 %v1407
    %2539 = vmatprep.subr.bf16.mxu0 %v1412
    %2540 = vmatpush1.bf16.msra.mxu0 %v1411
    %2541 = vmatprep.subr.bf16.mxu0 %v1416
    %2542 = vmatpush1.bf16.msra.mxu0 %v1415
    %2543 = vmatprep.subr.bf16.mxu0 %v1420
    %2544 = vmatpush1.bf16.msra.mxu0 %v1419
    %2545 = vmatprep.subr.bf16.mxu0 %v1424
    %2546 = vmatpush1.bf16.msra.mxu0 %v1423
    %2547 = vmatprep.subr.bf16.mxu0 %v1428
    %2548 = vmatpush1.bf16.msra.mxu0 %v1427
    %2549 = vmatprep.subr.bf16.mxu0 %v1432
    %2550 = vmatpush1.bf16.msra.mxu0 %v1431
    %2551 = vmatprep.subr.bf16.mxu0 %v1436
    %2552 = vmatpush1.bf16.msra.mxu0 %v1435
    %2553 = vmatprep.subr.bf16.mxu0 %v1440
    %2554 = vmatpush1.bf16.msra.mxu0 %v1439
    %2555 = vmatprep.subr.bf16.mxu0 %v1444
    %2556 = vmatpush1.bf16.msra.mxu0 %v1443
    %2557 = vmatprep.subr.bf16.mxu0 %v1448
    %2558 = vmatpush1.bf16.msra.mxu0 %v1447
    %2559 = vmatprep.subr.bf16.mxu0 %v1452
    %2560 = vmatpush1.bf16.msra.mxu0 %v1451
    %2561 = vmatprep.subr.bf16.mxu0 %v1456
    %2562 = vmatpush1.bf16.msra.mxu0 %v1455
    %2563 = vmatprep.mubr.bf16.mxu0 %v2489
    %2564 = vmatmul.mubr.bf16.gmra.mrb[0].mxu0 %v2488
    %v2565 = vpop.f32.mrb[0].mxu0
    %v2566 = vadd.f32 %v1192, %v2565
    %v2567 = vpop.f32.mrb[0].mxu0
    %v2568 = vadd.f32 %v1196, %v2567
    %v2569 = vpop.f32.mrb[0].mxu0
    %v2570 = vpop.f32.mrb[0].mxu0
    %2571 = vdwg.mxu0
    %v2572 = vxor.u32 %v2525, 2147483648
    %v2573 = vmul.f32 %v2572, 1.442695
    %v2574 = vpow.pop %v2573
    %v2575 = vadd.f32 %v2574, 1.0
    %v2576 = vrcp.pop %v2575
    %v2577 = vmul.f32 1.0, %v2576
    %v2578 = vxor.u32 %v2527, 2147483648
    %v2579 = vmul.f32 %v2578, 1.442695
    %v2580 = vpow.pop %v2579
    %v2581 = vadd.f32 %v2580, 1.0
    %v2582 = vrcp.pop %v2581
    %v2583 = vmul.f32 1.0, %v2582
    %v2584 = vtanh.pop %v2566
    %v2585 = vxor.u32 %v2568, 2147483648
    %v2586 = vmul.f32 %v2585, 1.442695
    %v2587 = vpow.pop %v2586
    %v2588 = vadd.f32 %v2587, 1.0
    %v2589 = vrcp.pop %v2588
    %v2590 = vmul.f32 1.0, %v2589
    %v2591 = vmul.f32 %v2583, %v2270
    %v2592 = vmul.f32 %v2577, %v2584
    %v2593 = vadd.f32 %v2591, %v2592
    %v2594 = vtanh.pop %v2593
    %v2595 = vmul.f32 %v2590, %v2594
    %s2596 = scalar_lea.vmem %s1, 16
    %v2597 = vld [vmem:[%s2596] sm:$0xf]
    %2598 = vmatprep.subr.bf16.mxu0 %v368
    %2599 = vmatpush1.bf16.msra.mxu0 %v367
    %2600 = vmatprep.subr.bf16.mxu0 %v372
    %2601 = vmatpush1.bf16.msra.mxu0 %v371
    %2602 = vmatprep.subr.bf16.mxu0 %v376
    %2603 = vmatpush1.bf16.msra.mxu0 %v375
    %2604 = vmatprep.subr.bf16.mxu0 %v380
    %2605 = vmatpush1.bf16.msra.mxu0 %v379
    %2606 = vmatprep.subr.bf16.mxu0 %v384
    %2607 = vmatpush1.bf16.msra.mxu0 %v383
    %2608 = vmatprep.subr.bf16.mxu0 %v388
    %2609 = vmatpush1.bf16.msra.mxu0 %v387
    %2610 = vmatprep.subr.bf16.mxu0 %v392
    %2611 = vmatpush1.bf16.msra.mxu0 %v391
    %2612 = vmatprep.subr.bf16.mxu0 %v396
    %2613 = vmatpush1.bf16.msra.mxu0 %v395
    %2614 = vmatprep.subr.bf16.mxu0 %v400
    %2615 = vmatpush1.bf16.msra.mxu0 %v399
    %2616 = vmatprep.subr.bf16.mxu0 %v404
    %2617 = vmatpush1.bf16.msra.mxu0 %v403
    %2618 = vmatprep.subr.bf16.mxu0 %v408
    %2619 = vmatpush1.bf16.msra.mxu0 %v407
    %2620 = vmatprep.subr.bf16.mxu0 %v412
    %2621 = vmatpush1.bf16.msra.mxu0 %v411
    %2622 = vmatprep.subr.bf16.mxu0 %v416
    %2623 = vmatpush1.bf16.msra.mxu0 %v415
    %2624 = vmatprep.subr.bf16.mxu0 %v420
    %2625 = vmatpush1.bf16.msra.mxu0 %v419
    %2626 = vmatprep.subr.bf16.mxu0 %v424
    %2627 = vmatpush1.bf16.msra.mxu0 %v423
    %2628 = vmatprep.subr.bf16.mxu0 %v428
    %2629 = vmatpush1.bf16.msra.mxu0 %v427
    %2630 = vmatprep.mubr.bf16.mxu0 %v2381
    %2631 = vmatmul.mubr.bf16.gmra.mrb[0].mxu0 %v2597
    %v2632 = vpop.f32.mrb[0].mxu0
    %v2633 = vadd.f32 %v158, %v2632
    %v2634 = vpop.f32.mrb[0].mxu0
    %v2635 = vadd.f32 %v162, %v2634
    %v2636 = vpop.f32.mrb[0].mxu0
    %v2637 = vpop.f32.mrb[0].mxu0
    %2638 = vdwg.mxu0
    %2639 = vmatprep.subr.bf16.mxu0 %v370
    %2640 = vmatpush1.bf16.msra.mxu0 %v369
    %2641 = vmatprep.subr.bf16.mxu0 %v374
    %2642 = vmatpush1.bf16.msra.mxu0 %v373
    %2643 = vmatprep.subr.bf16.mxu0 %v378
    %2644 = vmatpush1.bf16.msra.mxu0 %v377
    %2645 = vmatprep.subr.bf16.mxu0 %v382
    %2646 = vmatpush1.bf16.msra.mxu0 %v381
    %2647 = vmatprep.subr.bf16.mxu0 %v386
    %2648 = vmatpush1.bf16.msra.mxu0 %v385
    %2649 = vmatprep.subr.bf16.mxu0 %v390
    %2650 = vmatpush1.bf16.msra.mxu0 %v389
    %2651 = vmatprep.subr.bf16.mxu0 %v394
    %2652 = vmatpush1.bf16.msra.mxu0 %v393
    %2653 = vmatprep.subr.bf16.mxu0 %v398
    %2654 = vmatpush1.bf16.msra.mxu0 %v397
    %2655 = vmatprep.subr.bf16.mxu0 %v402
    %2656 = vmatpush1.bf16.msra.mxu0 %v401
    %2657 = vmatprep.subr.bf16.mxu0 %v406
    %2658 = vmatpush1.bf16.msra.mxu0 %v405
    %2659 = vmatprep.subr.bf16.mxu0 %v410
    %2660 = vmatpush1.bf16.msra.mxu0 %v409
    %2661 = vmatprep.subr.bf16.mxu0 %v414
    %2662 = vmatpush1.bf16.msra.mxu0 %v413
    %2663 = vmatprep.subr.bf16.mxu0 %v418
    %2664 = vmatpush1.bf16.msra.mxu0 %v417
    %2665 = vmatprep.subr.bf16.mxu0 %v422
    %2666 = vmatpush1.bf16.msra.mxu0 %v421
    %2667 = vmatprep.subr.bf16.mxu0 %v426
    %2668 = vmatpush1.bf16.msra.mxu0 %v425
    %2669 = vmatprep.subr.bf16.mxu0 %v430
    %2670 = vmatpush1.bf16.msra.mxu0 %v429
    %2671 = vmatprep.mubr.bf16.mxu0 %v2381
    %2672 = vmatmul.mubr.bf16.gmra.mrb[0].mxu0 %v2597
    %v2673 = vpop.f32.mrb[0].mxu0
    %v2674 = vadd.f32 %v166, %v2673
    %v2675 = vpop.f32.mrb[0].mxu0
    %v2676 = vadd.f32 %v170, %v2675
    %v2677 = vpop.f32.mrb[0].mxu0
    %v2678 = vpop.f32.mrb[0].mxu0
    %2679 = vdwg.mxu0
    %v2680 = vxor.u32 %v2633, 2147483648
    %v2681 = vmul.f32 %v2680, 1.442695
    %v2682 = vpow.pop %v2681
    %v2683 = vadd.f32 %v2682, 1.0
    %v2684 = vrcp.pop %v2683
    %v2685 = vmul.f32 1.0, %v2684
    %v2686 = vxor.u32 %v2635, 2147483648
    %v2687 = vmul.f32 %v2686, 1.442695
    %v2688 = vpow.pop %v2687
    %v2689 = vadd.f32 %v2688, 1.0
    %v2690 = vrcp.pop %v2689
    %v2691 = vmul.f32 1.0, %v2690
    %v2692 = vtanh.pop %v2674
    %v2693 = vxor.u32 %v2676, 2147483648
    %v2694 = vmul.f32 %v2693, 1.442695
    %v2695 = vpow.pop %v2694
    %v2696 = vadd.f32 %v2695, 1.0
    %v2697 = vrcp.pop %v2696
    %v2698 = vmul.f32 1.0, %v2697
    %v2699 = vmul.f32 %v2691, %v2378
    %v2700 = vmul.f32 %v2685, %v2692
    %v2701 = vadd.f32 %v2699, %v2700
    %v2702 = vtanh.pop %v2701
    %v2703 = vmul.f32 %v2698, %v2702
    %v2704 = vpack.c.bf16 %v2703, %v2703
    %2705 = vmatprep.subr.bf16.mxu0 %v881
    %2706 = vmatpush1.bf16.msra.mxu0 %v880
    %2707 = vmatprep.subr.bf16.mxu0 %v885
    %2708 = vmatpush1.bf16.msra.mxu0 %v884
    %2709 = vmatprep.subr.bf16.mxu0 %v889
    %2710 = vmatpush1.bf16.msra.mxu0 %v888
    %2711 = vmatprep.subr.bf16.mxu0 %v893
    %2712 = vmatpush1.bf16.msra.mxu0 %v892
    %2713 = vmatprep.subr.bf16.mxu0 %v897
    %2714 = vmatpush1.bf16.msra.mxu0 %v896
    %2715 = vmatprep.subr.bf16.mxu0 %v901
    %2716 = vmatpush1.bf16.msra.mxu0 %v900
    %2717 = vmatprep.subr.bf16.mxu0 %v905
    %2718 = vmatpush1.bf16.msra.mxu0 %v904
    %2719 = vmatprep.subr.bf16.mxu0 %v909
    %2720 = vmatpush1.bf16.msra.mxu0 %v908
    %2721 = vmatprep.subr.bf16.mxu0 %v913
    %2722 = vmatpush1.bf16.msra.mxu0 %v912
    %2723 = vmatprep.subr.bf16.mxu0 %v917
    %2724 = vmatpush1.bf16.msra.mxu0 %v916
    %2725 = vmatprep.subr.bf16.mxu0 %v921
    %2726 = vmatpush1.bf16.msra.mxu0 %v920
    %2727 = vmatprep.subr.bf16.mxu0 %v925
    %2728 = vmatpush1.bf16.msra.mxu0 %v924
    %2729 = vmatprep.subr.bf16.mxu0 %v929
    %2730 = vmatpush1.bf16.msra.mxu0 %v928
    %2731 = vmatprep.subr.bf16.mxu0 %v933
    %2732 = vmatpush1.bf16.msra.mxu0 %v932
    %2733 = vmatprep.subr.bf16.mxu0 %v937
    %2734 = vmatpush1.bf16.msra.mxu0 %v936
    %2735 = vmatprep.subr.bf16.mxu0 %v941
    %2736 = vmatpush1.bf16.msra.mxu0 %v940
    %2737 = vmatprep.mubr.bf16.mxu0 %v2488
    %2738 = vmatmul.mubr.bf16.gmra.mrb[0].mxu0 %v2704
    %v2739 = vpop.f32.mrb[0].mxu0
    %v2740 = vadd.f32 %v671, %v2739
    %v2741 = vpop.f32.mrb[0].mxu0
    %v2742 = vadd.f32 %v675, %v2741
    %v2743 = vpop.f32.mrb[0].mxu0
    %v2744 = vpop.f32.mrb[0].mxu0
    %2745 = vdwg.mxu0
    %2746 = vmatprep.subr.bf16.mxu0 %v883
    %2747 = vmatpush1.bf16.msra.mxu0 %v882
    %2748 = vmatprep.subr.bf16.mxu0 %v887
    %2749 = vmatpush1.bf16.msra.mxu0 %v886
    %2750 = vmatprep.subr.bf16.mxu0 %v891
    %2751 = vmatpush1.bf16.msra.mxu0 %v890
    %2752 = vmatprep.subr.bf16.mxu0 %v895
    %2753 = vmatpush1.bf16.msra.mxu0 %v894
    %2754 = vmatprep.subr.bf16.mxu0 %v899
    %2755 = vmatpush1.bf16.msra.mxu0 %v898
    %2756 = vmatprep.subr.bf16.mxu0 %v903
    %2757 = vmatpush1.bf16.msra.mxu0 %v902
    %2758 = vmatprep.subr.bf16.mxu0 %v907
    %2759 = vmatpush1.bf16.msra.mxu0 %v906
    %2760 = vmatprep.subr.bf16.mxu0 %v911
    %2761 = vmatpush1.bf16.msra.mxu0 %v910
    %2762 = vmatprep.subr.bf16.mxu0 %v915
    %2763 = vmatpush1.bf16.msra.mxu0 %v914
    %2764 = vmatprep.subr.bf16.mxu0 %v919
    %2765 = vmatpush1.bf16.msra.mxu0 %v918
    %2766 = vmatprep.subr.bf16.mxu0 %v923
    %2767 = vmatpush1.bf16.msra.mxu0 %v922
    %2768 = vmatprep.subr.bf16.mxu0 %v927
    %2769 = vmatpush1.bf16.msra.mxu0 %v926
    %2770 = vmatprep.subr.bf16.mxu0 %v931
    %2771 = vmatpush1.bf16.msra.mxu0 %v930
    %2772 = vmatprep.subr.bf16.mxu0 %v935
    %2773 = vmatpush1.bf16.msra.mxu0 %v934
    %2774 = vmatprep.subr.bf16.mxu0 %v939
    %2775 = vmatpush1.bf16.msra.mxu0 %v938
    %2776 = vmatprep.subr.bf16.mxu0 %v943
    %2777 = vmatpush1.bf16.msra.mxu0 %v942
    %2778 = vmatprep.mubr.bf16.mxu0 %v2488
    %2779 = vmatmul.mubr.bf16.gmra.mrb[0].mxu0 %v2704
    %v2780 = vpop.f32.mrb[0].mxu0
    %v2781 = vadd.f32 %v679, %v2780
    %v2782 = vpop.f32.mrb[0].mxu0
    %v2783 = vadd.f32 %v683, %v2782
    %v2784 = vpop.f32.mrb[0].mxu0
    %v2785 = vpop.f32.mrb[0].mxu0
    %2786 = vdwg.mxu0
    %v2787 = vxor.u32 %v2740, 2147483648
    %v2788 = vmul.f32 %v2787, 1.442695
    %v2789 = vpow.pop %v2788
    %v2790 = vadd.f32 %v2789, 1.0
    %v2791 = vrcp.pop %v2790
    %v2792 = vmul.f32 1.0, %v2791
    %v2793 = vxor.u32 %v2742, 2147483648
    %v2794 = vmul.f32 %v2793, 1.442695
    %v2795 = vpow.pop %v2794
    %v2796 = vadd.f32 %v2795, 1.0
    %v2797 = vrcp.pop %v2796
    %v2798 = vmul.f32 1.0, %v2797
    %v2799 = vtanh.pop %v2781
    %v2800 = vxor.u32 %v2783, 2147483648
    %v2801 = vmul.f32 %v2800, 1.442695
    %v2802 = vpow.pop %v2801
    %v2803 = vadd.f32 %v2802, 1.0
    %v2804 = vrcp.pop %v2803
    %v2805 = vmul.f32 1.0, %v2804
    %v2806 = vmul.f32 %v2798, %v2485
    %v2807 = vmul.f32 %v2792, %v2799
    %v2808 = vadd.f32 %v2806, %v2807
    %v2809 = vtanh.pop %v2808
    %v2810 = vmul.f32 %v2805, %v2809
    %v2811 = vpack.c.bf16 %v2810, %v2810
    %v2812 = vpack.c.bf16 %v2595, %v2595
    %2813 = vmatprep.subr.bf16.mxu0 %v1394
    %2814 = vmatpush1.bf16.msra.mxu0 %v1393
    %2815 = vmatprep.subr.bf16.mxu0 %v1398
    %2816 = vmatpush1.bf16.msra.mxu0 %v1397
    %2817 = vmatprep.subr.bf16.mxu0 %v1402
    %2818 = vmatpush1.bf16.msra.mxu0 %v1401
    %2819 = vmatprep.subr.bf16.mxu0 %v1406
    %2820 = vmatpush1.bf16.msra.mxu0 %v1405
    %2821 = vmatprep.subr.bf16.mxu0 %v1410
    %2822 = vmatpush1.bf16.msra.mxu0 %v1409
    %2823 = vmatprep.subr.bf16.mxu0 %v1414
    %2824 = vmatpush1.bf16.msra.mxu0 %v1413
    %2825 = vmatprep.subr.bf16.mxu0 %v1418
    %2826 = vmatpush1.bf16.msra.mxu0 %v1417
    %2827 = vmatprep.subr.bf16.mxu0 %v1422
    %2828 = vmatpush1.bf16.msra.mxu0 %v1421
    %2829 = vmatprep.subr.bf16.mxu0 %v1426
    %2830 = vmatpush1.bf16.msra.mxu0 %v1425
    %2831 = vmatprep.subr.bf16.mxu0 %v1430
    %2832 = vmatpush1.bf16.msra.mxu0 %v1429
    %2833 = vmatprep.subr.bf16.mxu0 %v1434
    %2834 = vmatpush1.bf16.msra.mxu0 %v1433
    %2835 = vmatprep.subr.bf16.mxu0 %v1438
    %2836 = vmatpush1.bf16.msra.mxu0 %v1437
    %2837 = vmatprep.subr.bf16.mxu0 %v1442
    %2838 = vmatpush1.bf16.msra.mxu0 %v1441
    %2839 = vmatprep.subr.bf16.mxu0 %v1446
    %2840 = vmatpush1.bf16.msra.mxu0 %v1445
    %2841 = vmatprep.subr.bf16.mxu0 %v1450
    %2842 = vmatpush1.bf16.msra.mxu0 %v1449
    %2843 = vmatprep.subr.bf16.mxu0 %v1454
    %2844 = vmatpush1.bf16.msra.mxu0 %v1453
    %2845 = vmatprep.mubr.bf16.mxu0 %v2812
    %2846 = vmatmul.mubr.bf16.gmra.mrb[0].mxu0 %v2811
    %v2847 = vpop.f32.mrb[0].mxu0
    %v2848 = vadd.f32 %v1184, %v2847
    %v2849 = vpop.f32.mrb[0].mxu0
    %v2850 = vadd.f32 %v1188, %v2849
    %v2851 = vpop.f32.mrb[0].mxu0
    %v2852 = vpop.f32.mrb[0].mxu0
    %2853 = vdwg.mxu0
    %2854 = vmatprep.subr.bf16.mxu0 %v1396
    %2855 = vmatpush1.bf16.msra.mxu0 %v1395
    %2856 = vmatprep.subr.bf16.mxu0 %v1400
    %2857 = vmatpush1.bf16.msra.mxu0 %v1399
    %2858 = vmatprep.subr.bf16.mxu0 %v1404
    %2859 = vmatpush1.bf16.msra.mxu0 %v1403
    %2860 = vmatprep.subr.bf16.mxu0 %v1408
    %2861 = vmatpush1.bf16.msra.mxu0 %v1407
    %2862 = vmatprep.subr.bf16.mxu0 %v1412
    %2863 = vmatpush1.bf16.msra.mxu0 %v1411
    %2864 = vmatprep.subr.bf16.mxu0 %v1416
    %2865 = vmatpush1.bf16.msra.mxu0 %v1415
    %2866 = vmatprep.subr.bf16.mxu0 %v1420
    %2867 = vmatpush1.bf16.msra.mxu0 %v1419
    %2868 = vmatprep.subr.bf16.mxu0 %v1424
    %2869 = vmatpush1.bf16.msra.mxu0 %v1423
    %2870 = vmatprep.subr.bf16.mxu0 %v1428
    %2871 = vmatpush1.bf16.msra.mxu0 %v1427
    %2872 = vmatprep.subr.bf16.mxu0 %v1432
    %2873 = vmatpush1.bf16.msra.mxu0 %v1431
    %2874 = vmatprep.subr.bf16.mxu0 %v1436
    %2875 = vmatpush1.bf16.msra.mxu0 %v1435
    %2876 = vmatprep.subr.bf16.mxu0 %v1440
    %2877 = vmatpush1.bf16.msra.mxu0 %v1439
    %2878 = vmatprep.subr.bf16.mxu0 %v1444
    %2879 = vmatpush1.bf16.msra.mxu0 %v1443
    %2880 = vmatprep.subr.bf16.mxu0 %v1448
    %2881 = vmatpush1.bf16.msra.mxu0 %v1447
    %2882 = vmatprep.subr.bf16.mxu0 %v1452
    %2883 = vmatpush1.bf16.msra.mxu0 %v1451
    %2884 = vmatprep.subr.bf16.mxu0 %v1456
    %2885 = vmatpush1.bf16.msra.mxu0 %v1455
    %2886 = vmatprep.mubr.bf16.mxu0 %v2812
    %2887 = vmatmul.mubr.bf16.gmra.mrb[0].mxu0 %v2811
    %v2888 = vpop.f32.mrb[0].mxu0
    %v2889 = vadd.f32 %v1192, %v2888
    %v2890 = vpop.f32.mrb[0].mxu0
    %v2891 = vadd.f32 %v1196, %v2890
    %v2892 = vpop.f32.mrb[0].mxu0
    %v2893 = vpop.f32.mrb[0].mxu0
    %2894 = vdwg.mxu0
    %v2895 = vxor.u32 %v2848, 2147483648
    %v2896 = vmul.f32 %v2895, 1.442695
    %v2897 = vpow.pop %v2896
    %v2898 = vadd.f32 %v2897, 1.0
    %v2899 = vrcp.pop %v2898
    %v2900 = vmul.f32 1.0, %v2899
    %v2901 = vxor.u32 %v2850, 2147483648
    %v2902 = vmul.f32 %v2901, 1.442695
    %v2903 = vpow.pop %v2902
    %v2904 = vadd.f32 %v2903, 1.0
    %v2905 = vrcp.pop %v2904
    %v2906 = vmul.f32 1.0, %v2905
    %v2907 = vtanh.pop %v2889
    %v2908 = vxor.u32 %v2891, 2147483648
    %v2909 = vmul.f32 %v2908, 1.442695
    %v2910 = vpow.pop %v2909
    %v2911 = vadd.f32 %v2910, 1.0
    %v2912 = vrcp.pop %v2911
    %v2913 = vmul.f32 1.0, %v2912
    %v2914 = vmul.f32 %v2906, %v2593
    %v2915 = vmul.f32 %v2900, %v2907
    %v2916 = vadd.f32 %v2914, %v2915
    %v2917 = vtanh.pop %v2916
    %v2918 = vmul.f32 %v2913, %v2917
    %s2919 = scalar_lea.vmem %s1, 20
    %v2920 = vld [vmem:[%s2919] sm:$0xf]
    %2921 = vmatprep.subr.bf16.mxu0 %v368
    %2922 = vmatpush1.bf16.msra.mxu0 %v367
    %2923 = vmatprep.subr.bf16.mxu0 %v372
    %2924 = vmatpush1.bf16.msra.mxu0 %v371
    %2925 = vmatprep.subr.bf16.mxu0 %v376
    %2926 = vmatpush1.bf16.msra.mxu0 %v375
    %2927 = vmatprep.subr.bf16.mxu0 %v380
    %2928 = vmatpush1.bf16.msra.mxu0 %v379
    %2929 = vmatprep.subr.bf16.mxu0 %v384
    %2930 = vmatpush1.bf16.msra.mxu0 %v383
    %2931 = vmatprep.subr.bf16.mxu0 %v388
    %2932 = vmatpush1.bf16.msra.mxu0 %v387
    %2933 = vmatprep.subr.bf16.mxu0 %v392
    %2934 = vmatpush1.bf16.msra.mxu0 %v391
    %2935 = vmatprep.subr.bf16.mxu0 %v396
    %2936 = vmatpush1.bf16.msra.mxu0 %v395
    %2937 = vmatprep.subr.bf16.mxu0 %v400
    %2938 = vmatpush1.bf16.msra.mxu0 %v399
    %2939 = vmatprep.subr.bf16.mxu0 %v404
    %2940 = vmatpush1.bf16.msra.mxu0 %v403
    %2941 = vmatprep.subr.bf16.mxu0 %v408
    %2942 = vmatpush1.bf16.msra.mxu0 %v407
    %2943 = vmatprep.subr.bf16.mxu0 %v412
    %2944 = vmatpush1.bf16.msra.mxu0 %v411
    %2945 = vmatprep.subr.bf16.mxu0 %v416
    %2946 = vmatpush1.bf16.msra.mxu0 %v415
    %2947 = vmatprep.subr.bf16.mxu0 %v420
    %2948 = vmatpush1.bf16.msra.mxu0 %v419
    %2949 = vmatprep.subr.bf16.mxu0 %v424
    %2950 = vmatpush1.bf16.msra.mxu0 %v423
    %2951 = vmatprep.subr.bf16.mxu0 %v428
    %2952 = vmatpush1.bf16.msra.mxu0 %v427
    %2953 = vmatprep.mubr.bf16.mxu0 %v2704
    %2954 = vmatmul.mubr.bf16.gmra.mrb[0].mxu0 %v2920
    %v2955 = vpop.f32.mrb[0].mxu0
    %v2956 = vadd.f32 %v158, %v2955
    %v2957 = vpop.f32.mrb[0].mxu0
    %v2958 = vadd.f32 %v162, %v2957
    %v2959 = vpop.f32.mrb[0].mxu0
    %v2960 = vpop.f32.mrb[0].mxu0
    %2961 = vdwg.mxu0
    %2962 = vmatprep.subr.bf16.mxu0 %v370
    %2963 = vmatpush1.bf16.msra.mxu0 %v369
    %2964 = vmatprep.subr.bf16.mxu0 %v374
    %2965 = vmatpush1.bf16.msra.mxu0 %v373
    %2966 = vmatprep.subr.bf16.mxu0 %v378
    %2967 = vmatpush1.bf16.msra.mxu0 %v377
    %2968 = vmatprep.subr.bf16.mxu0 %v382
    %2969 = vmatpush1.bf16.msra.mxu0 %v381
    %2970 = vmatprep.subr.bf16.mxu0 %v386
    %2971 = vmatpush1.bf16.msra.mxu0 %v385
    %2972 = vmatprep.subr.bf16.mxu0 %v390
    %2973 = vmatpush1.bf16.msra.mxu0 %v389
    %2974 = vmatprep.subr.bf16.mxu0 %v394
    %2975 = vmatpush1.bf16.msra.mxu0 %v393
    %2976 = vmatprep.subr.bf16.mxu0 %v398
    %2977 = vmatpush1.bf16.msra.mxu0 %v397
    %2978 = vmatprep.subr.bf16.mxu0 %v402
    %2979 = vmatpush1.bf16.msra.mxu0 %v401
    %2980 = vmatprep.subr.bf16.mxu0 %v406
    %2981 = vmatpush1.bf16.msra.mxu0 %v405
    %2982 = vmatprep.subr.bf16.mxu0 %v410
    %2983 = vmatpush1.bf16.msra.mxu0 %v409
    %2984 = vmatprep.subr.bf16.mxu0 %v414
    %2985 = vmatpush1.bf16.msra.mxu0 %v413
    %2986 = vmatprep.subr.bf16.mxu0 %v418
    %2987 = vmatpush1.bf16.msra.mxu0 %v417
    %2988 = vmatprep.subr.bf16.mxu0 %v422
    %2989 = vmatpush1.bf16.msra.mxu0 %v421
    %2990 = vmatprep.subr.bf16.mxu0 %v426
    %2991 = vmatpush1.bf16.msra.mxu0 %v425
    %2992 = vmatprep.subr.bf16.mxu0 %v430
    %2993 = vmatpush1.bf16.msra.mxu0 %v429
    %2994 = vmatprep.mubr.bf16.mxu0 %v2704
    %2995 = vmatmul.mubr.bf16.gmra.mrb[0].mxu0 %v2920
    %v2996 = vpop.f32.mrb[0].mxu0
    %v2997 = vadd.f32 %v166, %v2996
    %v2998 = vpop.f32.mrb[0].mxu0
    %v2999 = vadd.f32 %v170, %v2998
    %v3000 = vpop.f32.mrb[0].mxu0
    %v3001 = vpop.f32.mrb[0].mxu0
    %3002 = vdwg.mxu0
    %v3003 = vxor.u32 %v2956, 2147483648
    %v3004 = vmul.f32 %v3003, 1.442695
    %v3005 = vpow.pop %v3004
    %v3006 = vadd.f32 %v3005, 1.0
    %v3007 = vrcp.pop %v3006
    %v3008 = vmul.f32 1.0, %v3007
    %v3009 = vxor.u32 %v2958, 2147483648
    %v3010 = vmul.f32 %v3009, 1.442695
    %v3011 = vpow.pop %v3010
    %v3012 = vadd.f32 %v3011, 1.0
    %v3013 = vrcp.pop %v3012
    %v3014 = vmul.f32 1.0, %v3013
    %v3015 = vtanh.pop %v2997
    %v3016 = vxor.u32 %v2999, 2147483648
    %v3017 = vmul.f32 %v3016, 1.442695
    %v3018 = vpow.pop %v3017
    %v3019 = vadd.f32 %v3018, 1.0
    %v3020 = vrcp.pop %v3019
    %v3021 = vmul.f32 1.0, %v3020
    %v3022 = vmul.f32 %v3014, %v2701
    %v3023 = vmul.f32 %v3008, %v3015
    %v3024 = vadd.f32 %v3022, %v3023
    %v3025 = vtanh.pop %v3024
    %v3026 = vmul.f32 %v3021, %v3025
    %v3027 = vpack.c.bf16 %v3026, %v3026
    %3028 = vmatprep.subr.bf16.mxu0 %v881
    %3029 = vmatpush1.bf16.msra.mxu0 %v880
    %3030 = vmatprep.subr.bf16.mxu0 %v885
    %3031 = vmatpush1.bf16.msra.mxu0 %v884
    %3032 = vmatprep.subr.bf16.mxu0 %v889
    %3033 = vmatpush1.bf16.msra.mxu0 %v888
    %3034 = vmatprep.subr.bf16.mxu0 %v893
    %3035 = vmatpush1.bf16.msra.mxu0 %v892
    %3036 = vmatprep.subr.bf16.mxu0 %v897
    %3037 = vmatpush1.bf16.msra.mxu0 %v896
    %3038 = vmatprep.subr.bf16.mxu0 %v901
    %3039 = vmatpush1.bf16.msra.mxu0 %v900
    %3040 = vmatprep.subr.bf16.mxu0 %v905
    %3041 = vmatpush1.bf16.msra.mxu0 %v904
    %3042 = vmatprep.subr.bf16.mxu0 %v909
    %3043 = vmatpush1.bf16.msra.mxu0 %v908
    %3044 = vmatprep.subr.bf16.mxu0 %v913
    %3045 = vmatpush1.bf16.msra.mxu0 %v912
    %3046 = vmatprep.subr.bf16.mxu0 %v917
    %3047 = vmatpush1.bf16.msra.mxu0 %v916
    %3048 = vmatprep.subr.bf16.mxu0 %v921
    %3049 = vmatpush1.bf16.msra.mxu0 %v920
    %3050 = vmatprep.subr.bf16.mxu0 %v925
    %3051 = vmatpush1.bf16.msra.mxu0 %v924
    %3052 = vmatprep.subr.bf16.mxu0 %v929
    %3053 = vmatpush1.bf16.msra.mxu0 %v928
    %3054 = vmatprep.subr.bf16.mxu0 %v933
    %3055 = vmatpush1.bf16.msra.mxu0 %v932
    %3056 = vmatprep.subr.bf16.mxu0 %v937
    %3057 = vmatpush1.bf16.msra.mxu0 %v936
    %3058 = vmatprep.subr.bf16.mxu0 %v941
    %3059 = vmatpush1.bf16.msra.mxu0 %v940
    %3060 = vmatprep.mubr.bf16.mxu0 %v2811
    %3061 = vmatmul.mubr.bf16.gmra.mrb[0].mxu0 %v3027
    %v3062 = vpop.f32.mrb[0].mxu0
    %v3063 = vadd.f32 %v671, %v3062
    %v3064 = vpop.f32.mrb[0].mxu0
    %v3065 = vadd.f32 %v675, %v3064
    %v3066 = vpop.f32.mrb[0].mxu0
    %v3067 = vpop.f32.mrb[0].mxu0
    %3068 = vdwg.mxu0
    %3069 = vmatprep.subr.bf16.mxu0 %v883
    %3070 = vmatpush1.bf16.msra.mxu0 %v882
    %3071 = vmatprep.subr.bf16.mxu0 %v887
    %3072 = vmatpush1.bf16.msra.mxu0 %v886
    %3073 = vmatprep.subr.bf16.mxu0 %v891
    %3074 = vmatpush1.bf16.msra.mxu0 %v890
    %3075 = vmatprep.subr.bf16.mxu0 %v895
    %3076 = vmatpush1.bf16.msra.mxu0 %v894
    %3077 = vmatprep.subr.bf16.mxu0 %v899
    %3078 = vmatpush1.bf16.msra.mxu0 %v898
    %3079 = vmatprep.subr.bf16.mxu0 %v903
    %3080 = vmatpush1.bf16.msra.mxu0 %v902
    %3081 = vmatprep.subr.bf16.mxu0 %v907
    %3082 = vmatpush1.bf16.msra.mxu0 %v906
    %3083 = vmatprep.subr.bf16.mxu0 %v911
    %3084 = vmatpush1.bf16.msra.mxu0 %v910
    %3085 = vmatprep.subr.bf16.mxu0 %v915
    %3086 = vmatpush1.bf16.msra.mxu0 %v914
    %3087 = vmatprep.subr.bf16.mxu0 %v919
    %3088 = vmatpush1.bf16.msra.mxu0 %v918
    %3089 = vmatprep.subr.bf16.mxu0 %v923
    %3090 = vmatpush1.bf16.msra.mxu0 %v922
    %3091 = vmatprep.subr.bf16.mxu0 %v927
    %3092 = vmatpush1.bf16.msra.mxu0 %v926
    %3093 = vmatprep.subr.bf16.mxu0 %v931
    %3094 = vmatpush1.bf16.msra.mxu0 %v930
    %3095 = vmatprep.subr.bf16.mxu0 %v935
    %3096 = vmatpush1.bf16.msra.mxu0 %v934
    %3097 = vmatprep.subr.bf16.mxu0 %v939
    %3098 = vmatpush1.bf16.msra.mxu0 %v938
    %3099 = vmatprep.subr.bf16.mxu0 %v943
    %3100 = vmatpush1.bf16.msra.mxu0 %v942
    %3101 = vmatprep.mubr.bf16.mxu0 %v2811
    %3102 = vmatmul.mubr.bf16.gmra.mrb[0].mxu0 %v3027
    %v3103 = vpop.f32.mrb[0].mxu0
    %v3104 = vadd.f32 %v679, %v3103
    %v3105 = vpop.f32.mrb[0].mxu0
    %v3106 = vadd.f32 %v683, %v3105
    %v3107 = vpop.f32.mrb[0].mxu0
    %v3108 = vpop.f32.mrb[0].mxu0
    %3109 = vdwg.mxu0
    %v3110 = vxor.u32 %v3063, 2147483648
    %v3111 = vmul.f32 %v3110, 1.442695
    %v3112 = vpow.pop %v3111
    %v3113 = vadd.f32 %v3112, 1.0
    %v3114 = vrcp.pop %v3113
    %v3115 = vmul.f32 1.0, %v3114
    %v3116 = vxor.u32 %v3065, 2147483648
    %v3117 = vmul.f32 %v3116, 1.442695
    %v3118 = vpow.pop %v3117
    %v3119 = vadd.f32 %v3118, 1.0
    %v3120 = vrcp.pop %v3119
    %v3121 = vmul.f32 1.0, %v3120
    %v3122 = vtanh.pop %v3104
    %v3123 = vxor.u32 %v3106, 2147483648
    %v3124 = vmul.f32 %v3123, 1.442695
    %v3125 = vpow.pop %v3124
    %v3126 = vadd.f32 %v3125, 1.0
    %v3127 = vrcp.pop %v3126
    %v3128 = vmul.f32 1.0, %v3127
    %v3129 = vmul.f32 %v3121, %v2808
    %v3130 = vmul.f32 %v3115, %v3122
    %v3131 = vadd.f32 %v3129, %v3130
    %v3132 = vtanh.pop %v3131
    %v3133 = vmul.f32 %v3128, %v3132
    %v3134 = vpack.c.bf16 %v3133, %v3133
    %v3135 = vpack.c.bf16 %v2918, %v2918
    %3136 = vmatprep.subr.bf16.mxu0 %v1394
    %3137 = vmatpush1.bf16.msra.mxu0 %v1393
    %3138 = vmatprep.subr.bf16.mxu0 %v1398
    %3139 = vmatpush1.bf16.msra.mxu0 %v1397
    %3140 = vmatprep.subr.bf16.mxu0 %v1402
    %3141 = vmatpush1.bf16.msra.mxu0 %v1401
    %3142 = vmatprep.subr.bf16.mxu0 %v1406
    %3143 = vmatpush1.bf16.msra.mxu0 %v1405
    %3144 = vmatprep.subr.bf16.mxu0 %v1410
    %3145 = vmatpush1.bf16.msra.mxu0 %v1409
    %3146 = vmatprep.subr.bf16.mxu0 %v1414
    %3147 = vmatpush1.bf16.msra.mxu0 %v1413
    %3148 = vmatprep.subr.bf16.mxu0 %v1418
    %3149 = vmatpush1.bf16.msra.mxu0 %v1417
    %3150 = vmatprep.subr.bf16.mxu0 %v1422
    %3151 = vmatpush1.bf16.msra.mxu0 %v1421
    %3152 = vmatprep.subr.bf16.mxu0 %v1426
    %3153 = vmatpush1.bf16.msra.mxu0 %v1425
    %3154 = vmatprep.subr.bf16.mxu0 %v1430
    %3155 = vmatpush1.bf16.msra.mxu0 %v1429
    %3156 = vmatprep.subr.bf16.mxu0 %v1434
    %3157 = vmatpush1.bf16.msra.mxu0 %v1433
    %3158 = vmatprep.subr.bf16.mxu0 %v1438
    %3159 = vmatpush1.bf16.msra.mxu0 %v1437
    %3160 = vmatprep.subr.bf16.mxu0 %v1442
    %3161 = vmatpush1.bf16.msra.mxu0 %v1441
    %3162 = vmatprep.subr.bf16.mxu0 %v1446
    %3163 = vmatpush1.bf16.msra.mxu0 %v1445
    %3164 = vmatprep.subr.bf16.mxu0 %v1450
    %3165 = vmatpush1.bf16.msra.mxu0 %v1449
    %3166 = vmatprep.subr.bf16.mxu0 %v1454
    %3167 = vmatpush1.bf16.msra.mxu0 %v1453
    %3168 = vmatprep.mubr.bf16.mxu0 %v3135
    %3169 = vmatmul.mubr.bf16.gmra.mrb[0].mxu0 %v3134
    %v3170 = vpop.f32.mrb[0].mxu0
    %v3171 = vadd.f32 %v1184, %v3170
    %v3172 = vpop.f32.mrb[0].mxu0
    %v3173 = vadd.f32 %v1188, %v3172
    %v3174 = vpop.f32.mrb[0].mxu0
    %v3175 = vpop.f32.mrb[0].mxu0
    %3176 = vdwg.mxu0
    %3177 = vmatprep.subr.bf16.mxu0 %v1396
    %3178 = vmatpush1.bf16.msra.mxu0 %v1395
    %3179 = vmatprep.subr.bf16.mxu0 %v1400
    %3180 = vmatpush1.bf16.msra.mxu0 %v1399
    %3181 = vmatprep.subr.bf16.mxu0 %v1404
    %3182 = vmatpush1.bf16.msra.mxu0 %v1403
    %3183 = vmatprep.subr.bf16.mxu0 %v1408
    %3184 = vmatpush1.bf16.msra.mxu0 %v1407
    %3185 = vmatprep.subr.bf16.mxu0 %v1412
    %3186 = vmatpush1.bf16.msra.mxu0 %v1411
    %3187 = vmatprep.subr.bf16.mxu0 %v1416
    %3188 = vmatpush1.bf16.msra.mxu0 %v1415
    %3189 = vmatprep.subr.bf16.mxu0 %v1420
    %3190 = vmatpush1.bf16.msra.mxu0 %v1419
    %3191 = vmatprep.subr.bf16.mxu0 %v1424
    %3192 = vmatpush1.bf16.msra.mxu0 %v1423
    %3193 = vmatprep.subr.bf16.mxu0 %v1428
    %3194 = vmatpush1.bf16.msra.mxu0 %v1427
    %3195 = vmatprep.subr.bf16.mxu0 %v1432
    %3196 = vmatpush1.bf16.msra.mxu0 %v1431
    %3197 = vmatprep.subr.bf16.mxu0 %v1436
    %3198 = vmatpush1.bf16.msra.mxu0 %v1435
    %3199 = vmatprep.subr.bf16.mxu0 %v1440
    %3200 = vmatpush1.bf16.msra.mxu0 %v1439
    %3201 = vmatprep.subr.bf16.mxu0 %v1444
    %3202 = vmatpush1.bf16.msra.mxu0 %v1443
    %3203 = vmatprep.subr.bf16.mxu0 %v1448
    %3204 = vmatpush1.bf16.msra.mxu0 %v1447
    %3205 = vmatprep.subr.bf16.mxu0 %v1452
    %3206 = vmatpush1.bf16.msra.mxu0 %v1451
    %3207 = vmatprep.subr.bf16.mxu0 %v1456
    %3208 = vmatpush1.bf16.msra.mxu0 %v1455
    %3209 = vmatprep.mubr.bf16.mxu0 %v3135
    %3210 = vmatmul.mubr.bf16.gmra.mrb[0].mxu0 %v3134
    %v3211 = vpop.f32.mrb[0].mxu0
    %v3212 = vadd.f32 %v1192, %v3211
    %v3213 = vpop.f32.mrb[0].mxu0
    %v3214 = vadd.f32 %v1196, %v3213
    %v3215 = vpop.f32.mrb[0].mxu0
    %v3216 = vpop.f32.mrb[0].mxu0
    %3217 = vdwg.mxu0
    %v3218 = vxor.u32 %v3171, 2147483648
    %v3219 = vmul.f32 %v3218, 1.442695
    %v3220 = vpow.pop %v3219
    %v3221 = vadd.f32 %v3220, 1.0
    %v3222 = vrcp.pop %v3221
    %v3223 = vmul.f32 1.0, %v3222
    %v3224 = vxor.u32 %v3173, 2147483648
    %v3225 = vmul.f32 %v3224, 1.442695
    %v3226 = vpow.pop %v3225
    %v3227 = vadd.f32 %v3226, 1.0
    %v3228 = vrcp.pop %v3227
    %v3229 = vmul.f32 1.0, %v3228
    %v3230 = vtanh.pop %v3212
    %v3231 = vxor.u32 %v3214, 2147483648
    %v3232 = vmul.f32 %v3231, 1.442695
    %v3233 = vpow.pop %v3232
    %v3234 = vadd.f32 %v3233, 1.0
    %v3235 = vrcp.pop %v3234
    %v3236 = vmul.f32 1.0, %v3235
    %v3237 = vmul.f32 %v3229, %v2916
    %v3238 = vmul.f32 %v3223, %v3230
    %v3239 = vadd.f32 %v3237, %v3238
    %v3240 = vtanh.pop %v3239
    %v3241 = vmul.f32 %v3236, %v3240
    %3242 = vst [vmem:[#allocation7] sm:$0xff] 0.0
    %3243 = vst [vmem:[#allocation7 + $0x8] sm:$0xff] 0.0
    %v3244 = vlaneseq
    %v3245 = vand.u32 %v3244, 127
    %v3246 = vadd.s32 %v3245, 128
    %v3247 = vld [vmem:[%s15] sm:$0xff]
    %v3248 = vld [vmem:[%s15 + $0x8] sm:$0xff]
    %v3249 = vunpack.c.l.bf16 %v3247
    %v3250 = vunpack.c.h.bf16 %v3247
    %v3251 = vunpack.c.l.bf16 %v3248
    %v3252 = vunpack.c.h.bf16 %v3248
    %v3253 = vld [vmem:[%s8] sm:$0xff]
    %v3254 = vld [vmem:[%s8 + $0x8] sm:$0xff]
    %v3255 = vld [vmem:[%s8 + $0x10] sm:$0xff]
    %v3256 = vld [vmem:[%s8 + $0x18] sm:$0xff]
    %v3257 = vld [vmem:[%s8 + $0x20] sm:$0xff]
    %v3258 = vld [vmem:[%s8 + $0x28] sm:$0xff]
    %v3259 = vld [vmem:[%s8 + $0x30] sm:$0xff]
    %v3260 = vld [vmem:[%s8 + $0x38] sm:$0xff]
    %v3261 = vld [vmem:[%s8 + $0x40] sm:$0xff]
    %v3262 = vld [vmem:[%s8 + $0x48] sm:$0xff]
    %v3263 = vld [vmem:[%s8 + $0x50] sm:$0xff]
    %v3264 = vld [vmem:[%s8 + $0x58] sm:$0xff]
    %v3265 = vld [vmem:[%s8 + $0x60] sm:$0xff]
    %v3266 = vld [vmem:[%s8 + $0x68] sm:$0xff]
    %v3267 = vld [vmem:[%s8 + $0x70] sm:$0xff]
    %v3268 = vld [vmem:[%s8 + $0x78] sm:$0xff]
    %v3269 = vld [vmem:[%s8 + $0x80] sm:$0xff]
    %v3270 = vld [vmem:[%s8 + $0x88] sm:$0xff]
    %v3271 = vld [vmem:[%s8 + $0x90] sm:$0xff]
    %v3272 = vld [vmem:[%s8 + $0x98] sm:$0xff]
    %v3273 = vld [vmem:[%s8 + $0xa0] sm:$0xff]
    %v3274 = vld [vmem:[%s8 + $0xa8] sm:$0xff]
    %v3275 = vld [vmem:[%s8 + $0xb0] sm:$0xff]
    %v3276 = vld [vmem:[%s8 + $0xb8] sm:$0xff]
    %v3277 = vld [vmem:[%s8 + $0xc0] sm:$0xff]
    %v3278 = vld [vmem:[%s8 + $0xc8] sm:$0xff]
    %v3279 = vld [vmem:[%s8 + $0xd0] sm:$0xff]
    %v3280 = vld [vmem:[%s8 + $0xd8] sm:$0xff]
    %v3281 = vld [vmem:[%s8 + $0xe0] sm:$0xff]
    %v3282 = vld [vmem:[%s8 + $0xe8] sm:$0xff]
    %v3283 = vld [vmem:[%s8 + $0xf0] sm:$0xff]
    %v3284 = vld [vmem:[%s8 + $0xf8] sm:$0xff]
    %v3317 = vunpack.c.l.b16 %v3253
    %v3318 = vunpack.c.h.b16 %v3253
    %v3319 = vunpack.c.l.b16 %v3254
    %v3320 = vunpack.c.h.b16 %v3254
    %v3321 = vunpack.c.l.b16 %v3255
    %v3322 = vunpack.c.h.b16 %v3255
    %v3323 = vunpack.c.l.b16 %v3256
    %v3324 = vunpack.c.h.b16 %v3256
    %v3325 = vunpack.c.l.b16 %v3257
    %v3326 = vunpack.c.h.b16 %v3257
    %v3327 = vunpack.c.l.b16 %v3258
    %v3328 = vunpack.c.h.b16 %v3258
    %v3329 = vunpack.c.l.b16 %v3259
    %v3330 = vunpack.c.h.b16 %v3259
    %v3331 = vunpack.c.l.b16 %v3260
    %v3332 = vunpack.c.h.b16 %v3260
    %v3333 = vunpack.c.l.b16 %v3261
    %v3334 = vunpack.c.h.b16 %v3261
    %v3335 = vunpack.c.l.b16 %v3262
    %v3336 = vunpack.c.h.b16 %v3262
    %v3337 = vunpack.c.l.b16 %v3263
    %v3338 = vunpack.c.h.b16 %v3263
    %v3339 = vunpack.c.l.b16 %v3264
    %v3340 = vunpack.c.h.b16 %v3264
    %v3341 = vunpack.c.l.b16 %v3265
    %v3342 = vunpack.c.h.b16 %v3265
    %v3343 = vunpack.c.l.b16 %v3266
    %v3344 = vunpack.c.h.b16 %v3266
    %v3345 = vunpack.c.l.b16 %v3267
    %v3346 = vunpack.c.h.b16 %v3267
    %v3347 = vunpack.c.l.b16 %v3268
    %v3348 = vunpack.c.h.b16 %v3268
    %v3349 = vunpack.c.l.b16 %v3269
    %v3350 = vunpack.c.h.b16 %v3269
    %v3351 = vunpack.c.l.b16 %v3270
    %v3352 = vunpack.c.h.b16 %v3270
    %v3353 = vunpack.c.l.b16 %v3271
    %v3354 = vunpack.c.h.b16 %v3271
    %v3355 = vunpack.c.l.b16 %v3272
    %v3356 = vunpack.c.h.b16 %v3272
    %v3357 = vunpack.c.l.b16 %v3273
    %v3358 = vunpack.c.h.b16 %v3273
    %v3359 = vunpack.c.l.b16 %v3274
    %v3360 = vunpack.c.h.b16 %v3274
    %v3361 = vunpack.c.l.b16 %v3275
    %v3362 = vunpack.c.h.b16 %v3275
    %v3363 = vunpack.c.l.b16 %v3276
    %v3364 = vunpack.c.h.b16 %v3276
    %v3365 = vunpack.c.l.b16 %v3277
    %v3366 = vunpack.c.h.b16 %v3277
    %v3367 = vunpack.c.l.b16 %v3278
    %v3368 = vunpack.c.h.b16 %v3278
    %v3369 = vunpack.c.l.b16 %v3279
    %v3370 = vunpack.c.h.b16 %v3279
    %v3371 = vunpack.c.l.b16 %v3280
    %v3372 = vunpack.c.h.b16 %v3280
    %v3373 = vunpack.c.l.b16 %v3281
    %v3374 = vunpack.c.h.b16 %v3281
    %v3375 = vunpack.c.l.b16 %v3282
    %v3376 = vunpack.c.h.b16 %v3282
    %v3377 = vunpack.c.l.b16 %v3283
    %v3378 = vunpack.c.h.b16 %v3283
    %v3379 = vunpack.c.l.b16 %v3284
    %v3380 = vunpack.c.h.b16 %v3284
    %v3381 = vpack.c.b16 %v3321, %v3317
    %v3382 = vpack.c.b16 %v3322, %v3318
    %v3383 = vpack.c.b16 %v3323, %v3319
    %v3384 = vpack.c.b16 %v3324, %v3320
    %v3385 = vpack.c.b16 %v3329, %v3325
    %v3386 = vpack.c.b16 %v3330, %v3326
    %v3387 = vpack.c.b16 %v3331, %v3327
    %v3388 = vpack.c.b16 %v3332, %v3328
    %v3389 = vpack.c.b16 %v3337, %v3333
    %v3390 = vpack.c.b16 %v3338, %v3334
    %v3391 = vpack.c.b16 %v3339, %v3335
    %v3392 = vpack.c.b16 %v3340, %v3336
    %v3393 = vpack.c.b16 %v3345, %v3341
    %v3394 = vpack.c.b16 %v3346, %v3342
    %v3395 = vpack.c.b16 %v3347, %v3343
    %v3396 = vpack.c.b16 %v3348, %v3344
    %v3397 = vpack.c.b16 %v3353, %v3349
    %v3398 = vpack.c.b16 %v3354, %v3350
    %v3399 = vpack.c.b16 %v3355, %v3351
    %v3400 = vpack.c.b16 %v3356, %v3352
    %v3401 = vpack.c.b16 %v3361, %v3357
    %v3402 = vpack.c.b16 %v3362, %v3358
    %v3403 = vpack.c.b16 %v3363, %v3359
    %v3404 = vpack.c.b16 %v3364, %v3360
    %v3405 = vpack.c.b16 %v3369, %v3365
    %v3406 = vpack.c.b16 %v3370, %v3366
    %v3407 = vpack.c.b16 %v3371, %v3367
    %v3408 = vpack.c.b16 %v3372, %v3368
    %v3409 = vpack.c.b16 %v3377, %v3373
    %v3410 = vpack.c.b16 %v3378, %v3374
    %v3411 = vpack.c.b16 %v3379, %v3375
    %v3412 = vpack.c.b16 %v3380, %v3376
    %3445 = vmatprep.subr.bf16.mxu0 %v3382
    %3446 = vmatpush1.bf16.msra.mxu0 %v3381
    %3447 = vmatprep.subr.bf16.mxu0 %v3386
    %3448 = vmatpush1.bf16.msra.mxu0 %v3385
    %3449 = vmatprep.subr.bf16.mxu0 %v3390
    %3450 = vmatpush1.bf16.msra.mxu0 %v3389
    %3451 = vmatprep.subr.bf16.mxu0 %v3394
    %3452 = vmatpush1.bf16.msra.mxu0 %v3393
    %3453 = vmatprep.subr.bf16.mxu0 %v3398
    %3454 = vmatpush1.bf16.msra.mxu0 %v3397
    %3455 = vmatprep.subr.bf16.mxu0 %v3402
    %3456 = vmatpush1.bf16.msra.mxu0 %v3401
    %3457 = vmatprep.subr.bf16.mxu0 %v3406
    %3458 = vmatpush1.bf16.msra.mxu0 %v3405
    %3459 = vmatprep.subr.bf16.mxu0 %v3410
    %3460 = vmatpush1.bf16.msra.mxu0 %v3409
    %3461 = vmatprep.subr.bf16.mxu0 0
    %3462 = vmatpush1.bf16.msra.mxu0 0
    %3463 = vmatprep.subr.bf16.mxu0 0
    %3464 = vmatpush1.bf16.msra.mxu0 0
    %3465 = vmatprep.subr.bf16.mxu0 0
    %3466 = vmatpush1.bf16.msra.mxu0 0
    %3467 = vmatprep.subr.bf16.mxu0 0
    %3468 = vmatpush1.bf16.msra.mxu0 0
    %3469 = vmatprep.subr.bf16.mxu0 0
    %3470 = vmatpush1.bf16.msra.mxu0 0
    %3471 = vmatprep.subr.bf16.mxu0 0
    %3472 = vmatpush1.bf16.msra.mxu0 0
    %3473 = vmatprep.subr.bf16.mxu0 0
    %3474 = vmatpush1.bf16.msra.mxu0 0
    %3475 = vmatprep.subr.bf16.mxu0 0
    %3476 = vmatpush1.bf16.msra.mxu0 0
    %3477 = vmatprep.mubr.bf16.mxu0 0
    %3478 = vmatmul.mubr.bf16.gmra.mrb[0].mxu0 %v3027
    %v3479 = vpop.f32.mrb[0].mxu0
    %v3480 = vadd.f32 0.0, %v3479
    %v3481 = vpop.f32.mrb[0].mxu0
    %v3482 = vadd.f32 0.0, %v3481
    %v3483 = vpop.f32.mrb[0].mxu0
    %v3484 = vpop.f32.mrb[0].mxu0
    %3485 = vdwg.mxu0
    %3486 = vmatprep.subr.bf16.mxu0 %v3384
    %3487 = vmatpush1.bf16.msra.mxu0 %v3383
    %3488 = vmatprep.subr.bf16.mxu0 %v3388
    %3489 = vmatpush1.bf16.msra.mxu0 %v3387
    %3490 = vmatprep.subr.bf16.mxu0 %v3392
    %3491 = vmatpush1.bf16.msra.mxu0 %v3391
    %3492 = vmatprep.subr.bf16.mxu0 %v3396
    %3493 = vmatpush1.bf16.msra.mxu0 %v3395
    %3494 = vmatprep.subr.bf16.mxu0 %v3400
    %3495 = vmatpush1.bf16.msra.mxu0 %v3399
    %3496 = vmatprep.subr.bf16.mxu0 %v3404
    %3497 = vmatpush1.bf16.msra.mxu0 %v3403
    %3498 = vmatprep.subr.bf16.mxu0 %v3408
    %3499 = vmatpush1.bf16.msra.mxu0 %v3407
    %3500 = vmatprep.subr.bf16.mxu0 %v3412
    %3501 = vmatpush1.bf16.msra.mxu0 %v3411
    %3502 = vmatprep.subr.bf16.mxu0 0
    %3503 = vmatpush1.bf16.msra.mxu0 0
    %3504 = vmatprep.subr.bf16.mxu0 0
    %3505 = vmatpush1.bf16.msra.mxu0 0
    %3506 = vmatprep.subr.bf16.mxu0 0
    %3507 = vmatpush1.bf16.msra.mxu0 0
    %3508 = vmatprep.subr.bf16.mxu0 0
    %3509 = vmatpush1.bf16.msra.mxu0 0
    %3510 = vmatprep.subr.bf16.mxu0 0
    %3511 = vmatpush1.bf16.msra.mxu0 0
    %3512 = vmatprep.subr.bf16.mxu0 0
    %3513 = vmatpush1.bf16.msra.mxu0 0
    %3514 = vmatprep.subr.bf16.mxu0 0
    %3515 = vmatpush1.bf16.msra.mxu0 0
    %3516 = vmatprep.subr.bf16.mxu0 0
    %3517 = vmatpush1.bf16.msra.mxu0 0
    %3518 = vmatprep.mubr.bf16.mxu0 0
    %3519 = vmatmul.mubr.bf16.gmra.mrb[0].mxu0 %v3027
    %v3520 = vpop.f32.mrb[0].mxu0
    %v3521 = vadd.f32 0.0, %v3520
    %v3522 = vpop.f32.mrb[0].mxu0
    %v3523 = vadd.f32 0.0, %v3522
    %v3524 = vpop.f32.mrb[0].mxu0
    %v3525 = vpop.f32.mrb[0].mxu0
    %3526 = vdwg.mxu0
    %v3527 = vadd.f32 %v3249, %v3480
    %v3528 = vadd.f32 %v3250, %v3482
    %v3529 = vadd.f32 %v3251, %v3521
    %v3530 = vadd.f32 %v3252, %v3523
    %v3531 = vld [vmem:[%s12] sm:$0xf]
    %v3533 = vlaneseq
    %v3534 = vshrl.u32 %v3533, 7
    %v3535 = vsub.s32 0, %v3534
    %v3536 = vrot.slane %v3531, %v3535
    %v3537 = vlaneseq
    %v3538 = vshrl.u32 %v3537, 7
    %v3539 = vsub.s32 1, %v3538
    %v3540 = vrot.slane %v3531, %v3539
    %v3541 = vlaneseq
    %v3542 = vshrl.u32 %v3541, 7
    %v3543 = vsub.s32 2, %v3542
    %v3544 = vrot.slane %v3531, %v3543
    %v3545 = vlaneseq
    %v3546 = vshrl.u32 %v3545, 7
    %v3547 = vsub.s32 3, %v3546
    %v3548 = vrot.slane %v3531, %v3547
    %v3553 = vadd.f32 %v3527, %v3536
    %v3554 = vadd.f32 %v3528, %v3540
    %v3555 = vadd.f32 %v3529, %v3544
    %v3556 = vadd.f32 %v3530, %v3548
    %v3557 = vxor.u32 %v3553, 2147483648
    %v3558 = vmul.f32 %v3557, 1.442695
    %v3559 = vpow.pop %v3558
    %v3560 = vadd.f32 %v3559, 1.0
    %v3561 = vrcp.pop %v3560
    %v3562 = vmul.f32 1.0, %v3561
    %v3563 = vxor.u32 %v3554, 2147483648
    %v3564 = vmul.f32 %v3563, 1.442695
    %v3565 = vpow.pop %v3564
    %v3566 = vadd.f32 %v3565, 1.0
    %v3567 = vrcp.pop %v3566
    %v3568 = vmul.f32 1.0, %v3567
    %v3569 = vtanh.pop %v3555
    %v3570 = vxor.u32 %v3556, 2147483648
    %v3571 = vmul.f32 %v3570, 1.442695
    %v3572 = vpow.pop %v3571
    %v3573 = vadd.f32 %v3572, 1.0
    %v3574 = vrcp.pop %v3573
    %v3575 = vmul.f32 1.0, %v3574
    %v3576 = vmul.f32 %v3568, %v3024
    %v3577 = vmul.f32 %v3562, %v3569
    %v3578 = vadd.f32 %v3576, %v3577
    %v3579 = vtanh.pop %v3578
    %v3580 = vmul.f32 %v3575, %v3579
    %v3581 = vld [vmem:[%s10] sm:$0xff]
    %v3582 = vld [vmem:[%s10 + $0x8] sm:$0xff]
    %v3583 = vld [vmem:[%s10 + $0x10] sm:$0xff]
    %v3584 = vld [vmem:[%s10 + $0x18] sm:$0xff]
    %v3585 = vld [vmem:[%s10 + $0x20] sm:$0xff]
    %v3586 = vld [vmem:[%s10 + $0x28] sm:$0xff]
    %v3587 = vld [vmem:[%s10 + $0x30] sm:$0xff]
    %v3588 = vld [vmem:[%s10 + $0x38] sm:$0xff]
    %v3589 = vld [vmem:[%s10 + $0x40] sm:$0xff]
    %v3590 = vld [vmem:[%s10 + $0x48] sm:$0xff]
    %v3591 = vld [vmem:[%s10 + $0x50] sm:$0xff]
    %v3592 = vld [vmem:[%s10 + $0x58] sm:$0xff]
    %v3593 = vld [vmem:[%s10 + $0x60] sm:$0xff]
    %v3594 = vld [vmem:[%s10 + $0x68] sm:$0xff]
    %v3595 = vld [vmem:[%s10 + $0x70] sm:$0xff]
    %v3596 = vld [vmem:[%s10 + $0x78] sm:$0xff]
    %v3597 = vld [vmem:[%s10 + $0x80] sm:$0xff]
    %v3598 = vld [vmem:[%s10 + $0x88] sm:$0xff]
    %v3599 = vld [vmem:[%s10 + $0x90] sm:$0xff]
    %v3600 = vld [vmem:[%s10 + $0x98] sm:$0xff]
    %v3601 = vld [vmem:[%s10 + $0xa0] sm:$0xff]
    %v3602 = vld [vmem:[%s10 + $0xa8] sm:$0xff]
    %v3603 = vld [vmem:[%s10 + $0xb0] sm:$0xff]
    %v3604 = vld [vmem:[%s10 + $0xb8] sm:$0xff]
    %v3605 = vld [vmem:[%s10 + $0xc0] sm:$0xff]
    %v3606 = vld [vmem:[%s10 + $0xc8] sm:$0xff]
    %v3607 = vld [vmem:[%s10 + $0xd0] sm:$0xff]
    %v3608 = vld [vmem:[%s10 + $0xd8] sm:$0xff]
    %v3609 = vld [vmem:[%s10 + $0xe0] sm:$0xff]
    %v3610 = vld [vmem:[%s10 + $0xe8] sm:$0xff]
    %v3611 = vld [vmem:[%s10 + $0xf0] sm:$0xff]
    %v3612 = vld [vmem:[%s10 + $0xf8] sm:$0xff]
    %v3613 = vld [vmem:[%s10 + $0x100] sm:$0xff]
    %v3614 = vld [vmem:[%s10 + $0x108] sm:$0xff]
    %v3615 = vld [vmem:[%s10 + $0x110] sm:$0xff]
    %v3616 = vld [vmem:[%s10 + $0x118] sm:$0xff]
    %v3617 = vld [vmem:[%s10 + $0x120] sm:$0xff]
    %v3618 = vld [vmem:[%s10 + $0x128] sm:$0xff]
    %v3619 = vld [vmem:[%s10 + $0x130] sm:$0xff]
    %v3620 = vld [vmem:[%s10 + $0x138] sm:$0xff]
    %v3621 = vld [vmem:[%s10 + $0x140] sm:$0xff]
    %v3622 = vld [vmem:[%s10 + $0x148] sm:$0xff]
    %v3623 = vld [vmem:[%s10 + $0x150] sm:$0xff]
    %v3624 = vld [vmem:[%s10 + $0x158] sm:$0xff]
    %v3625 = vld [vmem:[%s10 + $0x160] sm:$0xff]
    %v3626 = vld [vmem:[%s10 + $0x168] sm:$0xff]
    %v3627 = vld [vmem:[%s10 + $0x170] sm:$0xff]
    %v3628 = vld [vmem:[%s10 + $0x178] sm:$0xff]
    %v3629 = vld [vmem:[%s10 + $0x180] sm:$0xff]
    %v3630 = vld [vmem:[%s10 + $0x188] sm:$0xff]
    %v3631 = vld [vmem:[%s10 + $0x190] sm:$0xff]
    %v3632 = vld [vmem:[%s10 + $0x198] sm:$0xff]
    %v3633 = vld [vmem:[%s10 + $0x1a0] sm:$0xff]
    %v3634 = vld [vmem:[%s10 + $0x1a8] sm:$0xff]
    %v3635 = vld [vmem:[%s10 + $0x1b0] sm:$0xff]
    %v3636 = vld [vmem:[%s10 + $0x1b8] sm:$0xff]
    %v3637 = vld [vmem:[%s10 + $0x1c0] sm:$0xff]
    %v3638 = vld [vmem:[%s10 + $0x1c8] sm:$0xff]
    %v3639 = vld [vmem:[%s10 + $0x1d0] sm:$0xff]
    %v3640 = vld [vmem:[%s10 + $0x1d8] sm:$0xff]
    %v3641 = vld [vmem:[%s10 + $0x1e0] sm:$0xff]
    %v3642 = vld [vmem:[%s10 + $0x1e8] sm:$0xff]
    %v3643 = vld [vmem:[%s10 + $0x1f0] sm:$0xff]
    %v3644 = vld [vmem:[%s10 + $0x1f8] sm:$0xff]
    %v3645 = vld [vmem:[%s13] sm:$0xf]
    %v3646 = vpack.c.bf16 %v3580, %v3580
    %v3648 = vlaneseq
    %v3649 = vshrl.u32 %v3648, 7
    %v3650 = vsub.s32 0, %v3649
    %v3651 = vrot.slane %v3645, %v3650
    %v3652 = vlaneseq
    %v3653 = vshrl.u32 %v3652, 7
    %v3654 = vsub.s32 1, %v3653
    %v3655 = vrot.slane %v3645, %v3654
    %v3656 = vlaneseq
    %v3657 = vshrl.u32 %v3656, 7
    %v3658 = vsub.s32 2, %v3657
    %v3659 = vrot.slane %v3645, %v3658
    %v3660 = vlaneseq
    %v3661 = vshrl.u32 %v3660, 7
    %v3662 = vsub.s32 3, %v3661
    %v3663 = vrot.slane %v3645, %v3662
    %v3732 = vunpack.c.l.b16 %v3581
    %v3733 = vunpack.c.h.b16 %v3581
    %v3734 = vunpack.c.l.b16 %v3582
    %v3735 = vunpack.c.h.b16 %v3582
    %v3736 = vunpack.c.l.b16 %v3583
    %v3737 = vunpack.c.h.b16 %v3583
    %v3738 = vunpack.c.l.b16 %v3584
    %v3739 = vunpack.c.h.b16 %v3584
    %v3740 = vunpack.c.l.b16 %v3585
    %v3741 = vunpack.c.h.b16 %v3585
    %v3742 = vunpack.c.l.b16 %v3586
    %v3743 = vunpack.c.h.b16 %v3586
    %v3744 = vunpack.c.l.b16 %v3587
    %v3745 = vunpack.c.h.b16 %v3587
    %v3746 = vunpack.c.l.b16 %v3588
    %v3747 = vunpack.c.h.b16 %v3588
    %v3748 = vunpack.c.l.b16 %v3589
    %v3749 = vunpack.c.h.b16 %v3589
    %v3750 = vunpack.c.l.b16 %v3590
    %v3751 = vunpack.c.h.b16 %v3590
    %v3752 = vunpack.c.l.b16 %v3591
    %v3753 = vunpack.c.h.b16 %v3591
    %v3754 = vunpack.c.l.b16 %v3592
    %v3755 = vunpack.c.h.b16 %v3592
    %v3756 = vunpack.c.l.b16 %v3593
    %v3757 = vunpack.c.h.b16 %v3593
    %v3758 = vunpack.c.l.b16 %v3594
    %v3759 = vunpack.c.h.b16 %v3594
    %v3760 = vunpack.c.l.b16 %v3595
    %v3761 = vunpack.c.h.b16 %v3595
    %v3762 = vunpack.c.l.b16 %v3596
    %v3763 = vunpack.c.h.b16 %v3596
    %v3764 = vunpack.c.l.b16 %v3597
    %v3765 = vunpack.c.h.b16 %v3597
    %v3766 = vunpack.c.l.b16 %v3598
    %v3767 = vunpack.c.h.b16 %v3598
    %v3768 = vunpack.c.l.b16 %v3599
    %v3769 = vunpack.c.h.b16 %v3599
    %v3770 = vunpack.c.l.b16 %v3600
    %v3771 = vunpack.c.h.b16 %v3600
    %v3772 = vunpack.c.l.b16 %v3601
    %v3773 = vunpack.c.h.b16 %v3601
    %v3774 = vunpack.c.l.b16 %v3602
    %v3775 = vunpack.c.h.b16 %v3602
    %v3776 = vunpack.c.l.b16 %v3603
    %v3777 = vunpack.c.h.b16 %v3603
    %v3778 = vunpack.c.l.b16 %v3604
    %v3779 = vunpack.c.h.b16 %v3604
    %v3780 = vunpack.c.l.b16 %v3605
    %v3781 = vunpack.c.h.b16 %v3605
    %v3782 = vunpack.c.l.b16 %v3606
    %v3783 = vunpack.c.h.b16 %v3606
    %v3784 = vunpack.c.l.b16 %v3607
    %v3785 = vunpack.c.h.b16 %v3607
    %v3786 = vunpack.c.l.b16 %v3608
    %v3787 = vunpack.c.h.b16 %v3608
    %v3788 = vunpack.c.l.b16 %v3609
    %v3789 = vunpack.c.h.b16 %v3609
    %v3790 = vunpack.c.l.b16 %v3610
    %v3791 = vunpack.c.h.b16 %v3610
    %v3792 = vunpack.c.l.b16 %v3611
    %v3793 = vunpack.c.h.b16 %v3611
    %v3794 = vunpack.c.l.b16 %v3612
    %v3795 = vunpack.c.h.b16 %v3612
    %v3796 = vunpack.c.l.b16 %v3613
    %v3797 = vunpack.c.h.b16 %v3613
    %v3798 = vunpack.c.l.b16 %v3614
    %v3799 = vunpack.c.h.b16 %v3614
    %v3800 = vunpack.c.l.b16 %v3615
    %v3801 = vunpack.c.h.b16 %v3615
    %v3802 = vunpack.c.l.b16 %v3616
    %v3803 = vunpack.c.h.b16 %v3616
    %v3804 = vunpack.c.l.b16 %v3617
    %v3805 = vunpack.c.h.b16 %v3617
    %v3806 = vunpack.c.l.b16 %v3618
    %v3807 = vunpack.c.h.b16 %v3618
    %v3808 = vunpack.c.l.b16 %v3619
    %v3809 = vunpack.c.h.b16 %v3619
    %v3810 = vunpack.c.l.b16 %v3620
    %v3811 = vunpack.c.h.b16 %v3620
    %v3812 = vunpack.c.l.b16 %v3621
    %v3813 = vunpack.c.h.b16 %v3621
    %v3814 = vunpack.c.l.b16 %v3622
    %v3815 = vunpack.c.h.b16 %v3622
    %v3816 = vunpack.c.l.b16 %v3623
    %v3817 = vunpack.c.h.b16 %v3623
    %v3818 = vunpack.c.l.b16 %v3624
    %v3819 = vunpack.c.h.b16 %v3624
    %v3820 = vunpack.c.l.b16 %v3625
    %v3821 = vunpack.c.h.b16 %v3625
    %v3822 = vunpack.c.l.b16 %v3626
    %v3823 = vunpack.c.h.b16 %v3626
    %v3824 = vunpack.c.l.b16 %v3627
    %v3825 = vunpack.c.h.b16 %v3627
    %v3826 = vunpack.c.l.b16 %v3628
    %v3827 = vunpack.c.h.b16 %v3628
    %v3828 = vunpack.c.l.b16 %v3629
    %v3829 = vunpack.c.h.b16 %v3629
    %v3830 = vunpack.c.l.b16 %v3630
    %v3831 = vunpack.c.h.b16 %v3630
    %v3832 = vunpack.c.l.b16 %v3631
    %v3833 = vunpack.c.h.b16 %v3631
    %v3834 = vunpack.c.l.b16 %v3632
    %v3835 = vunpack.c.h.b16 %v3632
    %v3836 = vunpack.c.l.b16 %v3633
    %v3837 = vunpack.c.h.b16 %v3633
    %v3838 = vunpack.c.l.b16 %v3634
    %v3839 = vunpack.c.h.b16 %v3634
    %v3840 = vunpack.c.l.b16 %v3635
    %v3841 = vunpack.c.h.b16 %v3635
    %v3842 = vunpack.c.l.b16 %v3636
    %v3843 = vunpack.c.h.b16 %v3636
    %v3844 = vunpack.c.l.b16 %v3637
    %v3845 = vunpack.c.h.b16 %v3637
    %v3846 = vunpack.c.l.b16 %v3638
    %v3847 = vunpack.c.h.b16 %v3638
    %v3848 = vunpack.c.l.b16 %v3639
    %v3849 = vunpack.c.h.b16 %v3639
    %v3850 = vunpack.c.l.b16 %v3640
    %v3851 = vunpack.c.h.b16 %v3640
    %v3852 = vunpack.c.l.b16 %v3641
    %v3853 = vunpack.c.h.b16 %v3641
    %v3854 = vunpack.c.l.b16 %v3642
    %v3855 = vunpack.c.h.b16 %v3642
    %v3856 = vunpack.c.l.b16 %v3643
    %v3857 = vunpack.c.h.b16 %v3643
    %v3858 = vunpack.c.l.b16 %v3644
    %v3859 = vunpack.c.h.b16 %v3644
    %v3860 = vpack.c.b16 %v3736, %v3732
    %v3861 = vpack.c.b16 %v3737, %v3733
    %v3862 = vpack.c.b16 %v3738, %v3734
    %v3863 = vpack.c.b16 %v3739, %v3735
    %v3864 = vpack.c.b16 %v3744, %v3740
    %v3865 = vpack.c.b16 %v3745, %v3741
    %v3866 = vpack.c.b16 %v3746, %v3742
    %v3867 = vpack.c.b16 %v3747, %v3743
    %v3868 = vpack.c.b16 %v3752, %v3748
    %v3869 = vpack.c.b16 %v3753, %v3749
    %v3870 = vpack.c.b16 %v3754, %v3750
    %v3871 = vpack.c.b16 %v3755, %v3751
    %v3872 = vpack.c.b16 %v3760, %v3756
    %v3873 = vpack.c.b16 %v3761, %v3757
    %v3874 = vpack.c.b16 %v3762, %v3758
    %v3875 = vpack.c.b16 %v3763, %v3759
    %v3876 = vpack.c.b16 %v3768, %v3764
    %v3877 = vpack.c.b16 %v3769, %v3765
    %v3878 = vpack.c.b16 %v3770, %v3766
    %v3879 = vpack.c.b16 %v3771, %v3767
    %v3880 = vpack.c.b16 %v3776, %v3772
    %v3881 = vpack.c.b16 %v3777, %v3773
    %v3882 = vpack.c.b16 %v3778, %v3774
    %v3883 = vpack.c.b16 %v3779, %v3775
    %v3884 = vpack.c.b16 %v3784, %v3780
    %v3885 = vpack.c.b16 %v3785, %v3781
    %v3886 = vpack.c.b16 %v3786, %v3782
    %v3887 = vpack.c.b16 %v3787, %v3783
    %v3888 = vpack.c.b16 %v3792, %v3788
    %v3889 = vpack.c.b16 %v3793, %v3789
    %v3890 = vpack.c.b16 %v3794, %v3790
    %v3891 = vpack.c.b16 %v3795, %v3791
    %v3892 = vpack.c.b16 %v3800, %v3796
    %v3893 = vpack.c.b16 %v3801, %v3797
    %v3894 = vpack.c.b16 %v3802, %v3798
    %v3895 = vpack.c.b16 %v3803, %v3799
    %v3896 = vpack.c.b16 %v3808, %v3804
    %v3897 = vpack.c.b16 %v3809, %v3805
    %v3898 = vpack.c.b16 %v3810, %v3806
    %v3899 = vpack.c.b16 %v3811, %v3807
    %v3900 = vpack.c.b16 %v3816, %v3812
    %v3901 = vpack.c.b16 %v3817, %v3813
    %v3902 = vpack.c.b16 %v3818, %v3814
    %v3903 = vpack.c.b16 %v3819, %v3815
    %v3904 = vpack.c.b16 %v3824, %v3820
    %v3905 = vpack.c.b16 %v3825, %v3821
    %v3906 = vpack.c.b16 %v3826, %v3822
    %v3907 = vpack.c.b16 %v3827, %v3823
    %v3908 = vpack.c.b16 %v3832, %v3828
    %v3909 = vpack.c.b16 %v3833, %v3829
    %v3910 = vpack.c.b16 %v3834, %v3830
    %v3911 = vpack.c.b16 %v3835, %v3831
    %v3912 = vpack.c.b16 %v3840, %v3836
    %v3913 = vpack.c.b16 %v3841, %v3837
    %v3914 = vpack.c.b16 %v3842, %v3838
    %v3915 = vpack.c.b16 %v3843, %v3839
    %v3916 = vpack.c.b16 %v3848, %v3844
    %v3917 = vpack.c.b16 %v3849, %v3845
    %v3918 = vpack.c.b16 %v3850, %v3846
    %v3919 = vpack.c.b16 %v3851, %v3847
    %v3920 = vpack.c.b16 %v3856, %v3852
    %v3921 = vpack.c.b16 %v3857, %v3853
    %v3922 = vpack.c.b16 %v3858, %v3854
    %v3923 = vpack.c.b16 %v3859, %v3855
    %3988 = vmatprep.subr.bf16.mxu0 %v3861
    %3989 = vmatpush1.bf16.msra.mxu0 %v3860
    %3990 = vmatprep.subr.bf16.mxu0 %v3865
    %3991 = vmatpush1.bf16.msra.mxu0 %v3864
    %3992 = vmatprep.subr.bf16.mxu0 %v3869
    %3993 = vmatpush1.bf16.msra.mxu0 %v3868
    %3994 = vmatprep.subr.bf16.mxu0 %v3873
    %3995 = vmatpush1.bf16.msra.mxu0 %v3872
    %3996 = vmatprep.subr.bf16.mxu0 %v3877
    %3997 = vmatpush1.bf16.msra.mxu0 %v3876
    %3998 = vmatprep.subr.bf16.mxu0 %v3881
    %3999 = vmatpush1.bf16.msra.mxu0 %v3880
    %4000 = vmatprep.subr.bf16.mxu0 %v3885
    %4001 = vmatpush1.bf16.msra.mxu0 %v3884
    %4002 = vmatprep.subr.bf16.mxu0 %v3889
    %4003 = vmatpush1.bf16.msra.mxu0 %v3888
    %4004 = vmatprep.subr.bf16.mxu0 %v3893
    %4005 = vmatpush1.bf16.msra.mxu0 %v3892
    %4006 = vmatprep.subr.bf16.mxu0 %v3897
    %4007 = vmatpush1.bf16.msra.mxu0 %v3896
    %4008 = vmatprep.subr.bf16.mxu0 %v3901
    %4009 = vmatpush1.bf16.msra.mxu0 %v3900
    %4010 = vmatprep.subr.bf16.mxu0 %v3905
    %4011 = vmatpush1.bf16.msra.mxu0 %v3904
    %4012 = vmatprep.subr.bf16.mxu0 %v3909
    %4013 = vmatpush1.bf16.msra.mxu0 %v3908
    %4014 = vmatprep.subr.bf16.mxu0 %v3913
    %4015 = vmatpush1.bf16.msra.mxu0 %v3912
    %4016 = vmatprep.subr.bf16.mxu0 %v3917
    %4017 = vmatpush1.bf16.msra.mxu0 %v3916
    %4018 = vmatprep.subr.bf16.mxu0 %v3921
    %4019 = vmatpush1.bf16.msra.mxu0 %v3920
    %4020 = vmatprep.mubr.bf16.mxu0 %v3134
    %4021 = vmatmul.mubr.bf16.gmra.mrb[0].mxu0 %v3646
    %v4022 = vpop.f32.mrb[0].mxu0
    %v4023 = vadd.f32 %v3651, %v4022
    %v4024 = vpop.f32.mrb[0].mxu0
    %v4025 = vadd.f32 %v3655, %v4024
    %v4026 = vpop.f32.mrb[0].mxu0
    %v4027 = vpop.f32.mrb[0].mxu0
    %4028 = vdwg.mxu0
    %4029 = vmatprep.subr.bf16.mxu0 %v3863
    %4030 = vmatpush1.bf16.msra.mxu0 %v3862
    %4031 = vmatprep.subr.bf16.mxu0 %v3867
    %4032 = vmatpush1.bf16.msra.mxu0 %v3866
    %4033 = vmatprep.subr.bf16.mxu0 %v3871
    %4034 = vmatpush1.bf16.msra.mxu0 %v3870
    %4035 = vmatprep.subr.bf16.mxu0 %v3875
    %4036 = vmatpush1.bf16.msra.mxu0 %v3874
    %4037 = vmatprep.subr.bf16.mxu0 %v3879
    %4038 = vmatpush1.bf16.msra.mxu0 %v3878
    %4039 = vmatprep.subr.bf16.mxu0 %v3883
    %4040 = vmatpush1.bf16.msra.mxu0 %v3882
    %4041 = vmatprep.subr.bf16.mxu0 %v3887
    %4042 = vmatpush1.bf16.msra.mxu0 %v3886
    %4043 = vmatprep.subr.bf16.mxu0 %v3891
    %4044 = vmatpush1.bf16.msra.mxu0 %v3890
    %4045 = vmatprep.subr.bf16.mxu0 %v3895
    %4046 = vmatpush1.bf16.msra.mxu0 %v3894
    %4047 = vmatprep.subr.bf16.mxu0 %v3899
    %4048 = vmatpush1.bf16.msra.mxu0 %v3898
    %4049 = vmatprep.subr.bf16.mxu0 %v3903
    %4050 = vmatpush1.bf16.msra.mxu0 %v3902
    %4051 = vmatprep.subr.bf16.mxu0 %v3907
    %4052 = vmatpush1.bf16.msra.mxu0 %v3906
    %4053 = vmatprep.subr.bf16.mxu0 %v3911
    %4054 = vmatpush1.bf16.msra.mxu0 %v3910
    %4055 = vmatprep.subr.bf16.mxu0 %v3915
    %4056 = vmatpush1.bf16.msra.mxu0 %v3914
    %4057 = vmatprep.subr.bf16.mxu0 %v3919
    %4058 = vmatpush1.bf16.msra.mxu0 %v3918
    %4059 = vmatprep.subr.bf16.mxu0 %v3923
    %4060 = vmatpush1.bf16.msra.mxu0 %v3922
    %4061 = vmatprep.mubr.bf16.mxu0 %v3134
    %4062 = vmatmul.mubr.bf16.gmra.mrb[0].mxu0 %v3646
    %v4063 = vpop.f32.mrb[0].mxu0
    %v4064 = vadd.f32 %v3659, %v4063
    %v4065 = vpop.f32.mrb[0].mxu0
    %v4066 = vadd.f32 %v3663, %v4065
    %v4067 = vpop.f32.mrb[0].mxu0
    %v4068 = vpop.f32.mrb[0].mxu0
    %4069 = vdwg.mxu0
    %v4070 = vxor.u32 %v4023, 2147483648
    %v4071 = vmul.f32 %v4070, 1.442695
    %v4072 = vpow.pop %v4071
    %v4073 = vadd.f32 %v4072, 1.0
    %v4074 = vrcp.pop %v4073
    %v4075 = vmul.f32 1.0, %v4074
    %v4076 = vxor.u32 %v4025, 2147483648
    %v4077 = vmul.f32 %v4076, 1.442695
    %v4078 = vpow.pop %v4077
    %v4079 = vadd.f32 %v4078, 1.0
    %v4080 = vrcp.pop %v4079
    %v4081 = vmul.f32 1.0, %v4080
    %v4082 = vtanh.pop %v4064
    %v4083 = vxor.u32 %v4066, 2147483648
    %v4084 = vmul.f32 %v4083, 1.442695
    %v4085 = vpow.pop %v4084
    %v4086 = vadd.f32 %v4085, 1.0
    %v4087 = vrcp.pop %v4086
    %v4088 = vmul.f32 1.0, %v4087
    %v4089 = vmul.f32 %v4081, %v3131
    %v4090 = vmul.f32 %v4075, %v4082
    %v4091 = vadd.f32 %v4089, %v4090
    %v4092 = vtanh.pop %v4091
    %v4093 = vmul.f32 %v4088, %v4092
    %v4094 = vld [vmem:[#allocation6] sm:$0xff]
    %v4095 = vld [vmem:[#allocation6 + $0x8] sm:$0xff]
    %v4096 = vld [vmem:[#allocation6 + $0x10] sm:$0xff]
    %v4097 = vld [vmem:[#allocation6 + $0x18] sm:$0xff]
    %v4098 = vld [vmem:[#allocation6 + $0x20] sm:$0xff]
    %v4099 = vld [vmem:[#allocation6 + $0x28] sm:$0xff]
    %v4100 = vld [vmem:[#allocation6 + $0x30] sm:$0xff]
    %v4101 = vld [vmem:[#allocation6 + $0x38] sm:$0xff]
    %v4102 = vld [vmem:[#allocation6 + $0x40] sm:$0xff]
    %v4103 = vld [vmem:[#allocation6 + $0x48] sm:$0xff]
    %v4104 = vld [vmem:[#allocation6 + $0x50] sm:$0xff]
    %v4105 = vld [vmem:[#allocation6 + $0x58] sm:$0xff]
    %v4106 = vld [vmem:[#allocation6 + $0x60] sm:$0xff]
    %v4107 = vld [vmem:[#allocation6 + $0x68] sm:$0xff]
    %v4108 = vld [vmem:[#allocation6 + $0x70] sm:$0xff]
    %v4109 = vld [vmem:[#allocation6 + $0x78] sm:$0xff]
    %v4110 = vld [vmem:[#allocation6 + $0x80] sm:$0xff]
    %v4111 = vld [vmem:[#allocation6 + $0x88] sm:$0xff]
    %v4112 = vld [vmem:[#allocation6 + $0x90] sm:$0xff]
    %v4113 = vld [vmem:[#allocation6 + $0x98] sm:$0xff]
    %v4114 = vld [vmem:[#allocation6 + $0xa0] sm:$0xff]
    %v4115 = vld [vmem:[#allocation6 + $0xa8] sm:$0xff]
    %v4116 = vld [vmem:[#allocation6 + $0xb0] sm:$0xff]
    %v4117 = vld [vmem:[#allocation6 + $0xb8] sm:$0xff]
    %v4118 = vld [vmem:[#allocation6 + $0xc0] sm:$0xff]
    %v4119 = vld [vmem:[#allocation6 + $0xc8] sm:$0xff]
    %v4120 = vld [vmem:[#allocation6 + $0xd0] sm:$0xff]
    %v4121 = vld [vmem:[#allocation6 + $0xd8] sm:$0xff]
    %v4122 = vld [vmem:[#allocation6 + $0xe0] sm:$0xff]
    %v4123 = vld [vmem:[#allocation6 + $0xe8] sm:$0xff]
    %v4124 = vld [vmem:[#allocation6 + $0xf0] sm:$0xff]
    %v4125 = vld [vmem:[#allocation6 + $0xf8] sm:$0xff]
    %v4126 = vld [vmem:[#allocation6 + $0x100] sm:$0xff]
    %v4127 = vld [vmem:[#allocation6 + $0x108] sm:$0xff]
    %v4128 = vld [vmem:[#allocation6 + $0x110] sm:$0xff]
    %v4129 = vld [vmem:[#allocation6 + $0x118] sm:$0xff]
    %v4130 = vld [vmem:[#allocation6 + $0x120] sm:$0xff]
    %v4131 = vld [vmem:[#allocation6 + $0x128] sm:$0xff]
    %v4132 = vld [vmem:[#allocation6 + $0x130] sm:$0xff]
    %v4133 = vld [vmem:[#allocation6 + $0x138] sm:$0xff]
    %v4134 = vld [vmem:[#allocation6 + $0x140] sm:$0xff]
    %v4135 = vld [vmem:[#allocation6 + $0x148] sm:$0xff]
    %v4136 = vld [vmem:[#allocation6 + $0x150] sm:$0xff]
    %v4137 = vld [vmem:[#allocation6 + $0x158] sm:$0xff]
    %v4138 = vld [vmem:[#allocation6 + $0x160] sm:$0xff]
    %v4139 = vld [vmem:[#allocation6 + $0x168] sm:$0xff]
    %v4140 = vld [vmem:[#allocation6 + $0x170] sm:$0xff]
    %v4141 = vld [vmem:[#allocation6 + $0x178] sm:$0xff]
    %v4142 = vld [vmem:[#allocation6 + $0x180] sm:$0xff]
    %v4143 = vld [vmem:[#allocation6 + $0x188] sm:$0xff]
    %v4144 = vld [vmem:[#allocation6 + $0x190] sm:$0xff]
    %v4145 = vld [vmem:[#allocation6 + $0x198] sm:$0xff]
    %v4146 = vld [vmem:[#allocation6 + $0x1a0] sm:$0xff]
    %v4147 = vld [vmem:[#allocation6 + $0x1a8] sm:$0xff]
    %v4148 = vld [vmem:[#allocation6 + $0x1b0] sm:$0xff]
    %v4149 = vld [vmem:[#allocation6 + $0x1b8] sm:$0xff]
    %v4150 = vld [vmem:[#allocation6 + $0x1c0] sm:$0xff]
    %v4151 = vld [vmem:[#allocation6 + $0x1c8] sm:$0xff]
    %v4152 = vld [vmem:[#allocation6 + $0x1d0] sm:$0xff]
    %v4153 = vld [vmem:[#allocation6 + $0x1d8] sm:$0xff]
    %v4154 = vld [vmem:[#allocation6 + $0x1e0] sm:$0xff]
    %v4155 = vld [vmem:[#allocation6 + $0x1e8] sm:$0xff]
    %v4156 = vld [vmem:[#allocation6 + $0x1f0] sm:$0xff]
    %v4157 = vld [vmem:[#allocation6 + $0x1f8] sm:$0xff]
    %v4158 = vld [vmem:[%s14] sm:$0xf]
    %v4159 = vpack.c.bf16 %v4093, %v4093
    %v4160 = vpack.c.bf16 %v3241, %v3241
    %v4162 = vlaneseq
    %v4163 = vshrl.u32 %v4162, 7
    %v4164 = vsub.s32 0, %v4163
    %v4165 = vrot.slane %v4158, %v4164
    %v4166 = vlaneseq
    %v4167 = vshrl.u32 %v4166, 7
    %v4168 = vsub.s32 1, %v4167
    %v4169 = vrot.slane %v4158, %v4168
    %v4170 = vlaneseq
    %v4171 = vshrl.u32 %v4170, 7
    %v4172 = vsub.s32 2, %v4171
    %v4173 = vrot.slane %v4158, %v4172
    %v4174 = vlaneseq
    %v4175 = vshrl.u32 %v4174, 7
    %v4176 = vsub.s32 3, %v4175
    %v4177 = vrot.slane %v4158, %v4176
    %v4246 = vunpack.c.l.b16 %v4094
    %v4247 = vunpack.c.h.b16 %v4094
    %v4248 = vunpack.c.l.b16 %v4095
    %v4249 = vunpack.c.h.b16 %v4095
    %v4250 = vunpack.c.l.b16 %v4096
    %v4251 = vunpack.c.h.b16 %v4096
    %v4252 = vunpack.c.l.b16 %v4097
    %v4253 = vunpack.c.h.b16 %v4097
    %v4254 = vunpack.c.l.b16 %v4098
    %v4255 = vunpack.c.h.b16 %v4098
    %v4256 = vunpack.c.l.b16 %v4099
    %v4257 = vunpack.c.h.b16 %v4099
    %v4258 = vunpack.c.l.b16 %v4100
    %v4259 = vunpack.c.h.b16 %v4100
    %v4260 = vunpack.c.l.b16 %v4101
    %v4261 = vunpack.c.h.b16 %v4101
    %v4262 = vunpack.c.l.b16 %v4102
    %v4263 = vunpack.c.h.b16 %v4102
    %v4264 = vunpack.c.l.b16 %v4103
    %v4265 = vunpack.c.h.b16 %v4103
    %v4266 = vunpack.c.l.b16 %v4104
    %v4267 = vunpack.c.h.b16 %v4104
    %v4268 = vunpack.c.l.b16 %v4105
    %v4269 = vunpack.c.h.b16 %v4105
    %v4270 = vunpack.c.l.b16 %v4106
    %v4271 = vunpack.c.h.b16 %v4106
    %v4272 = vunpack.c.l.b16 %v4107
    %v4273 = vunpack.c.h.b16 %v4107
    %v4274 = vunpack.c.l.b16 %v4108
    %v4275 = vunpack.c.h.b16 %v4108
    %v4276 = vunpack.c.l.b16 %v4109
    %v4277 = vunpack.c.h.b16 %v4109
    %v4278 = vunpack.c.l.b16 %v4110
    %v4279 = vunpack.c.h.b16 %v4110
    %v4280 = vunpack.c.l.b16 %v4111
    %v4281 = vunpack.c.h.b16 %v4111
    %v4282 = vunpack.c.l.b16 %v4112
    %v4283 = vunpack.c.h.b16 %v4112
    %v4284 = vunpack.c.l.b16 %v4113
    %v4285 = vunpack.c.h.b16 %v4113
    %v4286 = vunpack.c.l.b16 %v4114
    %v4287 = vunpack.c.h.b16 %v4114
    %v4288 = vunpack.c.l.b16 %v4115
    %v4289 = vunpack.c.h.b16 %v4115
    %v4290 = vunpack.c.l.b16 %v4116
    %v4291 = vunpack.c.h.b16 %v4116
    %v4292 = vunpack.c.l.b16 %v4117
    %v4293 = vunpack.c.h.b16 %v4117
    %v4294 = vunpack.c.l.b16 %v4118
    %v4295 = vunpack.c.h.b16 %v4118
    %v4296 = vunpack.c.l.b16 %v4119
    %v4297 = vunpack.c.h.b16 %v4119
    %v4298 = vunpack.c.l.b16 %v4120
    %v4299 = vunpack.c.h.b16 %v4120
    %v4300 = vunpack.c.l.b16 %v4121
    %v4301 = vunpack.c.h.b16 %v4121
    %v4302 = vunpack.c.l.b16 %v4122
    %v4303 = vunpack.c.h.b16 %v4122
    %v4304 = vunpack.c.l.b16 %v4123
    %v4305 = vunpack.c.h.b16 %v4123
    %v4306 = vunpack.c.l.b16 %v4124
    %v4307 = vunpack.c.h.b16 %v4124
    %v4308 = vunpack.c.l.b16 %v4125
    %v4309 = vunpack.c.h.b16 %v4125
    %v4310 = vunpack.c.l.b16 %v4126
    %v4311 = vunpack.c.h.b16 %v4126
    %v4312 = vunpack.c.l.b16 %v4127
    %v4313 = vunpack.c.h.b16 %v4127
    %v4314 = vunpack.c.l.b16 %v4128
    %v4315 = vunpack.c.h.b16 %v4128
    %v4316 = vunpack.c.l.b16 %v4129
    %v4317 = vunpack.c.h.b16 %v4129
    %v4318 = vunpack.c.l.b16 %v4130
    %v4319 = vunpack.c.h.b16 %v4130
    %v4320 = vunpack.c.l.b16 %v4131
    %v4321 = vunpack.c.h.b16 %v4131
    %v4322 = vunpack.c.l.b16 %v4132
    %v4323 = vunpack.c.h.b16 %v4132
    %v4324 = vunpack.c.l.b16 %v4133
    %v4325 = vunpack.c.h.b16 %v4133
    %v4326 = vunpack.c.l.b16 %v4134
    %v4327 = vunpack.c.h.b16 %v4134
    %v4328 = vunpack.c.l.b16 %v4135
    %v4329 = vunpack.c.h.b16 %v4135
    %v4330 = vunpack.c.l.b16 %v4136
    %v4331 = vunpack.c.h.b16 %v4136
    %v4332 = vunpack.c.l.b16 %v4137
    %v4333 = vunpack.c.h.b16 %v4137
    %v4334 = vunpack.c.l.b16 %v4138
    %v4335 = vunpack.c.h.b16 %v4138
    %v4336 = vunpack.c.l.b16 %v4139
    %v4337 = vunpack.c.h.b16 %v4139
    %v4338 = vunpack.c.l.b16 %v4140
    %v4339 = vunpack.c.h.b16 %v4140
    %v4340 = vunpack.c.l.b16 %v4141
    %v4341 = vunpack.c.h.b16 %v4141
    %v4342 = vunpack.c.l.b16 %v4142
    %v4343 = vunpack.c.h.b16 %v4142
    %v4344 = vunpack.c.l.b16 %v4143
    %v4345 = vunpack.c.h.b16 %v4143
    %v4346 = vunpack.c.l.b16 %v4144
    %v4347 = vunpack.c.h.b16 %v4144
    %v4348 = vunpack.c.l.b16 %v4145
    %v4349 = vunpack.c.h.b16 %v4145
    %v4350 = vunpack.c.l.b16 %v4146
    %v4351 = vunpack.c.h.b16 %v4146
    %v4352 = vunpack.c.l.b16 %v4147
    %v4353 = vunpack.c.h.b16 %v4147
    %v4354 = vunpack.c.l.b16 %v4148
    %v4355 = vunpack.c.h.b16 %v4148
    %v4356 = vunpack.c.l.b16 %v4149
    %v4357 = vunpack.c.h.b16 %v4149
    %v4358 = vunpack.c.l.b16 %v4150
    %v4359 = vunpack.c.h.b16 %v4150
    %v4360 = vunpack.c.l.b16 %v4151
    %v4361 = vunpack.c.h.b16 %v4151
    %v4362 = vunpack.c.l.b16 %v4152
    %v4363 = vunpack.c.h.b16 %v4152
    %v4364 = vunpack.c.l.b16 %v4153
    %v4365 = vunpack.c.h.b16 %v4153
    %v4366 = vunpack.c.l.b16 %v4154
    %v4367 = vunpack.c.h.b16 %v4154
    %v4368 = vunpack.c.l.b16 %v4155
    %v4369 = vunpack.c.h.b16 %v4155
    %v4370 = vunpack.c.l.b16 %v4156
    %v4371 = vunpack.c.h.b16 %v4156
    %v4372 = vunpack.c.l.b16 %v4157
    %v4373 = vunpack.c.h.b16 %v4157
    %v4374 = vpack.c.b16 %v4250, %v4246
    %v4375 = vpack.c.b16 %v4251, %v4247
    %v4376 = vpack.c.b16 %v4252, %v4248
    %v4377 = vpack.c.b16 %v4253, %v4249
    %v4378 = vpack.c.b16 %v4258, %v4254
    %v4379 = vpack.c.b16 %v4259, %v4255
    %v4380 = vpack.c.b16 %v4260, %v4256
    %v4381 = vpack.c.b16 %v4261, %v4257
    %v4382 = vpack.c.b16 %v4266, %v4262
    %v4383 = vpack.c.b16 %v4267, %v4263
    %v4384 = vpack.c.b16 %v4268, %v4264
    %v4385 = vpack.c.b16 %v4269, %v4265
    %v4386 = vpack.c.b16 %v4274, %v4270
    %v4387 = vpack.c.b16 %v4275, %v4271
    %v4388 = vpack.c.b16 %v4276, %v4272
    %v4389 = vpack.c.b16 %v4277, %v4273
    %v4390 = vpack.c.b16 %v4282, %v4278
    %v4391 = vpack.c.b16 %v4283, %v4279
    %v4392 = vpack.c.b16 %v4284, %v4280
    %v4393 = vpack.c.b16 %v4285, %v4281
    %v4394 = vpack.c.b16 %v4290, %v4286
    %v4395 = vpack.c.b16 %v4291, %v4287
    %v4396 = vpack.c.b16 %v4292, %v4288
    %v4397 = vpack.c.b16 %v4293, %v4289
    %v4398 = vpack.c.b16 %v4298, %v4294
    %v4399 = vpack.c.b16 %v4299, %v4295
    %v4400 = vpack.c.b16 %v4300, %v4296
    %v4401 = vpack.c.b16 %v4301, %v4297
    %v4402 = vpack.c.b16 %v4306, %v4302
    %v4403 = vpack.c.b16 %v4307, %v4303
    %v4404 = vpack.c.b16 %v4308, %v4304
    %v4405 = vpack.c.b16 %v4309, %v4305
    %v4406 = vpack.c.b16 %v4314, %v4310
    %v4407 = vpack.c.b16 %v4315, %v4311
    %v4408 = vpack.c.b16 %v4316, %v4312
    %v4409 = vpack.c.b16 %v4317, %v4313
    %v4410 = vpack.c.b16 %v4322, %v4318
    %v4411 = vpack.c.b16 %v4323, %v4319
    %v4412 = vpack.c.b16 %v4324, %v4320
    %v4413 = vpack.c.b16 %v4325, %v4321
    %v4414 = vpack.c.b16 %v4330, %v4326
    %v4415 = vpack.c.b16 %v4331, %v4327
    %v4416 = vpack.c.b16 %v4332, %v4328
    %v4417 = vpack.c.b16 %v4333, %v4329
    %v4418 = vpack.c.b16 %v4338, %v4334
    %v4419 = vpack.c.b16 %v4339, %v4335
    %v4420 = vpack.c.b16 %v4340, %v4336
    %v4421 = vpack.c.b16 %v4341, %v4337
    %v4422 = vpack.c.b16 %v4346, %v4342
    %v4423 = vpack.c.b16 %v4347, %v4343
    %v4424 = vpack.c.b16 %v4348, %v4344
    %v4425 = vpack.c.b16 %v4349, %v4345
    %v4426 = vpack.c.b16 %v4354, %v4350
    %v4427 = vpack.c.b16 %v4355, %v4351
    %v4428 = vpack.c.b16 %v4356, %v4352
    %v4429 = vpack.c.b16 %v4357, %v4353
    %v4430 = vpack.c.b16 %v4362, %v4358
    %v4431 = vpack.c.b16 %v4363, %v4359
    %v4432 = vpack.c.b16 %v4364, %v4360
    %v4433 = vpack.c.b16 %v4365, %v4361
    %v4434 = vpack.c.b16 %v4370, %v4366
    %v4435 = vpack.c.b16 %v4371, %v4367
    %v4436 = vpack.c.b16 %v4372, %v4368
    %v4437 = vpack.c.b16 %v4373, %v4369
    %4502 = vmatprep.subr.bf16.mxu0 %v4375
    %4503 = vmatpush1.bf16.msra.mxu0 %v4374
    %4504 = vmatprep.subr.bf16.mxu0 %v4379
    %4505 = vmatpush1.bf16.msra.mxu0 %v4378
    %4506 = vmatprep.subr.bf16.mxu0 %v4383
    %4507 = vmatpush1.bf16.msra.mxu0 %v4382
    %4508 = vmatprep.subr.bf16.mxu0 %v4387
    %4509 = vmatpush1.bf16.msra.mxu0 %v4386
    %4510 = vmatprep.subr.bf16.mxu0 %v4391
    %4511 = vmatpush1.bf16.msra.mxu0 %v4390
    %4512 = vmatprep.subr.bf16.mxu0 %v4395
    %4513 = vmatpush1.bf16.msra.mxu0 %v4394
    %4514 = vmatprep.subr.bf16.mxu0 %v4399
    %4515 = vmatpush1.bf16.msra.mxu0 %v4398
    %4516 = vmatprep.subr.bf16.mxu0 %v4403
    %4517 = vmatpush1.bf16.msra.mxu0 %v4402
    %4518 = vmatprep.subr.bf16.mxu0 %v4407
    %4519 = vmatpush1.bf16.msra.mxu0 %v4406
    %4520 = vmatprep.subr.bf16.mxu0 %v4411
    %4521 = vmatpush1.bf16.msra.mxu0 %v4410
    %4522 = vmatprep.subr.bf16.mxu0 %v4415
    %4523 = vmatpush1.bf16.msra.mxu0 %v4414
    %4524 = vmatprep.subr.bf16.mxu0 %v4419
    %4525 = vmatpush1.bf16.msra.mxu0 %v4418
    %4526 = vmatprep.subr.bf16.mxu0 %v4423
    %4527 = vmatpush1.bf16.msra.mxu0 %v4422
    %4528 = vmatprep.subr.bf16.mxu0 %v4427
    %4529 = vmatpush1.bf16.msra.mxu0 %v4426
    %4530 = vmatprep.subr.bf16.mxu0 %v4431
    %4531 = vmatpush1.bf16.msra.mxu0 %v4430
    %4532 = vmatprep.subr.bf16.mxu0 %v4435
    %4533 = vmatpush1.bf16.msra.mxu0 %v4434
    %4534 = vmatprep.mubr.bf16.mxu0 %v4160
    %4535 = vmatmul.mubr.bf16.gmra.mrb[0].mxu0 %v4159
    %v4536 = vpop.f32.mrb[0].mxu0
    %v4537 = vadd.f32 %v4165, %v4536
    %v4538 = vpop.f32.mrb[0].mxu0
    %v4539 = vadd.f32 %v4169, %v4538
    %v4540 = vpop.f32.mrb[0].mxu0
    %v4541 = vpop.f32.mrb[0].mxu0
    %4542 = vdwg.mxu0
    %4543 = vmatprep.subr.bf16.mxu0 %v4377
    %4544 = vmatpush1.bf16.msra.mxu0 %v4376
    %4545 = vmatprep.subr.bf16.mxu0 %v4381
    %4546 = vmatpush1.bf16.msra.mxu0 %v4380
    %4547 = vmatprep.subr.bf16.mxu0 %v4385
    %4548 = vmatpush1.bf16.msra.mxu0 %v4384
    %4549 = vmatprep.subr.bf16.mxu0 %v4389
    %4550 = vmatpush1.bf16.msra.mxu0 %v4388
    %4551 = vmatprep.subr.bf16.mxu0 %v4393
    %4552 = vmatpush1.bf16.msra.mxu0 %v4392
    %4553 = vmatprep.subr.bf16.mxu0 %v4397
    %4554 = vmatpush1.bf16.msra.mxu0 %v4396
    %4555 = vmatprep.subr.bf16.mxu0 %v4401
    %4556 = vmatpush1.bf16.msra.mxu0 %v4400
    %4557 = vmatprep.subr.bf16.mxu0 %v4405
    %4558 = vmatpush1.bf16.msra.mxu0 %v4404
    %4559 = vmatprep.subr.bf16.mxu0 %v4409
    %4560 = vmatpush1.bf16.msra.mxu0 %v4408
    %4561 = vmatprep.subr.bf16.mxu0 %v4413
    %4562 = vmatpush1.bf16.msra.mxu0 %v4412
    %4563 = vmatprep.subr.bf16.mxu0 %v4417
    %4564 = vmatpush1.bf16.msra.mxu0 %v4416
    %4565 = vmatprep.subr.bf16.mxu0 %v4421
    %4566 = vmatpush1.bf16.msra.mxu0 %v4420
    %4567 = vmatprep.subr.bf16.mxu0 %v4425
    %4568 = vmatpush1.bf16.msra.mxu0 %v4424
    %4569 = vmatprep.subr.bf16.mxu0 %v4429
    %4570 = vmatpush1.bf16.msra.mxu0 %v4428
    %4571 = vmatprep.subr.bf16.mxu0 %v4433
    %4572 = vmatpush1.bf16.msra.mxu0 %v4432
    %4573 = vmatprep.subr.bf16.mxu0 %v4437
    %4574 = vmatpush1.bf16.msra.mxu0 %v4436
    %4575 = vmatprep.mubr.bf16.mxu0 %v4160
    %4576 = vmatmul.mubr.bf16.gmra.mrb[0].mxu0 %v4159
    %v4577 = vpop.f32.mrb[0].mxu0
    %v4578 = vadd.f32 %v4173, %v4577
    %v4579 = vpop.f32.mrb[0].mxu0
    %v4580 = vadd.f32 %v4177, %v4579
    %v4581 = vpop.f32.mrb[0].mxu0
    %v4582 = vpop.f32.mrb[0].mxu0
    %4583 = vdwg.mxu0
    %v4584 = vxor.u32 %v4537, 2147483648
    %v4585 = vmul.f32 %v4584, 1.442695
    %v4586 = vpow.pop %v4585
    %v4587 = vadd.f32 %v4586, 1.0
    %v4588 = vrcp.pop %v4587
    %v4589 = vmul.f32 1.0, %v4588
    %v4590 = vxor.u32 %v4539, 2147483648
    %v4591 = vmul.f32 %v4590, 1.442695
    %v4592 = vpow.pop %v4591
    %v4593 = vadd.f32 %v4592, 1.0
    %v4594 = vrcp.pop %v4593
    %v4595 = vmul.f32 1.0, %v4594
    %v4596 = vtanh.pop %v4578
    %v4597 = vxor.u32 %v4580, 2147483648
    %v4598 = vmul.f32 %v4597, 1.442695
    %v4599 = vpow.pop %v4598
    %v4600 = vadd.f32 %v4599, 1.0
    %v4601 = vrcp.pop %v4600
    %v4602 = vmul.f32 1.0, %v4601
    %v4603 = vmul.f32 %v4595, %v3239
    %v4604 = vmul.f32 %v4589, %v4596
    %v4605 = vadd.f32 %v4603, %v4604
    %v4606 = vtanh.pop %v4605
    %v4607 = vmul.f32 %v4602, %v4606
    %v4608 = vpack.c.bf16 %v4607, %v4607
    %v4609 = vld [vmem:[%s16] sm:$0xff]
    %v4610 = vld [vmem:[%s16 + $0x8] sm:$0xff]
    %v4611 = vld [vmem:[%s16 + $0x10] sm:$0xff]
    %v4612 = vld [vmem:[%s16 + $0x18] sm:$0xff]
    %v4613 = vld [vmem:[%s16 + $0x20] sm:$0xff]
    %v4614 = vld [vmem:[%s16 + $0x28] sm:$0xff]
    %v4615 = vld [vmem:[%s16 + $0x30] sm:$0xff]
    %v4616 = vld [vmem:[%s16 + $0x38] sm:$0xff]
    %v4617 = vld [vmem:[%s16 + $0x40] sm:$0xff]
    %v4618 = vld [vmem:[%s16 + $0x48] sm:$0xff]
    %v4619 = vld [vmem:[%s16 + $0x50] sm:$0xff]
    %v4620 = vld [vmem:[%s16 + $0x58] sm:$0xff]
    %v4621 = vld [vmem:[%s16 + $0x60] sm:$0xff]
    %v4622 = vld [vmem:[%s16 + $0x68] sm:$0xff]
    %v4623 = vld [vmem:[%s16 + $0x70] sm:$0xff]
    %v4624 = vld [vmem:[%s16 + $0x78] sm:$0xff]
    %v4625 = vld [vmem:[%s17] sm:$0x3]
    %v4627 = vlaneseq
    %v4628 = vshrl.u32 %v4627, 7
    %v4629 = vsub.s32 0, %v4628
    %v4630 = vrot.slane %v4625, %v4629
    %v4631 = vlaneseq
    %v4632 = vshrl.u32 %v4631, 7
    %v4633 = vsub.s32 1, %v4632
    %v4634 = vrot.slane %v4625, %v4633
    %v4653 = vunpack.c.l.b16 %v4609
    %v4654 = vunpack.c.h.b16 %v4609
    %v4655 = vunpack.c.l.b16 %v4610
    %v4656 = vunpack.c.h.b16 %v4610
    %v4657 = vunpack.c.l.b16 %v4611
    %v4658 = vunpack.c.h.b16 %v4611
    %v4659 = vunpack.c.l.b16 %v4612
    %v4660 = vunpack.c.h.b16 %v4612
    %v4661 = vunpack.c.l.b16 %v4613
    %v4662 = vunpack.c.h.b16 %v4613
    %v4663 = vunpack.c.l.b16 %v4614
    %v4664 = vunpack.c.h.b16 %v4614
    %v4665 = vunpack.c.l.b16 %v4615
    %v4666 = vunpack.c.h.b16 %v4615
    %v4667 = vunpack.c.l.b16 %v4616
    %v4668 = vunpack.c.h.b16 %v4616
    %v4669 = vunpack.c.l.b16 %v4617
    %v4670 = vunpack.c.h.b16 %v4617
    %v4671 = vunpack.c.l.b16 %v4618
    %v4672 = vunpack.c.h.b16 %v4618
    %v4673 = vunpack.c.l.b16 %v4619
    %v4674 = vunpack.c.h.b16 %v4619
    %v4675 = vunpack.c.l.b16 %v4620
    %v4676 = vunpack.c.h.b16 %v4620
    %v4677 = vunpack.c.l.b16 %v4621
    %v4678 = vunpack.c.h.b16 %v4621
    %v4679 = vunpack.c.l.b16 %v4622
    %v4680 = vunpack.c.h.b16 %v4622
    %v4681 = vunpack.c.l.b16 %v4623
    %v4682 = vunpack.c.h.b16 %v4623
    %v4683 = vunpack.c.l.b16 %v4624
    %v4684 = vunpack.c.h.b16 %v4624
    %v4685 = vpack.c.b16 %v4655, %v4653
    %v4686 = vpack.c.b16 %v4656, %v4654
    %v4687 = vpack.c.b16 %v4659, %v4657
    %v4688 = vpack.c.b16 %v4660, %v4658
    %v4689 = vpack.c.b16 %v4663, %v4661
    %v4690 = vpack.c.b16 %v4664, %v4662
    %v4691 = vpack.c.b16 %v4667, %v4665
    %v4692 = vpack.c.b16 %v4668, %v4666
    %v4693 = vpack.c.b16 %v4671, %v4669
    %v4694 = vpack.c.b16 %v4672, %v4670
    %v4695 = vpack.c.b16 %v4675, %v4673
    %v4696 = vpack.c.b16 %v4676, %v4674
    %v4697 = vpack.c.b16 %v4679, %v4677
    %v4698 = vpack.c.b16 %v4680, %v4678
    %v4699 = vpack.c.b16 %v4683, %v4681
    %v4700 = vpack.c.b16 %v4684, %v4682
    %4717 = vmatprep.subr.bf16.mxu0 %v4686
    %4718 = vmatpush1.bf16.msra.mxu0 %v4685
    %4719 = vmatprep.subr.bf16.mxu0 %v4688
    %4720 = vmatpush1.bf16.msra.mxu0 %v4687
    %4721 = vmatprep.subr.bf16.mxu0 %v4690
    %4722 = vmatpush1.bf16.msra.mxu0 %v4689
    %4723 = vmatprep.subr.bf16.mxu0 %v4692
    %4724 = vmatpush1.bf16.msra.mxu0 %v4691
    %4725 = vmatprep.subr.bf16.mxu0 %v4694
    %4726 = vmatpush1.bf16.msra.mxu0 %v4693
    %4727 = vmatprep.subr.bf16.mxu0 %v4696
    %4728 = vmatpush1.bf16.msra.mxu0 %v4695
    %4729 = vmatprep.subr.bf16.mxu0 %v4698
    %4730 = vmatpush1.bf16.msra.mxu0 %v4697
    %4731 = vmatprep.subr.bf16.mxu0 %v4700
    %4732 = vmatpush1.bf16.msra.mxu0 %v4699
    %4733 = vmatprep.subr.bf16.mxu0 0
    %4734 = vmatpush1.bf16.msra.mxu0 0
    %4735 = vmatprep.subr.bf16.mxu0 0
    %4736 = vmatpush1.bf16.msra.mxu0 0
    %4737 = vmatprep.subr.bf16.mxu0 0
    %4738 = vmatpush1.bf16.msra.mxu0 0
    %4739 = vmatprep.subr.bf16.mxu0 0
    %4740 = vmatpush1.bf16.msra.mxu0 0
    %4741 = vmatprep.subr.bf16.mxu0 0
    %4742 = vmatpush1.bf16.msra.mxu0 0
    %4743 = vmatprep.subr.bf16.mxu0 0
    %4744 = vmatpush1.bf16.msra.mxu0 0
    %4745 = vmatprep.subr.bf16.mxu0 0
    %4746 = vmatpush1.bf16.msra.mxu0 0
    %4747 = vmatprep.subr.bf16.mxu0 0
    %4748 = vmatpush1.bf16.msra.mxu0 0
    %4749 = vmatprep.mubr.bf16.mxu0 0
    %4750 = vmatmul.mubr.bf16.gmra.mrb[0].mxu0 %v4608
    %v4751 = vpop.f32.mrb[0].mxu0
    %v4752 = vadd.f32 %v4630, %v4751
    %v4753 = vpop.f32.mrb[0].mxu0
    %v4754 = vadd.f32 %v4634, %v4753
    %v4755 = vpop.f32.mrb[0].mxu0
    %v4756 = vpop.f32.mrb[0].mxu0
    %4757 = vdwg.mxu0
    %s4758 = scalar_lea.vmem [#allocation7], 16
    %4759 = vst [vmem:[%s4758] sm:$0xff] %v4752
    %4760 = vst [vmem:[%s4758 + $0x8] sm:$0xff] %v4754
    %v4761 = vmax.f32 %v4752, %v4754
    %4762 = vmax.xlane.f32.xlu0 %v4761
    %v4763 = vpop.xlane.xlu0 %4762
    %vm4764 = vcmp.eq.f32.partialorder %v4752, %v4763
    %vm4765 = vcmp.eq.f32.partialorder %v4754, %v4763
    %v4766 = vsel %vm4764, %v3245, 256
    %v4767 = vsel %vm4765, %v3246, 256
    %vm4768 = vcmp.lt.s32.totalorder %v4766, %v4767
    %v4769 = vsel %vm4768, %v4766, %v4767
    %v4770 = vand.u32 %v4769, 65535
    %v4771 = vshra.s32 %v4769, 16
    %v4772 = vcvt.s32.f32 %v4770
    %v4773 = vcvt.s32.f32 %v4771
    %4774 = vmin.xlane.f32.xlu0 %v4773
    %v4775 = vpop.xlane.xlu0 %4774
    %vm4776 = vcmp.eq.f32.partialorder %v4773, %v4775
    %v4777 = vsel %vm4776, %v4772, inf
    %4778 = vmin.xlane.f32.xlu0 %v4777
    %v4779 = vpop.xlane.xlu0 %4778
    %v4780 = vcvt.f32.s32 %v4779
    %v4781 = vcvt.f32.s32 %v4775
    %v4782 = vshll.u32 %v4781, 16
    %v4783 = vadd.s32 %v4782, %v4780
    %vm4784 = vcmp.eq.s32.totalorder %v3245, %v4783
    %vm4785 = vcmp.eq.s32.totalorder %v3246, %v4783
    %v4786 = vsel %vm4784, 1, 0
    %v4787 = vsel %vm4785, 1, 0
    %v4788 = vcvt.s32.f32 %v4786
    %v4789 = vcvt.s32.f32 %v4787
    %v4790 = vpack.c.bf16 %v4788, %v4788
    %v4791 = vpack.c.bf16 %v4789, %v4789
    %v4792 = vld [vmem:[%s9] sm:$0xff]
    %v4793 = vld [vmem:[%s9 + $0x8] sm:$0xff]
    %v4794 = vld [vmem:[%s9 + $0x10] sm:$0xff]
    %v4795 = vld [vmem:[%s9 + $0x18] sm:$0xff]
    %v4796 = vld [vmem:[%s9 + $0x20] sm:$0xff]
    %v4797 = vld [vmem:[%s9 + $0x28] sm:$0xff]
    %v4798 = vld [vmem:[%s9 + $0x30] sm:$0xff]
    %v4799 = vld [vmem:[%s9 + $0x38] sm:$0xff]
    %v4800 = vld [vmem:[%s9 + $0x40] sm:$0xff]
    %v4801 = vld [vmem:[%s9 + $0x48] sm:$0xff]
    %v4802 = vld [vmem:[%s9 + $0x50] sm:$0xff]
    %v4803 = vld [vmem:[%s9 + $0x58] sm:$0xff]
    %v4804 = vld [vmem:[%s9 + $0x60] sm:$0xff]
    %v4805 = vld [vmem:[%s9 + $0x68] sm:$0xff]
    %v4806 = vld [vmem:[%s9 + $0x70] sm:$0xff]
    %v4807 = vld [vmem:[%s9 + $0x78] sm:$0xff]
    %v4808 = vld [vmem:[%s9 + $0x80] sm:$0xff]
    %v4809 = vld [vmem:[%s9 + $0x88] sm:$0xff]
    %v4810 = vld [vmem:[%s9 + $0x90] sm:$0xff]
    %v4811 = vld [vmem:[%s9 + $0x98] sm:$0xff]
    %v4812 = vld [vmem:[%s9 + $0xa0] sm:$0xff]
    %v4813 = vld [vmem:[%s9 + $0xa8] sm:$0xff]
    %v4814 = vld [vmem:[%s9 + $0xb0] sm:$0xff]
    %v4815 = vld [vmem:[%s9 + $0xb8] sm:$0xff]
    %v4816 = vld [vmem:[%s9 + $0xc0] sm:$0xff]
    %v4817 = vld [vmem:[%s9 + $0xc8] sm:$0xff]
    %v4818 = vld [vmem:[%s9 + $0xd0] sm:$0xff]
    %v4819 = vld [vmem:[%s9 + $0xd8] sm:$0xff]
    %v4820 = vld [vmem:[%s9 + $0xe0] sm:$0xff]
    %v4821 = vld [vmem:[%s9 + $0xe8] sm:$0xff]
    %v4822 = vld [vmem:[%s9 + $0xf0] sm:$0xff]
    %v4823 = vld [vmem:[%s9 + $0xf8] sm:$0xff]
    %v4824 = vld [vmem:[%s9 + $0x100] sm:$0xff]
    %v4825 = vld [vmem:[%s9 + $0x108] sm:$0xff]
    %v4826 = vld [vmem:[%s9 + $0x110] sm:$0xff]
    %v4827 = vld [vmem:[%s9 + $0x118] sm:$0xff]
    %v4828 = vld [vmem:[%s9 + $0x120] sm:$0xff]
    %v4829 = vld [vmem:[%s9 + $0x128] sm:$0xff]
    %v4830 = vld [vmem:[%s9 + $0x130] sm:$0xff]
    %v4831 = vld [vmem:[%s9 + $0x138] sm:$0xff]
    %v4832 = vld [vmem:[%s9 + $0x140] sm:$0xff]
    %v4833 = vld [vmem:[%s9 + $0x148] sm:$0xff]
    %v4834 = vld [vmem:[%s9 + $0x150] sm:$0xff]
    %v4835 = vld [vmem:[%s9 + $0x158] sm:$0xff]
    %v4836 = vld [vmem:[%s9 + $0x160] sm:$0xff]
    %v4837 = vld [vmem:[%s9 + $0x168] sm:$0xff]
    %v4838 = vld [vmem:[%s9 + $0x170] sm:$0xff]
    %v4839 = vld [vmem:[%s9 + $0x178] sm:$0xff]
    %v4840 = vld [vmem:[%s9 + $0x180] sm:$0xff]
    %v4841 = vld [vmem:[%s9 + $0x188] sm:$0xff]
    %v4842 = vld [vmem:[%s9 + $0x190] sm:$0xff]
    %v4843 = vld [vmem:[%s9 + $0x198] sm:$0xff]
    %v4844 = vld [vmem:[%s9 + $0x1a0] sm:$0xff]
    %v4845 = vld [vmem:[%s9 + $0x1a8] sm:$0xff]
    %v4846 = vld [vmem:[%s9 + $0x1b0] sm:$0xff]
    %v4847 = vld [vmem:[%s9 + $0x1b8] sm:$0xff]
    %v4848 = vld [vmem:[%s9 + $0x1c0] sm:$0xff]
    %v4849 = vld [vmem:[%s9 + $0x1c8] sm:$0xff]
    %v4850 = vld [vmem:[%s9 + $0x1d0] sm:$0xff]
    %v4851 = vld [vmem:[%s9 + $0x1d8] sm:$0xff]
    %v4852 = vld [vmem:[%s9 + $0x1e0] sm:$0xff]
    %v4853 = vld [vmem:[%s9 + $0x1e8] sm:$0xff]
    %v4854 = vld [vmem:[%s9 + $0x1f0] sm:$0xff]
    %v4855 = vld [vmem:[%s9 + $0x1f8] sm:$0xff]
    %v4920 = vunpack.c.l.b16 %v4792
    %v4921 = vunpack.c.h.b16 %v4792
    %v4922 = vunpack.c.l.b16 %v4793
    %v4923 = vunpack.c.h.b16 %v4793
    %v4924 = vunpack.c.l.b16 %v4794
    %v4925 = vunpack.c.h.b16 %v4794
    %v4926 = vunpack.c.l.b16 %v4795
    %v4927 = vunpack.c.h.b16 %v4795
    %v4928 = vunpack.c.l.b16 %v4796
    %v4929 = vunpack.c.h.b16 %v4796
    %v4930 = vunpack.c.l.b16 %v4797
    %v4931 = vunpack.c.h.b16 %v4797
    %v4932 = vunpack.c.l.b16 %v4798
    %v4933 = vunpack.c.h.b16 %v4798
    %v4934 = vunpack.c.l.b16 %v4799
    %v4935 = vunpack.c.h.b16 %v4799
    %v4936 = vunpack.c.l.b16 %v4800
    %v4937 = vunpack.c.h.b16 %v4800
    %v4938 = vunpack.c.l.b16 %v4801
    %v4939 = vunpack.c.h.b16 %v4801
    %v4940 = vunpack.c.l.b16 %v4802
    %v4941 = vunpack.c.h.b16 %v4802
    %v4942 = vunpack.c.l.b16 %v4803
    %v4943 = vunpack.c.h.b16 %v4803
    %v4944 = vunpack.c.l.b16 %v4804
    %v4945 = vunpack.c.h.b16 %v4804
    %v4946 = vunpack.c.l.b16 %v4805
    %v4947 = vunpack.c.h.b16 %v4805
    %v4948 = vunpack.c.l.b16 %v4806
    %v4949 = vunpack.c.h.b16 %v4806
    %v4950 = vunpack.c.l.b16 %v4807
    %v4951 = vunpack.c.h.b16 %v4807
    %v4952 = vunpack.c.l.b16 %v4808
    %v4953 = vunpack.c.h.b16 %v4808
    %v4954 = vunpack.c.l.b16 %v4809
    %v4955 = vunpack.c.h.b16 %v4809
    %v4956 = vunpack.c.l.b16 %v4810
    %v4957 = vunpack.c.h.b16 %v4810
    %v4958 = vunpack.c.l.b16 %v4811
    %v4959 = vunpack.c.h.b16 %v4811
    %v4960 = vunpack.c.l.b16 %v4812
    %v4961 = vunpack.c.h.b16 %v4812
    %v4962 = vunpack.c.l.b16 %v4813
    %v4963 = vunpack.c.h.b16 %v4813
    %v4964 = vunpack.c.l.b16 %v4814
    %v4965 = vunpack.c.h.b16 %v4814
    %v4966 = vunpack.c.l.b16 %v4815
    %v4967 = vunpack.c.h.b16 %v4815
    %v4968 = vunpack.c.l.b16 %v4816
    %v4969 = vunpack.c.h.b16 %v4816
    %v4970 = vunpack.c.l.b16 %v4817
    %v4971 = vunpack.c.h.b16 %v4817
    %v4972 = vunpack.c.l.b16 %v4818
    %v4973 = vunpack.c.h.b16 %v4818
    %v4974 = vunpack.c.l.b16 %v4819
    %v4975 = vunpack.c.h.b16 %v4819
    %v4976 = vunpack.c.l.b16 %v4820
    %v4977 = vunpack.c.h.b16 %v4820
    %v4978 = vunpack.c.l.b16 %v4821
    %v4979 = vunpack.c.h.b16 %v4821
    %v4980 = vunpack.c.l.b16 %v4822
    %v4981 = vunpack.c.h.b16 %v4822
    %v4982 = vunpack.c.l.b16 %v4823
    %v4983 = vunpack.c.h.b16 %v4823
    %v4984 = vunpack.c.l.b16 %v4824
    %v4985 = vunpack.c.h.b16 %v4824
    %v4986 = vunpack.c.l.b16 %v4825
    %v4987 = vunpack.c.h.b16 %v4825
    %v4988 = vunpack.c.l.b16 %v4826
    %v4989 = vunpack.c.h.b16 %v4826
    %v4990 = vunpack.c.l.b16 %v4827
    %v4991 = vunpack.c.h.b16 %v4827
    %v4992 = vunpack.c.l.b16 %v4828
    %v4993 = vunpack.c.h.b16 %v4828
    %v4994 = vunpack.c.l.b16 %v4829
    %v4995 = vunpack.c.h.b16 %v4829
    %v4996 = vunpack.c.l.b16 %v4830
    %v4997 = vunpack.c.h.b16 %v4830
    %v4998 = vunpack.c.l.b16 %v4831
    %v4999 = vunpack.c.h.b16 %v4831
    %v5000 = vunpack.c.l.b16 %v4832
    %v5001 = vunpack.c.h.b16 %v4832
    %v5002 = vunpack.c.l.b16 %v4833
    %v5003 = vunpack.c.h.b16 %v4833
    %v5004 = vunpack.c.l.b16 %v4834
    %v5005 = vunpack.c.h.b16 %v4834
    %v5006 = vunpack.c.l.b16 %v4835
    %v5007 = vunpack.c.h.b16 %v4835
    %v5008 = vunpack.c.l.b16 %v4836
    %v5009 = vunpack.c.h.b16 %v4836
    %v5010 = vunpack.c.l.b16 %v4837
    %v5011 = vunpack.c.h.b16 %v4837
    %v5012 = vunpack.c.l.b16 %v4838
    %v5013 = vunpack.c.h.b16 %v4838
    %v5014 = vunpack.c.l.b16 %v4839
    %v5015 = vunpack.c.h.b16 %v4839
    %v5016 = vunpack.c.l.b16 %v4840
    %v5017 = vunpack.c.h.b16 %v4840
    %v5018 = vunpack.c.l.b16 %v4841
    %v5019 = vunpack.c.h.b16 %v4841
    %v5020 = vunpack.c.l.b16 %v4842
    %v5021 = vunpack.c.h.b16 %v4842
    %v5022 = vunpack.c.l.b16 %v4843
    %v5023 = vunpack.c.h.b16 %v4843
    %v5024 = vunpack.c.l.b16 %v4844
    %v5025 = vunpack.c.h.b16 %v4844
    %v5026 = vunpack.c.l.b16 %v4845
    %v5027 = vunpack.c.h.b16 %v4845
    %v5028 = vunpack.c.l.b16 %v4846
    %v5029 = vunpack.c.h.b16 %v4846
    %v5030 = vunpack.c.l.b16 %v4847
    %v5031 = vunpack.c.h.b16 %v4847
    %v5032 = vunpack.c.l.b16 %v4848
    %v5033 = vunpack.c.h.b16 %v4848
    %v5034 = vunpack.c.l.b16 %v4849
    %v5035 = vunpack.c.h.b16 %v4849
    %v5036 = vunpack.c.l.b16 %v4850
    %v5037 = vunpack.c.h.b16 %v4850
    %v5038 = vunpack.c.l.b16 %v4851
    %v5039 = vunpack.c.h.b16 %v4851
    %v5040 = vunpack.c.l.b16 %v4852
    %v5041 = vunpack.c.h.b16 %v4852
    %v5042 = vunpack.c.l.b16 %v4853
    %v5043 = vunpack.c.h.b16 %v4853
    %v5044 = vunpack.c.l.b16 %v4854
    %v5045 = vunpack.c.h.b16 %v4854
    %v5046 = vunpack.c.l.b16 %v4855
    %v5047 = vunpack.c.h.b16 %v4855
    %v5048 = vpack.c.b16 %v4924, %v4920
    %v5049 = vpack.c.b16 %v4925, %v4921
    %v5050 = vpack.c.b16 %v4926, %v4922
    %v5051 = vpack.c.b16 %v4927, %v4923
    %v5052 = vpack.c.b16 %v4932, %v4928
    %v5053 = vpack.c.b16 %v4933, %v4929
    %v5054 = vpack.c.b16 %v4934, %v4930
    %v5055 = vpack.c.b16 %v4935, %v4931
    %v5056 = vpack.c.b16 %v4940, %v4936
    %v5057 = vpack.c.b16 %v4941, %v4937
    %v5058 = vpack.c.b16 %v4942, %v4938
    %v5059 = vpack.c.b16 %v4943, %v4939
    %v5060 = vpack.c.b16 %v4948, %v4944
    %v5061 = vpack.c.b16 %v4949, %v4945
    %v5062 = vpack.c.b16 %v4950, %v4946
    %v5063 = vpack.c.b16 %v4951, %v4947
    %v5064 = vpack.c.b16 %v4956, %v4952
    %v5065 = vpack.c.b16 %v4957, %v4953
    %v5066 = vpack.c.b16 %v4958, %v4954
    %v5067 = vpack.c.b16 %v4959, %v4955
    %v5068 = vpack.c.b16 %v4964, %v4960
    %v5069 = vpack.c.b16 %v4965, %v4961
    %v5070 = vpack.c.b16 %v4966, %v4962
    %v5071 = vpack.c.b16 %v4967, %v4963
    %v5072 = vpack.c.b16 %v4972, %v4968
    %v5073 = vpack.c.b16 %v4973, %v4969
    %v5074 = vpack.c.b16 %v4974, %v4970
    %v5075 = vpack.c.b16 %v4975, %v4971
    %v5076 = vpack.c.b16 %v4980, %v4976
    %v5077 = vpack.c.b16 %v4981, %v4977
    %v5078 = vpack.c.b16 %v4982, %v4978
    %v5079 = vpack.c.b16 %v4983, %v4979
    %v5080 = vpack.c.b16 %v4988, %v4984
    %v5081 = vpack.c.b16 %v4989, %v4985
    %v5082 = vpack.c.b16 %v4990, %v4986
    %v5083 = vpack.c.b16 %v4991, %v4987
    %v5084 = vpack.c.b16 %v4996, %v4992
    %v5085 = vpack.c.b16 %v4997, %v4993
    %v5086 = vpack.c.b16 %v4998, %v4994
    %v5087 = vpack.c.b16 %v4999, %v4995
    %v5088 = vpack.c.b16 %v5004, %v5000
    %v5089 = vpack.c.b16 %v5005, %v5001
    %v5090 = vpack.c.b16 %v5006, %v5002
    %v5091 = vpack.c.b16 %v5007, %v5003
    %v5092 = vpack.c.b16 %v5012, %v5008
    %v5093 = vpack.c.b16 %v5013, %v5009
    %v5094 = vpack.c.b16 %v5014, %v5010
    %v5095 = vpack.c.b16 %v5015, %v5011
    %v5096 = vpack.c.b16 %v5020, %v5016
    %v5097 = vpack.c.b16 %v5021, %v5017
    %v5098 = vpack.c.b16 %v5022, %v5018
    %v5099 = vpack.c.b16 %v5023, %v5019
    %v5100 = vpack.c.b16 %v5028, %v5024
    %v5101 = vpack.c.b16 %v5029, %v5025
    %v5102 = vpack.c.b16 %v5030, %v5026
    %v5103 = vpack.c.b16 %v5031, %v5027
    %v5104 = vpack.c.b16 %v5036, %v5032
    %v5105 = vpack.c.b16 %v5037, %v5033
    %v5106 = vpack.c.b16 %v5038, %v5034
    %v5107 = vpack.c.b16 %v5039, %v5035
    %v5108 = vpack.c.b16 %v5044, %v5040
    %v5109 = vpack.c.b16 %v5045, %v5041
    %v5110 = vpack.c.b16 %v5046, %v5042
    %v5111 = vpack.c.b16 %v5047, %v5043
    %5176 = vmatprep.subr.bf16.mxu0 %v5049
    %5177 = vmatpush1.bf16.msra.mxu0 %v5048
    %5178 = vmatprep.subr.bf16.mxu0 %v5053
    %5179 = vmatpush1.bf16.msra.mxu0 %v5052
    %5180 = vmatprep.subr.bf16.mxu0 %v5057
    %5181 = vmatpush1.bf16.msra.mxu0 %v5056
    %5182 = vmatprep.subr.bf16.mxu0 %v5061
    %5183 = vmatpush1.bf16.msra.mxu0 %v5060
    %5184 = vmatprep.subr.bf16.mxu0 %v5065
    %5185 = vmatpush1.bf16.msra.mxu0 %v5064
    %5186 = vmatprep.subr.bf16.mxu0 %v5069
    %5187 = vmatpush1.bf16.msra.mxu0 %v5068
    %5188 = vmatprep.subr.bf16.mxu0 %v5073
    %5189 = vmatpush1.bf16.msra.mxu0 %v5072
    %5190 = vmatprep.subr.bf16.mxu0 %v5077
    %5191 = vmatpush1.bf16.msra.mxu0 %v5076
    %5192 = vmatprep.subr.bf16.mxu0 %v5081
    %5193 = vmatpush1.bf16.msra.mxu0 %v5080
    %5194 = vmatprep.subr.bf16.mxu0 %v5085
    %5195 = vmatpush1.bf16.msra.mxu0 %v5084
    %5196 = vmatprep.subr.bf16.mxu0 %v5089
    %5197 = vmatpush1.bf16.msra.mxu0 %v5088
    %5198 = vmatprep.subr.bf16.mxu0 %v5093
    %5199 = vmatpush1.bf16.msra.mxu0 %v5092
    %5200 = vmatprep.subr.bf16.mxu0 %v5097
    %5201 = vmatpush1.bf16.msra.mxu0 %v5096
    %5202 = vmatprep.subr.bf16.mxu0 %v5101
    %5203 = vmatpush1.bf16.msra.mxu0 %v5100
    %5204 = vmatprep.subr.bf16.mxu0 %v5105
    %5205 = vmatpush1.bf16.msra.mxu0 %v5104
    %5206 = vmatprep.subr.bf16.mxu0 %v5109
    %5207 = vmatpush1.bf16.msra.mxu0 %v5108
    %5208 = vmatprep.mubr.bf16.mxu0 %v4791
    %5209 = vmatmul.mubr.bf16.gmra.mrb[0].mxu0 %v4790
    %v5210 = vpop.f32.mrb[0].mxu0
    %v5211 = vadd.f32 0.0, %v5210
    %v5212 = vpop.f32.mrb[0].mxu0
    %v5213 = vadd.f32 0.0, %v5212
    %v5214 = vpop.f32.mrb[0].mxu0
    %v5215 = vpop.f32.mrb[0].mxu0
    %5216 = vdwg.mxu0
    %5217 = vmatprep.subr.bf16.mxu0 %v5051
    %5218 = vmatpush1.bf16.msra.mxu0 %v5050
    %5219 = vmatprep.subr.bf16.mxu0 %v5055
    %5220 = vmatpush1.bf16.msra.mxu0 %v5054
    %5221 = vmatprep.subr.bf16.mxu0 %v5059
    %5222 = vmatpush1.bf16.msra.mxu0 %v5058
    %5223 = vmatprep.subr.bf16.mxu0 %v5063
    %5224 = vmatpush1.bf16.msra.mxu0 %v5062
    %5225 = vmatprep.subr.bf16.mxu0 %v5067
    %5226 = vmatpush1.bf16.msra.mxu0 %v5066
    %5227 = vmatprep.subr.bf16.mxu0 %v5071
    %5228 = vmatpush1.bf16.msra.mxu0 %v5070
    %5229 = vmatprep.subr.bf16.mxu0 %v5075
    %5230 = vmatpush1.bf16.msra.mxu0 %v5074
    %5231 = vmatprep.subr.bf16.mxu0 %v5079
    %5232 = vmatpush1.bf16.msra.mxu0 %v5078
    %5233 = vmatprep.subr.bf16.mxu0 %v5083
    %5234 = vmatpush1.bf16.msra.mxu0 %v5082
    %5235 = vmatprep.subr.bf16.mxu0 %v5087
    %5236 = vmatpush1.bf16.msra.mxu0 %v5086
    %5237 = vmatprep.subr.bf16.mxu0 %v5091
    %5238 = vmatpush1.bf16.msra.mxu0 %v5090
    %5239 = vmatprep.subr.bf16.mxu0 %v5095
    %5240 = vmatpush1.bf16.msra.mxu0 %v5094
    %5241 = vmatprep.subr.bf16.mxu0 %v5099
    %5242 = vmatpush1.bf16.msra.mxu0 %v5098
    %5243 = vmatprep.subr.bf16.mxu0 %v5103
    %5244 = vmatpush1.bf16.msra.mxu0 %v5102
    %5245 = vmatprep.subr.bf16.mxu0 %v5107
    %5246 = vmatpush1.bf16.msra.mxu0 %v5106
    %5247 = vmatprep.subr.bf16.mxu0 %v5111
    %5248 = vmatpush1.bf16.msra.mxu0 %v5110
    %5249 = vmatprep.mubr.bf16.mxu0 %v4791
    %5250 = vmatmul.mubr.bf16.gmra.mrb[0].mxu0 %v4790
    %v5251 = vpop.f32.mrb[0].mxu0
    %v5252 = vadd.f32 0.0, %v5251
    %v5253 = vpop.f32.mrb[0].mxu0
    %v5254 = vadd.f32 0.0, %v5253
    %v5255 = vpop.f32.mrb[0].mxu0
    %v5256 = vpop.f32.mrb[0].mxu0
    %5257 = vdwg.mxu0
    %s5258 = scalar_lea.vmem %s15, 16
    %v5259 = vld [vmem:[%s5258] sm:$0xff]
    %v5260 = vld [vmem:[%s5258 + $0x8] sm:$0xff]
    %v5261 = vunpack.c.l.bf16 %v5259
    %v5262 = vunpack.c.h.bf16 %v5259
    %v5263 = vunpack.c.l.bf16 %v5260
    %v5264 = vunpack.c.h.bf16 %v5260
    %s5265 = sld [smem:[#allocation2 + $0x1]]
    %p5266 = scmp.ne.s32.totalorder %s5265, 0
    %s5267 = scalar_select %p5266, 1, 0
    %v5268 = vstv %s5267
    %vm5269 = vcmp.eq.s32.totalorder %v5268, 1
    %v5270 = vsel %vm5269, %v5261, %v5211
    %v5271 = vsel %vm5269, %v5262, %v5213
    %v5272 = vsel %vm5269, %v5263, %v5252
    %v5273 = vsel %vm5269, %v5264, %v5254
    %v5274 = vld [vmem:[%s8] sm:$0xff]
    %v5275 = vld [vmem:[%s8 + $0x8] sm:$0xff]
    %v5276 = vld [vmem:[%s8 + $0x10] sm:$0xff]
    %v5277 = vld [vmem:[%s8 + $0x18] sm:$0xff]
    %v5278 = vld [vmem:[%s8 + $0x20] sm:$0xff]
    %v5279 = vld [vmem:[%s8 + $0x28] sm:$0xff]
    %v5280 = vld [vmem:[%s8 + $0x30] sm:$0xff]
    %v5281 = vld [vmem:[%s8 + $0x38] sm:$0xff]
    %v5282 = vld [vmem:[%s8 + $0x40] sm:$0xff]
    %v5283 = vld [vmem:[%s8 + $0x48] sm:$0xff]
    %v5284 = vld [vmem:[%s8 + $0x50] sm:$0xff]
    %v5285 = vld [vmem:[%s8 + $0x58] sm:$0xff]
    %v5286 = vld [vmem:[%s8 + $0x60] sm:$0xff]
    %v5287 = vld [vmem:[%s8 + $0x68] sm:$0xff]
    %v5288 = vld [vmem:[%s8 + $0x70] sm:$0xff]
    %v5289 = vld [vmem:[%s8 + $0x78] sm:$0xff]
    %v5290 = vld [vmem:[%s8 + $0x80] sm:$0xff]
    %v5291 = vld [vmem:[%s8 + $0x88] sm:$0xff]
    %v5292 = vld [vmem:[%s8 + $0x90] sm:$0xff]
    %v5293 = vld [vmem:[%s8 + $0x98] sm:$0xff]
    %v5294 = vld [vmem:[%s8 + $0xa0] sm:$0xff]
    %v5295 = vld [vmem:[%s8 + $0xa8] sm:$0xff]
    %v5296 = vld [vmem:[%s8 + $0xb0] sm:$0xff]
    %v5297 = vld [vmem:[%s8 + $0xb8] sm:$0xff]
    %v5298 = vld [vmem:[%s8 + $0xc0] sm:$0xff]
    %v5299 = vld [vmem:[%s8 + $0xc8] sm:$0xff]
    %v5300 = vld [vmem:[%s8 + $0xd0] sm:$0xff]
    %v5301 = vld [vmem:[%s8 + $0xd8] sm:$0xff]
    %v5302 = vld [vmem:[%s8 + $0xe0] sm:$0xff]
    %v5303 = vld [vmem:[%s8 + $0xe8] sm:$0xff]
    %v5304 = vld [vmem:[%s8 + $0xf0] sm:$0xff]
    %v5305 = vld [vmem:[%s8 + $0xf8] sm:$0xff]
    %v5338 = vunpack.c.l.b16 %v5274
    %v5339 = vunpack.c.h.b16 %v5274
    %v5340 = vunpack.c.l.b16 %v5275
    %v5341 = vunpack.c.h.b16 %v5275
    %v5342 = vunpack.c.l.b16 %v5276
    %v5343 = vunpack.c.h.b16 %v5276
    %v5344 = vunpack.c.l.b16 %v5277
    %v5345 = vunpack.c.h.b16 %v5277
    %v5346 = vunpack.c.l.b16 %v5278
    %v5347 = vunpack.c.h.b16 %v5278
    %v5348 = vunpack.c.l.b16 %v5279
    %v5349 = vunpack.c.h.b16 %v5279
    %v5350 = vunpack.c.l.b16 %v5280
    %v5351 = vunpack.c.h.b16 %v5280
    %v5352 = vunpack.c.l.b16 %v5281
    %v5353 = vunpack.c.h.b16 %v5281
    %v5354 = vunpack.c.l.b16 %v5282
    %v5355 = vunpack.c.h.b16 %v5282
    %v5356 = vunpack.c.l.b16 %v5283
    %v5357 = vunpack.c.h.b16 %v5283
    %v5358 = vunpack.c.l.b16 %v5284
    %v5359 = vunpack.c.h.b16 %v5284
    %v5360 = vunpack.c.l.b16 %v5285
    %v5361 = vunpack.c.h.b16 %v5285
    %v5362 = vunpack.c.l.b16 %v5286
    %v5363 = vunpack.c.h.b16 %v5286
    %v5364 = vunpack.c.l.b16 %v5287
    %v5365 = vunpack.c.h.b16 %v5287
    %v5366 = vunpack.c.l.b16 %v5288
    %v5367 = vunpack.c.h.b16 %v5288
    %v5368 = vunpack.c.l.b16 %v5289
    %v5369 = vunpack.c.h.b16 %v5289
    %v5370 = vunpack.c.l.b16 %v5290
    %v5371 = vunpack.c.h.b16 %v5290
    %v5372 = vunpack.c.l.b16 %v5291
    %v5373 = vunpack.c.h.b16 %v5291
    %v5374 = vunpack.c.l.b16 %v5292
    %v5375 = vunpack.c.h.b16 %v5292
    %v5376 = vunpack.c.l.b16 %v5293
    %v5377 = vunpack.c.h.b16 %v5293
    %v5378 = vunpack.c.l.b16 %v5294
    %v5379 = vunpack.c.h.b16 %v5294
    %v5380 = vunpack.c.l.b16 %v5295
    %v5381 = vunpack.c.h.b16 %v5295
    %v5382 = vunpack.c.l.b16 %v5296
    %v5383 = vunpack.c.h.b16 %v5296
    %v5384 = vunpack.c.l.b16 %v5297
    %v5385 = vunpack.c.h.b16 %v5297
    %v5386 = vunpack.c.l.b16 %v5298
    %v5387 = vunpack.c.h.b16 %v5298
    %v5388 = vunpack.c.l.b16 %v5299
    %v5389 = vunpack.c.h.b16 %v5299
    %v5390 = vunpack.c.l.b16 %v5300
    %v5391 = vunpack.c.h.b16 %v5300
    %v5392 = vunpack.c.l.b16 %v5301
    %v5393 = vunpack.c.h.b16 %v5301
    %v5394 = vunpack.c.l.b16 %v5302
    %v5395 = vunpack.c.h.b16 %v5302
    %v5396 = vunpack.c.l.b16 %v5303
    %v5397 = vunpack.c.h.b16 %v5303
    %v5398 = vunpack.c.l.b16 %v5304
    %v5399 = vunpack.c.h.b16 %v5304
    %v5400 = vunpack.c.l.b16 %v5305
    %v5401 = vunpack.c.h.b16 %v5305
    %v5402 = vpack.c.b16 %v5342, %v5338
    %v5403 = vpack.c.b16 %v5343, %v5339
    %v5404 = vpack.c.b16 %v5344, %v5340
    %v5405 = vpack.c.b16 %v5345, %v5341
    %v5406 = vpack.c.b16 %v5350, %v5346
    %v5407 = vpack.c.b16 %v5351, %v5347
    %v5408 = vpack.c.b16 %v5352, %v5348
    %v5409 = vpack.c.b16 %v5353, %v5349
    %v5410 = vpack.c.b16 %v5358, %v5354
    %v5411 = vpack.c.b16 %v5359, %v5355
    %v5412 = vpack.c.b16 %v5360, %v5356
    %v5413 = vpack.c.b16 %v5361, %v5357
    %v5414 = vpack.c.b16 %v5366, %v5362
    %v5415 = vpack.c.b16 %v5367, %v5363
    %v5416 = vpack.c.b16 %v5368, %v5364
    %v5417 = vpack.c.b16 %v5369, %v5365
    %v5418 = vpack.c.b16 %v5374, %v5370
    %v5419 = vpack.c.b16 %v5375, %v5371
    %v5420 = vpack.c.b16 %v5376, %v5372
    %v5421 = vpack.c.b16 %v5377, %v5373
    %v5422 = vpack.c.b16 %v5382, %v5378
    %v5423 = vpack.c.b16 %v5383, %v5379
    %v5424 = vpack.c.b16 %v5384, %v5380
    %v5425 = vpack.c.b16 %v5385, %v5381
    %v5426 = vpack.c.b16 %v5390, %v5386
    %v5427 = vpack.c.b16 %v5391, %v5387
    %v5428 = vpack.c.b16 %v5392, %v5388
    %v5429 = vpack.c.b16 %v5393, %v5389
    %v5430 = vpack.c.b16 %v5398, %v5394
    %v5431 = vpack.c.b16 %v5399, %v5395
    %v5432 = vpack.c.b16 %v5400, %v5396
    %v5433 = vpack.c.b16 %v5401, %v5397
    %5466 = vmatprep.subr.bf16.mxu0 %v5403
    %5467 = vmatpush1.bf16.msra.mxu0 %v5402
    %5468 = vmatprep.subr.bf16.mxu0 %v5407
    %5469 = vmatpush1.bf16.msra.mxu0 %v5406
    %5470 = vmatprep.subr.bf16.mxu0 %v5411
    %5471 = vmatpush1.bf16.msra.mxu0 %v5410
    %5472 = vmatprep.subr.bf16.mxu0 %v5415
    %5473 = vmatpush1.bf16.msra.mxu0 %v5414
    %5474 = vmatprep.subr.bf16.mxu0 %v5419
    %5475 = vmatpush1.bf16.msra.mxu0 %v5418
    %5476 = vmatprep.subr.bf16.mxu0 %v5423
    %5477 = vmatpush1.bf16.msra.mxu0 %v5422
    %5478 = vmatprep.subr.bf16.mxu0 %v5427
    %5479 = vmatpush1.bf16.msra.mxu0 %v5426
    %5480 = vmatprep.subr.bf16.mxu0 %v5431
    %5481 = vmatpush1.bf16.msra.mxu0 %v5430
    %5482 = vmatprep.subr.bf16.mxu0 0
    %5483 = vmatpush1.bf16.msra.mxu0 0
    %5484 = vmatprep.subr.bf16.mxu0 0
    %5485 = vmatpush1.bf16.msra.mxu0 0
    %5486 = vmatprep.subr.bf16.mxu0 0
    %5487 = vmatpush1.bf16.msra.mxu0 0
    %5488 = vmatprep.subr.bf16.mxu0 0
    %5489 = vmatpush1.bf16.msra.mxu0 0
    %5490 = vmatprep.subr.bf16.mxu0 0
    %5491 = vmatpush1.bf16.msra.mxu0 0
    %5492 = vmatprep.subr.bf16.mxu0 0
    %5493 = vmatpush1.bf16.msra.mxu0 0
    %5494 = vmatprep.subr.bf16.mxu0 0
    %5495 = vmatpush1.bf16.msra.mxu0 0
    %5496 = vmatprep.subr.bf16.mxu0 0
    %5497 = vmatpush1.bf16.msra.mxu0 0
    %5498 = vmatprep.mubr.bf16.mxu0 0
    %5499 = vmatmul.mubr.bf16.gmra.mrb[0].mxu0 %v3646
    %v5500 = vpop.f32.mrb[0].mxu0
    %v5501 = vadd.f32 0.0, %v5500
    %v5502 = vpop.f32.mrb[0].mxu0
    %v5503 = vadd.f32 0.0, %v5502
    %v5504 = vpop.f32.mrb[0].mxu0
    %v5505 = vpop.f32.mrb[0].mxu0
    %5506 = vdwg.mxu0
    %5507 = vmatprep.subr.bf16.mxu0 %v5405
    %5508 = vmatpush1.bf16.msra.mxu0 %v5404
    %5509 = vmatprep.subr.bf16.mxu0 %v5409
    %5510 = vmatpush1.bf16.msra.mxu0 %v5408
    %5511 = vmatprep.subr.bf16.mxu0 %v5413
    %5512 = vmatpush1.bf16.msra.mxu0 %v5412
    %5513 = vmatprep.subr.bf16.mxu0 %v5417
    %5514 = vmatpush1.bf16.msra.mxu0 %v5416
    %5515 = vmatprep.subr.bf16.mxu0 %v5421
    %5516 = vmatpush1.bf16.msra.mxu0 %v5420
    %5517 = vmatprep.subr.bf16.mxu0 %v5425
    %5518 = vmatpush1.bf16.msra.mxu0 %v5424
    %5519 = vmatprep.subr.bf16.mxu0 %v5429
    %5520 = vmatpush1.bf16.msra.mxu0 %v5428
    %5521 = vmatprep.subr.bf16.mxu0 %v5433
    %5522 = vmatpush1.bf16.msra.mxu0 %v5432
    %5523 = vmatprep.subr.bf16.mxu0 0
    %5524 = vmatpush1.bf16.msra.mxu0 0
    %5525 = vmatprep.subr.bf16.mxu0 0
    %5526 = vmatpush1.bf16.msra.mxu0 0
    %5527 = vmatprep.subr.bf16.mxu0 0
    %5528 = vmatpush1.bf16.msra.mxu0 0
    %5529 = vmatprep.subr.bf16.mxu0 0
    %5530 = vmatpush1.bf16.msra.mxu0 0
    %5531 = vmatprep.subr.bf16.mxu0 0
    %5532 = vmatpush1.bf16.msra.mxu0 0
    %5533 = vmatprep.subr.bf16.mxu0 0
    %5534 = vmatpush1.bf16.msra.mxu0 0
    %5535 = vmatprep.subr.bf16.mxu0 0
    %5536 = vmatpush1.bf16.msra.mxu0 0
    %5537 = vmatprep.subr.bf16.mxu0 0
    %5538 = vmatpush1.bf16.msra.mxu0 0
    %5539 = vmatprep.mubr.bf16.mxu0 0
    %5540 = vmatmul.mubr.bf16.gmra.mrb[0].mxu0 %v3646
    %v5541 = vpop.f32.mrb[0].mxu0
    %v5542 = vadd.f32 0.0, %v5541
    %v5543 = vpop.f32.mrb[0].mxu0
    %v5544 = vadd.f32 0.0, %v5543
    %v5545 = vpop.f32.mrb[0].mxu0
    %v5546 = vpop.f32.mrb[0].mxu0
    %5547 = vdwg.mxu0
    %v5548 = vadd.f32 %v5270, %v5501
    %v5549 = vadd.f32 %v5271, %v5503
    %v5550 = vadd.f32 %v5272, %v5542
    %v5551 = vadd.f32 %v5273, %v5544
    %v5552 = vld [vmem:[%s12] sm:$0xf]
    %v5554 = vlaneseq
    %v5555 = vshrl.u32 %v5554, 7
    %v5556 = vsub.s32 0, %v5555
    %v5557 = vrot.slane %v5552, %v5556
    %v5558 = vlaneseq
    %v5559 = vshrl.u32 %v5558, 7
    %v5560 = vsub.s32 1, %v5559
    %v5561 = vrot.slane %v5552, %v5560
    %v5562 = vlaneseq
    %v5563 = vshrl.u32 %v5562, 7
    %v5564 = vsub.s32 2, %v5563
    %v5565 = vrot.slane %v5552, %v5564
    %v5566 = vlaneseq
    %v5567 = vshrl.u32 %v5566, 7
    %v5568 = vsub.s32 3, %v5567
    %v5569 = vrot.slane %v5552, %v5568
    %v5574 = vadd.f32 %v5548, %v5557
    %v5575 = vadd.f32 %v5549, %v5561
    %v5576 = vadd.f32 %v5550, %v5565
    %v5577 = vadd.f32 %v5551, %v5569
    %v5578 = vxor.u32 %v5574, 2147483648
    %v5579 = vmul.f32 %v5578, 1.442695
    %v5580 = vpow.pop %v5579
    %v5581 = vadd.f32 %v5580, 1.0
    %v5582 = vrcp.pop %v5581
    %v5583 = vmul.f32 1.0, %v5582
    %v5584 = vxor.u32 %v5575, 2147483648
    %v5585 = vmul.f32 %v5584, 1.442695
    %v5586 = vpow.pop %v5585
    %v5587 = vadd.f32 %v5586, 1.0
    %v5588 = vrcp.pop %v5587
    %v5589 = vmul.f32 1.0, %v5588
    %v5590 = vtanh.pop %v5576
    %v5591 = vxor.u32 %v5577, 2147483648
    %v5592 = vmul.f32 %v5591, 1.442695
    %v5593 = vpow.pop %v5592
    %v5594 = vadd.f32 %v5593, 1.0
    %v5595 = vrcp.pop %v5594
    %v5596 = vmul.f32 1.0, %v5595
    %v5597 = vmul.f32 %v5589, %v3578
    %v5598 = vmul.f32 %v5583, %v5590
    %v5599 = vadd.f32 %v5597, %v5598
    %v5600 = vtanh.pop %v5599
    %v5601 = vmul.f32 %v5596, %v5600
    %v5602 = vld [vmem:[%s10] sm:$0xff]
    %v5603 = vld [vmem:[%s10 + $0x8] sm:$0xff]
    %v5604 = vld [vmem:[%s10 + $0x10] sm:$0xff]
    %v5605 = vld [vmem:[%s10 + $0x18] sm:$0xff]
    %v5606 = vld [vmem:[%s10 + $0x20] sm:$0xff]
    %v5607 = vld [vmem:[%s10 + $0x28] sm:$0xff]
    %v5608 = vld [vmem:[%s10 + $0x30] sm:$0xff]
    %v5609 = vld [vmem:[%s10 + $0x38] sm:$0xff]
    %v5610 = vld [vmem:[%s10 + $0x40] sm:$0xff]
    %v5611 = vld [vmem:[%s10 + $0x48] sm:$0xff]
    %v5612 = vld [vmem:[%s10 + $0x50] sm:$0xff]
    %v5613 = vld [vmem:[%s10 + $0x58] sm:$0xff]
    %v5614 = vld [vmem:[%s10 + $0x60] sm:$0xff]
    %v5615 = vld [vmem:[%s10 + $0x68] sm:$0xff]
    %v5616 = vld [vmem:[%s10 + $0x70] sm:$0xff]
    %v5617 = vld [vmem:[%s10 + $0x78] sm:$0xff]
    %v5618 = vld [vmem:[%s10 + $0x80] sm:$0xff]
    %v5619 = vld [vmem:[%s10 + $0x88] sm:$0xff]
    %v5620 = vld [vmem:[%s10 + $0x90] sm:$0xff]
    %v5621 = vld [vmem:[%s10 + $0x98] sm:$0xff]
    %v5622 = vld [vmem:[%s10 + $0xa0] sm:$0xff]
    %v5623 = vld [vmem:[%s10 + $0xa8] sm:$0xff]
    %v5624 = vld [vmem:[%s10 + $0xb0] sm:$0xff]
    %v5625 = vld [vmem:[%s10 + $0xb8] sm:$0xff]
    %v5626 = vld [vmem:[%s10 + $0xc0] sm:$0xff]
    %v5627 = vld [vmem:[%s10 + $0xc8] sm:$0xff]
    %v5628 = vld [vmem:[%s10 + $0xd0] sm:$0xff]
    %v5629 = vld [vmem:[%s10 + $0xd8] sm:$0xff]
    %v5630 = vld [vmem:[%s10 + $0xe0] sm:$0xff]
    %v5631 = vld [vmem:[%s10 + $0xe8] sm:$0xff]
    %v5632 = vld [vmem:[%s10 + $0xf0] sm:$0xff]
    %v5633 = vld [vmem:[%s10 + $0xf8] sm:$0xff]
    %v5634 = vld [vmem:[%s10 + $0x100] sm:$0xff]
    %v5635 = vld [vmem:[%s10 + $0x108] sm:$0xff]
    %v5636 = vld [vmem:[%s10 + $0x110] sm:$0xff]
    %v5637 = vld [vmem:[%s10 + $0x118] sm:$0xff]
    %v5638 = vld [vmem:[%s10 + $0x120] sm:$0xff]
    %v5639 = vld [vmem:[%s10 + $0x128] sm:$0xff]
    %v5640 = vld [vmem:[%s10 + $0x130] sm:$0xff]
    %v5641 = vld [vmem:[%s10 + $0x138] sm:$0xff]
    %v5642 = vld [vmem:[%s10 + $0x140] sm:$0xff]
    %v5643 = vld [vmem:[%s10 + $0x148] sm:$0xff]
    %v5644 = vld [vmem:[%s10 + $0x150] sm:$0xff]
    %v5645 = vld [vmem:[%s10 + $0x158] sm:$0xff]
    %v5646 = vld [vmem:[%s10 + $0x160] sm:$0xff]
    %v5647 = vld [vmem:[%s10 + $0x168] sm:$0xff]
    %v5648 = vld [vmem:[%s10 + $0x170] sm:$0xff]
    %v5649 = vld [vmem:[%s10 + $0x178] sm:$0xff]
    %v5650 = vld [vmem:[%s10 + $0x180] sm:$0xff]
    %v5651 = vld [vmem:[%s10 + $0x188] sm:$0xff]
    %v5652 = vld [vmem:[%s10 + $0x190] sm:$0xff]
    %v5653 = vld [vmem:[%s10 + $0x198] sm:$0xff]
    %v5654 = vld [vmem:[%s10 + $0x1a0] sm:$0xff]
    %v5655 = vld [vmem:[%s10 + $0x1a8] sm:$0xff]
    %v5656 = vld [vmem:[%s10 + $0x1b0] sm:$0xff]
    %v5657 = vld [vmem:[%s10 + $0x1b8] sm:$0xff]
    %v5658 = vld [vmem:[%s10 + $0x1c0] sm:$0xff]
    %v5659 = vld [vmem:[%s10 + $0x1c8] sm:$0xff]
    %v5660 = vld [vmem:[%s10 + $0x1d0] sm:$0xff]
    %v5661 = vld [vmem:[%s10 + $0x1d8] sm:$0xff]
    %v5662 = vld [vmem:[%s10 + $0x1e0] sm:$0xff]
    %v5663 = vld [vmem:[%s10 + $0x1e8] sm:$0xff]
    %v5664 = vld [vmem:[%s10 + $0x1f0] sm:$0xff]
    %v5665 = vld [vmem:[%s10 + $0x1f8] sm:$0xff]
    %v5666 = vld [vmem:[%s13] sm:$0xf]
    %v5667 = vpack.c.bf16 %v5601, %v5601
    %v5669 = vlaneseq
    %v5670 = vshrl.u32 %v5669, 7
    %v5671 = vsub.s32 0, %v5670
    %v5672 = vrot.slane %v5666, %v5671
    %v5673 = vlaneseq
    %v5674 = vshrl.u32 %v5673, 7
    %v5675 = vsub.s32 1, %v5674
    %v5676 = vrot.slane %v5666, %v5675
    %v5677 = vlaneseq
    %v5678 = vshrl.u32 %v5677, 7
    %v5679 = vsub.s32 2, %v5678
    %v5680 = vrot.slane %v5666, %v5679
    %v5681 = vlaneseq
    %v5682 = vshrl.u32 %v5681, 7
    %v5683 = vsub.s32 3, %v5682
    %v5684 = vrot.slane %v5666, %v5683
    %v5753 = vunpack.c.l.b16 %v5602
    %v5754 = vunpack.c.h.b16 %v5602
    %v5755 = vunpack.c.l.b16 %v5603
    %v5756 = vunpack.c.h.b16 %v5603
    %v5757 = vunpack.c.l.b16 %v5604
    %v5758 = vunpack.c.h.b16 %v5604
    %v5759 = vunpack.c.l.b16 %v5605
    %v5760 = vunpack.c.h.b16 %v5605
    %v5761 = vunpack.c.l.b16 %v5606
    %v5762 = vunpack.c.h.b16 %v5606
    %v5763 = vunpack.c.l.b16 %v5607
    %v5764 = vunpack.c.h.b16 %v5607
    %v5765 = vunpack.c.l.b16 %v5608
    %v5766 = vunpack.c.h.b16 %v5608
    %v5767 = vunpack.c.l.b16 %v5609
    %v5768 = vunpack.c.h.b16 %v5609
    %v5769 = vunpack.c.l.b16 %v5610
    %v5770 = vunpack.c.h.b16 %v5610
    %v5771 = vunpack.c.l.b16 %v5611
    %v5772 = vunpack.c.h.b16 %v5611
    %v5773 = vunpack.c.l.b16 %v5612
    %v5774 = vunpack.c.h.b16 %v5612
    %v5775 = vunpack.c.l.b16 %v5613
    %v5776 = vunpack.c.h.b16 %v5613
    %v5777 = vunpack.c.l.b16 %v5614
    %v5778 = vunpack.c.h.b16 %v5614
    %v5779 = vunpack.c.l.b16 %v5615
    %v5780 = vunpack.c.h.b16 %v5615
    %v5781 = vunpack.c.l.b16 %v5616
    %v5782 = vunpack.c.h.b16 %v5616
    %v5783 = vunpack.c.l.b16 %v5617
    %v5784 = vunpack.c.h.b16 %v5617
    %v5785 = vunpack.c.l.b16 %v5618
    %v5786 = vunpack.c.h.b16 %v5618
    %v5787 = vunpack.c.l.b16 %v5619
    %v5788 = vunpack.c.h.b16 %v5619
    %v5789 = vunpack.c.l.b16 %v5620
    %v5790 = vunpack.c.h.b16 %v5620
    %v5791 = vunpack.c.l.b16 %v5621
    %v5792 = vunpack.c.h.b16 %v5621
    %v5793 = vunpack.c.l.b16 %v5622
    %v5794 = vunpack.c.h.b16 %v5622
    %v5795 = vunpack.c.l.b16 %v5623
    %v5796 = vunpack.c.h.b16 %v5623
    %v5797 = vunpack.c.l.b16 %v5624
    %v5798 = vunpack.c.h.b16 %v5624
    %v5799 = vunpack.c.l.b16 %v5625
    %v5800 = vunpack.c.h.b16 %v5625
    %v5801 = vunpack.c.l.b16 %v5626
    %v5802 = vunpack.c.h.b16 %v5626
    %v5803 = vunpack.c.l.b16 %v5627
    %v5804 = vunpack.c.h.b16 %v5627
    %v5805 = vunpack.c.l.b16 %v5628
    %v5806 = vunpack.c.h.b16 %v5628
    %v5807 = vunpack.c.l.b16 %v5629
    %v5808 = vunpack.c.h.b16 %v5629
    %v5809 = vunpack.c.l.b16 %v5630
    %v5810 = vunpack.c.h.b16 %v5630
    %v5811 = vunpack.c.l.b16 %v5631
    %v5812 = vunpack.c.h.b16 %v5631
    %v5813 = vunpack.c.l.b16 %v5632
    %v5814 = vunpack.c.h.b16 %v5632
    %v5815 = vunpack.c.l.b16 %v5633
    %v5816 = vunpack.c.h.b16 %v5633
    %v5817 = vunpack.c.l.b16 %v5634
    %v5818 = vunpack.c.h.b16 %v5634
    %v5819 = vunpack.c.l.b16 %v5635
    %v5820 = vunpack.c.h.b16 %v5635
    %v5821 = vunpack.c.l.b16 %v5636
    %v5822 = vunpack.c.h.b16 %v5636
    %v5823 = vunpack.c.l.b16 %v5637
    %v5824 = vunpack.c.h.b16 %v5637
    %v5825 = vunpack.c.l.b16 %v5638
    %v5826 = vunpack.c.h.b16 %v5638
    %v5827 = vunpack.c.l.b16 %v5639
    %v5828 = vunpack.c.h.b16 %v5639
    %v5829 = vunpack.c.l.b16 %v5640
    %v5830 = vunpack.c.h.b16 %v5640
    %v5831 = vunpack.c.l.b16 %v5641
    %v5832 = vunpack.c.h.b16 %v5641
    %v5833 = vunpack.c.l.b16 %v5642
    %v5834 = vunpack.c.h.b16 %v5642
    %v5835 = vunpack.c.l.b16 %v5643
    %v5836 = vunpack.c.h.b16 %v5643
    %v5837 = vunpack.c.l.b16 %v5644
    %v5838 = vunpack.c.h.b16 %v5644
    %v5839 = vunpack.c.l.b16 %v5645
    %v5840 = vunpack.c.h.b16 %v5645
    %v5841 = vunpack.c.l.b16 %v5646
    %v5842 = vunpack.c.h.b16 %v5646
    %v5843 = vunpack.c.l.b16 %v5647
    %v5844 = vunpack.c.h.b16 %v5647
    %v5845 = vunpack.c.l.b16 %v5648
    %v5846 = vunpack.c.h.b16 %v5648
    %v5847 = vunpack.c.l.b16 %v5649
    %v5848 = vunpack.c.h.b16 %v5649
    %v5849 = vunpack.c.l.b16 %v5650
    %v5850 = vunpack.c.h.b16 %v5650
    %v5851 = vunpack.c.l.b16 %v5651
    %v5852 = vunpack.c.h.b16 %v5651
    %v5853 = vunpack.c.l.b16 %v5652
    %v5854 = vunpack.c.h.b16 %v5652
    %v5855 = vunpack.c.l.b16 %v5653
    %v5856 = vunpack.c.h.b16 %v5653
    %v5857 = vunpack.c.l.b16 %v5654
    %v5858 = vunpack.c.h.b16 %v5654
    %v5859 = vunpack.c.l.b16 %v5655
    %v5860 = vunpack.c.h.b16 %v5655
    %v5861 = vunpack.c.l.b16 %v5656
    %v5862 = vunpack.c.h.b16 %v5656
    %v5863 = vunpack.c.l.b16 %v5657
    %v5864 = vunpack.c.h.b16 %v5657
    %v5865 = vunpack.c.l.b16 %v5658
    %v5866 = vunpack.c.h.b16 %v5658
    %v5867 = vunpack.c.l.b16 %v5659
    %v5868 = vunpack.c.h.b16 %v5659
    %v5869 = vunpack.c.l.b16 %v5660
    %v5870 = vunpack.c.h.b16 %v5660
    %v5871 = vunpack.c.l.b16 %v5661
    %v5872 = vunpack.c.h.b16 %v5661
    %v5873 = vunpack.c.l.b16 %v5662
    %v5874 = vunpack.c.h.b16 %v5662
    %v5875 = vunpack.c.l.b16 %v5663
    %v5876 = vunpack.c.h.b16 %v5663
    %v5877 = vunpack.c.l.b16 %v5664
    %v5878 = vunpack.c.h.b16 %v5664
    %v5879 = vunpack.c.l.b16 %v5665
    %v5880 = vunpack.c.h.b16 %v5665
    %v5881 = vpack.c.b16 %v5757, %v5753
    %v5882 = vpack.c.b16 %v5758, %v5754
    %v5883 = vpack.c.b16 %v5759, %v5755
    %v5884 = vpack.c.b16 %v5760, %v5756
    %v5885 = vpack.c.b16 %v5765, %v5761
    %v5886 = vpack.c.b16 %v5766, %v5762
    %v5887 = vpack.c.b16 %v5767, %v5763
    %v5888 = vpack.c.b16 %v5768, %v5764
    %v5889 = vpack.c.b16 %v5773, %v5769
    %v5890 = vpack.c.b16 %v5774, %v5770
    %v5891 = vpack.c.b16 %v5775, %v5771
    %v5892 = vpack.c.b16 %v5776, %v5772
    %v5893 = vpack.c.b16 %v5781, %v5777
    %v5894 = vpack.c.b16 %v5782, %v5778
    %v5895 = vpack.c.b16 %v5783, %v5779
    %v5896 = vpack.c.b16 %v5784, %v5780
    %v5897 = vpack.c.b16 %v5789, %v5785
    %v5898 = vpack.c.b16 %v5790, %v5786
    %v5899 = vpack.c.b16 %v5791, %v5787
    %v5900 = vpack.c.b16 %v5792, %v5788
    %v5901 = vpack.c.b16 %v5797, %v5793
    %v5902 = vpack.c.b16 %v5798, %v5794
    %v5903 = vpack.c.b16 %v5799, %v5795
    %v5904 = vpack.c.b16 %v5800, %v5796
    %v5905 = vpack.c.b16 %v5805, %v5801
    %v5906 = vpack.c.b16 %v5806, %v5802
    %v5907 = vpack.c.b16 %v5807, %v5803
    %v5908 = vpack.c.b16 %v5808, %v5804
    %v5909 = vpack.c.b16 %v5813, %v5809
    %v5910 = vpack.c.b16 %v5814, %v5810
    %v5911 = vpack.c.b16 %v5815, %v5811
    %v5912 = vpack.c.b16 %v5816, %v5812
    %v5913 = vpack.c.b16 %v5821, %v5817
    %v5914 = vpack.c.b16 %v5822, %v5818
    %v5915 = vpack.c.b16 %v5823, %v5819
    %v5916 = vpack.c.b16 %v5824, %v5820
    %v5917 = vpack.c.b16 %v5829, %v5825
    %v5918 = vpack.c.b16 %v5830, %v5826
    %v5919 = vpack.c.b16 %v5831, %v5827
    %v5920 = vpack.c.b16 %v5832, %v5828
    %v5921 = vpack.c.b16 %v5837, %v5833
    %v5922 = vpack.c.b16 %v5838, %v5834
    %v5923 = vpack.c.b16 %v5839, %v5835
    %v5924 = vpack.c.b16 %v5840, %v5836
    %v5925 = vpack.c.b16 %v5845, %v5841
    %v5926 = vpack.c.b16 %v5846, %v5842
    %v5927 = vpack.c.b16 %v5847, %v5843
    %v5928 = vpack.c.b16 %v5848, %v5844
    %v5929 = vpack.c.b16 %v5853, %v5849
    %v5930 = vpack.c.b16 %v5854, %v5850
    %v5931 = vpack.c.b16 %v5855, %v5851
    %v5932 = vpack.c.b16 %v5856, %v5852
    %v5933 = vpack.c.b16 %v5861, %v5857
    %v5934 = vpack.c.b16 %v5862, %v5858
    %v5935 = vpack.c.b16 %v5863, %v5859
    %v5936 = vpack.c.b16 %v5864, %v5860
    %v5937 = vpack.c.b16 %v5869, %v5865
    %v5938 = vpack.c.b16 %v5870, %v5866
    %v5939 = vpack.c.b16 %v5871, %v5867
    %v5940 = vpack.c.b16 %v5872, %v5868
    %v5941 = vpack.c.b16 %v5877, %v5873
    %v5942 = vpack.c.b16 %v5878, %v5874
    %v5943 = vpack.c.b16 %v5879, %v5875
    %v5944 = vpack.c.b16 %v5880, %v5876
    %6009 = vmatprep.subr.bf16.mxu0 %v5882
    %6010 = vmatpush1.bf16.msra.mxu0 %v5881
    %6011 = vmatprep.subr.bf16.mxu0 %v5886
    %6012 = vmatpush1.bf16.msra.mxu0 %v5885
    %6013 = vmatprep.subr.bf16.mxu0 %v5890
    %6014 = vmatpush1.bf16.msra.mxu0 %v5889
    %6015 = vmatprep.subr.bf16.mxu0 %v5894
    %6016 = vmatpush1.bf16.msra.mxu0 %v5893
    %6017 = vmatprep.subr.bf16.mxu0 %v5898
    %6018 = vmatpush1.bf16.msra.mxu0 %v5897
    %6019 = vmatprep.subr.bf16.mxu0 %v5902
    %6020 = vmatpush1.bf16.msra.mxu0 %v5901
    %6021 = vmatprep.subr.bf16.mxu0 %v5906
    %6022 = vmatpush1.bf16.msra.mxu0 %v5905
    %6023 = vmatprep.subr.bf16.mxu0 %v5910
    %6024 = vmatpush1.bf16.msra.mxu0 %v5909
    %6025 = vmatprep.subr.bf16.mxu0 %v5914
    %6026 = vmatpush1.bf16.msra.mxu0 %v5913
    %6027 = vmatprep.subr.bf16.mxu0 %v5918
    %6028 = vmatpush1.bf16.msra.mxu0 %v5917
    %6029 = vmatprep.subr.bf16.mxu0 %v5922
    %6030 = vmatpush1.bf16.msra.mxu0 %v5921
    %6031 = vmatprep.subr.bf16.mxu0 %v5926
    %6032 = vmatpush1.bf16.msra.mxu0 %v5925
    %6033 = vmatprep.subr.bf16.mxu0 %v5930
    %6034 = vmatpush1.bf16.msra.mxu0 %v5929
    %6035 = vmatprep.subr.bf16.mxu0 %v5934
    %6036 = vmatpush1.bf16.msra.mxu0 %v5933
    %6037 = vmatprep.subr.bf16.mxu0 %v5938
    %6038 = vmatpush1.bf16.msra.mxu0 %v5937
    %6039 = vmatprep.subr.bf16.mxu0 %v5942
    %6040 = vmatpush1.bf16.msra.mxu0 %v5941
    %6041 = vmatprep.mubr.bf16.mxu0 %v4159
    %6042 = vmatmul.mubr.bf16.gmra.mrb[0].mxu0 %v5667
    %v6043 = vpop.f32.mrb[0].mxu0
    %v6044 = vadd.f32 %v5672, %v6043
    %v6045 = vpop.f32.mrb[0].mxu0
    %v6046 = vadd.f32 %v5676, %v6045
    %v6047 = vpop.f32.mrb[0].mxu0
    %v6048 = vpop.f32.mrb[0].mxu0
    %6049 = vdwg.mxu0
    %6050 = vmatprep.subr.bf16.mxu0 %v5884
    %6051 = vmatpush1.bf16.msra.mxu0 %v5883
    %6052 = vmatprep.subr.bf16.mxu0 %v5888
    %6053 = vmatpush1.bf16.msra.mxu0 %v5887
    %6054 = vmatprep.subr.bf16.mxu0 %v5892
    %6055 = vmatpush1.bf16.msra.mxu0 %v5891
    %6056 = vmatprep.subr.bf16.mxu0 %v5896
    %6057 = vmatpush1.bf16.msra.mxu0 %v5895
    %6058 = vmatprep.subr.bf16.mxu0 %v5900
    %6059 = vmatpush1.bf16.msra.mxu0 %v5899
    %6060 = vmatprep.subr.bf16.mxu0 %v5904
    %6061 = vmatpush1.bf16.msra.mxu0 %v5903
    %6062 = vmatprep.subr.bf16.mxu0 %v5908
    %6063 = vmatpush1.bf16.msra.mxu0 %v5907
    %6064 = vmatprep.subr.bf16.mxu0 %v5912
    %6065 = vmatpush1.bf16.msra.mxu0 %v5911
    %6066 = vmatprep.subr.bf16.mxu0 %v5916
    %6067 = vmatpush1.bf16.msra.mxu0 %v5915
    %6068 = vmatprep.subr.bf16.mxu0 %v5920
    %6069 = vmatpush1.bf16.msra.mxu0 %v5919
    %6070 = vmatprep.subr.bf16.mxu0 %v5924
    %6071 = vmatpush1.bf16.msra.mxu0 %v5923
    %6072 = vmatprep.subr.bf16.mxu0 %v5928
    %6073 = vmatpush1.bf16.msra.mxu0 %v5927
    %6074 = vmatprep.subr.bf16.mxu0 %v5932
    %6075 = vmatpush1.bf16.msra.mxu0 %v5931
    %6076 = vmatprep.subr.bf16.mxu0 %v5936
    %6077 = vmatpush1.bf16.msra.mxu0 %v5935
    %6078 = vmatprep.subr.bf16.mxu0 %v5940
    %6079 = vmatpush1.bf16.msra.mxu0 %v5939
    %6080 = vmatprep.subr.bf16.mxu0 %v5944
    %6081 = vmatpush1.bf16.msra.mxu0 %v5943
    %6082 = vmatprep.mubr.bf16.mxu0 %v4159
    %6083 = vmatmul.mubr.bf16.gmra.mrb[0].mxu0 %v5667
    %v6084 = vpop.f32.mrb[0].mxu0
    %v6085 = vadd.f32 %v5680, %v6084
    %v6086 = vpop.f32.mrb[0].mxu0
    %v6087 = vadd.f32 %v5684, %v6086
    %v6088 = vpop.f32.mrb[0].mxu0
    %v6089 = vpop.f32.mrb[0].mxu0
    %6090 = vdwg.mxu0
    %v6091 = vxor.u32 %v6044, 2147483648
    %v6092 = vmul.f32 %v6091, 1.442695
    %v6093 = vpow.pop %v6092
    %v6094 = vadd.f32 %v6093, 1.0
    %v6095 = vrcp.pop %v6094
    %v6096 = vmul.f32 1.0, %v6095
    %v6097 = vxor.u32 %v6046, 2147483648
    %v6098 = vmul.f32 %v6097, 1.442695
    %v6099 = vpow.pop %v6098
    %v6100 = vadd.f32 %v6099, 1.0
    %v6101 = vrcp.pop %v6100
    %v6102 = vmul.f32 1.0, %v6101
    %v6103 = vtanh.pop %v6085
    %v6104 = vxor.u32 %v6087, 2147483648
    %v6105 = vmul.f32 %v6104, 1.442695
    %v6106 = vpow.pop %v6105
    %v6107 = vadd.f32 %v6106, 1.0
    %v6108 = vrcp.pop %v6107
    %v6109 = vmul.f32 1.0, %v6108
    %v6110 = vmul.f32 %v6102, %v4091
    %v6111 = vmul.f32 %v6096, %v6103
    %v6112 = vadd.f32 %v6110, %v6111
    %v6113 = vtanh.pop %v6112
    %v6114 = vmul.f32 %v6109, %v6113
    %v6115 = vld [vmem:[#allocation6] sm:$0xff]
    %v6116 = vld [vmem:[#allocation6 + $0x8] sm:$0xff]
    %v6117 = vld [vmem:[#allocation6 + $0x10] sm:$0xff]
    %v6118 = vld [vmem:[#allocation6 + $0x18] sm:$0xff]
    %v6119 = vld [vmem:[#allocation6 + $0x20] sm:$0xff]
    %v6120 = vld [vmem:[#allocation6 + $0x28] sm:$0xff]
    %v6121 = vld [vmem:[#allocation6 + $0x30] sm:$0xff]
    %v6122 = vld [vmem:[#allocation6 + $0x38] sm:$0xff]
    %v6123 = vld [vmem:[#allocation6 + $0x40] sm:$0xff]
    %v6124 = vld [vmem:[#allocation6 + $0x48] sm:$0xff]
    %v6125 = vld [vmem:[#allocation6 + $0x50] sm:$0xff]
    %v6126 = vld [vmem:[#allocation6 + $0x58] sm:$0xff]
    %v6127 = vld [vmem:[#allocation6 + $0x60] sm:$0xff]
    %v6128 = vld [vmem:[#allocation6 + $0x68] sm:$0xff]
    %v6129 = vld [vmem:[#allocation6 + $0x70] sm:$0xff]
    %v6130 = vld [vmem:[#allocation6 + $0x78] sm:$0xff]
    %v6131 = vld [vmem:[#allocation6 + $0x80] sm:$0xff]
    %v6132 = vld [vmem:[#allocation6 + $0x88] sm:$0xff]
    %v6133 = vld [vmem:[#allocation6 + $0x90] sm:$0xff]
    %v6134 = vld [vmem:[#allocation6 + $0x98] sm:$0xff]
    %v6135 = vld [vmem:[#allocation6 + $0xa0] sm:$0xff]
    %v6136 = vld [vmem:[#allocation6 + $0xa8] sm:$0xff]
    %v6137 = vld [vmem:[#allocation6 + $0xb0] sm:$0xff]
    %v6138 = vld [vmem:[#allocation6 + $0xb8] sm:$0xff]
    %v6139 = vld [vmem:[#allocation6 + $0xc0] sm:$0xff]
    %v6140 = vld [vmem:[#allocation6 + $0xc8] sm:$0xff]
    %v6141 = vld [vmem:[#allocation6 + $0xd0] sm:$0xff]
    %v6142 = vld [vmem:[#allocation6 + $0xd8] sm:$0xff]
    %v6143 = vld [vmem:[#allocation6 + $0xe0] sm:$0xff]
    %v6144 = vld [vmem:[#allocation6 + $0xe8] sm:$0xff]
    %v6145 = vld [vmem:[#allocation6 + $0xf0] sm:$0xff]
    %v6146 = vld [vmem:[#allocation6 + $0xf8] sm:$0xff]
    %v6147 = vld [vmem:[#allocation6 + $0x100] sm:$0xff]
    %v6148 = vld [vmem:[#allocation6 + $0x108] sm:$0xff]
    %v6149 = vld [vmem:[#allocation6 + $0x110] sm:$0xff]
    %v6150 = vld [vmem:[#allocation6 + $0x118] sm:$0xff]
    %v6151 = vld [vmem:[#allocation6 + $0x120] sm:$0xff]
    %v6152 = vld [vmem:[#allocation6 + $0x128] sm:$0xff]
    %v6153 = vld [vmem:[#allocation6 + $0x130] sm:$0xff]
    %v6154 = vld [vmem:[#allocation6 + $0x138] sm:$0xff]
    %v6155 = vld [vmem:[#allocation6 + $0x140] sm:$0xff]
    %v6156 = vld [vmem:[#allocation6 + $0x148] sm:$0xff]
    %v6157 = vld [vmem:[#allocation6 + $0x150] sm:$0xff]
    %v6158 = vld [vmem:[#allocation6 + $0x158] sm:$0xff]
    %v6159 = vld [vmem:[#allocation6 + $0x160] sm:$0xff]
    %v6160 = vld [vmem:[#allocation6 + $0x168] sm:$0xff]
    %v6161 = vld [vmem:[#allocation6 + $0x170] sm:$0xff]
    %v6162 = vld [vmem:[#allocation6 + $0x178] sm:$0xff]
    %v6163 = vld [vmem:[#allocation6 + $0x180] sm:$0xff]
    %v6164 = vld [vmem:[#allocation6 + $0x188] sm:$0xff]
    %v6165 = vld [vmem:[#allocation6 + $0x190] sm:$0xff]
    %v6166 = vld [vmem:[#allocation6 + $0x198] sm:$0xff]
    %v6167 = vld [vmem:[#allocation6 + $0x1a0] sm:$0xff]
    %v6168 = vld [vmem:[#allocation6 + $0x1a8] sm:$0xff]
    %v6169 = vld [vmem:[#allocation6 + $0x1b0] sm:$0xff]
    %v6170 = vld [vmem:[#allocation6 + $0x1b8] sm:$0xff]
    %v6171 = vld [vmem:[#allocation6 + $0x1c0] sm:$0xff]
    %v6172 = vld [vmem:[#allocation6 + $0x1c8] sm:$0xff]
    %v6173 = vld [vmem:[#allocation6 + $0x1d0] sm:$0xff]
    %v6174 = vld [vmem:[#allocation6 + $0x1d8] sm:$0xff]
    %v6175 = vld [vmem:[#allocation6 + $0x1e0] sm:$0xff]
    %v6176 = vld [vmem:[#allocation6 + $0x1e8] sm:$0xff]
    %v6177 = vld [vmem:[#allocation6 + $0x1f0] sm:$0xff]
    %v6178 = vld [vmem:[#allocation6 + $0x1f8] sm:$0xff]
    %v6179 = vld [vmem:[%s14] sm:$0xf]
    %v6180 = vpack.c.bf16 %v6114, %v6114
    %v6182 = vlaneseq
    %v6183 = vshrl.u32 %v6182, 7
    %v6184 = vsub.s32 0, %v6183
    %v6185 = vrot.slane %v6179, %v6184
    %v6186 = vlaneseq
    %v6187 = vshrl.u32 %v6186, 7
    %v6188 = vsub.s32 1, %v6187
    %v6189 = vrot.slane %v6179, %v6188
    %v6190 = vlaneseq
    %v6191 = vshrl.u32 %v6190, 7
    %v6192 = vsub.s32 2, %v6191
    %v6193 = vrot.slane %v6179, %v6192
    %v6194 = vlaneseq
    %v6195 = vshrl.u32 %v6194, 7
    %v6196 = vsub.s32 3, %v6195
    %v6197 = vrot.slane %v6179, %v6196
    %v6266 = vunpack.c.l.b16 %v6115
    %v6267 = vunpack.c.h.b16 %v6115
    %v6268 = vunpack.c.l.b16 %v6116
    %v6269 = vunpack.c.h.b16 %v6116
    %v6270 = vunpack.c.l.b16 %v6117
    %v6271 = vunpack.c.h.b16 %v6117
    %v6272 = vunpack.c.l.b16 %v6118
    %v6273 = vunpack.c.h.b16 %v6118
    %v6274 = vunpack.c.l.b16 %v6119
    %v6275 = vunpack.c.h.b16 %v6119
    %v6276 = vunpack.c.l.b16 %v6120
    %v6277 = vunpack.c.h.b16 %v6120
    %v6278 = vunpack.c.l.b16 %v6121
    %v6279 = vunpack.c.h.b16 %v6121
    %v6280 = vunpack.c.l.b16 %v6122
    %v6281 = vunpack.c.h.b16 %v6122
    %v6282 = vunpack.c.l.b16 %v6123
    %v6283 = vunpack.c.h.b16 %v6123
    %v6284 = vunpack.c.l.b16 %v6124
    %v6285 = vunpack.c.h.b16 %v6124
    %v6286 = vunpack.c.l.b16 %v6125
    %v6287 = vunpack.c.h.b16 %v6125
    %v6288 = vunpack.c.l.b16 %v6126
    %v6289 = vunpack.c.h.b16 %v6126
    %v6290 = vunpack.c.l.b16 %v6127
    %v6291 = vunpack.c.h.b16 %v6127
    %v6292 = vunpack.c.l.b16 %v6128
    %v6293 = vunpack.c.h.b16 %v6128
    %v6294 = vunpack.c.l.b16 %v6129
    %v6295 = vunpack.c.h.b16 %v6129
    %v6296 = vunpack.c.l.b16 %v6130
    %v6297 = vunpack.c.h.b16 %v6130
    %v6298 = vunpack.c.l.b16 %v6131
    %v6299 = vunpack.c.h.b16 %v6131
    %v6300 = vunpack.c.l.b16 %v6132
    %v6301 = vunpack.c.h.b16 %v6132
    %v6302 = vunpack.c.l.b16 %v6133
    %v6303 = vunpack.c.h.b16 %v6133
    %v6304 = vunpack.c.l.b16 %v6134
    %v6305 = vunpack.c.h.b16 %v6134
    %v6306 = vunpack.c.l.b16 %v6135
    %v6307 = vunpack.c.h.b16 %v6135
    %v6308 = vunpack.c.l.b16 %v6136
    %v6309 = vunpack.c.h.b16 %v6136
    %v6310 = vunpack.c.l.b16 %v6137
    %v6311 = vunpack.c.h.b16 %v6137
    %v6312 = vunpack.c.l.b16 %v6138
    %v6313 = vunpack.c.h.b16 %v6138
    %v6314 = vunpack.c.l.b16 %v6139
    %v6315 = vunpack.c.h.b16 %v6139
    %v6316 = vunpack.c.l.b16 %v6140
    %v6317 = vunpack.c.h.b16 %v6140
    %v6318 = vunpack.c.l.b16 %v6141
    %v6319 = vunpack.c.h.b16 %v6141
    %v6320 = vunpack.c.l.b16 %v6142
    %v6321 = vunpack.c.h.b16 %v6142
    %v6322 = vunpack.c.l.b16 %v6143
    %v6323 = vunpack.c.h.b16 %v6143
    %v6324 = vunpack.c.l.b16 %v6144
    %v6325 = vunpack.c.h.b16 %v6144
    %v6326 = vunpack.c.l.b16 %v6145
    %v6327 = vunpack.c.h.b16 %v6145
    %v6328 = vunpack.c.l.b16 %v6146
    %v6329 = vunpack.c.h.b16 %v6146
    %v6330 = vunpack.c.l.b16 %v6147
    %v6331 = vunpack.c.h.b16 %v6147
    %v6332 = vunpack.c.l.b16 %v6148
    %v6333 = vunpack.c.h.b16 %v6148
    %v6334 = vunpack.c.l.b16 %v6149
    %v6335 = vunpack.c.h.b16 %v6149
    %v6336 = vunpack.c.l.b16 %v6150
    %v6337 = vunpack.c.h.b16 %v6150
    %v6338 = vunpack.c.l.b16 %v6151
    %v6339 = vunpack.c.h.b16 %v6151
    %v6340 = vunpack.c.l.b16 %v6152
    %v6341 = vunpack.c.h.b16 %v6152
    %v6342 = vunpack.c.l.b16 %v6153
    %v6343 = vunpack.c.h.b16 %v6153
    %v6344 = vunpack.c.l.b16 %v6154
    %v6345 = vunpack.c.h.b16 %v6154
    %v6346 = vunpack.c.l.b16 %v6155
    %v6347 = vunpack.c.h.b16 %v6155
    %v6348 = vunpack.c.l.b16 %v6156
    %v6349 = vunpack.c.h.b16 %v6156
    %v6350 = vunpack.c.l.b16 %v6157
    %v6351 = vunpack.c.h.b16 %v6157
    %v6352 = vunpack.c.l.b16 %v6158
    %v6353 = vunpack.c.h.b16 %v6158
    %v6354 = vunpack.c.l.b16 %v6159
    %v6355 = vunpack.c.h.b16 %v6159
    %v6356 = vunpack.c.l.b16 %v6160
    %v6357 = vunpack.c.h.b16 %v6160
    %v6358 = vunpack.c.l.b16 %v6161
    %v6359 = vunpack.c.h.b16 %v6161
    %v6360 = vunpack.c.l.b16 %v6162
    %v6361 = vunpack.c.h.b16 %v6162
    %v6362 = vunpack.c.l.b16 %v6163
    %v6363 = vunpack.c.h.b16 %v6163
    %v6364 = vunpack.c.l.b16 %v6164
    %v6365 = vunpack.c.h.b16 %v6164
    %v6366 = vunpack.c.l.b16 %v6165
    %v6367 = vunpack.c.h.b16 %v6165
    %v6368 = vunpack.c.l.b16 %v6166
    %v6369 = vunpack.c.h.b16 %v6166
    %v6370 = vunpack.c.l.b16 %v6167
    %v6371 = vunpack.c.h.b16 %v6167
    %v6372 = vunpack.c.l.b16 %v6168
    %v6373 = vunpack.c.h.b16 %v6168
    %v6374 = vunpack.c.l.b16 %v6169
    %v6375 = vunpack.c.h.b16 %v6169
    %v6376 = vunpack.c.l.b16 %v6170
    %v6377 = vunpack.c.h.b16 %v6170
    %v6378 = vunpack.c.l.b16 %v6171
    %v6379 = vunpack.c.h.b16 %v6171
    %v6380 = vunpack.c.l.b16 %v6172
    %v6381 = vunpack.c.h.b16 %v6172
    %v6382 = vunpack.c.l.b16 %v6173
    %v6383 = vunpack.c.h.b16 %v6173
    %v6384 = vunpack.c.l.b16 %v6174
    %v6385 = vunpack.c.h.b16 %v6174
    %v6386 = vunpack.c.l.b16 %v6175
    %v6387 = vunpack.c.h.b16 %v6175
    %v6388 = vunpack.c.l.b16 %v6176
    %v6389 = vunpack.c.h.b16 %v6176
    %v6390 = vunpack.c.l.b16 %v6177
    %v6391 = vunpack.c.h.b16 %v6177
    %v6392 = vunpack.c.l.b16 %v6178
    %v6393 = vunpack.c.h.b16 %v6178
    %v6394 = vpack.c.b16 %v6270, %v6266
    %v6395 = vpack.c.b16 %v6271, %v6267
    %v6396 = vpack.c.b16 %v6272, %v6268
    %v6397 = vpack.c.b16 %v6273, %v6269
    %v6398 = vpack.c.b16 %v6278, %v6274
    %v6399 = vpack.c.b16 %v6279, %v6275
    %v6400 = vpack.c.b16 %v6280, %v6276
    %v6401 = vpack.c.b16 %v6281, %v6277
    %v6402 = vpack.c.b16 %v6286, %v6282
    %v6403 = vpack.c.b16 %v6287, %v6283
    %v6404 = vpack.c.b16 %v6288, %v6284
    %v6405 = vpack.c.b16 %v6289, %v6285
    %v6406 = vpack.c.b16 %v6294, %v6290
    %v6407 = vpack.c.b16 %v6295, %v6291
    %v6408 = vpack.c.b16 %v6296, %v6292
    %v6409 = vpack.c.b16 %v6297, %v6293
    %v6410 = vpack.c.b16 %v6302, %v6298
    %v6411 = vpack.c.b16 %v6303, %v6299
    %v6412 = vpack.c.b16 %v6304, %v6300
    %v6413 = vpack.c.b16 %v6305, %v6301
    %v6414 = vpack.c.b16 %v6310, %v6306
    %v6415 = vpack.c.b16 %v6311, %v6307
    %v6416 = vpack.c.b16 %v6312, %v6308
    %v6417 = vpack.c.b16 %v6313, %v6309
    %v6418 = vpack.c.b16 %v6318, %v6314
    %v6419 = vpack.c.b16 %v6319, %v6315
    %v6420 = vpack.c.b16 %v6320, %v6316
    %v6421 = vpack.c.b16 %v6321, %v6317
    %v6422 = vpack.c.b16 %v6326, %v6322
    %v6423 = vpack.c.b16 %v6327, %v6323
    %v6424 = vpack.c.b16 %v6328, %v6324
    %v6425 = vpack.c.b16 %v6329, %v6325
    %v6426 = vpack.c.b16 %v6334, %v6330
    %v6427 = vpack.c.b16 %v6335, %v6331
    %v6428 = vpack.c.b16 %v6336, %v6332
    %v6429 = vpack.c.b16 %v6337, %v6333
    %v6430 = vpack.c.b16 %v6342, %v6338
    %v6431 = vpack.c.b16 %v6343, %v6339
    %v6432 = vpack.c.b16 %v6344, %v6340
    %v6433 = vpack.c.b16 %v6345, %v6341
    %v6434 = vpack.c.b16 %v6350, %v6346
    %v6435 = vpack.c.b16 %v6351, %v6347
    %v6436 = vpack.c.b16 %v6352, %v6348
    %v6437 = vpack.c.b16 %v6353, %v6349
    %v6438 = vpack.c.b16 %v6358, %v6354
    %v6439 = vpack.c.b16 %v6359, %v6355
    %v6440 = vpack.c.b16 %v6360, %v6356
    %v6441 = vpack.c.b16 %v6361, %v6357
    %v6442 = vpack.c.b16 %v6366, %v6362
    %v6443 = vpack.c.b16 %v6367, %v6363
    %v6444 = vpack.c.b16 %v6368, %v6364
    %v6445 = vpack.c.b16 %v6369, %v6365
    %v6446 = vpack.c.b16 %v6374, %v6370
    %v6447 = vpack.c.b16 %v6375, %v6371
    %v6448 = vpack.c.b16 %v6376, %v6372
    %v6449 = vpack.c.b16 %v6377, %v6373
    %v6450 = vpack.c.b16 %v6382, %v6378
    %v6451 = vpack.c.b16 %v6383, %v6379
    %v6452 = vpack.c.b16 %v6384, %v6380
    %v6453 = vpack.c.b16 %v6385, %v6381
    %v6454 = vpack.c.b16 %v6390, %v6386
    %v6455 = vpack.c.b16 %v6391, %v6387
    %v6456 = vpack.c.b16 %v6392, %v6388
    %v6457 = vpack.c.b16 %v6393, %v6389
    %6522 = vmatprep.subr.bf16.mxu0 %v6395
    %6523 = vmatpush1.bf16.msra.mxu0 %v6394
    %6524 = vmatprep.subr.bf16.mxu0 %v6399
    %6525 = vmatpush1.bf16.msra.mxu0 %v6398
    %6526 = vmatprep.subr.bf16.mxu0 %v6403
    %6527 = vmatpush1.bf16.msra.mxu0 %v6402
    %6528 = vmatprep.subr.bf16.mxu0 %v6407
    %6529 = vmatpush1.bf16.msra.mxu0 %v6406
    %6530 = vmatprep.subr.bf16.mxu0 %v6411
    %6531 = vmatpush1.bf16.msra.mxu0 %v6410
    %6532 = vmatprep.subr.bf16.mxu0 %v6415
    %6533 = vmatpush1.bf16.msra.mxu0 %v6414
    %6534 = vmatprep.subr.bf16.mxu0 %v6419
    %6535 = vmatpush1.bf16.msra.mxu0 %v6418
    %6536 = vmatprep.subr.bf16.mxu0 %v6423
    %6537 = vmatpush1.bf16.msra.mxu0 %v6422
    %6538 = vmatprep.subr.bf16.mxu0 %v6427
    %6539 = vmatpush1.bf16.msra.mxu0 %v6426
    %6540 = vmatprep.subr.bf16.mxu0 %v6431
    %6541 = vmatpush1.bf16.msra.mxu0 %v6430
    %6542 = vmatprep.subr.bf16.mxu0 %v6435
    %6543 = vmatpush1.bf16.msra.mxu0 %v6434
    %6544 = vmatprep.subr.bf16.mxu0 %v6439
    %6545 = vmatpush1.bf16.msra.mxu0 %v6438
    %6546 = vmatprep.subr.bf16.mxu0 %v6443
    %6547 = vmatpush1.bf16.msra.mxu0 %v6442
    %6548 = vmatprep.subr.bf16.mxu0 %v6447
    %6549 = vmatpush1.bf16.msra.mxu0 %v6446
    %6550 = vmatprep.subr.bf16.mxu0 %v6451
    %6551 = vmatpush1.bf16.msra.mxu0 %v6450
    %6552 = vmatprep.subr.bf16.mxu0 %v6455
    %6553 = vmatpush1.bf16.msra.mxu0 %v6454
    %6554 = vmatprep.mubr.bf16.mxu0 %v4608
    %6555 = vmatmul.mubr.bf16.gmra.mrb[0].mxu0 %v6180
    %v6556 = vpop.f32.mrb[0].mxu0
    %v6557 = vadd.f32 %v6185, %v6556
    %v6558 = vpop.f32.mrb[0].mxu0
    %v6559 = vadd.f32 %v6189, %v6558
    %v6560 = vpop.f32.mrb[0].mxu0
    %v6561 = vpop.f32.mrb[0].mxu0
    %6562 = vdwg.mxu0
    %6563 = vmatprep.subr.bf16.mxu0 %v6397
    %6564 = vmatpush1.bf16.msra.mxu0 %v6396
    %6565 = vmatprep.subr.bf16.mxu0 %v6401
    %6566 = vmatpush1.bf16.msra.mxu0 %v6400
    %6567 = vmatprep.subr.bf16.mxu0 %v6405
    %6568 = vmatpush1.bf16.msra.mxu0 %v6404
    %6569 = vmatprep.subr.bf16.mxu0 %v6409
    %6570 = vmatpush1.bf16.msra.mxu0 %v6408
    %6571 = vmatprep.subr.bf16.mxu0 %v6413
    %6572 = vmatpush1.bf16.msra.mxu0 %v6412
    %6573 = vmatprep.subr.bf16.mxu0 %v6417
    %6574 = vmatpush1.bf16.msra.mxu0 %v6416
    %6575 = vmatprep.subr.bf16.mxu0 %v6421
    %6576 = vmatpush1.bf16.msra.mxu0 %v6420
    %6577 = vmatprep.subr.bf16.mxu0 %v6425
    %6578 = vmatpush1.bf16.msra.mxu0 %v6424
    %6579 = vmatprep.subr.bf16.mxu0 %v6429
    %6580 = vmatpush1.bf16.msra.mxu0 %v6428
    %6581 = vmatprep.subr.bf16.mxu0 %v6433
    %6582 = vmatpush1.bf16.msra.mxu0 %v6432
    %6583 = vmatprep.subr.bf16.mxu0 %v6437
    %6584 = vmatpush1.bf16.msra.mxu0 %v6436
    %6585 = vmatprep.subr.bf16.mxu0 %v6441
    %6586 = vmatpush1.bf16.msra.mxu0 %v6440
    %6587 = vmatprep.subr.bf16.mxu0 %v6445
    %6588 = vmatpush1.bf16.msra.mxu0 %v6444
    %6589 = vmatprep.subr.bf16.mxu0 %v6449
    %6590 = vmatpush1.bf16.msra.mxu0 %v6448
    %6591 = vmatprep.subr.bf16.mxu0 %v6453
    %6592 = vmatpush1.bf16.msra.mxu0 %v6452
    %6593 = vmatprep.subr.bf16.mxu0 %v6457
    %6594 = vmatpush1.bf16.msra.mxu0 %v6456
    %6595 = vmatprep.mubr.bf16.mxu0 %v4608
    %6596 = vmatmul.mubr.bf16.gmra.mrb[0].mxu0 %v6180
    %v6597 = vpop.f32.mrb[0].mxu0
    %v6598 = vadd.f32 %v6193, %v6597
    %v6599 = vpop.f32.mrb[0].mxu0
    %v6600 = vadd.f32 %v6197, %v6599
    %v6601 = vpop.f32.mrb[0].mxu0
    %v6602 = vpop.f32.mrb[0].mxu0
    %6603 = vdwg.mxu0
    %v6604 = vxor.u32 %v6557, 2147483648
    %v6605 = vmul.f32 %v6604, 1.442695
    %v6606 = vpow.pop %v6605
    %v6607 = vadd.f32 %v6606, 1.0
    %v6608 = vrcp.pop %v6607
    %v6609 = vmul.f32 1.0, %v6608
    %v6610 = vxor.u32 %v6559, 2147483648
    %v6611 = vmul.f32 %v6610, 1.442695
    %v6612 = vpow.pop %v6611
    %v6613 = vadd.f32 %v6612, 1.0
    %v6614 = vrcp.pop %v6613
    %v6615 = vmul.f32 1.0, %v6614
    %v6616 = vtanh.pop %v6598
    %v6617 = vxor.u32 %v6600, 2147483648
    %v6618 = vmul.f32 %v6617, 1.442695
    %v6619 = vpow.pop %v6618
    %v6620 = vadd.f32 %v6619, 1.0
    %v6621 = vrcp.pop %v6620
    %v6622 = vmul.f32 1.0, %v6621
    %v6623 = vmul.f32 %v6615, %v4605
    %v6624 = vmul.f32 %v6609, %v6616
    %v6625 = vadd.f32 %v6623, %v6624
    %v6626 = vtanh.pop %v6625
    %v6627 = vmul.f32 %v6622, %v6626
    %v6628 = vpack.c.bf16 %v6627, %v6627
    %v6629 = vld [vmem:[%s16] sm:$0xff]
    %v6630 = vld [vmem:[%s16 + $0x8] sm:$0xff]
    %v6631 = vld [vmem:[%s16 + $0x10] sm:$0xff]
    %v6632 = vld [vmem:[%s16 + $0x18] sm:$0xff]
    %v6633 = vld [vmem:[%s16 + $0x20] sm:$0xff]
    %v6634 = vld [vmem:[%s16 + $0x28] sm:$0xff]
    %v6635 = vld [vmem:[%s16 + $0x30] sm:$0xff]
    %v6636 = vld [vmem:[%s16 + $0x38] sm:$0xff]
    %v6637 = vld [vmem:[%s16 + $0x40] sm:$0xff]
    %v6638 = vld [vmem:[%s16 + $0x48] sm:$0xff]
    %v6639 = vld [vmem:[%s16 + $0x50] sm:$0xff]
    %v6640 = vld [vmem:[%s16 + $0x58] sm:$0xff]
    %v6641 = vld [vmem:[%s16 + $0x60] sm:$0xff]
    %v6642 = vld [vmem:[%s16 + $0x68] sm:$0xff]
    %v6643 = vld [vmem:[%s16 + $0x70] sm:$0xff]
    %v6644 = vld [vmem:[%s16 + $0x78] sm:$0xff]
    %v6645 = vld [vmem:[%s17] sm:$0x3]
    %v6647 = vlaneseq
    %v6648 = vshrl.u32 %v6647, 7
    %v6649 = vsub.s32 0, %v6648
    %v6650 = vrot.slane %v6645, %v6649
    %v6651 = vlaneseq
    %v6652 = vshrl.u32 %v6651, 7
    %v6653 = vsub.s32 1, %v6652
    %v6654 = vrot.slane %v6645, %v6653
    %v6673 = vunpack.c.l.b16 %v6629
    %v6674 = vunpack.c.h.b16 %v6629
    %v6675 = vunpack.c.l.b16 %v6630
    %v6676 = vunpack.c.h.b16 %v6630
    %v6677 = vunpack.c.l.b16 %v6631
    %v6678 = vunpack.c.h.b16 %v6631
    %v6679 = vunpack.c.l.b16 %v6632
    %v6680 = vunpack.c.h.b16 %v6632
    %v6681 = vunpack.c.l.b16 %v6633
    %v6682 = vunpack.c.h.b16 %v6633
    %v6683 = vunpack.c.l.b16 %v6634
    %v6684 = vunpack.c.h.b16 %v6634
    %v6685 = vunpack.c.l.b16 %v6635
    %v6686 = vunpack.c.h.b16 %v6635
    %v6687 = vunpack.c.l.b16 %v6636
    %v6688 = vunpack.c.h.b16 %v6636
    %v6689 = vunpack.c.l.b16 %v6637
    %v6690 = vunpack.c.h.b16 %v6637
    %v6691 = vunpack.c.l.b16 %v6638
    %v6692 = vunpack.c.h.b16 %v6638
    %v6693 = vunpack.c.l.b16 %v6639
    %v6694 = vunpack.c.h.b16 %v6639
    %v6695 = vunpack.c.l.b16 %v6640
    %v6696 = vunpack.c.h.b16 %v6640
    %v6697 = vunpack.c.l.b16 %v6641
    %v6698 = vunpack.c.h.b16 %v6641
    %v6699 = vunpack.c.l.b16 %v6642
    %v6700 = vunpack.c.h.b16 %v6642
    %v6701 = vunpack.c.l.b16 %v6643
    %v6702 = vunpack.c.h.b16 %v6643
    %v6703 = vunpack.c.l.b16 %v6644
    %v6704 = vunpack.c.h.b16 %v6644
    %v6705 = vpack.c.b16 %v6675, %v6673
    %v6706 = vpack.c.b16 %v6676, %v6674
    %v6707 = vpack.c.b16 %v6679, %v6677
    %v6708 = vpack.c.b16 %v6680, %v6678
    %v6709 = vpack.c.b16 %v6683, %v6681
    %v6710 = vpack.c.b16 %v6684, %v6682
    %v6711 = vpack.c.b16 %v6687, %v6685
    %v6712 = vpack.c.b16 %v6688, %v6686
    %v6713 = vpack.c.b16 %v6691, %v6689
    %v6714 = vpack.c.b16 %v6692, %v6690
    %v6715 = vpack.c.b16 %v6695, %v6693
    %v6716 = vpack.c.b16 %v6696, %v6694
    %v6717 = vpack.c.b16 %v6699, %v6697
    %v6718 = vpack.c.b16 %v6700, %v6698
    %v6719 = vpack.c.b16 %v6703, %v6701
    %v6720 = vpack.c.b16 %v6704, %v6702
    %6737 = vmatprep.subr.bf16.mxu0 %v6706
    %6738 = vmatpush1.bf16.msra.mxu0 %v6705
    %6739 = vmatprep.subr.bf16.mxu0 %v6708
    %6740 = vmatpush1.bf16.msra.mxu0 %v6707
    %6741 = vmatprep.subr.bf16.mxu0 %v6710
    %6742 = vmatpush1.bf16.msra.mxu0 %v6709
    %6743 = vmatprep.subr.bf16.mxu0 %v6712
    %6744 = vmatpush1.bf16.msra.mxu0 %v6711
    %6745 = vmatprep.subr.bf16.mxu0 %v6714
    %6746 = vmatpush1.bf16.msra.mxu0 %v6713
    %6747 = vmatprep.subr.bf16.mxu0 %v6716
    %6748 = vmatpush1.bf16.msra.mxu0 %v6715
    %6749 = vmatprep.subr.bf16.mxu0 %v6718
    %6750 = vmatpush1.bf16.msra.mxu0 %v6717
    %6751 = vmatprep.subr.bf16.mxu0 %v6720
    %6752 = vmatpush1.bf16.msra.mxu0 %v6719
    %6753 = vmatprep.subr.bf16.mxu0 0
    %6754 = vmatpush1.bf16.msra.mxu0 0
    %6755 = vmatprep.subr.bf16.mxu0 0
    %6756 = vmatpush1.bf16.msra.mxu0 0
    %6757 = vmatprep.subr.bf16.mxu0 0
    %6758 = vmatpush1.bf16.msra.mxu0 0
    %6759 = vmatprep.subr.bf16.mxu0 0
    %6760 = vmatpush1.bf16.msra.mxu0 0
    %6761 = vmatprep.subr.bf16.mxu0 0
    %6762 = vmatpush1.bf16.msra.mxu0 0
    %6763 = vmatprep.subr.bf16.mxu0 0
    %6764 = vmatpush1.bf16.msra.mxu0 0
    %6765 = vmatprep.subr.bf16.mxu0 0
    %6766 = vmatpush1.bf16.msra.mxu0 0
    %6767 = vmatprep.subr.bf16.mxu0 0
    %6768 = vmatpush1.bf16.msra.mxu0 0
    %6769 = vmatprep.mubr.bf16.mxu0 0
    %6770 = vmatmul.mubr.bf16.gmra.mrb[0].mxu0 %v6628
    %v6771 = vpop.f32.mrb[0].mxu0
    %v6772 = vadd.f32 %v6650, %v6771
    %v6773 = vpop.f32.mrb[0].mxu0
    %v6774 = vadd.f32 %v6654, %v6773
    %v6775 = vpop.f32.mrb[0].mxu0
    %v6776 = vpop.f32.mrb[0].mxu0
    %6777 = vdwg.mxu0
    %s6778 = scalar_lea.vmem [#allocation7], 32
    %6779 = vst [vmem:[%s6778] sm:$0xff] %v6772
    %6780 = vst [vmem:[%s6778 + $0x8] sm:$0xff] %v6774
    %v6781 = vmax.f32 %v6772, %v6774
    %6782 = vmax.xlane.f32.xlu0 %v6781
    %v6783 = vpop.xlane.xlu0 %6782
    %vm6784 = vcmp.eq.f32.partialorder %v6772, %v6783
    %vm6785 = vcmp.eq.f32.partialorder %v6774, %v6783
    %v6786 = vsel %vm6784, %v3245, 256
    %v6787 = vsel %vm6785, %v3246, 256
    %vm6788 = vcmp.lt.s32.totalorder %v6786, %v6787
    %v6789 = vsel %vm6788, %v6786, %v6787
    %v6790 = vand.u32 %v6789, 65535
    %v6791 = vshra.s32 %v6789, 16
    %v6792 = vcvt.s32.f32 %v6790
    %v6793 = vcvt.s32.f32 %v6791
    %6794 = vmin.xlane.f32.xlu0 %v6793
    %v6795 = vpop.xlane.xlu0 %6794
    %vm6796 = vcmp.eq.f32.partialorder %v6793, %v6795
    %v6797 = vsel %vm6796, %v6792, inf
    %6798 = vmin.xlane.f32.xlu0 %v6797
    %v6799 = vpop.xlane.xlu0 %6798
    %v6800 = vcvt.f32.s32 %v6799
    %v6801 = vcvt.f32.s32 %v6795
    %v6802 = vshll.u32 %v6801, 16
    %v6803 = vadd.s32 %v6802, %v6800
    %vm6804 = vcmp.eq.s32.totalorder %v3245, %v6803
    %vm6805 = vcmp.eq.s32.totalorder %v3246, %v6803
    %v6806 = vsel %vm6804, 1, 0
    %v6807 = vsel %vm6805, 1, 0
    %v6808 = vcvt.s32.f32 %v6806
    %v6809 = vcvt.s32.f32 %v6807
    %v6810 = vpack.c.bf16 %v6808, %v6808
    %v6811 = vpack.c.bf16 %v6809, %v6809
    %v6812 = vld [vmem:[%s9] sm:$0xff]
    %v6813 = vld [vmem:[%s9 + $0x8] sm:$0xff]
    %v6814 = vld [vmem:[%s9 + $0x10] sm:$0xff]
    %v6815 = vld [vmem:[%s9 + $0x18] sm:$0xff]
    %v6816 = vld [vmem:[%s9 + $0x20] sm:$0xff]
    %v6817 = vld [vmem:[%s9 + $0x28] sm:$0xff]
    %v6818 = vld [vmem:[%s9 + $0x30] sm:$0xff]
    %v6819 = vld [vmem:[%s9 + $0x38] sm:$0xff]
    %v6820 = vld [vmem:[%s9 + $0x40] sm:$0xff]
    %v6821 = vld [vmem:[%s9 + $0x48] sm:$0xff]
    %v6822 = vld [vmem:[%s9 + $0x50] sm:$0xff]
    %v6823 = vld [vmem:[%s9 + $0x58] sm:$0xff]
    %v6824 = vld [vmem:[%s9 + $0x60] sm:$0xff]
    %v6825 = vld [vmem:[%s9 + $0x68] sm:$0xff]
    %v6826 = vld [vmem:[%s9 + $0x70] sm:$0xff]
    %v6827 = vld [vmem:[%s9 + $0x78] sm:$0xff]
    %v6828 = vld [vmem:[%s9 + $0x80] sm:$0xff]
    %v6829 = vld [vmem:[%s9 + $0x88] sm:$0xff]
    %v6830 = vld [vmem:[%s9 + $0x90] sm:$0xff]
    %v6831 = vld [vmem:[%s9 + $0x98] sm:$0xff]
    %v6832 = vld [vmem:[%s9 + $0xa0] sm:$0xff]
    %v6833 = vld [vmem:[%s9 + $0xa8] sm:$0xff]
    %v6834 = vld [vmem:[%s9 + $0xb0] sm:$0xff]
    %v6835 = vld [vmem:[%s9 + $0xb8] sm:$0xff]
    %v6836 = vld [vmem:[%s9 + $0xc0] sm:$0xff]
    %v6837 = vld [vmem:[%s9 + $0xc8] sm:$0xff]
    %v6838 = vld [vmem:[%s9 + $0xd0] sm:$0xff]
    %v6839 = vld [vmem:[%s9 + $0xd8] sm:$0xff]
    %v6840 = vld [vmem:[%s9 + $0xe0] sm:$0xff]
    %v6841 = vld [vmem:[%s9 + $0xe8] sm:$0xff]
    %v6842 = vld [vmem:[%s9 + $0xf0] sm:$0xff]
    %v6843 = vld [vmem:[%s9 + $0xf8] sm:$0xff]
    %v6844 = vld [vmem:[%s9 + $0x100] sm:$0xff]
    %v6845 = vld [vmem:[%s9 + $0x108] sm:$0xff]
    %v6846 = vld [vmem:[%s9 + $0x110] sm:$0xff]
    %v6847 = vld [vmem:[%s9 + $0x118] sm:$0xff]
    %v6848 = vld [vmem:[%s9 + $0x120] sm:$0xff]
    %v6849 = vld [vmem:[%s9 + $0x128] sm:$0xff]
    %v6850 = vld [vmem:[%s9 + $0x130] sm:$0xff]
    %v6851 = vld [vmem:[%s9 + $0x138] sm:$0xff]
    %v6852 = vld [vmem:[%s9 + $0x140] sm:$0xff]
    %v6853 = vld [vmem:[%s9 + $0x148] sm:$0xff]
    %v6854 = vld [vmem:[%s9 + $0x150] sm:$0xff]
    %v6855 = vld [vmem:[%s9 + $0x158] sm:$0xff]
    %v6856 = vld [vmem:[%s9 + $0x160] sm:$0xff]
    %v6857 = vld [vmem:[%s9 + $0x168] sm:$0xff]
    %v6858 = vld [vmem:[%s9 + $0x170] sm:$0xff]
    %v6859 = vld [vmem:[%s9 + $0x178] sm:$0xff]
    %v6860 = vld [vmem:[%s9 + $0x180] sm:$0xff]
    %v6861 = vld [vmem:[%s9 + $0x188] sm:$0xff]
    %v6862 = vld [vmem:[%s9 + $0x190] sm:$0xff]
    %v6863 = vld [vmem:[%s9 + $0x198] sm:$0xff]
    %v6864 = vld [vmem:[%s9 + $0x1a0] sm:$0xff]
    %v6865 = vld [vmem:[%s9 + $0x1a8] sm:$0xff]
    %v6866 = vld [vmem:[%s9 + $0x1b0] sm:$0xff]
    %v6867 = vld [vmem:[%s9 + $0x1b8] sm:$0xff]
    %v6868 = vld [vmem:[%s9 + $0x1c0] sm:$0xff]
    %v6869 = vld [vmem:[%s9 + $0x1c8] sm:$0xff]
    %v6870 = vld [vmem:[%s9 + $0x1d0] sm:$0xff]
    %v6871 = vld [vmem:[%s9 + $0x1d8] sm:$0xff]
    %v6872 = vld [vmem:[%s9 + $0x1e0] sm:$0xff]
    %v6873 = vld [vmem:[%s9 + $0x1e8] sm:$0xff]
    %v6874 = vld [vmem:[%s9 + $0x1f0] sm:$0xff]
    %v6875 = vld [vmem:[%s9 + $0x1f8] sm:$0xff]
    %v6940 = vunpack.c.l.b16 %v6812
    %v6941 = vunpack.c.h.b16 %v6812
    %v6942 = vunpack.c.l.b16 %v6813
    %v6943 = vunpack.c.h.b16 %v6813
    %v6944 = vunpack.c.l.b16 %v6814
    %v6945 = vunpack.c.h.b16 %v6814
    %v6946 = vunpack.c.l.b16 %v6815
    %v6947 = vunpack.c.h.b16 %v6815
    %v6948 = vunpack.c.l.b16 %v6816
    %v6949 = vunpack.c.h.b16 %v6816
    %v6950 = vunpack.c.l.b16 %v6817
    %v6951 = vunpack.c.h.b16 %v6817
    %v6952 = vunpack.c.l.b16 %v6818
    %v6953 = vunpack.c.h.b16 %v6818
    %v6954 = vunpack.c.l.b16 %v6819
    %v6955 = vunpack.c.h.b16 %v6819
    %v6956 = vunpack.c.l.b16 %v6820
    %v6957 = vunpack.c.h.b16 %v6820
    %v6958 = vunpack.c.l.b16 %v6821
    %v6959 = vunpack.c.h.b16 %v6821
    %v6960 = vunpack.c.l.b16 %v6822
    %v6961 = vunpack.c.h.b16 %v6822
    %v6962 = vunpack.c.l.b16 %v6823
    %v6963 = vunpack.c.h.b16 %v6823
    %v6964 = vunpack.c.l.b16 %v6824
    %v6965 = vunpack.c.h.b16 %v6824
    %v6966 = vunpack.c.l.b16 %v6825
    %v6967 = vunpack.c.h.b16 %v6825
    %v6968 = vunpack.c.l.b16 %v6826
    %v6969 = vunpack.c.h.b16 %v6826
    %v6970 = vunpack.c.l.b16 %v6827
    %v6971 = vunpack.c.h.b16 %v6827
    %v6972 = vunpack.c.l.b16 %v6828
    %v6973 = vunpack.c.h.b16 %v6828
    %v6974 = vunpack.c.l.b16 %v6829
    %v6975 = vunpack.c.h.b16 %v6829
    %v6976 = vunpack.c.l.b16 %v6830
    %v6977 = vunpack.c.h.b16 %v6830
    %v6978 = vunpack.c.l.b16 %v6831
    %v6979 = vunpack.c.h.b16 %v6831
    %v6980 = vunpack.c.l.b16 %v6832
    %v6981 = vunpack.c.h.b16 %v6832
    %v6982 = vunpack.c.l.b16 %v6833
    %v6983 = vunpack.c.h.b16 %v6833
    %v6984 = vunpack.c.l.b16 %v6834
    %v6985 = vunpack.c.h.b16 %v6834
    %v6986 = vunpack.c.l.b16 %v6835
    %v6987 = vunpack.c.h.b16 %v6835
    %v6988 = vunpack.c.l.b16 %v6836
    %v6989 = vunpack.c.h.b16 %v6836
    %v6990 = vunpack.c.l.b16 %v6837
    %v6991 = vunpack.c.h.b16 %v6837
    %v6992 = vunpack.c.l.b16 %v6838
    %v6993 = vunpack.c.h.b16 %v6838
    %v6994 = vunpack.c.l.b16 %v6839
    %v6995 = vunpack.c.h.b16 %v6839
    %v6996 = vunpack.c.l.b16 %v6840
    %v6997 = vunpack.c.h.b16 %v6840
    %v6998 = vunpack.c.l.b16 %v6841
    %v6999 = vunpack.c.h.b16 %v6841
    %v7000 = vunpack.c.l.b16 %v6842
    %v7001 = vunpack.c.h.b16 %v6842
    %v7002 = vunpack.c.l.b16 %v6843
    %v7003 = vunpack.c.h.b16 %v6843
    %v7004 = vunpack.c.l.b16 %v6844
    %v7005 = vunpack.c.h.b16 %v6844
    %v7006 = vunpack.c.l.b16 %v6845
    %v7007 = vunpack.c.h.b16 %v6845
    %v7008 = vunpack.c.l.b16 %v6846
    %v7009 = vunpack.c.h.b16 %v6846
    %v7010 = vunpack.c.l.b16 %v6847
    %v7011 = vunpack.c.h.b16 %v6847
    %v7012 = vunpack.c.l.b16 %v6848
    %v7013 = vunpack.c.h.b16 %v6848
    %v7014 = vunpack.c.l.b16 %v6849
    %v7015 = vunpack.c.h.b16 %v6849
    %v7016 = vunpack.c.l.b16 %v6850
    %v7017 = vunpack.c.h.b16 %v6850
    %v7018 = vunpack.c.l.b16 %v6851
    %v7019 = vunpack.c.h.b16 %v6851
    %v7020 = vunpack.c.l.b16 %v6852
    %v7021 = vunpack.c.h.b16 %v6852
    %v7022 = vunpack.c.l.b16 %v6853
    %v7023 = vunpack.c.h.b16 %v6853
    %v7024 = vunpack.c.l.b16 %v6854
    %v7025 = vunpack.c.h.b16 %v6854
    %v7026 = vunpack.c.l.b16 %v6855
    %v7027 = vunpack.c.h.b16 %v6855
    %v7028 = vunpack.c.l.b16 %v6856
    %v7029 = vunpack.c.h.b16 %v6856
    %v7030 = vunpack.c.l.b16 %v6857
    %v7031 = vunpack.c.h.b16 %v6857
    %v7032 = vunpack.c.l.b16 %v6858
    %v7033 = vunpack.c.h.b16 %v6858
    %v7034 = vunpack.c.l.b16 %v6859
    %v7035 = vunpack.c.h.b16 %v6859
    %v7036 = vunpack.c.l.b16 %v6860
    %v7037 = vunpack.c.h.b16 %v6860
    %v7038 = vunpack.c.l.b16 %v6861
    %v7039 = vunpack.c.h.b16 %v6861
    %v7040 = vunpack.c.l.b16 %v6862
    %v7041 = vunpack.c.h.b16 %v6862
    %v7042 = vunpack.c.l.b16 %v6863
    %v7043 = vunpack.c.h.b16 %v6863
    %v7044 = vunpack.c.l.b16 %v6864
    %v7045 = vunpack.c.h.b16 %v6864
    %v7046 = vunpack.c.l.b16 %v6865
    %v7047 = vunpack.c.h.b16 %v6865
    %v7048 = vunpack.c.l.b16 %v6866
    %v7049 = vunpack.c.h.b16 %v6866
    %v7050 = vunpack.c.l.b16 %v6867
    %v7051 = vunpack.c.h.b16 %v6867
    %v7052 = vunpack.c.l.b16 %v6868
    %v7053 = vunpack.c.h.b16 %v6868
    %v7054 = vunpack.c.l.b16 %v6869
    %v7055 = vunpack.c.h.b16 %v6869
    %v7056 = vunpack.c.l.b16 %v6870
    %v7057 = vunpack.c.h.b16 %v6870
    %v7058 = vunpack.c.l.b16 %v6871
    %v7059 = vunpack.c.h.b16 %v6871
    %v7060 = vunpack.c.l.b16 %v6872
    %v7061 = vunpack.c.h.b16 %v6872
    %v7062 = vunpack.c.l.b16 %v6873
    %v7063 = vunpack.c.h.b16 %v6873
    %v7064 = vunpack.c.l.b16 %v6874
    %v7065 = vunpack.c.h.b16 %v6874
    %v7066 = vunpack.c.l.b16 %v6875
    %v7067 = vunpack.c.h.b16 %v6875
    %v7068 = vpack.c.b16 %v6944, %v6940
    %v7069 = vpack.c.b16 %v6945, %v6941
    %v7070 = vpack.c.b16 %v6946, %v6942
    %v7071 = vpack.c.b16 %v6947, %v6943
    %v7072 = vpack.c.b16 %v6952, %v6948
    %v7073 = vpack.c.b16 %v6953, %v6949
    %v7074 = vpack.c.b16 %v6954, %v6950
    %v7075 = vpack.c.b16 %v6955, %v6951
    %v7076 = vpack.c.b16 %v6960, %v6956
    %v7077 = vpack.c.b16 %v6961, %v6957
    %v7078 = vpack.c.b16 %v6962, %v6958
    %v7079 = vpack.c.b16 %v6963, %v6959
    %v7080 = vpack.c.b16 %v6968, %v6964
    %v7081 = vpack.c.b16 %v6969, %v6965
    %v7082 = vpack.c.b16 %v6970, %v6966
    %v7083 = vpack.c.b16 %v6971, %v6967
    %v7084 = vpack.c.b16 %v6976, %v6972
    %v7085 = vpack.c.b16 %v6977, %v6973
    %v7086 = vpack.c.b16 %v6978, %v6974
    %v7087 = vpack.c.b16 %v6979, %v6975
    %v7088 = vpack.c.b16 %v6984, %v6980
    %v7089 = vpack.c.b16 %v6985, %v6981
    %v7090 = vpack.c.b16 %v6986, %v6982
    %v7091 = vpack.c.b16 %v6987, %v6983
    %v7092 = vpack.c.b16 %v6992, %v6988
    %v7093 = vpack.c.b16 %v6993, %v6989
    %v7094 = vpack.c.b16 %v6994, %v6990
    %v7095 = vpack.c.b16 %v6995, %v6991
    %v7096 = vpack.c.b16 %v7000, %v6996
    %v7097 = vpack.c.b16 %v7001, %v6997
    %v7098 = vpack.c.b16 %v7002, %v6998
    %v7099 = vpack.c.b16 %v7003, %v6999
    %v7100 = vpack.c.b16 %v7008, %v7004
    %v7101 = vpack.c.b16 %v7009, %v7005
    %v7102 = vpack.c.b16 %v7010, %v7006
    %v7103 = vpack.c.b16 %v7011, %v7007
    %v7104 = vpack.c.b16 %v7016, %v7012
    %v7105 = vpack.c.b16 %v7017, %v7013
    %v7106 = vpack.c.b16 %v7018, %v7014
    %v7107 = vpack.c.b16 %v7019, %v7015
    %v7108 = vpack.c.b16 %v7024, %v7020
    %v7109 = vpack.c.b16 %v7025, %v7021
    %v7110 = vpack.c.b16 %v7026, %v7022
    %v7111 = vpack.c.b16 %v7027, %v7023
    %v7112 = vpack.c.b16 %v7032, %v7028
    %v7113 = vpack.c.b16 %v7033, %v7029
    %v7114 = vpack.c.b16 %v7034, %v7030
    %v7115 = vpack.c.b16 %v7035, %v7031
    %v7116 = vpack.c.b16 %v7040, %v7036
    %v7117 = vpack.c.b16 %v7041, %v7037
    %v7118 = vpack.c.b16 %v7042, %v7038
    %v7119 = vpack.c.b16 %v7043, %v7039
    %v7120 = vpack.c.b16 %v7048, %v7044
    %v7121 = vpack.c.b16 %v7049, %v7045
    %v7122 = vpack.c.b16 %v7050, %v7046
    %v7123 = vpack.c.b16 %v7051, %v7047
    %v7124 = vpack.c.b16 %v7056, %v7052
    %v7125 = vpack.c.b16 %v7057, %v7053
    %v7126 = vpack.c.b16 %v7058, %v7054
    %v7127 = vpack.c.b16 %v7059, %v7055
    %v7128 = vpack.c.b16 %v7064, %v7060
    %v7129 = vpack.c.b16 %v7065, %v7061
    %v7130 = vpack.c.b16 %v7066, %v7062
    %v7131 = vpack.c.b16 %v7067, %v7063
    %7196 = vmatprep.subr.bf16.mxu0 %v7069
    %7197 = vmatpush1.bf16.msra.mxu0 %v7068
    %7198 = vmatprep.subr.bf16.mxu0 %v7073
    %7199 = vmatpush1.bf16.msra.mxu0 %v7072
    %7200 = vmatprep.subr.bf16.mxu0 %v7077
    %7201 = vmatpush1.bf16.msra.mxu0 %v7076
    %7202 = vmatprep.subr.bf16.mxu0 %v7081
    %7203 = vmatpush1.bf16.msra.mxu0 %v7080
    %7204 = vmatprep.subr.bf16.mxu0 %v7085
    %7205 = vmatpush1.bf16.msra.mxu0 %v7084
    %7206 = vmatprep.subr.bf16.mxu0 %v7089
    %7207 = vmatpush1.bf16.msra.mxu0 %v7088
    %7208 = vmatprep.subr.bf16.mxu0 %v7093
    %7209 = vmatpush1.bf16.msra.mxu0 %v7092
    %7210 = vmatprep.subr.bf16.mxu0 %v7097
    %7211 = vmatpush1.bf16.msra.mxu0 %v7096
    %7212 = vmatprep.subr.bf16.mxu0 %v7101
    %7213 = vmatpush1.bf16.msra.mxu0 %v7100
    %7214 = vmatprep.subr.bf16.mxu0 %v7105
    %7215 = vmatpush1.bf16.msra.mxu0 %v7104
    %7216 = vmatprep.subr.bf16.mxu0 %v7109
    %7217 = vmatpush1.bf16.msra.mxu0 %v7108
    %7218 = vmatprep.subr.bf16.mxu0 %v7113
    %7219 = vmatpush1.bf16.msra.mxu0 %v7112
    %7220 = vmatprep.subr.bf16.mxu0 %v7117
    %7221 = vmatpush1.bf16.msra.mxu0 %v7116
    %7222 = vmatprep.subr.bf16.mxu0 %v7121
    %7223 = vmatpush1.bf16.msra.mxu0 %v7120
    %7224 = vmatprep.subr.bf16.mxu0 %v7125
    %7225 = vmatpush1.bf16.msra.mxu0 %v7124
    %7226 = vmatprep.subr.bf16.mxu0 %v7129
    %7227 = vmatpush1.bf16.msra.mxu0 %v7128
    %7228 = vmatprep.mubr.bf16.mxu0 %v6811
    %7229 = vmatmul.mubr.bf16.gmra.mrb[0].mxu0 %v6810
    %v7230 = vpop.f32.mrb[0].mxu0
    %v7231 = vadd.f32 0.0, %v7230
    %v7232 = vpop.f32.mrb[0].mxu0
    %v7233 = vadd.f32 0.0, %v7232
    %v7234 = vpop.f32.mrb[0].mxu0
    %v7235 = vpop.f32.mrb[0].mxu0
    %7236 = vdwg.mxu0
    %7237 = vmatprep.subr.bf16.mxu0 %v7071
    %7238 = vmatpush1.bf16.msra.mxu0 %v7070
    %7239 = vmatprep.subr.bf16.mxu0 %v7075
    %7240 = vmatpush1.bf16.msra.mxu0 %v7074
    %7241 = vmatprep.subr.bf16.mxu0 %v7079
    %7242 = vmatpush1.bf16.msra.mxu0 %v7078
    %7243 = vmatprep.subr.bf16.mxu0 %v7083
    %7244 = vmatpush1.bf16.msra.mxu0 %v7082
    %7245 = vmatprep.subr.bf16.mxu0 %v7087
    %7246 = vmatpush1.bf16.msra.mxu0 %v7086
    %7247 = vmatprep.subr.bf16.mxu0 %v7091
    %7248 = vmatpush1.bf16.msra.mxu0 %v7090
    %7249 = vmatprep.subr.bf16.mxu0 %v7095
    %7250 = vmatpush1.bf16.msra.mxu0 %v7094
    %7251 = vmatprep.subr.bf16.mxu0 %v7099
    %7252 = vmatpush1.bf16.msra.mxu0 %v7098
    %7253 = vmatprep.subr.bf16.mxu0 %v7103
    %7254 = vmatpush1.bf16.msra.mxu0 %v7102
    %7255 = vmatprep.subr.bf16.mxu0 %v7107
    %7256 = vmatpush1.bf16.msra.mxu0 %v7106
    %7257 = vmatprep.subr.bf16.mxu0 %v7111
    %7258 = vmatpush1.bf16.msra.mxu0 %v7110
    %7259 = vmatprep.subr.bf16.mxu0 %v7115
    %7260 = vmatpush1.bf16.msra.mxu0 %v7114
    %7261 = vmatprep.subr.bf16.mxu0 %v7119
    %7262 = vmatpush1.bf16.msra.mxu0 %v7118
    %7263 = vmatprep.subr.bf16.mxu0 %v7123
    %7264 = vmatpush1.bf16.msra.mxu0 %v7122
    %7265 = vmatprep.subr.bf16.mxu0 %v7127
    %7266 = vmatpush1.bf16.msra.mxu0 %v7126
    %7267 = vmatprep.subr.bf16.mxu0 %v7131
    %7268 = vmatpush1.bf16.msra.mxu0 %v7130
    %7269 = vmatprep.mubr.bf16.mxu0 %v6811
    %7270 = vmatmul.mubr.bf16.gmra.mrb[0].mxu0 %v6810
    %v7271 = vpop.f32.mrb[0].mxu0
    %v7272 = vadd.f32 0.0, %v7271
    %v7273 = vpop.f32.mrb[0].mxu0
    %v7274 = vadd.f32 0.0, %v7273
    %v7275 = vpop.f32.mrb[0].mxu0
    %v7276 = vpop.f32.mrb[0].mxu0
    %7277 = vdwg.mxu0
    %s7278 = scalar_lea.vmem %s15, 32
    %v7279 = vld [vmem:[%s7278] sm:$0xff]
    %v7280 = vld [vmem:[%s7278 + $0x8] sm:$0xff]
    %v7281 = vunpack.c.l.bf16 %v7279
    %v7282 = vunpack.c.h.bf16 %v7279
    %v7283 = vunpack.c.l.bf16 %v7280
    %v7284 = vunpack.c.h.bf16 %v7280
    %s7285 = sld [smem:[#allocation2 + $0x2]]
    %p7286 = scmp.ne.s32.totalorder %s7285, 0
    %s7287 = scalar_select %p7286, 1, 0
    %v7288 = vstv %s7287
    %vm7289 = vcmp.eq.s32.totalorder %v7288, 1
    %v7290 = vsel %vm7289, %v7281, %v7231
    %v7291 = vsel %vm7289, %v7282, %v7233
    %v7292 = vsel %vm7289, %v7283, %v7272
    %v7293 = vsel %vm7289, %v7284, %v7274
    %v7294 = vld [vmem:[%s8] sm:$0xff]
    %v7295 = vld [vmem:[%s8 + $0x8] sm:$0xff]
    %v7296 = vld [vmem:[%s8 + $0x10] sm:$0xff]
    %v7297 = vld [vmem:[%s8 + $0x18] sm:$0xff]
    %v7298 = vld [vmem:[%s8 + $0x20] sm:$0xff]
    %v7299 = vld [vmem:[%s8 + $0x28] sm:$0xff]
    %v7300 = vld [vmem:[%s8 + $0x30] sm:$0xff]
    %v7301 = vld [vmem:[%s8 + $0x38] sm:$0xff]
    %v7302 = vld [vmem:[%s8 + $0x40] sm:$0xff]
    %v7303 = vld [vmem:[%s8 + $0x48] sm:$0xff]
    %v7304 = vld [vmem:[%s8 + $0x50] sm:$0xff]
    %v7305 = vld [vmem:[%s8 + $0x58] sm:$0xff]
    %v7306 = vld [vmem:[%s8 + $0x60] sm:$0xff]
    %v7307 = vld [vmem:[%s8 + $0x68] sm:$0xff]
    %v7308 = vld [vmem:[%s8 + $0x70] sm:$0xff]
    %v7309 = vld [vmem:[%s8 + $0x78] sm:$0xff]
    %v7310 = vld [vmem:[%s8 + $0x80] sm:$0xff]
    %v7311 = vld [vmem:[%s8 + $0x88] sm:$0xff]
    %v7312 = vld [vmem:[%s8 + $0x90] sm:$0xff]
    %v7313 = vld [vmem:[%s8 + $0x98] sm:$0xff]
    %v7314 = vld [vmem:[%s8 + $0xa0] sm:$0xff]
    %v7315 = vld [vmem:[%s8 + $0xa8] sm:$0xff]
    %v7316 = vld [vmem:[%s8 + $0xb0] sm:$0xff]
    %v7317 = vld [vmem:[%s8 + $0xb8] sm:$0xff]
    %v7318 = vld [vmem:[%s8 + $0xc0] sm:$0xff]
    %v7319 = vld [vmem:[%s8 + $0xc8] sm:$0xff]
    %v7320 = vld [vmem:[%s8 + $0xd0] sm:$0xff]
    %v7321 = vld [vmem:[%s8 + $0xd8] sm:$0xff]
    %v7322 = vld [vmem:[%s8 + $0xe0] sm:$0xff]
    %v7323 = vld [vmem:[%s8 + $0xe8] sm:$0xff]
    %v7324 = vld [vmem:[%s8 + $0xf0] sm:$0xff]
    %v7325 = vld [vmem:[%s8 + $0xf8] sm:$0xff]
    %v7358 = vunpack.c.l.b16 %v7294
    %v7359 = vunpack.c.h.b16 %v7294
    %v7360 = vunpack.c.l.b16 %v7295
    %v7361 = vunpack.c.h.b16 %v7295
    %v7362 = vunpack.c.l.b16 %v7296
    %v7363 = vunpack.c.h.b16 %v7296
    %v7364 = vunpack.c.l.b16 %v7297
    %v7365 = vunpack.c.h.b16 %v7297
    %v7366 = vunpack.c.l.b16 %v7298
    %v7367 = vunpack.c.h.b16 %v7298
    %v7368 = vunpack.c.l.b16 %v7299
    %v7369 = vunpack.c.h.b16 %v7299
    %v7370 = vunpack.c.l.b16 %v7300
    %v7371 = vunpack.c.h.b16 %v7300
    %v7372 = vunpack.c.l.b16 %v7301
    %v7373 = vunpack.c.h.b16 %v7301
    %v7374 = vunpack.c.l.b16 %v7302
    %v7375 = vunpack.c.h.b16 %v7302
    %v7376 = vunpack.c.l.b16 %v7303
    %v7377 = vunpack.c.h.b16 %v7303
    %v7378 = vunpack.c.l.b16 %v7304
    %v7379 = vunpack.c.h.b16 %v7304
    %v7380 = vunpack.c.l.b16 %v7305
    %v7381 = vunpack.c.h.b16 %v7305
    %v7382 = vunpack.c.l.b16 %v7306
    %v7383 = vunpack.c.h.b16 %v7306
    %v7384 = vunpack.c.l.b16 %v7307
    %v7385 = vunpack.c.h.b16 %v7307
    %v7386 = vunpack.c.l.b16 %v7308
    %v7387 = vunpack.c.h.b16 %v7308
    %v7388 = vunpack.c.l.b16 %v7309
    %v7389 = vunpack.c.h.b16 %v7309
    %v7390 = vunpack.c.l.b16 %v7310
    %v7391 = vunpack.c.h.b16 %v7310
    %v7392 = vunpack.c.l.b16 %v7311
    %v7393 = vunpack.c.h.b16 %v7311
    %v7394 = vunpack.c.l.b16 %v7312
    %v7395 = vunpack.c.h.b16 %v7312
    %v7396 = vunpack.c.l.b16 %v7313
    %v7397 = vunpack.c.h.b16 %v7313
    %v7398 = vunpack.c.l.b16 %v7314
    %v7399 = vunpack.c.h.b16 %v7314
    %v7400 = vunpack.c.l.b16 %v7315
    %v7401 = vunpack.c.h.b16 %v7315
    %v7402 = vunpack.c.l.b16 %v7316
    %v7403 = vunpack.c.h.b16 %v7316
    %v7404 = vunpack.c.l.b16 %v7317
    %v7405 = vunpack.c.h.b16 %v7317
    %v7406 = vunpack.c.l.b16 %v7318
    %v7407 = vunpack.c.h.b16 %v7318
    %v7408 = vunpack.c.l.b16 %v7319
    %v7409 = vunpack.c.h.b16 %v7319
    %v7410 = vunpack.c.l.b16 %v7320
    %v7411 = vunpack.c.h.b16 %v7320
    %v7412 = vunpack.c.l.b16 %v7321
    %v7413 = vunpack.c.h.b16 %v7321
    %v7414 = vunpack.c.l.b16 %v7322
    %v7415 = vunpack.c.h.b16 %v7322
    %v7416 = vunpack.c.l.b16 %v7323
    %v7417 = vunpack.c.h.b16 %v7323
    %v7418 = vunpack.c.l.b16 %v7324
    %v7419 = vunpack.c.h.b16 %v7324
    %v7420 = vunpack.c.l.b16 %v7325
    %v7421 = vunpack.c.h.b16 %v7325
    %v7422 = vpack.c.b16 %v7362, %v7358
    %v7423 = vpack.c.b16 %v7363, %v7359
    %v7424 = vpack.c.b16 %v7364, %v7360
    %v7425 = vpack.c.b16 %v7365, %v7361
    %v7426 = vpack.c.b16 %v7370, %v7366
    %v7427 = vpack.c.b16 %v7371, %v7367
    %v7428 = vpack.c.b16 %v7372, %v7368
    %v7429 = vpack.c.b16 %v7373, %v7369
    %v7430 = vpack.c.b16 %v7378, %v7374
    %v7431 = vpack.c.b16 %v7379, %v7375
    %v7432 = vpack.c.b16 %v7380, %v7376
    %v7433 = vpack.c.b16 %v7381, %v7377
    %v7434 = vpack.c.b16 %v7386, %v7382
    %v7435 = vpack.c.b16 %v7387, %v7383
    %v7436 = vpack.c.b16 %v7388, %v7384
    %v7437 = vpack.c.b16 %v7389, %v7385
    %v7438 = vpack.c.b16 %v7394, %v7390
    %v7439 = vpack.c.b16 %v7395, %v7391
    %v7440 = vpack.c.b16 %v7396, %v7392
    %v7441 = vpack.c.b16 %v7397, %v7393
    %v7442 = vpack.c.b16 %v7402, %v7398
    %v7443 = vpack.c.b16 %v7403, %v7399
    %v7444 = vpack.c.b16 %v7404, %v7400
    %v7445 = vpack.c.b16 %v7405, %v7401
    %v7446 = vpack.c.b16 %v7410, %v7406
    %v7447 = vpack.c.b16 %v7411, %v7407
    %v7448 = vpack.c.b16 %v7412, %v7408
    %v7449 = vpack.c.b16 %v7413, %v7409
    %v7450 = vpack.c.b16 %v7418, %v7414
    %v7451 = vpack.c.b16 %v7419, %v7415
    %v7452 = vpack.c.b16 %v7420, %v7416
    %v7453 = vpack.c.b16 %v7421, %v7417
    %7486 = vmatprep.subr.bf16.mxu0 %v7423
    %7487 = vmatpush1.bf16.msra.mxu0 %v7422
    %7488 = vmatprep.subr.bf16.mxu0 %v7427
    %7489 = vmatpush1.bf16.msra.mxu0 %v7426
    %7490 = vmatprep.subr.bf16.mxu0 %v7431
    %7491 = vmatpush1.bf16.msra.mxu0 %v7430
    %7492 = vmatprep.subr.bf16.mxu0 %v7435
    %7493 = vmatpush1.bf16.msra.mxu0 %v7434
    %7494 = vmatprep.subr.bf16.mxu0 %v7439
    %7495 = vmatpush1.bf16.msra.mxu0 %v7438
    %7496 = vmatprep.subr.bf16.mxu0 %v7443
    %7497 = vmatpush1.bf16.msra.mxu0 %v7442
    %7498 = vmatprep.subr.bf16.mxu0 %v7447
    %7499 = vmatpush1.bf16.msra.mxu0 %v7446
    %7500 = vmatprep.subr.bf16.mxu0 %v7451
    %7501 = vmatpush1.bf16.msra.mxu0 %v7450
    %7502 = vmatprep.subr.bf16.mxu0 0
    %7503 = vmatpush1.bf16.msra.mxu0 0
    %7504 = vmatprep.subr.bf16.mxu0 0
    %7505 = vmatpush1.bf16.msra.mxu0 0
    %7506 = vmatprep.subr.bf16.mxu0 0
    %7507 = vmatpush1.bf16.msra.mxu0 0
    %7508 = vmatprep.subr.bf16.mxu0 0
    %7509 = vmatpush1.bf16.msra.mxu0 0
    %7510 = vmatprep.subr.bf16.mxu0 0
    %7511 = vmatpush1.bf16.msra.mxu0 0
    %7512 = vmatprep.subr.bf16.mxu0 0
    %7513 = vmatpush1.bf16.msra.mxu0 0
    %7514 = vmatprep.subr.bf16.mxu0 0
    %7515 = vmatpush1.bf16.msra.mxu0 0
    %7516 = vmatprep.subr.bf16.mxu0 0
    %7517 = vmatpush1.bf16.msra.mxu0 0
    %7518 = vmatprep.mubr.bf16.mxu0 0
    %7519 = vmatmul.mubr.bf16.gmra.mrb[0].mxu0 %v5667
    %v7520 = vpop.f32.mrb[0].mxu0
    %v7521 = vadd.f32 0.0, %v7520
    %v7522 = vpop.f32.mrb[0].mxu0
    %v7523 = vadd.f32 0.0, %v7522
    %v7524 = vpop.f32.mrb[0].mxu0
    %v7525 = vpop.f32.mrb[0].mxu0
    %7526 = vdwg.mxu0
    %7527 = vmatprep.subr.bf16.mxu0 %v7425
    %7528 = vmatpush1.bf16.msra.mxu0 %v7424
    %7529 = vmatprep.subr.bf16.mxu0 %v7429
    %7530 = vmatpush1.bf16.msra.mxu0 %v7428
    %7531 = vmatprep.subr.bf16.mxu0 %v7433
    %7532 = vmatpush1.bf16.msra.mxu0 %v7432
    %7533 = vmatprep.subr.bf16.mxu0 %v7437
    %7534 = vmatpush1.bf16.msra.mxu0 %v7436
    %7535 = vmatprep.subr.bf16.mxu0 %v7441
    %7536 = vmatpush1.bf16.msra.mxu0 %v7440
    %7537 = vmatprep.subr.bf16.mxu0 %v7445
    %7538 = vmatpush1.bf16.msra.mxu0 %v7444
    %7539 = vmatprep.subr.bf16.mxu0 %v7449
    %7540 = vmatpush1.bf16.msra.mxu0 %v7448
    %7541 = vmatprep.subr.bf16.mxu0 %v7453
    %7542 = vmatpush1.bf16.msra.mxu0 %v7452
    %7543 = vmatprep.subr.bf16.mxu0 0
    %7544 = vmatpush1.bf16.msra.mxu0 0
    %7545 = vmatprep.subr.bf16.mxu0 0
    %7546 = vmatpush1.bf16.msra.mxu0 0
    %7547 = vmatprep.subr.bf16.mxu0 0
    %7548 = vmatpush1.bf16.msra.mxu0 0
    %7549 = vmatprep.subr.bf16.mxu0 0
    %7550 = vmatpush1.bf16.msra.mxu0 0
    %7551 = vmatprep.subr.bf16.mxu0 0
    %7552 = vmatpush1.bf16.msra.mxu0 0
    %7553 = vmatprep.subr.bf16.mxu0 0
    %7554 = vmatpush1.bf16.msra.mxu0 0
    %7555 = vmatprep.subr.bf16.mxu0 0
    %7556 = vmatpush1.bf16.msra.mxu0 0
    %7557 = vmatprep.subr.bf16.mxu0 0
    %7558 = vmatpush1.bf16.msra.mxu0 0
    %7559 = vmatprep.mubr.bf16.mxu0 0
    %7560 = vmatmul.mubr.bf16.gmra.mrb[0].mxu0 %v5667
    %v7561 = vpop.f32.mrb[0].mxu0
    %v7562 = vadd.f32 0.0, %v7561
    %v7563 = vpop.f32.mrb[0].mxu0
    %v7564 = vadd.f32 0.0, %v7563
    %v7565 = vpop.f32.mrb[0].mxu0
    %v7566 = vpop.f32.mrb[0].mxu0
    %7567 = vdwg.mxu0
    %v7568 = vadd.f32 %v7290, %v7521
    %v7569 = vadd.f32 %v7291, %v7523
    %v7570 = vadd.f32 %v7292, %v7562
    %v7571 = vadd.f32 %v7293, %v7564
    %v7572 = vld [vmem:[%s12] sm:$0xf]
    %v7574 = vlaneseq
    %v7575 = vshrl.u32 %v7574, 7
    %v7576 = vsub.s32 0, %v7575
    %v7577 = vrot.slane %v7572, %v7576
    %v7578 = vlaneseq
    %v7579 = vshrl.u32 %v7578, 7
    %v7580 = vsub.s32 1, %v7579
    %v7581 = vrot.slane %v7572, %v7580
    %v7582 = vlaneseq
    %v7583 = vshrl.u32 %v7582, 7
    %v7584 = vsub.s32 2, %v7583
    %v7585 = vrot.slane %v7572, %v7584
    %v7586 = vlaneseq
    %v7587 = vshrl.u32 %v7586, 7
    %v7588 = vsub.s32 3, %v7587
    %v7589 = vrot.slane %v7572, %v7588
    %v7594 = vadd.f32 %v7568, %v7577
    %v7595 = vadd.f32 %v7569, %v7581
    %v7596 = vadd.f32 %v7570, %v7585
    %v7597 = vadd.f32 %v7571, %v7589
    %v7598 = vxor.u32 %v7594, 2147483648
    %v7599 = vmul.f32 %v7598, 1.442695
    %v7600 = vpow.pop %v7599
    %v7601 = vadd.f32 %v7600, 1.0
    %v7602 = vrcp.pop %v7601
    %v7603 = vmul.f32 1.0, %v7602
    %v7604 = vxor.u32 %v7595, 2147483648
    %v7605 = vmul.f32 %v7604, 1.442695
    %v7606 = vpow.pop %v7605
    %v7607 = vadd.f32 %v7606, 1.0
    %v7608 = vrcp.pop %v7607
    %v7609 = vmul.f32 1.0, %v7608
    %v7610 = vtanh.pop %v7596
    %v7611 = vxor.u32 %v7597, 2147483648
    %v7612 = vmul.f32 %v7611, 1.442695
    %v7613 = vpow.pop %v7612
    %v7614 = vadd.f32 %v7613, 1.0
    %v7615 = vrcp.pop %v7614
    %v7616 = vmul.f32 1.0, %v7615
    %v7617 = vmul.f32 %v7609, %v5599
    %v7618 = vmul.f32 %v7603, %v7610
    %v7619 = vadd.f32 %v7617, %v7618
    %v7620 = vtanh.pop %v7619
    %v7621 = vmul.f32 %v7616, %v7620
    %v7622 = vld [vmem:[%s10] sm:$0xff]
    %v7623 = vld [vmem:[%s10 + $0x8] sm:$0xff]
    %v7624 = vld [vmem:[%s10 + $0x10] sm:$0xff]
    %v7625 = vld [vmem:[%s10 + $0x18] sm:$0xff]
    %v7626 = vld [vmem:[%s10 + $0x20] sm:$0xff]
    %v7627 = vld [vmem:[%s10 + $0x28] sm:$0xff]
    %v7628 = vld [vmem:[%s10 + $0x30] sm:$0xff]
    %v7629 = vld [vmem:[%s10 + $0x38] sm:$0xff]
    %v7630 = vld [vmem:[%s10 + $0x40] sm:$0xff]
    %v7631 = vld [vmem:[%s10 + $0x48] sm:$0xff]
    %v7632 = vld [vmem:[%s10 + $0x50] sm:$0xff]
    %v7633 = vld [vmem:[%s10 + $0x58] sm:$0xff]
    %v7634 = vld [vmem:[%s10 + $0x60] sm:$0xff]
    %v7635 = vld [vmem:[%s10 + $0x68] sm:$0xff]
    %v7636 = vld [vmem:[%s10 + $0x70] sm:$0xff]
    %v7637 = vld [vmem:[%s10 + $0x78] sm:$0xff]
    %v7638 = vld [vmem:[%s10 + $0x80] sm:$0xff]
    %v7639 = vld [vmem:[%s10 + $0x88] sm:$0xff]
    %v7640 = vld [vmem:[%s10 + $0x90] sm:$0xff]
    %v7641 = vld [vmem:[%s10 + $0x98] sm:$0xff]
    %v7642 = vld [vmem:[%s10 + $0xa0] sm:$0xff]
    %v7643 = vld [vmem:[%s10 + $0xa8] sm:$0xff]
    %v7644 = vld [vmem:[%s10 + $0xb0] sm:$0xff]
    %v7645 = vld [vmem:[%s10 + $0xb8] sm:$0xff]
    %v7646 = vld [vmem:[%s10 + $0xc0] sm:$0xff]
    %v7647 = vld [vmem:[%s10 + $0xc8] sm:$0xff]
    %v7648 = vld [vmem:[%s10 + $0xd0] sm:$0xff]
    %v7649 = vld [vmem:[%s10 + $0xd8] sm:$0xff]
    %v7650 = vld [vmem:[%s10 + $0xe0] sm:$0xff]
    %v7651 = vld [vmem:[%s10 + $0xe8] sm:$0xff]
    %v7652 = vld [vmem:[%s10 + $0xf0] sm:$0xff]
    %v7653 = vld [vmem:[%s10 + $0xf8] sm:$0xff]
    %v7654 = vld [vmem:[%s10 + $0x100] sm:$0xff]
    %v7655 = vld [vmem:[%s10 + $0x108] sm:$0xff]
    %v7656 = vld [vmem:[%s10 + $0x110] sm:$0xff]
    %v7657 = vld [vmem:[%s10 + $0x118] sm:$0xff]
    %v7658 = vld [vmem:[%s10 + $0x120] sm:$0xff]
    %v7659 = vld [vmem:[%s10 + $0x128] sm:$0xff]
    %v7660 = vld [vmem:[%s10 + $0x130] sm:$0xff]
    %v7661 = vld [vmem:[%s10 + $0x138] sm:$0xff]
    %v7662 = vld [vmem:[%s10 + $0x140] sm:$0xff]
    %v7663 = vld [vmem:[%s10 + $0x148] sm:$0xff]
    %v7664 = vld [vmem:[%s10 + $0x150] sm:$0xff]
    %v7665 = vld [vmem:[%s10 + $0x158] sm:$0xff]
    %v7666 = vld [vmem:[%s10 + $0x160] sm:$0xff]
    %v7667 = vld [vmem:[%s10 + $0x168] sm:$0xff]
    %v7668 = vld [vmem:[%s10 + $0x170] sm:$0xff]
    %v7669 = vld [vmem:[%s10 + $0x178] sm:$0xff]
    %v7670 = vld [vmem:[%s10 + $0x180] sm:$0xff]
    %v7671 = vld [vmem:[%s10 + $0x188] sm:$0xff]
    %v7672 = vld [vmem:[%s10 + $0x190] sm:$0xff]
    %v7673 = vld [vmem:[%s10 + $0x198] sm:$0xff]
    %v7674 = vld [vmem:[%s10 + $0x1a0] sm:$0xff]
    %v7675 = vld [vmem:[%s10 + $0x1a8] sm:$0xff]
    %v7676 = vld [vmem:[%s10 + $0x1b0] sm:$0xff]
    %v7677 = vld [vmem:[%s10 + $0x1b8] sm:$0xff]
    %v7678 = vld [vmem:[%s10 + $0x1c0] sm:$0xff]
    %v7679 = vld [vmem:[%s10 + $0x1c8] sm:$0xff]
    %v7680 = vld [vmem:[%s10 + $0x1d0] sm:$0xff]
    %v7681 = vld [vmem:[%s10 + $0x1d8] sm:$0xff]
    %v7682 = vld [vmem:[%s10 + $0x1e0] sm:$0xff]
    %v7683 = vld [vmem:[%s10 + $0x1e8] sm:$0xff]
    %v7684 = vld [vmem:[%s10 + $0x1f0] sm:$0xff]
    %v7685 = vld [vmem:[%s10 + $0x1f8] sm:$0xff]
    %v7686 = vld [vmem:[%s13] sm:$0xf]
    %v7687 = vpack.c.bf16 %v7621, %v7621
    %v7689 = vlaneseq
    %v7690 = vshrl.u32 %v7689, 7
    %v7691 = vsub.s32 0, %v7690
    %v7692 = vrot.slane %v7686, %v7691
    %v7693 = vlaneseq
    %v7694 = vshrl.u32 %v7693, 7
    %v7695 = vsub.s32 1, %v7694
    %v7696 = vrot.slane %v7686, %v7695
    %v7697 = vlaneseq
    %v7698 = vshrl.u32 %v7697, 7
    %v7699 = vsub.s32 2, %v7698
    %v7700 = vrot.slane %v7686, %v7699
    %v7701 = vlaneseq
    %v7702 = vshrl.u32 %v7701, 7
    %v7703 = vsub.s32 3, %v7702
    %v7704 = vrot.slane %v7686, %v7703
    %v7773 = vunpack.c.l.b16 %v7622
    %v7774 = vunpack.c.h.b16 %v7622
    %v7775 = vunpack.c.l.b16 %v7623
    %v7776 = vunpack.c.h.b16 %v7623
    %v7777 = vunpack.c.l.b16 %v7624
    %v7778 = vunpack.c.h.b16 %v7624
    %v7779 = vunpack.c.l.b16 %v7625
    %v7780 = vunpack.c.h.b16 %v7625
    %v7781 = vunpack.c.l.b16 %v7626
    %v7782 = vunpack.c.h.b16 %v7626
    %v7783 = vunpack.c.l.b16 %v7627
    %v7784 = vunpack.c.h.b16 %v7627
    %v7785 = vunpack.c.l.b16 %v7628
    %v7786 = vunpack.c.h.b16 %v7628
    %v7787 = vunpack.c.l.b16 %v7629
    %v7788 = vunpack.c.h.b16 %v7629
    %v7789 = vunpack.c.l.b16 %v7630
    %v7790 = vunpack.c.h.b16 %v7630
    %v7791 = vunpack.c.l.b16 %v7631
    %v7792 = vunpack.c.h.b16 %v7631
    %v7793 = vunpack.c.l.b16 %v7632
    %v7794 = vunpack.c.h.b16 %v7632
    %v7795 = vunpack.c.l.b16 %v7633
    %v7796 = vunpack.c.h.b16 %v7633
    %v7797 = vunpack.c.l.b16 %v7634
    %v7798 = vunpack.c.h.b16 %v7634
    %v7799 = vunpack.c.l.b16 %v7635
    %v7800 = vunpack.c.h.b16 %v7635
    %v7801 = vunpack.c.l.b16 %v7636
    %v7802 = vunpack.c.h.b16 %v7636
    %v7803 = vunpack.c.l.b16 %v7637
    %v7804 = vunpack.c.h.b16 %v7637
    %v7805 = vunpack.c.l.b16 %v7638
    %v7806 = vunpack.c.h.b16 %v7638
    %v7807 = vunpack.c.l.b16 %v7639
    %v7808 = vunpack.c.h.b16 %v7639
    %v7809 = vunpack.c.l.b16 %v7640
    %v7810 = vunpack.c.h.b16 %v7640
    %v7811 = vunpack.c.l.b16 %v7641
    %v7812 = vunpack.c.h.b16 %v7641
    %v7813 = vunpack.c.l.b16 %v7642
    %v7814 = vunpack.c.h.b16 %v7642
    %v7815 = vunpack.c.l.b16 %v7643
    %v7816 = vunpack.c.h.b16 %v7643
    %v7817 = vunpack.c.l.b16 %v7644
    %v7818 = vunpack.c.h.b16 %v7644
    %v7819 = vunpack.c.l.b16 %v7645
    %v7820 = vunpack.c.h.b16 %v7645
    %v7821 = vunpack.c.l.b16 %v7646
    %v7822 = vunpack.c.h.b16 %v7646
    %v7823 = vunpack.c.l.b16 %v7647
    %v7824 = vunpack.c.h.b16 %v7647
    %v7825 = vunpack.c.l.b16 %v7648
    %v7826 = vunpack.c.h.b16 %v7648
    %v7827 = vunpack.c.l.b16 %v7649
    %v7828 = vunpack.c.h.b16 %v7649
    %v7829 = vunpack.c.l.b16 %v7650
    %v7830 = vunpack.c.h.b16 %v7650
    %v7831 = vunpack.c.l.b16 %v7651
    %v7832 = vunpack.c.h.b16 %v7651
    %v7833 = vunpack.c.l.b16 %v7652
    %v7834 = vunpack.c.h.b16 %v7652
    %v7835 = vunpack.c.l.b16 %v7653
    %v7836 = vunpack.c.h.b16 %v7653
    %v7837 = vunpack.c.l.b16 %v7654
    %v7838 = vunpack.c.h.b16 %v7654
    %v7839 = vunpack.c.l.b16 %v7655
    %v7840 = vunpack.c.h.b16 %v7655
    %v7841 = vunpack.c.l.b16 %v7656
    %v7842 = vunpack.c.h.b16 %v7656
    %v7843 = vunpack.c.l.b16 %v7657
    %v7844 = vunpack.c.h.b16 %v7657
    %v7845 = vunpack.c.l.b16 %v7658
    %v7846 = vunpack.c.h.b16 %v7658
    %v7847 = vunpack.c.l.b16 %v7659
    %v7848 = vunpack.c.h.b16 %v7659
    %v7849 = vunpack.c.l.b16 %v7660
    %v7850 = vunpack.c.h.b16 %v7660
    %v7851 = vunpack.c.l.b16 %v7661
    %v7852 = vunpack.c.h.b16 %v7661
    %v7853 = vunpack.c.l.b16 %v7662
    %v7854 = vunpack.c.h.b16 %v7662
    %v7855 = vunpack.c.l.b16 %v7663
    %v7856 = vunpack.c.h.b16 %v7663
    %v7857 = vunpack.c.l.b16 %v7664
    %v7858 = vunpack.c.h.b16 %v7664
    %v7859 = vunpack.c.l.b16 %v7665
    %v7860 = vunpack.c.h.b16 %v7665
    %v7861 = vunpack.c.l.b16 %v7666
    %v7862 = vunpack.c.h.b16 %v7666
    %v7863 = vunpack.c.l.b16 %v7667
    %v7864 = vunpack.c.h.b16 %v7667
    %v7865 = vunpack.c.l.b16 %v7668
    %v7866 = vunpack.c.h.b16 %v7668
    %v7867 = vunpack.c.l.b16 %v7669
    %v7868 = vunpack.c.h.b16 %v7669
    %v7869 = vunpack.c.l.b16 %v7670
    %v7870 = vunpack.c.h.b16 %v7670
    %v7871 = vunpack.c.l.b16 %v7671
    %v7872 = vunpack.c.h.b16 %v7671
    %v7873 = vunpack.c.l.b16 %v7672
    %v7874 = vunpack.c.h.b16 %v7672
    %v7875 = vunpack.c.l.b16 %v7673
    %v7876 = vunpack.c.h.b16 %v7673
    %v7877 = vunpack.c.l.b16 %v7674
    %v7878 = vunpack.c.h.b16 %v7674
    %v7879 = vunpack.c.l.b16 %v7675
    %v7880 = vunpack.c.h.b16 %v7675
    %v7881 = vunpack.c.l.b16 %v7676
    %v7882 = vunpack.c.h.b16 %v7676
    %v7883 = vunpack.c.l.b16 %v7677
    %v7884 = vunpack.c.h.b16 %v7677
    %v7885 = vunpack.c.l.b16 %v7678
    %v7886 = vunpack.c.h.b16 %v7678
    %v7887 = vunpack.c.l.b16 %v7679
    %v7888 = vunpack.c.h.b16 %v7679
    %v7889 = vunpack.c.l.b16 %v7680
    %v7890 = vunpack.c.h.b16 %v7680
    %v7891 = vunpack.c.l.b16 %v7681
    %v7892 = vunpack.c.h.b16 %v7681
    %v7893 = vunpack.c.l.b16 %v7682
    %v7894 = vunpack.c.h.b16 %v7682
    %v7895 = vunpack.c.l.b16 %v7683
    %v7896 = vunpack.c.h.b16 %v7683
    %v7897 = vunpack.c.l.b16 %v7684
    %v7898 = vunpack.c.h.b16 %v7684
    %v7899 = vunpack.c.l.b16 %v7685
    %v7900 = vunpack.c.h.b16 %v7685
    %v7901 = vpack.c.b16 %v7777, %v7773
    %v7902 = vpack.c.b16 %v7778, %v7774
    %v7903 = vpack.c.b16 %v7779, %v7775
    %v7904 = vpack.c.b16 %v7780, %v7776
    %v7905 = vpack.c.b16 %v7785, %v7781
    %v7906 = vpack.c.b16 %v7786, %v7782
    %v7907 = vpack.c.b16 %v7787, %v7783
    %v7908 = vpack.c.b16 %v7788, %v7784
    %v7909 = vpack.c.b16 %v7793, %v7789
    %v7910 = vpack.c.b16 %v7794, %v7790
    %v7911 = vpack.c.b16 %v7795, %v7791
    %v7912 = vpack.c.b16 %v7796, %v7792
    %v7913 = vpack.c.b16 %v7801, %v7797
    %v7914 = vpack.c.b16 %v7802, %v7798
    %v7915 = vpack.c.b16 %v7803, %v7799
    %v7916 = vpack.c.b16 %v7804, %v7800
    %v7917 = vpack.c.b16 %v7809, %v7805
    %v7918 = vpack.c.b16 %v7810, %v7806
    %v7919 = vpack.c.b16 %v7811, %v7807
    %v7920 = vpack.c.b16 %v7812, %v7808
    %v7921 = vpack.c.b16 %v7817, %v7813
    %v7922 = vpack.c.b16 %v7818, %v7814
    %v7923 = vpack.c.b16 %v7819, %v7815
    %v7924 = vpack.c.b16 %v7820, %v7816
    %v7925 = vpack.c.b16 %v7825, %v7821
    %v7926 = vpack.c.b16 %v7826, %v7822
    %v7927 = vpack.c.b16 %v7827, %v7823
    %v7928 = vpack.c.b16 %v7828, %v7824
    %v7929 = vpack.c.b16 %v7833, %v7829
    %v7930 = vpack.c.b16 %v7834, %v7830
    %v7931 = vpack.c.b16 %v7835, %v7831
    %v7932 = vpack.c.b16 %v7836, %v7832
    %v7933 = vpack.c.b16 %v7841, %v7837
    %v7934 = vpack.c.b16 %v7842, %v7838
    %v7935 = vpack.c.b16 %v7843, %v7839
    %v7936 = vpack.c.b16 %v7844, %v7840
    %v7937 = vpack.c.b16 %v7849, %v7845
    %v7938 = vpack.c.b16 %v7850, %v7846
    %v7939 = vpack.c.b16 %v7851, %v7847
    %v7940 = vpack.c.b16 %v7852, %v7848
    %v7941 = vpack.c.b16 %v7857, %v7853
    %v7942 = vpack.c.b16 %v7858, %v7854
    %v7943 = vpack.c.b16 %v7859, %v7855
    %v7944 = vpack.c.b16 %v7860, %v7856
    %v7945 = vpack.c.b16 %v7865, %v7861
    %v7946 = vpack.c.b16 %v7866, %v7862
    %v7947 = vpack.c.b16 %v7867, %v7863
    %v7948 = vpack.c.b16 %v7868, %v7864
    %v7949 = vpack.c.b16 %v7873, %v7869
    %v7950 = vpack.c.b16 %v7874, %v7870
    %v7951 = vpack.c.b16 %v7875, %v7871
    %v7952 = vpack.c.b16 %v7876, %v7872
    %v7953 = vpack.c.b16 %v7881, %v7877
    %v7954 = vpack.c.b16 %v7882, %v7878
    %v7955 = vpack.c.b16 %v7883, %v7879
    %v7956 = vpack.c.b16 %v7884, %v7880
    %v7957 = vpack.c.b16 %v7889, %v7885
    %v7958 = vpack.c.b16 %v7890, %v7886
    %v7959 = vpack.c.b16 %v7891, %v7887
    %v7960 = vpack.c.b16 %v7892, %v7888
    %v7961 = vpack.c.b16 %v7897, %v7893
    %v7962 = vpack.c.b16 %v7898, %v7894
    %v7963 = vpack.c.b16 %v7899, %v7895
    %v7964 = vpack.c.b16 %v7900, %v7896
    %8029 = vmatprep.subr.bf16.mxu0 %v7902
    %8030 = vmatpush1.bf16.msra.mxu0 %v7901
    %8031 = vmatprep.subr.bf16.mxu0 %v7906
    %8032 = vmatpush1.bf16.msra.mxu0 %v7905
    %8033 = vmatprep.subr.bf16.mxu0 %v7910
    %8034 = vmatpush1.bf16.msra.mxu0 %v7909
    %8035 = vmatprep.subr.bf16.mxu0 %v7914
    %8036 = vmatpush1.bf16.msra.mxu0 %v7913
    %8037 = vmatprep.subr.bf16.mxu0 %v7918
    %8038 = vmatpush1.bf16.msra.mxu0 %v7917
    %8039 = vmatprep.subr.bf16.mxu0 %v7922
    %8040 = vmatpush1.bf16.msra.mxu0 %v7921
    %8041 = vmatprep.subr.bf16.mxu0 %v7926
    %8042 = vmatpush1.bf16.msra.mxu0 %v7925
    %8043 = vmatprep.subr.bf16.mxu0 %v7930
    %8044 = vmatpush1.bf16.msra.mxu0 %v7929
    %8045 = vmatprep.subr.bf16.mxu0 %v7934
    %8046 = vmatpush1.bf16.msra.mxu0 %v7933
    %8047 = vmatprep.subr.bf16.mxu0 %v7938
    %8048 = vmatpush1.bf16.msra.mxu0 %v7937
    %8049 = vmatprep.subr.bf16.mxu0 %v7942
    %8050 = vmatpush1.bf16.msra.mxu0 %v7941
    %8051 = vmatprep.subr.bf16.mxu0 %v7946
    %8052 = vmatpush1.bf16.msra.mxu0 %v7945
    %8053 = vmatprep.subr.bf16.mxu0 %v7950
    %8054 = vmatpush1.bf16.msra.mxu0 %v7949
    %8055 = vmatprep.subr.bf16.mxu0 %v7954
    %8056 = vmatpush1.bf16.msra.mxu0 %v7953
    %8057 = vmatprep.subr.bf16.mxu0 %v7958
    %8058 = vmatpush1.bf16.msra.mxu0 %v7957
    %8059 = vmatprep.subr.bf16.mxu0 %v7962
    %8060 = vmatpush1.bf16.msra.mxu0 %v7961
    %8061 = vmatprep.mubr.bf16.mxu0 %v6180
    %8062 = vmatmul.mubr.bf16.gmra.mrb[0].mxu0 %v7687
    %v8063 = vpop.f32.mrb[0].mxu0
    %v8064 = vadd.f32 %v7692, %v8063
    %v8065 = vpop.f32.mrb[0].mxu0
    %v8066 = vadd.f32 %v7696, %v8065
    %v8067 = vpop.f32.mrb[0].mxu0
    %v8068 = vpop.f32.mrb[0].mxu0
    %8069 = vdwg.mxu0
    %8070 = vmatprep.subr.bf16.mxu0 %v7904
    %8071 = vmatpush1.bf16.msra.mxu0 %v7903
    %8072 = vmatprep.subr.bf16.mxu0 %v7908
    %8073 = vmatpush1.bf16.msra.mxu0 %v7907
    %8074 = vmatprep.subr.bf16.mxu0 %v7912
    %8075 = vmatpush1.bf16.msra.mxu0 %v7911
    %8076 = vmatprep.subr.bf16.mxu0 %v7916
    %8077 = vmatpush1.bf16.msra.mxu0 %v7915
    %8078 = vmatprep.subr.bf16.mxu0 %v7920
    %8079 = vmatpush1.bf16.msra.mxu0 %v7919
    %8080 = vmatprep.subr.bf16.mxu0 %v7924
    %8081 = vmatpush1.bf16.msra.mxu0 %v7923
    %8082 = vmatprep.subr.bf16.mxu0 %v7928
    %8083 = vmatpush1.bf16.msra.mxu0 %v7927
    %8084 = vmatprep.subr.bf16.mxu0 %v7932
    %8085 = vmatpush1.bf16.msra.mxu0 %v7931
    %8086 = vmatprep.subr.bf16.mxu0 %v7936
    %8087 = vmatpush1.bf16.msra.mxu0 %v7935
    %8088 = vmatprep.subr.bf16.mxu0 %v7940
    %8089 = vmatpush1.bf16.msra.mxu0 %v7939
    %8090 = vmatprep.subr.bf16.mxu0 %v7944
    %8091 = vmatpush1.bf16.msra.mxu0 %v7943
    %8092 = vmatprep.subr.bf16.mxu0 %v7948
    %8093 = vmatpush1.bf16.msra.mxu0 %v7947
    %8094 = vmatprep.subr.bf16.mxu0 %v7952
    %8095 = vmatpush1.bf16.msra.mxu0 %v7951
    %8096 = vmatprep.subr.bf16.mxu0 %v7956
    %8097 = vmatpush1.bf16.msra.mxu0 %v7955
    %8098 = vmatprep.subr.bf16.mxu0 %v7960
    %8099 = vmatpush1.bf16.msra.mxu0 %v7959
    %8100 = vmatprep.subr.bf16.mxu0 %v7964
    %8101 = vmatpush1.bf16.msra.mxu0 %v7963
    %8102 = vmatprep.mubr.bf16.mxu0 %v6180
    %8103 = vmatmul.mubr.bf16.gmra.mrb[0].mxu0 %v7687
    %v8104 = vpop.f32.mrb[0].mxu0
    %v8105 = vadd.f32 %v7700, %v8104
    %v8106 = vpop.f32.mrb[0].mxu0
    %v8107 = vadd.f32 %v7704, %v8106
    %v8108 = vpop.f32.mrb[0].mxu0
    %v8109 = vpop.f32.mrb[0].mxu0
    %8110 = vdwg.mxu0
    %v8111 = vxor.u32 %v8064, 2147483648
    %v8112 = vmul.f32 %v8111, 1.442695
    %v8113 = vpow.pop %v8112
    %v8114 = vadd.f32 %v8113, 1.0
    %v8115 = vrcp.pop %v8114
    %v8116 = vmul.f32 1.0, %v8115
    %v8117 = vxor.u32 %v8066, 2147483648
    %v8118 = vmul.f32 %v8117, 1.442695
    %v8119 = vpow.pop %v8118
    %v8120 = vadd.f32 %v8119, 1.0
    %v8121 = vrcp.pop %v8120
    %v8122 = vmul.f32 1.0, %v8121
    %v8123 = vtanh.pop %v8105
    %v8124 = vxor.u32 %v8107, 2147483648
    %v8125 = vmul.f32 %v8124, 1.442695
    %v8126 = vpow.pop %v8125
    %v8127 = vadd.f32 %v8126, 1.0
    %v8128 = vrcp.pop %v8127
    %v8129 = vmul.f32 1.0, %v8128
    %v8130 = vmul.f32 %v8122, %v6112
    %v8131 = vmul.f32 %v8116, %v8123
    %v8132 = vadd.f32 %v8130, %v8131
    %v8133 = vtanh.pop %v8132
    %v8134 = vmul.f32 %v8129, %v8133
    %v8135 = vld [vmem:[#allocation6] sm:$0xff]
    %v8136 = vld [vmem:[#allocation6 + $0x8] sm:$0xff]
    %v8137 = vld [vmem:[#allocation6 + $0x10] sm:$0xff]
    %v8138 = vld [vmem:[#allocation6 + $0x18] sm:$0xff]
    %v8139 = vld [vmem:[#allocation6 + $0x20] sm:$0xff]
    %v8140 = vld [vmem:[#allocation6 + $0x28] sm:$0xff]
    %v8141 = vld [vmem:[#allocation6 + $0x30] sm:$0xff]
    %v8142 = vld [vmem:[#allocation6 + $0x38] sm:$0xff]
    %v8143 = vld [vmem:[#allocation6 + $0x40] sm:$0xff]
    %v8144 = vld [vmem:[#allocation6 + $0x48] sm:$0xff]
    %v8145 = vld [vmem:[#allocation6 + $0x50] sm:$0xff]
    %v8146 = vld [vmem:[#allocation6 + $0x58] sm:$0xff]
    %v8147 = vld [vmem:[#allocation6 + $0x60] sm:$0xff]
    %v8148 = vld [vmem:[#allocation6 + $0x68] sm:$0xff]
    %v8149 = vld [vmem:[#allocation6 + $0x70] sm:$0xff]
    %v8150 = vld [vmem:[#allocation6 + $0x78] sm:$0xff]
    %v8151 = vld [vmem:[#allocation6 + $0x80] sm:$0xff]
    %v8152 = vld [vmem:[#allocation6 + $0x88] sm:$0xff]
    %v8153 = vld [vmem:[#allocation6 + $0x90] sm:$0xff]
    %v8154 = vld [vmem:[#allocation6 + $0x98] sm:$0xff]
    %v8155 = vld [vmem:[#allocation6 + $0xa0] sm:$0xff]
    %v8156 = vld [vmem:[#allocation6 + $0xa8] sm:$0xff]
    %v8157 = vld [vmem:[#allocation6 + $0xb0] sm:$0xff]
    %v8158 = vld [vmem:[#allocation6 + $0xb8] sm:$0xff]
    %v8159 = vld [vmem:[#allocation6 + $0xc0] sm:$0xff]
    %v8160 = vld [vmem:[#allocation6 + $0xc8] sm:$0xff]
    %v8161 = vld [vmem:[#allocation6 + $0xd0] sm:$0xff]
    %v8162 = vld [vmem:[#allocation6 + $0xd8] sm:$0xff]
    %v8163 = vld [vmem:[#allocation6 + $0xe0] sm:$0xff]
    %v8164 = vld [vmem:[#allocation6 + $0xe8] sm:$0xff]
    %v8165 = vld [vmem:[#allocation6 + $0xf0] sm:$0xff]
    %v8166 = vld [vmem:[#allocation6 + $0xf8] sm:$0xff]
    %v8167 = vld [vmem:[#allocation6 + $0x100] sm:$0xff]
    %v8168 = vld [vmem:[#allocation6 + $0x108] sm:$0xff]
    %v8169 = vld [vmem:[#allocation6 + $0x110] sm:$0xff]
    %v8170 = vld [vmem:[#allocation6 + $0x118] sm:$0xff]
    %v8171 = vld [vmem:[#allocation6 + $0x120] sm:$0xff]
    %v8172 = vld [vmem:[#allocation6 + $0x128] sm:$0xff]
    %v8173 = vld [vmem:[#allocation6 + $0x130] sm:$0xff]
    %v8174 = vld [vmem:[#allocation6 + $0x138] sm:$0xff]
    %v8175 = vld [vmem:[#allocation6 + $0x140] sm:$0xff]
    %v8176 = vld [vmem:[#allocation6 + $0x148] sm:$0xff]
    %v8177 = vld [vmem:[#allocation6 + $0x150] sm:$0xff]
    %v8178 = vld [vmem:[#allocation6 + $0x158] sm:$0xff]
    %v8179 = vld [vmem:[#allocation6 + $0x160] sm:$0xff]
    %v8180 = vld [vmem:[#allocation6 + $0x168] sm:$0xff]
    %v8181 = vld [vmem:[#allocation6 + $0x170] sm:$0xff]
    %v8182 = vld [vmem:[#allocation6 + $0x178] sm:$0xff]
    %v8183 = vld [vmem:[#allocation6 + $0x180] sm:$0xff]
    %v8184 = vld [vmem:[#allocation6 + $0x188] sm:$0xff]
    %v8185 = vld [vmem:[#allocation6 + $0x190] sm:$0xff]
    %v8186 = vld [vmem:[#allocation6 + $0x198] sm:$0xff]
    %v8187 = vld [vmem:[#allocation6 + $0x1a0] sm:$0xff]
    %v8188 = vld [vmem:[#allocation6 + $0x1a8] sm:$0xff]
    %v8189 = vld [vmem:[#allocation6 + $0x1b0] sm:$0xff]
    %v8190 = vld [vmem:[#allocation6 + $0x1b8] sm:$0xff]
    %v8191 = vld [vmem:[#allocation6 + $0x1c0] sm:$0xff]
    %v8192 = vld [vmem:[#allocation6 + $0x1c8] sm:$0xff]
    %v8193 = vld [vmem:[#allocation6 + $0x1d0] sm:$0xff]
    %v8194 = vld [vmem:[#allocation6 + $0x1d8] sm:$0xff]
    %v8195 = vld [vmem:[#allocation6 + $0x1e0] sm:$0xff]
    %v8196 = vld [vmem:[#allocation6 + $0x1e8] sm:$0xff]
    %v8197 = vld [vmem:[#allocation6 + $0x1f0] sm:$0xff]
    %v8198 = vld [vmem:[#allocation6 + $0x1f8] sm:$0xff]
    %v8199 = vld [vmem:[%s14] sm:$0xf]
    %v8200 = vpack.c.bf16 %v8134, %v8134
    %v8202 = vlaneseq
    %v8203 = vshrl.u32 %v8202, 7
    %v8204 = vsub.s32 0, %v8203
    %v8205 = vrot.slane %v8199, %v8204
    %v8206 = vlaneseq
    %v8207 = vshrl.u32 %v8206, 7
    %v8208 = vsub.s32 1, %v8207
    %v8209 = vrot.slane %v8199, %v8208
    %v8210 = vlaneseq
    %v8211 = vshrl.u32 %v8210, 7
    %v8212 = vsub.s32 2, %v8211
    %v8213 = vrot.slane %v8199, %v8212
    %v8214 = vlaneseq
    %v8215 = vshrl.u32 %v8214, 7
    %v8216 = vsub.s32 3, %v8215
    %v8217 = vrot.slane %v8199, %v8216
    %v8286 = vunpack.c.l.b16 %v8135
    %v8287 = vunpack.c.h.b16 %v8135
    %v8288 = vunpack.c.l.b16 %v8136
    %v8289 = vunpack.c.h.b16 %v8136
    %v8290 = vunpack.c.l.b16 %v8137
    %v8291 = vunpack.c.h.b16 %v8137
    %v8292 = vunpack.c.l.b16 %v8138
    %v8293 = vunpack.c.h.b16 %v8138
    %v8294 = vunpack.c.l.b16 %v8139
    %v8295 = vunpack.c.h.b16 %v8139
    %v8296 = vunpack.c.l.b16 %v8140
    %v8297 = vunpack.c.h.b16 %v8140
    %v8298 = vunpack.c.l.b16 %v8141
    %v8299 = vunpack.c.h.b16 %v8141
    %v8300 = vunpack.c.l.b16 %v8142
    %v8301 = vunpack.c.h.b16 %v8142
    %v8302 = vunpack.c.l.b16 %v8143
    %v8303 = vunpack.c.h.b16 %v8143
    %v8304 = vunpack.c.l.b16 %v8144
    %v8305 = vunpack.c.h.b16 %v8144
    %v8306 = vunpack.c.l.b16 %v8145
    %v8307 = vunpack.c.h.b16 %v8145
    %v8308 = vunpack.c.l.b16 %v8146
    %v8309 = vunpack.c.h.b16 %v8146
    %v8310 = vunpack.c.l.b16 %v8147
    %v8311 = vunpack.c.h.b16 %v8147
    %v8312 = vunpack.c.l.b16 %v8148
    %v8313 = vunpack.c.h.b16 %v8148
    %v8314 = vunpack.c.l.b16 %v8149
    %v8315 = vunpack.c.h.b16 %v8149
    %v8316 = vunpack.c.l.b16 %v8150
    %v8317 = vunpack.c.h.b16 %v8150
    %v8318 = vunpack.c.l.b16 %v8151
    %v8319 = vunpack.c.h.b16 %v8151
    %v8320 = vunpack.c.l.b16 %v8152
    %v8321 = vunpack.c.h.b16 %v8152
    %v8322 = vunpack.c.l.b16 %v8153
    %v8323 = vunpack.c.h.b16 %v8153
    %v8324 = vunpack.c.l.b16 %v8154
    %v8325 = vunpack.c.h.b16 %v8154
    %v8326 = vunpack.c.l.b16 %v8155
    %v8327 = vunpack.c.h.b16 %v8155
    %v8328 = vunpack.c.l.b16 %v8156
    %v8329 = vunpack.c.h.b16 %v8156
    %v8330 = vunpack.c.l.b16 %v8157
    %v8331 = vunpack.c.h.b16 %v8157
    %v8332 = vunpack.c.l.b16 %v8158
    %v8333 = vunpack.c.h.b16 %v8158
    %v8334 = vunpack.c.l.b16 %v8159
    %v8335 = vunpack.c.h.b16 %v8159
    %v8336 = vunpack.c.l.b16 %v8160
    %v8337 = vunpack.c.h.b16 %v8160
    %v8338 = vunpack.c.l.b16 %v8161
    %v8339 = vunpack.c.h.b16 %v8161
    %v8340 = vunpack.c.l.b16 %v8162
    %v8341 = vunpack.c.h.b16 %v8162
    %v8342 = vunpack.c.l.b16 %v8163
    %v8343 = vunpack.c.h.b16 %v8163
    %v8344 = vunpack.c.l.b16 %v8164
    %v8345 = vunpack.c.h.b16 %v8164
    %v8346 = vunpack.c.l.b16 %v8165
    %v8347 = vunpack.c.h.b16 %v8165
    %v8348 = vunpack.c.l.b16 %v8166
    %v8349 = vunpack.c.h.b16 %v8166
    %v8350 = vunpack.c.l.b16 %v8167
    %v8351 = vunpack.c.h.b16 %v8167
    %v8352 = vunpack.c.l.b16 %v8168
    %v8353 = vunpack.c.h.b16 %v8168
    %v8354 = vunpack.c.l.b16 %v8169
    %v8355 = vunpack.c.h.b16 %v8169
    %v8356 = vunpack.c.l.b16 %v8170
    %v8357 = vunpack.c.h.b16 %v8170
    %v8358 = vunpack.c.l.b16 %v8171
    %v8359 = vunpack.c.h.b16 %v8171
    %v8360 = vunpack.c.l.b16 %v8172
    %v8361 = vunpack.c.h.b16 %v8172
    %v8362 = vunpack.c.l.b16 %v8173
    %v8363 = vunpack.c.h.b16 %v8173
    %v8364 = vunpack.c.l.b16 %v8174
    %v8365 = vunpack.c.h.b16 %v8174
    %v8366 = vunpack.c.l.b16 %v8175
    %v8367 = vunpack.c.h.b16 %v8175
    %v8368 = vunpack.c.l.b16 %v8176
    %v8369 = vunpack.c.h.b16 %v8176
    %v8370 = vunpack.c.l.b16 %v8177
    %v8371 = vunpack.c.h.b16 %v8177
    %v8372 = vunpack.c.l.b16 %v8178
    %v8373 = vunpack.c.h.b16 %v8178
    %v8374 = vunpack.c.l.b16 %v8179
    %v8375 = vunpack.c.h.b16 %v8179
    %v8376 = vunpack.c.l.b16 %v8180
    %v8377 = vunpack.c.h.b16 %v8180
    %v8378 = vunpack.c.l.b16 %v8181
    %v8379 = vunpack.c.h.b16 %v8181
    %v8380 = vunpack.c.l.b16 %v8182
    %v8381 = vunpack.c.h.b16 %v8182
    %v8382 = vunpack.c.l.b16 %v8183
    %v8383 = vunpack.c.h.b16 %v8183
    %v8384 = vunpack.c.l.b16 %v8184
    %v8385 = vunpack.c.h.b16 %v8184
    %v8386 = vunpack.c.l.b16 %v8185
    %v8387 = vunpack.c.h.b16 %v8185
    %v8388 = vunpack.c.l.b16 %v8186
    %v8389 = vunpack.c.h.b16 %v8186
    %v8390 = vunpack.c.l.b16 %v8187
    %v8391 = vunpack.c.h.b16 %v8187
    %v8392 = vunpack.c.l.b16 %v8188
    %v8393 = vunpack.c.h.b16 %v8188
    %v8394 = vunpack.c.l.b16 %v8189
    %v8395 = vunpack.c.h.b16 %v8189
    %v8396 = vunpack.c.l.b16 %v8190
    %v8397 = vunpack.c.h.b16 %v8190
    %v8398 = vunpack.c.l.b16 %v8191
    %v8399 = vunpack.c.h.b16 %v8191
    %v8400 = vunpack.c.l.b16 %v8192
    %v8401 = vunpack.c.h.b16 %v8192
    %v8402 = vunpack.c.l.b16 %v8193
    %v8403 = vunpack.c.h.b16 %v8193
    %v8404 = vunpack.c.l.b16 %v8194
    %v8405 = vunpack.c.h.b16 %v8194
    %v8406 = vunpack.c.l.b16 %v8195
    %v8407 = vunpack.c.h.b16 %v8195
    %v8408 = vunpack.c.l.b16 %v8196
    %v8409 = vunpack.c.h.b16 %v8196
    %v8410 = vunpack.c.l.b16 %v8197
    %v8411 = vunpack.c.h.b16 %v8197
    %v8412 = vunpack.c.l.b16 %v8198
    %v8413 = vunpack.c.h.b16 %v8198
    %v8414 = vpack.c.b16 %v8290, %v8286
    %v8415 = vpack.c.b16 %v8291, %v8287
    %v8416 = vpack.c.b16 %v8292, %v8288
    %v8417 = vpack.c.b16 %v8293, %v8289
    %v8418 = vpack.c.b16 %v8298, %v8294
    %v8419 = vpack.c.b16 %v8299, %v8295
    %v8420 = vpack.c.b16 %v8300, %v8296
    %v8421 = vpack.c.b16 %v8301, %v8297
    %v8422 = vpack.c.b16 %v8306, %v8302
    %v8423 = vpack.c.b16 %v8307, %v8303
    %v8424 = vpack.c.b16 %v8308, %v8304
    %v8425 = vpack.c.b16 %v8309, %v8305
    %v8426 = vpack.c.b16 %v8314, %v8310
    %v8427 = vpack.c.b16 %v8315, %v8311
    %v8428 = vpack.c.b16 %v8316, %v8312
    %v8429 = vpack.c.b16 %v8317, %v8313
    %v8430 = vpack.c.b16 %v8322, %v8318
    %v8431 = vpack.c.b16 %v8323, %v8319
    %v8432 = vpack.c.b16 %v8324, %v8320
    %v8433 = vpack.c.b16 %v8325, %v8321
    %v8434 = vpack.c.b16 %v8330, %v8326
    %v8435 = vpack.c.b16 %v8331, %v8327
    %v8436 = vpack.c.b16 %v8332, %v8328
    %v8437 = vpack.c.b16 %v8333, %v8329
    %v8438 = vpack.c.b16 %v8338, %v8334
    %v8439 = vpack.c.b16 %v8339, %v8335
    %v8440 = vpack.c.b16 %v8340, %v8336
    %v8441 = vpack.c.b16 %v8341, %v8337
    %v8442 = vpack.c.b16 %v8346, %v8342
    %v8443 = vpack.c.b16 %v8347, %v8343
    %v8444 = vpack.c.b16 %v8348, %v8344
    %v8445 = vpack.c.b16 %v8349, %v8345
    %v8446 = vpack.c.b16 %v8354, %v8350
    %v8447 = vpack.c.b16 %v8355, %v8351
    %v8448 = vpack.c.b16 %v8356, %v8352
    %v8449 = vpack.c.b16 %v8357, %v8353
    %v8450 = vpack.c.b16 %v8362, %v8358
    %v8451 = vpack.c.b16 %v8363, %v8359
    %v8452 = vpack.c.b16 %v8364, %v8360
    %v8453 = vpack.c.b16 %v8365, %v8361
    %v8454 = vpack.c.b16 %v8370, %v8366
    %v8455 = vpack.c.b16 %v8371, %v8367
    %v8456 = vpack.c.b16 %v8372, %v8368
    %v8457 = vpack.c.b16 %v8373, %v8369
    %v8458 = vpack.c.b16 %v8378, %v8374
    %v8459 = vpack.c.b16 %v8379, %v8375
    %v8460 = vpack.c.b16 %v8380, %v8376
    %v8461 = vpack.c.b16 %v8381, %v8377
    %v8462 = vpack.c.b16 %v8386, %v8382
    %v8463 = vpack.c.b16 %v8387, %v8383
    %v8464 = vpack.c.b16 %v8388, %v8384
    %v8465 = vpack.c.b16 %v8389, %v8385
    %v8466 = vpack.c.b16 %v8394, %v8390
    %v8467 = vpack.c.b16 %v8395, %v8391
    %v8468 = vpack.c.b16 %v8396, %v8392
    %v8469 = vpack.c.b16 %v8397, %v8393
    %v8470 = vpack.c.b16 %v8402, %v8398
    %v8471 = vpack.c.b16 %v8403, %v8399
    %v8472 = vpack.c.b16 %v8404, %v8400
    %v8473 = vpack.c.b16 %v8405, %v8401
    %v8474 = vpack.c.b16 %v8410, %v8406
    %v8475 = vpack.c.b16 %v8411, %v8407
    %v8476 = vpack.c.b16 %v8412, %v8408
    %v8477 = vpack.c.b16 %v8413, %v8409
    %8542 = vmatprep.subr.bf16.mxu0 %v8415
    %8543 = vmatpush1.bf16.msra.mxu0 %v8414
    %8544 = vmatprep.subr.bf16.mxu0 %v8419
    %8545 = vmatpush1.bf16.msra.mxu0 %v8418
    %8546 = vmatprep.subr.bf16.mxu0 %v8423
    %8547 = vmatpush1.bf16.msra.mxu0 %v8422
    %8548 = vmatprep.subr.bf16.mxu0 %v8427
    %8549 = vmatpush1.bf16.msra.mxu0 %v8426
    %8550 = vmatprep.subr.bf16.mxu0 %v8431
    %8551 = vmatpush1.bf16.msra.mxu0 %v8430
    %8552 = vmatprep.subr.bf16.mxu0 %v8435
    %8553 = vmatpush1.bf16.msra.mxu0 %v8434
    %8554 = vmatprep.subr.bf16.mxu0 %v8439
    %8555 = vmatpush1.bf16.msra.mxu0 %v8438
    %8556 = vmatprep.subr.bf16.mxu0 %v8443
    %8557 = vmatpush1.bf16.msra.mxu0 %v8442
    %8558 = vmatprep.subr.bf16.mxu0 %v8447
    %8559 = vmatpush1.bf16.msra.mxu0 %v8446
    %8560 = vmatprep.subr.bf16.mxu0 %v8451
    %8561 = vmatpush1.bf16.msra.mxu0 %v8450
    %8562 = vmatprep.subr.bf16.mxu0 %v8455
    %8563 = vmatpush1.bf16.msra.mxu0 %v8454
    %8564 = vmatprep.subr.bf16.mxu0 %v8459
    %8565 = vmatpush1.bf16.msra.mxu0 %v8458
    %8566 = vmatprep.subr.bf16.mxu0 %v8463
    %8567 = vmatpush1.bf16.msra.mxu0 %v8462
    %8568 = vmatprep.subr.bf16.mxu0 %v8467
    %8569 = vmatpush1.bf16.msra.mxu0 %v8466
    %8570 = vmatprep.subr.bf16.mxu0 %v8471
    %8571 = vmatpush1.bf16.msra.mxu0 %v8470
    %8572 = vmatprep.subr.bf16.mxu0 %v8475
    %8573 = vmatpush1.bf16.msra.mxu0 %v8474
    %8574 = vmatprep.mubr.bf16.mxu0 %v6628
    %8575 = vmatmul.mubr.bf16.gmra.mrb[0].mxu0 %v8200
    %v8576 = vpop.f32.mrb[0].mxu0
    %v8577 = vadd.f32 %v8205, %v8576
    %v8578 = vpop.f32.mrb[0].mxu0
    %v8579 = vadd.f32 %v8209, %v8578
    %v8580 = vpop.f32.mrb[0].mxu0
    %v8581 = vpop.f32.mrb[0].mxu0
    %8582 = vdwg.mxu0
    %8583 = vmatprep.subr.bf16.mxu0 %v8417
    %8584 = vmatpush1.bf16.msra.mxu0 %v8416
    %8585 = vmatprep.subr.bf16.mxu0 %v8421
    %8586 = vmatpush1.bf16.msra.mxu0 %v8420
    %8587 = vmatprep.subr.bf16.mxu0 %v8425
    %8588 = vmatpush1.bf16.msra.mxu0 %v8424
    %8589 = vmatprep.subr.bf16.mxu0 %v8429
    %8590 = vmatpush1.bf16.msra.mxu0 %v8428
    %8591 = vmatprep.subr.bf16.mxu0 %v8433
    %8592 = vmatpush1.bf16.msra.mxu0 %v8432
    %8593 = vmatprep.subr.bf16.mxu0 %v8437
    %8594 = vmatpush1.bf16.msra.mxu0 %v8436
    %8595 = vmatprep.subr.bf16.mxu0 %v8441
    %8596 = vmatpush1.bf16.msra.mxu0 %v8440
    %8597 = vmatprep.subr.bf16.mxu0 %v8445
    %8598 = vmatpush1.bf16.msra.mxu0 %v8444
    %8599 = vmatprep.subr.bf16.mxu0 %v8449
    %8600 = vmatpush1.bf16.msra.mxu0 %v8448
    %8601 = vmatprep.subr.bf16.mxu0 %v8453
    %8602 = vmatpush1.bf16.msra.mxu0 %v8452
    %8603 = vmatprep.subr.bf16.mxu0 %v8457
    %8604 = vmatpush1.bf16.msra.mxu0 %v8456
    %8605 = vmatprep.subr.bf16.mxu0 %v8461
    %8606 = vmatpush1.bf16.msra.mxu0 %v8460
    %8607 = vmatprep.subr.bf16.mxu0 %v8465
    %8608 = vmatpush1.bf16.msra.mxu0 %v8464
    %8609 = vmatprep.subr.bf16.mxu0 %v8469
    %8610 = vmatpush1.bf16.msra.mxu0 %v8468
    %8611 = vmatprep.subr.bf16.mxu0 %v8473
    %8612 = vmatpush1.bf16.msra.mxu0 %v8472
    %8613 = vmatprep.subr.bf16.mxu0 %v8477
    %8614 = vmatpush1.bf16.msra.mxu0 %v8476
    %8615 = vmatprep.mubr.bf16.mxu0 %v6628
    %8616 = vmatmul.mubr.bf16.gmra.mrb[0].mxu0 %v8200
    %v8617 = vpop.f32.mrb[0].mxu0
    %v8618 = vadd.f32 %v8213, %v8617
    %v8619 = vpop.f32.mrb[0].mxu0
    %v8620 = vadd.f32 %v8217, %v8619
    %v8621 = vpop.f32.mrb[0].mxu0
    %v8622 = vpop.f32.mrb[0].mxu0
    %8623 = vdwg.mxu0
    %v8624 = vxor.u32 %v8577, 2147483648
    %v8625 = vmul.f32 %v8624, 1.442695
    %v8626 = vpow.pop %v8625
    %v8627 = vadd.f32 %v8626, 1.0
    %v8628 = vrcp.pop %v8627
    %v8629 = vmul.f32 1.0, %v8628
    %v8630 = vxor.u32 %v8579, 2147483648
    %v8631 = vmul.f32 %v8630, 1.442695
    %v8632 = vpow.pop %v8631
    %v8633 = vadd.f32 %v8632, 1.0
    %v8634 = vrcp.pop %v8633
    %v8635 = vmul.f32 1.0, %v8634
    %v8636 = vtanh.pop %v8618
    %v8637 = vxor.u32 %v8620, 2147483648
    %v8638 = vmul.f32 %v8637, 1.442695
    %v8639 = vpow.pop %v8638
    %v8640 = vadd.f32 %v8639, 1.0
    %v8641 = vrcp.pop %v8640
    %v8642 = vmul.f32 1.0, %v8641
    %v8643 = vmul.f32 %v8635, %v6625
    %v8644 = vmul.f32 %v8629, %v8636
    %v8645 = vadd.f32 %v8643, %v8644
    %v8646 = vtanh.pop %v8645
    %v8647 = vmul.f32 %v8642, %v8646
    %v8648 = vpack.c.bf16 %v8647, %v8647
    %v8649 = vld [vmem:[%s16] sm:$0xff]
    %v8650 = vld [vmem:[%s16 + $0x8] sm:$0xff]
    %v8651 = vld [vmem:[%s16 + $0x10] sm:$0xff]
    %v8652 = vld [vmem:[%s16 + $0x18] sm:$0xff]
    %v8653 = vld [vmem:[%s16 + $0x20] sm:$0xff]
    %v8654 = vld [vmem:[%s16 + $0x28] sm:$0xff]
    %v8655 = vld [vmem:[%s16 + $0x30] sm:$0xff]
    %v8656 = vld [vmem:[%s16 + $0x38] sm:$0xff]
    %v8657 = vld [vmem:[%s16 + $0x40] sm:$0xff]
    %v8658 = vld [vmem:[%s16 + $0x48] sm:$0xff]
    %v8659 = vld [vmem:[%s16 + $0x50] sm:$0xff]
    %v8660 = vld [vmem:[%s16 + $0x58] sm:$0xff]
    %v8661 = vld [vmem:[%s16 + $0x60] sm:$0xff]
    %v8662 = vld [vmem:[%s16 + $0x68] sm:$0xff]
    %v8663 = vld [vmem:[%s16 + $0x70] sm:$0xff]
    %v8664 = vld [vmem:[%s16 + $0x78] sm:$0xff]
    %v8665 = vld [vmem:[%s17] sm:$0x3]
    %v8667 = vlaneseq
    %v8668 = vshrl.u32 %v8667, 7
    %v8669 = vsub.s32 0, %v8668
    %v8670 = vrot.slane %v8665, %v8669
    %v8671 = vlaneseq
    %v8672 = vshrl.u32 %v8671, 7
    %v8673 = vsub.s32 1, %v8672
    %v8674 = vrot.slane %v8665, %v8673
    %v8693 = vunpack.c.l.b16 %v8649
    %v8694 = vunpack.c.h.b16 %v8649
    %v8695 = vunpack.c.l.b16 %v8650
    %v8696 = vunpack.c.h.b16 %v8650
    %v8697 = vunpack.c.l.b16 %v8651
    %v8698 = vunpack.c.h.b16 %v8651
    %v8699 = vunpack.c.l.b16 %v8652
    %v8700 = vunpack.c.h.b16 %v8652
    %v8701 = vunpack.c.l.b16 %v8653
    %v8702 = vunpack.c.h.b16 %v8653
    %v8703 = vunpack.c.l.b16 %v8654
    %v8704 = vunpack.c.h.b16 %v8654
    %v8705 = vunpack.c.l.b16 %v8655
    %v8706 = vunpack.c.h.b16 %v8655
    %v8707 = vunpack.c.l.b16 %v8656
    %v8708 = vunpack.c.h.b16 %v8656
    %v8709 = vunpack.c.l.b16 %v8657
    %v8710 = vunpack.c.h.b16 %v8657
    %v8711 = vunpack.c.l.b16 %v8658
    %v8712 = vunpack.c.h.b16 %v8658
    %v8713 = vunpack.c.l.b16 %v8659
    %v8714 = vunpack.c.h.b16 %v8659
    %v8715 = vunpack.c.l.b16 %v8660
    %v8716 = vunpack.c.h.b16 %v8660
    %v8717 = vunpack.c.l.b16 %v8661
    %v8718 = vunpack.c.h.b16 %v8661
    %v8719 = vunpack.c.l.b16 %v8662
    %v8720 = vunpack.c.h.b16 %v8662
    %v8721 = vunpack.c.l.b16 %v8663
    %v8722 = vunpack.c.h.b16 %v8663
    %v8723 = vunpack.c.l.b16 %v8664
    %v8724 = vunpack.c.h.b16 %v8664
    %v8725 = vpack.c.b16 %v8695, %v8693
    %v8726 = vpack.c.b16 %v8696, %v8694
    %v8727 = vpack.c.b16 %v8699, %v8697
    %v8728 = vpack.c.b16 %v8700, %v8698
    %v8729 = vpack.c.b16 %v8703, %v8701
    %v8730 = vpack.c.b16 %v8704, %v8702
    %v8731 = vpack.c.b16 %v8707, %v8705
    %v8732 = vpack.c.b16 %v8708, %v8706
    %v8733 = vpack.c.b16 %v8711, %v8709
    %v8734 = vpack.c.b16 %v8712, %v8710
    %v8735 = vpack.c.b16 %v8715, %v8713
    %v8736 = vpack.c.b16 %v8716, %v8714
    %v8737 = vpack.c.b16 %v8719, %v8717
    %v8738 = vpack.c.b16 %v8720, %v8718
    %v8739 = vpack.c.b16 %v8723, %v8721
    %v8740 = vpack.c.b16 %v8724, %v8722
    %8757 = vmatprep.subr.bf16.mxu0 %v8726
    %8758 = vmatpush1.bf16.msra.mxu0 %v8725
    %8759 = vmatprep.subr.bf16.mxu0 %v8728
    %8760 = vmatpush1.bf16.msra.mxu0 %v8727
    %8761 = vmatprep.subr.bf16.mxu0 %v8730
    %8762 = vmatpush1.bf16.msra.mxu0 %v8729
    %8763 = vmatprep.subr.bf16.mxu0 %v8732
    %8764 = vmatpush1.bf16.msra.mxu0 %v8731
    %8765 = vmatprep.subr.bf16.mxu0 %v8734
    %8766 = vmatpush1.bf16.msra.mxu0 %v8733
    %8767 = vmatprep.subr.bf16.mxu0 %v8736
    %8768 = vmatpush1.bf16.msra.mxu0 %v8735
    %8769 = vmatprep.subr.bf16.mxu0 %v8738
    %8770 = vmatpush1.bf16.msra.mxu0 %v8737
    %8771 = vmatprep.subr.bf16.mxu0 %v8740
    %8772 = vmatpush1.bf16.msra.mxu0 %v8739
    %8773 = vmatprep.subr.bf16.mxu0 0
    %8774 = vmatpush1.bf16.msra.mxu0 0
    %8775 = vmatprep.subr.bf16.mxu0 0
    %8776 = vmatpush1.bf16.msra.mxu0 0
    %8777 = vmatprep.subr.bf16.mxu0 0
    %8778 = vmatpush1.bf16.msra.mxu0 0
    %8779 = vmatprep.subr.bf16.mxu0 0
    %8780 = vmatpush1.bf16.msra.mxu0 0
    %8781 = vmatprep.subr.bf16.mxu0 0
    %8782 = vmatpush1.bf16.msra.mxu0 0
    %8783 = vmatprep.subr.bf16.mxu0 0
    %8784 = vmatpush1.bf16.msra.mxu0 0
    %8785 = vmatprep.subr.bf16.mxu0 0
    %8786 = vmatpush1.bf16.msra.mxu0 0
    %8787 = vmatprep.subr.bf16.mxu0 0
    %8788 = vmatpush1.bf16.msra.mxu0 0
    %8789 = vmatprep.mubr.bf16.mxu0 0
    %8790 = vmatmul.mubr.bf16.gmra.mrb[0].mxu0 %v8648
    %v8791 = vpop.f32.mrb[0].mxu0
    %v8792 = vadd.f32 %v8670, %v8791
    %v8793 = vpop.f32.mrb[0].mxu0
    %v8794 = vadd.f32 %v8674, %v8793
    %v8795 = vpop.f32.mrb[0].mxu0
    %v8796 = vpop.f32.mrb[0].mxu0
    %8797 = vdwg.mxu0
    %s8798 = scalar_lea.vmem [#allocation7], 48
    %8799 = vst [vmem:[%s8798] sm:$0xff] %v8792
    %8800 = vst [vmem:[%s8798 + $0x8] sm:$0xff] %v8794
    %v8801 = vmax.f32 %v8792, %v8794
    %8802 = vmax.xlane.f32.xlu0 %v8801
    %v8803 = vpop.xlane.xlu0 %8802
    %vm8804 = vcmp.eq.f32.partialorder %v8792, %v8803
    %vm8805 = vcmp.eq.f32.partialorder %v8794, %v8803
    %v8806 = vsel %vm8804, %v3245, 256
    %v8807 = vsel %vm8805, %v3246, 256
    %vm8808 = vcmp.lt.s32.totalorder %v8806, %v8807
    %v8809 = vsel %vm8808, %v8806, %v8807
    %v8810 = vand.u32 %v8809, 65535
    %v8811 = vshra.s32 %v8809, 16
    %v8812 = vcvt.s32.f32 %v8810
    %v8813 = vcvt.s32.f32 %v8811
    %8814 = vmin.xlane.f32.xlu0 %v8813
    %v8815 = vpop.xlane.xlu0 %8814
    %vm8816 = vcmp.eq.f32.partialorder %v8813, %v8815
    %v8817 = vsel %vm8816, %v8812, inf
    %8818 = vmin.xlane.f32.xlu0 %v8817
    %v8819 = vpop.xlane.xlu0 %8818
    %v8820 = vcvt.f32.s32 %v8819
    %v8821 = vcvt.f32.s32 %v8815
    %v8822 = vshll.u32 %v8821, 16
    %v8823 = vadd.s32 %v8822, %v8820
    %vm8824 = vcmp.eq.s32.totalorder %v3245, %v8823
    %vm8825 = vcmp.eq.s32.totalorder %v3246, %v8823
    %v8826 = vsel %vm8824, 1, 0
    %v8827 = vsel %vm8825, 1, 0
    %v8828 = vcvt.s32.f32 %v8826
    %v8829 = vcvt.s32.f32 %v8827
    %v8830 = vpack.c.bf16 %v8828, %v8828
    %v8831 = vpack.c.bf16 %v8829, %v8829
    %v8832 = vld [vmem:[%s9] sm:$0xff]
    %v8833 = vld [vmem:[%s9 + $0x8] sm:$0xff]
    %v8834 = vld [vmem:[%s9 + $0x10] sm:$0xff]
    %v8835 = vld [vmem:[%s9 + $0x18] sm:$0xff]
    %v8836 = vld [vmem:[%s9 + $0x20] sm:$0xff]
    %v8837 = vld [vmem:[%s9 + $0x28] sm:$0xff]
    %v8838 = vld [vmem:[%s9 + $0x30] sm:$0xff]
    %v8839 = vld [vmem:[%s9 + $0x38] sm:$0xff]
    %v8840 = vld [vmem:[%s9 + $0x40] sm:$0xff]
    %v8841 = vld [vmem:[%s9 + $0x48] sm:$0xff]
    %v8842 = vld [vmem:[%s9 + $0x50] sm:$0xff]
    %v8843 = vld [vmem:[%s9 + $0x58] sm:$0xff]
    %v8844 = vld [vmem:[%s9 + $0x60] sm:$0xff]
    %v8845 = vld [vmem:[%s9 + $0x68] sm:$0xff]
    %v8846 = vld [vmem:[%s9 + $0x70] sm:$0xff]
    %v8847 = vld [vmem:[%s9 + $0x78] sm:$0xff]
    %v8848 = vld [vmem:[%s9 + $0x80] sm:$0xff]
    %v8849 = vld [vmem:[%s9 + $0x88] sm:$0xff]
    %v8850 = vld [vmem:[%s9 + $0x90] sm:$0xff]
    %v8851 = vld [vmem:[%s9 + $0x98] sm:$0xff]
    %v8852 = vld [vmem:[%s9 + $0xa0] sm:$0xff]
    %v8853 = vld [vmem:[%s9 + $0xa8] sm:$0xff]
    %v8854 = vld [vmem:[%s9 + $0xb0] sm:$0xff]
    %v8855 = vld [vmem:[%s9 + $0xb8] sm:$0xff]
    %v8856 = vld [vmem:[%s9 + $0xc0] sm:$0xff]
    %v8857 = vld [vmem:[%s9 + $0xc8] sm:$0xff]
    %v8858 = vld [vmem:[%s9 + $0xd0] sm:$0xff]
    %v8859 = vld [vmem:[%s9 + $0xd8] sm:$0xff]
    %v8860 = vld [vmem:[%s9 + $0xe0] sm:$0xff]
    %v8861 = vld [vmem:[%s9 + $0xe8] sm:$0xff]
    %v8862 = vld [vmem:[%s9 + $0xf0] sm:$0xff]
    %v8863 = vld [vmem:[%s9 + $0xf8] sm:$0xff]
    %v8864 = vld [vmem:[%s9 + $0x100] sm:$0xff]
    %v8865 = vld [vmem:[%s9 + $0x108] sm:$0xff]
    %v8866 = vld [vmem:[%s9 + $0x110] sm:$0xff]
    %v8867 = vld [vmem:[%s9 + $0x118] sm:$0xff]
    %v8868 = vld [vmem:[%s9 + $0x120] sm:$0xff]
    %v8869 = vld [vmem:[%s9 + $0x128] sm:$0xff]
    %v8870 = vld [vmem:[%s9 + $0x130] sm:$0xff]
    %v8871 = vld [vmem:[%s9 + $0x138] sm:$0xff]
    %v8872 = vld [vmem:[%s9 + $0x140] sm:$0xff]
    %v8873 = vld [vmem:[%s9 + $0x148] sm:$0xff]
    %v8874 = vld [vmem:[%s9 + $0x150] sm:$0xff]
    %v8875 = vld [vmem:[%s9 + $0x158] sm:$0xff]
    %v8876 = vld [vmem:[%s9 + $0x160] sm:$0xff]
    %v8877 = vld [vmem:[%s9 + $0x168] sm:$0xff]
    %v8878 = vld [vmem:[%s9 + $0x170] sm:$0xff]
    %v8879 = vld [vmem:[%s9 + $0x178] sm:$0xff]
    %v8880 = vld [vmem:[%s9 + $0x180] sm:$0xff]
    %v8881 = vld [vmem:[%s9 + $0x188] sm:$0xff]
    %v8882 = vld [vmem:[%s9 + $0x190] sm:$0xff]
    %v8883 = vld [vmem:[%s9 + $0x198] sm:$0xff]
    %v8884 = vld [vmem:[%s9 + $0x1a0] sm:$0xff]
    %v8885 = vld [vmem:[%s9 + $0x1a8] sm:$0xff]
    %v8886 = vld [vmem:[%s9 + $0x1b0] sm:$0xff]
    %v8887 = vld [vmem:[%s9 + $0x1b8] sm:$0xff]
    %v8888 = vld [vmem:[%s9 + $0x1c0] sm:$0xff]
    %v8889 = vld [vmem:[%s9 + $0x1c8] sm:$0xff]
    %v8890 = vld [vmem:[%s9 + $0x1d0] sm:$0xff]
    %v8891 = vld [vmem:[%s9 + $0x1d8] sm:$0xff]
    %v8892 = vld [vmem:[%s9 + $0x1e0] sm:$0xff]
    %v8893 = vld [vmem:[%s9 + $0x1e8] sm:$0xff]
    %v8894 = vld [vmem:[%s9 + $0x1f0] sm:$0xff]
    %v8895 = vld [vmem:[%s9 + $0x1f8] sm:$0xff]
    %v8960 = vunpack.c.l.b16 %v8832
    %v8961 = vunpack.c.h.b16 %v8832
    %v8962 = vunpack.c.l.b16 %v8833
    %v8963 = vunpack.c.h.b16 %v8833
    %v8964 = vunpack.c.l.b16 %v8834
    %v8965 = vunpack.c.h.b16 %v8834
    %v8966 = vunpack.c.l.b16 %v8835
    %v8967 = vunpack.c.h.b16 %v8835
    %v8968 = vunpack.c.l.b16 %v8836
    %v8969 = vunpack.c.h.b16 %v8836
    %v8970 = vunpack.c.l.b16 %v8837
    %v8971 = vunpack.c.h.b16 %v8837
    %v8972 = vunpack.c.l.b16 %v8838
    %v8973 = vunpack.c.h.b16 %v8838
    %v8974 = vunpack.c.l.b16 %v8839
    %v8975 = vunpack.c.h.b16 %v8839
    %v8976 = vunpack.c.l.b16 %v8840
    %v8977 = vunpack.c.h.b16 %v8840
    %v8978 = vunpack.c.l.b16 %v8841
    %v8979 = vunpack.c.h.b16 %v8841
    %v8980 = vunpack.c.l.b16 %v8842
    %v8981 = vunpack.c.h.b16 %v8842
    %v8982 = vunpack.c.l.b16 %v8843
    %v8983 = vunpack.c.h.b16 %v8843
    %v8984 = vunpack.c.l.b16 %v8844
    %v8985 = vunpack.c.h.b16 %v8844
    %v8986 = vunpack.c.l.b16 %v8845
    %v8987 = vunpack.c.h.b16 %v8845
    %v8988 = vunpack.c.l.b16 %v8846
    %v8989 = vunpack.c.h.b16 %v8846
    %v8990 = vunpack.c.l.b16 %v8847
    %v8991 = vunpack.c.h.b16 %v8847
    %v8992 = vunpack.c.l.b16 %v8848
    %v8993 = vunpack.c.h.b16 %v8848
    %v8994 = vunpack.c.l.b16 %v8849
    %v8995 = vunpack.c.h.b16 %v8849
    %v8996 = vunpack.c.l.b16 %v8850
    %v8997 = vunpack.c.h.b16 %v8850
    %v8998 = vunpack.c.l.b16 %v8851
    %v8999 = vunpack.c.h.b16 %v8851
    %v9000 = vunpack.c.l.b16 %v8852
    %v9001 = vunpack.c.h.b16 %v8852
    %v9002 = vunpack.c.l.b16 %v8853
    %v9003 = vunpack.c.h.b16 %v8853
    %v9004 = vunpack.c.l.b16 %v8854
    %v9005 = vunpack.c.h.b16 %v8854
    %v9006 = vunpack.c.l.b16 %v8855
    %v9007 = vunpack.c.h.b16 %v8855
    %v9008 = vunpack.c.l.b16 %v8856
    %v9009 = vunpack.c.h.b16 %v8856
    %v9010 = vunpack.c.l.b16 %v8857
    %v9011 = vunpack.c.h.b16 %v8857
    %v9012 = vunpack.c.l.b16 %v8858
    %v9013 = vunpack.c.h.b16 %v8858
    %v9014 = vunpack.c.l.b16 %v8859
    %v9015 = vunpack.c.h.b16 %v8859
    %v9016 = vunpack.c.l.b16 %v8860
    %v9017 = vunpack.c.h.b16 %v8860
    %v9018 = vunpack.c.l.b16 %v8861
    %v9019 = vunpack.c.h.b16 %v8861
    %v9020 = vunpack.c.l.b16 %v8862
    %v9021 = vunpack.c.h.b16 %v8862
    %v9022 = vunpack.c.l.b16 %v8863
    %v9023 = vunpack.c.h.b16 %v8863
    %v9024 = vunpack.c.l.b16 %v8864
    %v9025 = vunpack.c.h.b16 %v8864
    %v9026 = vunpack.c.l.b16 %v8865
    %v9027 = vunpack.c.h.b16 %v8865
    %v9028 = vunpack.c.l.b16 %v8866
    %v9029 = vunpack.c.h.b16 %v8866
    %v9030 = vunpack.c.l.b16 %v8867
    %v9031 = vunpack.c.h.b16 %v8867
    %v9032 = vunpack.c.l.b16 %v8868
    %v9033 = vunpack.c.h.b16 %v8868
    %v9034 = vunpack.c.l.b16 %v8869
    %v9035 = vunpack.c.h.b16 %v8869
    %v9036 = vunpack.c.l.b16 %v8870
    %v9037 = vunpack.c.h.b16 %v8870
    %v9038 = vunpack.c.l.b16 %v8871
    %v9039 = vunpack.c.h.b16 %v8871
    %v9040 = vunpack.c.l.b16 %v8872
    %v9041 = vunpack.c.h.b16 %v8872
    %v9042 = vunpack.c.l.b16 %v8873
    %v9043 = vunpack.c.h.b16 %v8873
    %v9044 = vunpack.c.l.b16 %v8874
    %v9045 = vunpack.c.h.b16 %v8874
    %v9046 = vunpack.c.l.b16 %v8875
    %v9047 = vunpack.c.h.b16 %v8875
    %v9048 = vunpack.c.l.b16 %v8876
    %v9049 = vunpack.c.h.b16 %v8876
    %v9050 = vunpack.c.l.b16 %v8877
    %v9051 = vunpack.c.h.b16 %v8877
    %v9052 = vunpack.c.l.b16 %v8878
    %v9053 = vunpack.c.h.b16 %v8878
    %v9054 = vunpack.c.l.b16 %v8879
    %v9055 = vunpack.c.h.b16 %v8879
    %v9056 = vunpack.c.l.b16 %v8880
    %v9057 = vunpack.c.h.b16 %v8880
    %v9058 = vunpack.c.l.b16 %v8881
    %v9059 = vunpack.c.h.b16 %v8881
    %v9060 = vunpack.c.l.b16 %v8882
    %v9061 = vunpack.c.h.b16 %v8882
    %v9062 = vunpack.c.l.b16 %v8883
    %v9063 = vunpack.c.h.b16 %v8883
    %v9064 = vunpack.c.l.b16 %v8884
    %v9065 = vunpack.c.h.b16 %v8884
    %v9066 = vunpack.c.l.b16 %v8885
    %v9067 = vunpack.c.h.b16 %v8885
    %v9068 = vunpack.c.l.b16 %v8886
    %v9069 = vunpack.c.h.b16 %v8886
    %v9070 = vunpack.c.l.b16 %v8887
    %v9071 = vunpack.c.h.b16 %v8887
    %v9072 = vunpack.c.l.b16 %v8888
    %v9073 = vunpack.c.h.b16 %v8888
    %v9074 = vunpack.c.l.b16 %v8889
    %v9075 = vunpack.c.h.b16 %v8889
    %v9076 = vunpack.c.l.b16 %v8890
    %v9077 = vunpack.c.h.b16 %v8890
    %v9078 = vunpack.c.l.b16 %v8891
    %v9079 = vunpack.c.h.b16 %v8891
    %v9080 = vunpack.c.l.b16 %v8892
    %v9081 = vunpack.c.h.b16 %v8892
    %v9082 = vunpack.c.l.b16 %v8893
    %v9083 = vunpack.c.h.b16 %v8893
    %v9084 = vunpack.c.l.b16 %v8894
    %v9085 = vunpack.c.h.b16 %v8894
    %v9086 = vunpack.c.l.b16 %v8895
    %v9087 = vunpack.c.h.b16 %v8895
    %v9088 = vpack.c.b16 %v8964, %v8960
    %v9089 = vpack.c.b16 %v8965, %v8961
    %v9090 = vpack.c.b16 %v8966, %v8962
    %v9091 = vpack.c.b16 %v8967, %v8963
    %v9092 = vpack.c.b16 %v8972, %v8968
    %v9093 = vpack.c.b16 %v8973, %v8969
    %v9094 = vpack.c.b16 %v8974, %v8970
    %v9095 = vpack.c.b16 %v8975, %v8971
    %v9096 = vpack.c.b16 %v8980, %v8976
    %v9097 = vpack.c.b16 %v8981, %v8977
    %v9098 = vpack.c.b16 %v8982, %v8978
    %v9099 = vpack.c.b16 %v8983, %v8979
    %v9100 = vpack.c.b16 %v8988, %v8984
    %v9101 = vpack.c.b16 %v8989, %v8985
    %v9102 = vpack.c.b16 %v8990, %v8986
    %v9103 = vpack.c.b16 %v8991, %v8987
    %v9104 = vpack.c.b16 %v8996, %v8992
    %v9105 = vpack.c.b16 %v8997, %v8993
    %v9106 = vpack.c.b16 %v8998, %v8994
    %v9107 = vpack.c.b16 %v8999, %v8995
    %v9108 = vpack.c.b16 %v9004, %v9000
    %v9109 = vpack.c.b16 %v9005, %v9001
    %v9110 = vpack.c.b16 %v9006, %v9002
    %v9111 = vpack.c.b16 %v9007, %v9003
    %v9112 = vpack.c.b16 %v9012, %v9008
    %v9113 = vpack.c.b16 %v9013, %v9009
    %v9114 = vpack.c.b16 %v9014, %v9010
    %v9115 = vpack.c.b16 %v9015, %v9011
    %v9116 = vpack.c.b16 %v9020, %v9016
    %v9117 = vpack.c.b16 %v9021, %v9017
    %v9118 = vpack.c.b16 %v9022, %v9018
    %v9119 = vpack.c.b16 %v9023, %v9019
    %v9120 = vpack.c.b16 %v9028, %v9024
    %v9121 = vpack.c.b16 %v9029, %v9025
    %v9122 = vpack.c.b16 %v9030, %v9026
    %v9123 = vpack.c.b16 %v9031, %v9027
    %v9124 = vpack.c.b16 %v9036, %v9032
    %v9125 = vpack.c.b16 %v9037, %v9033
    %v9126 = vpack.c.b16 %v9038, %v9034
    %v9127 = vpack.c.b16 %v9039, %v9035
    %v9128 = vpack.c.b16 %v9044, %v9040
    %v9129 = vpack.c.b16 %v9045, %v9041
    %v9130 = vpack.c.b16 %v9046, %v9042
    %v9131 = vpack.c.b16 %v9047, %v9043
    %v9132 = vpack.c.b16 %v9052, %v9048
    %v9133 = vpack.c.b16 %v9053, %v9049
    %v9134 = vpack.c.b16 %v9054, %v9050
    %v9135 = vpack.c.b16 %v9055, %v9051
    %v9136 = vpack.c.b16 %v9060, %v9056
    %v9137 = vpack.c.b16 %v9061, %v9057
    %v9138 = vpack.c.b16 %v9062, %v9058
    %v9139 = vpack.c.b16 %v9063, %v9059
    %v9140 = vpack.c.b16 %v9068, %v9064
    %v9141 = vpack.c.b16 %v9069, %v9065
    %v9142 = vpack.c.b16 %v9070, %v9066
    %v9143 = vpack.c.b16 %v9071, %v9067
    %v9144 = vpack.c.b16 %v9076, %v9072
    %v9145 = vpack.c.b16 %v9077, %v9073
    %v9146 = vpack.c.b16 %v9078, %v9074
    %v9147 = vpack.c.b16 %v9079, %v9075
    %v9148 = vpack.c.b16 %v9084, %v9080
    %v9149 = vpack.c.b16 %v9085, %v9081
    %v9150 = vpack.c.b16 %v9086, %v9082
    %v9151 = vpack.c.b16 %v9087, %v9083
    %9216 = vmatprep.subr.bf16.mxu0 %v9089
    %9217 = vmatpush1.bf16.msra.mxu0 %v9088
    %9218 = vmatprep.subr.bf16.mxu0 %v9093
    %9219 = vmatpush1.bf16.msra.mxu0 %v9092
    %9220 = vmatprep.subr.bf16.mxu0 %v9097
    %9221 = vmatpush1.bf16.msra.mxu0 %v9096
    %9222 = vmatprep.subr.bf16.mxu0 %v9101
    %9223 = vmatpush1.bf16.msra.mxu0 %v9100
    %9224 = vmatprep.subr.bf16.mxu0 %v9105
    %9225 = vmatpush1.bf16.msra.mxu0 %v9104
    %9226 = vmatprep.subr.bf16.mxu0 %v9109
    %9227 = vmatpush1.bf16.msra.mxu0 %v9108
    %9228 = vmatprep.subr.bf16.mxu0 %v9113
    %9229 = vmatpush1.bf16.msra.mxu0 %v9112
    %9230 = vmatprep.subr.bf16.mxu0 %v9117
    %9231 = vmatpush1.bf16.msra.mxu0 %v9116
    %9232 = vmatprep.subr.bf16.mxu0 %v9121
    %9233 = vmatpush1.bf16.msra.mxu0 %v9120
    %9234 = vmatprep.subr.bf16.mxu0 %v9125
    %9235 = vmatpush1.bf16.msra.mxu0 %v9124
    %9236 = vmatprep.subr.bf16.mxu0 %v9129
    %9237 = vmatpush1.bf16.msra.mxu0 %v9128
    %9238 = vmatprep.subr.bf16.mxu0 %v9133
    %9239 = vmatpush1.bf16.msra.mxu0 %v9132
    %9240 = vmatprep.subr.bf16.mxu0 %v9137
    %9241 = vmatpush1.bf16.msra.mxu0 %v9136
    %9242 = vmatprep.subr.bf16.mxu0 %v9141
    %9243 = vmatpush1.bf16.msra.mxu0 %v9140
    %9244 = vmatprep.subr.bf16.mxu0 %v9145
    %9245 = vmatpush1.bf16.msra.mxu0 %v9144
    %9246 = vmatprep.subr.bf16.mxu0 %v9149
    %9247 = vmatpush1.bf16.msra.mxu0 %v9148
    %9248 = vmatprep.mubr.bf16.mxu0 %v8831
    %9249 = vmatmul.mubr.bf16.gmra.mrb[0].mxu0 %v8830
    %v9250 = vpop.f32.mrb[0].mxu0
    %v9251 = vadd.f32 0.0, %v9250
    %v9252 = vpop.f32.mrb[0].mxu0
    %v9253 = vadd.f32 0.0, %v9252
    %v9254 = vpop.f32.mrb[0].mxu0
    %v9255 = vpop.f32.mrb[0].mxu0
    %9256 = vdwg.mxu0
    %9257 = vmatprep.subr.bf16.mxu0 %v9091
    %9258 = vmatpush1.bf16.msra.mxu0 %v9090
    %9259 = vmatprep.subr.bf16.mxu0 %v9095
    %9260 = vmatpush1.bf16.msra.mxu0 %v9094
    %9261 = vmatprep.subr.bf16.mxu0 %v9099
    %9262 = vmatpush1.bf16.msra.mxu0 %v9098
    %9263 = vmatprep.subr.bf16.mxu0 %v9103
    %9264 = vmatpush1.bf16.msra.mxu0 %v9102
    %9265 = vmatprep.subr.bf16.mxu0 %v9107
    %9266 = vmatpush1.bf16.msra.mxu0 %v9106
    %9267 = vmatprep.subr.bf16.mxu0 %v9111
    %9268 = vmatpush1.bf16.msra.mxu0 %v9110
    %9269 = vmatprep.subr.bf16.mxu0 %v9115
    %9270 = vmatpush1.bf16.msra.mxu0 %v9114
    %9271 = vmatprep.subr.bf16.mxu0 %v9119
    %9272 = vmatpush1.bf16.msra.mxu0 %v9118
    %9273 = vmatprep.subr.bf16.mxu0 %v9123
    %9274 = vmatpush1.bf16.msra.mxu0 %v9122
    %9275 = vmatprep.subr.bf16.mxu0 %v9127
    %9276 = vmatpush1.bf16.msra.mxu0 %v9126
    %9277 = vmatprep.subr.bf16.mxu0 %v9131
    %9278 = vmatpush1.bf16.msra.mxu0 %v9130
    %9279 = vmatprep.subr.bf16.mxu0 %v9135
    %9280 = vmatpush1.bf16.msra.mxu0 %v9134
    %9281 = vmatprep.subr.bf16.mxu0 %v9139
    %9282 = vmatpush1.bf16.msra.mxu0 %v9138
    %9283 = vmatprep.subr.bf16.mxu0 %v9143
    %9284 = vmatpush1.bf16.msra.mxu0 %v9142
    %9285 = vmatprep.subr.bf16.mxu0 %v9147
    %9286 = vmatpush1.bf16.msra.mxu0 %v9146
    %9287 = vmatprep.subr.bf16.mxu0 %v9151
    %9288 = vmatpush1.bf16.msra.mxu0 %v9150
    %9289 = vmatprep.mubr.bf16.mxu0 %v8831
    %9290 = vmatmul.mubr.bf16.gmra.mrb[0].mxu0 %v8830
    %v9291 = vpop.f32.mrb[0].mxu0
    %v9292 = vadd.f32 0.0, %v9291
    %v9293 = vpop.f32.mrb[0].mxu0
    %v9294 = vadd.f32 0.0, %v9293
    %v9295 = vpop.f32.mrb[0].mxu0
    %v9296 = vpop.f32.mrb[0].mxu0
    %9297 = vdwg.mxu0
    %s9298 = scalar_lea.vmem %s15, 48
    %v9299 = vld [vmem:[%s9298] sm:$0xff]
    %v9300 = vld [vmem:[%s9298 + $0x8] sm:$0xff]
    %v9301 = vunpack.c.l.bf16 %v9299
    %v9302 = vunpack.c.h.bf16 %v9299
    %v9303 = vunpack.c.l.bf16 %v9300
    %v9304 = vunpack.c.h.bf16 %v9300
    %s9305 = sld [smem:[#allocation2 + $0x3]]
    %p9306 = scmp.ne.s32.totalorder %s9305, 0
    %s9307 = scalar_select %p9306, 1, 0
    %v9308 = vstv %s9307
    %vm9309 = vcmp.eq.s32.totalorder %v9308, 1
    %v9310 = vsel %vm9309, %v9301, %v9251
    %v9311 = vsel %vm9309, %v9302, %v9253
    %v9312 = vsel %vm9309, %v9303, %v9292
    %v9313 = vsel %vm9309, %v9304, %v9294
    %v9314 = vld [vmem:[%s8] sm:$0xff]
    %v9315 = vld [vmem:[%s8 + $0x8] sm:$0xff]
    %v9316 = vld [vmem:[%s8 + $0x10] sm:$0xff]
    %v9317 = vld [vmem:[%s8 + $0x18] sm:$0xff]
    %v9318 = vld [vmem:[%s8 + $0x20] sm:$0xff]
    %v9319 = vld [vmem:[%s8 + $0x28] sm:$0xff]
    %v9320 = vld [vmem:[%s8 + $0x30] sm:$0xff]
    %v9321 = vld [vmem:[%s8 + $0x38] sm:$0xff]
    %v9322 = vld [vmem:[%s8 + $0x40] sm:$0xff]
    %v9323 = vld [vmem:[%s8 + $0x48] sm:$0xff]
    %v9324 = vld [vmem:[%s8 + $0x50] sm:$0xff]
    %v9325 = vld [vmem:[%s8 + $0x58] sm:$0xff]
    %v9326 = vld [vmem:[%s8 + $0x60] sm:$0xff]
    %v9327 = vld [vmem:[%s8 + $0x68] sm:$0xff]
    %v9328 = vld [vmem:[%s8 + $0x70] sm:$0xff]
    %v9329 = vld [vmem:[%s8 + $0x78] sm:$0xff]
    %v9330 = vld [vmem:[%s8 + $0x80] sm:$0xff]
    %v9331 = vld [vmem:[%s8 + $0x88] sm:$0xff]
    %v9332 = vld [vmem:[%s8 + $0x90] sm:$0xff]
    %v9333 = vld [vmem:[%s8 + $0x98] sm:$0xff]
    %v9334 = vld [vmem:[%s8 + $0xa0] sm:$0xff]
    %v9335 = vld [vmem:[%s8 + $0xa8] sm:$0xff]
    %v9336 = vld [vmem:[%s8 + $0xb0] sm:$0xff]
    %v9337 = vld [vmem:[%s8 + $0xb8] sm:$0xff]
    %v9338 = vld [vmem:[%s8 + $0xc0] sm:$0xff]
    %v9339 = vld [vmem:[%s8 + $0xc8] sm:$0xff]
    %v9340 = vld [vmem:[%s8 + $0xd0] sm:$0xff]
    %v9341 = vld [vmem:[%s8 + $0xd8] sm:$0xff]
    %v9342 = vld [vmem:[%s8 + $0xe0] sm:$0xff]
    %v9343 = vld [vmem:[%s8 + $0xe8] sm:$0xff]
    %v9344 = vld [vmem:[%s8 + $0xf0] sm:$0xff]
    %v9345 = vld [vmem:[%s8 + $0xf8] sm:$0xff]
    %v9378 = vunpack.c.l.b16 %v9314
    %v9379 = vunpack.c.h.b16 %v9314
    %v9380 = vunpack.c.l.b16 %v9315
    %v9381 = vunpack.c.h.b16 %v9315
    %v9382 = vunpack.c.l.b16 %v9316
    %v9383 = vunpack.c.h.b16 %v9316
    %v9384 = vunpack.c.l.b16 %v9317
    %v9385 = vunpack.c.h.b16 %v9317
    %v9386 = vunpack.c.l.b16 %v9318
    %v9387 = vunpack.c.h.b16 %v9318
    %v9388 = vunpack.c.l.b16 %v9319
    %v9389 = vunpack.c.h.b16 %v9319
    %v9390 = vunpack.c.l.b16 %v9320
    %v9391 = vunpack.c.h.b16 %v9320
    %v9392 = vunpack.c.l.b16 %v9321
    %v9393 = vunpack.c.h.b16 %v9321
    %v9394 = vunpack.c.l.b16 %v9322
    %v9395 = vunpack.c.h.b16 %v9322
    %v9396 = vunpack.c.l.b16 %v9323
    %v9397 = vunpack.c.h.b16 %v9323
    %v9398 = vunpack.c.l.b16 %v9324
    %v9399 = vunpack.c.h.b16 %v9324
    %v9400 = vunpack.c.l.b16 %v9325
    %v9401 = vunpack.c.h.b16 %v9325
    %v9402 = vunpack.c.l.b16 %v9326
    %v9403 = vunpack.c.h.b16 %v9326
    %v9404 = vunpack.c.l.b16 %v9327
    %v9405 = vunpack.c.h.b16 %v9327
    %v9406 = vunpack.c.l.b16 %v9328
    %v9407 = vunpack.c.h.b16 %v9328
    %v9408 = vunpack.c.l.b16 %v9329
    %v9409 = vunpack.c.h.b16 %v9329
    %v9410 = vunpack.c.l.b16 %v9330
    %v9411 = vunpack.c.h.b16 %v9330
    %v9412 = vunpack.c.l.b16 %v9331
    %v9413 = vunpack.c.h.b16 %v9331
    %v9414 = vunpack.c.l.b16 %v9332
    %v9415 = vunpack.c.h.b16 %v9332
    %v9416 = vunpack.c.l.b16 %v9333
    %v9417 = vunpack.c.h.b16 %v9333
    %v9418 = vunpack.c.l.b16 %v9334
    %v9419 = vunpack.c.h.b16 %v9334
    %v9420 = vunpack.c.l.b16 %v9335
    %v9421 = vunpack.c.h.b16 %v9335
    %v9422 = vunpack.c.l.b16 %v9336
    %v9423 = vunpack.c.h.b16 %v9336
    %v9424 = vunpack.c.l.b16 %v9337
    %v9425 = vunpack.c.h.b16 %v9337
    %v9426 = vunpack.c.l.b16 %v9338
    %v9427 = vunpack.c.h.b16 %v9338
    %v9428 = vunpack.c.l.b16 %v9339
    %v9429 = vunpack.c.h.b16 %v9339
    %v9430 = vunpack.c.l.b16 %v9340
    %v9431 = vunpack.c.h.b16 %v9340
    %v9432 = vunpack.c.l.b16 %v9341
    %v9433 = vunpack.c.h.b16 %v9341
    %v9434 = vunpack.c.l.b16 %v9342
    %v9435 = vunpack.c.h.b16 %v9342
    %v9436 = vunpack.c.l.b16 %v9343
    %v9437 = vunpack.c.h.b16 %v9343
    %v9438 = vunpack.c.l.b16 %v9344
    %v9439 = vunpack.c.h.b16 %v9344
    %v9440 = vunpack.c.l.b16 %v9345
    %v9441 = vunpack.c.h.b16 %v9345
    %v9442 = vpack.c.b16 %v9382, %v9378
    %v9443 = vpack.c.b16 %v9383, %v9379
    %v9444 = vpack.c.b16 %v9384, %v9380
    %v9445 = vpack.c.b16 %v9385, %v9381
    %v9446 = vpack.c.b16 %v9390, %v9386
    %v9447 = vpack.c.b16 %v9391, %v9387
    %v9448 = vpack.c.b16 %v9392, %v9388
    %v9449 = vpack.c.b16 %v9393, %v9389
    %v9450 = vpack.c.b16 %v9398, %v9394
    %v9451 = vpack.c.b16 %v9399, %v9395
    %v9452 = vpack.c.b16 %v9400, %v9396
    %v9453 = vpack.c.b16 %v9401, %v9397
    %v9454 = vpack.c.b16 %v9406, %v9402
    %v9455 = vpack.c.b16 %v9407, %v9403
    %v9456 = vpack.c.b16 %v9408, %v9404
    %v9457 = vpack.c.b16 %v9409, %v9405
    %v9458 = vpack.c.b16 %v9414, %v9410
    %v9459 = vpack.c.b16 %v9415, %v9411
    %v9460 = vpack.c.b16 %v9416, %v9412
    %v9461 = vpack.c.b16 %v9417, %v9413
    %v9462 = vpack.c.b16 %v9422, %v9418
    %v9463 = vpack.c.b16 %v9423, %v9419
    %v9464 = vpack.c.b16 %v9424, %v9420
    %v9465 = vpack.c.b16 %v9425, %v9421
    %v9466 = vpack.c.b16 %v9430, %v9426
    %v9467 = vpack.c.b16 %v9431, %v9427
    %v9468 = vpack.c.b16 %v9432, %v9428
    %v9469 = vpack.c.b16 %v9433, %v9429
    %v9470 = vpack.c.b16 %v9438, %v9434
    %v9471 = vpack.c.b16 %v9439, %v9435
    %v9472 = vpack.c.b16 %v9440, %v9436
    %v9473 = vpack.c.b16 %v9441, %v9437
    %9506 = vmatprep.subr.bf16.mxu0 %v9443
    %9507 = vmatpush1.bf16.msra.mxu0 %v9442
    %9508 = vmatprep.subr.bf16.mxu0 %v9447
    %9509 = vmatpush1.bf16.msra.mxu0 %v9446
    %9510 = vmatprep.subr.bf16.mxu0 %v9451
    %9511 = vmatpush1.bf16.msra.mxu0 %v9450
    %9512 = vmatprep.subr.bf16.mxu0 %v9455
    %9513 = vmatpush1.bf16.msra.mxu0 %v9454
    %9514 = vmatprep.subr.bf16.mxu0 %v9459
    %9515 = vmatpush1.bf16.msra.mxu0 %v9458
    %9516 = vmatprep.subr.bf16.mxu0 %v9463
    %9517 = vmatpush1.bf16.msra.mxu0 %v9462
    %9518 = vmatprep.subr.bf16.mxu0 %v9467
    %9519 = vmatpush1.bf16.msra.mxu0 %v9466
    %9520 = vmatprep.subr.bf16.mxu0 %v9471
    %9521 = vmatpush1.bf16.msra.mxu0 %v9470
    %9522 = vmatprep.subr.bf16.mxu0 0
    %9523 = vmatpush1.bf16.msra.mxu0 0
    %9524 = vmatprep.subr.bf16.mxu0 0
    %9525 = vmatpush1.bf16.msra.mxu0 0
    %9526 = vmatprep.subr.bf16.mxu0 0
    %9527 = vmatpush1.bf16.msra.mxu0 0
    %9528 = vmatprep.subr.bf16.mxu0 0
    %9529 = vmatpush1.bf16.msra.mxu0 0
    %9530 = vmatprep.subr.bf16.mxu0 0
    %9531 = vmatpush1.bf16.msra.mxu0 0
    %9532 = vmatprep.subr.bf16.mxu0 0
    %9533 = vmatpush1.bf16.msra.mxu0 0
    %9534 = vmatprep.subr.bf16.mxu0 0
    %9535 = vmatpush1.bf16.msra.mxu0 0
    %9536 = vmatprep.subr.bf16.mxu0 0
    %9537 = vmatpush1.bf16.msra.mxu0 0
    %9538 = vmatprep.mubr.bf16.mxu0 0
    %9539 = vmatmul.mubr.bf16.gmra.mrb[0].mxu0 %v7687
    %v9540 = vpop.f32.mrb[0].mxu0
    %v9541 = vadd.f32 0.0, %v9540
    %v9542 = vpop.f32.mrb[0].mxu0
    %v9543 = vadd.f32 0.0, %v9542
    %v9544 = vpop.f32.mrb[0].mxu0
    %v9545 = vpop.f32.mrb[0].mxu0
    %9546 = vdwg.mxu0
    %9547 = vmatprep.subr.bf16.mxu0 %v9445
    %9548 = vmatpush1.bf16.msra.mxu0 %v9444
    %9549 = vmatprep.subr.bf16.mxu0 %v9449
    %9550 = vmatpush1.bf16.msra.mxu0 %v9448
    %9551 = vmatprep.subr.bf16.mxu0 %v9453
    %9552 = vmatpush1.bf16.msra.mxu0 %v9452
    %9553 = vmatprep.subr.bf16.mxu0 %v9457
    %9554 = vmatpush1.bf16.msra.mxu0 %v9456
    %9555 = vmatprep.subr.bf16.mxu0 %v9461
    %9556 = vmatpush1.bf16.msra.mxu0 %v9460
    %9557 = vmatprep.subr.bf16.mxu0 %v9465
    %9558 = vmatpush1.bf16.msra.mxu0 %v9464
    %9559 = vmatprep.subr.bf16.mxu0 %v9469
    %9560 = vmatpush1.bf16.msra.mxu0 %v9468
    %9561 = vmatprep.subr.bf16.mxu0 %v9473
    %9562 = vmatpush1.bf16.msra.mxu0 %v9472
    %9563 = vmatprep.subr.bf16.mxu0 0
    %9564 = vmatpush1.bf16.msra.mxu0 0
    %9565 = vmatprep.subr.bf16.mxu0 0
    %9566 = vmatpush1.bf16.msra.mxu0 0
    %9567 = vmatprep.subr.bf16.mxu0 0
    %9568 = vmatpush1.bf16.msra.mxu0 0
    %9569 = vmatprep.subr.bf16.mxu0 0
    %9570 = vmatpush1.bf16.msra.mxu0 0
    %9571 = vmatprep.subr.bf16.mxu0 0
    %9572 = vmatpush1.bf16.msra.mxu0 0
    %9573 = vmatprep.subr.bf16.mxu0 0
    %9574 = vmatpush1.bf16.msra.mxu0 0
    %9575 = vmatprep.subr.bf16.mxu0 0
    %9576 = vmatpush1.bf16.msra.mxu0 0
    %9577 = vmatprep.subr.bf16.mxu0 0
    %9578 = vmatpush1.bf16.msra.mxu0 0
    %9579 = vmatprep.mubr.bf16.mxu0 0
    %9580 = vmatmul.mubr.bf16.gmra.mrb[0].mxu0 %v7687
    %v9581 = vpop.f32.mrb[0].mxu0
    %v9582 = vadd.f32 0.0, %v9581
    %v9583 = vpop.f32.mrb[0].mxu0
    %v9584 = vadd.f32 0.0, %v9583
    %v9585 = vpop.f32.mrb[0].mxu0
    %v9586 = vpop.f32.mrb[0].mxu0
    %9587 = vdwg.mxu0
    %v9588 = vadd.f32 %v9310, %v9541
    %v9589 = vadd.f32 %v9311, %v9543
    %v9590 = vadd.f32 %v9312, %v9582
    %v9591 = vadd.f32 %v9313, %v9584
    %v9592 = vld [vmem:[%s12] sm:$0xf]
    %v9594 = vlaneseq
    %v9595 = vshrl.u32 %v9594, 7
    %v9596 = vsub.s32 0, %v9595
    %v9597 = vrot.slane %v9592, %v9596
    %v9598 = vlaneseq
    %v9599 = vshrl.u32 %v9598, 7
    %v9600 = vsub.s32 1, %v9599
    %v9601 = vrot.slane %v9592, %v9600
    %v9602 = vlaneseq
    %v9603 = vshrl.u32 %v9602, 7
    %v9604 = vsub.s32 2, %v9603
    %v9605 = vrot.slane %v9592, %v9604
    %v9606 = vlaneseq
    %v9607 = vshrl.u32 %v9606, 7
    %v9608 = vsub.s32 3, %v9607
    %v9609 = vrot.slane %v9592, %v9608
    %v9614 = vadd.f32 %v9588, %v9597
    %v9615 = vadd.f32 %v9589, %v9601
    %v9616 = vadd.f32 %v9590, %v9605
    %v9617 = vadd.f32 %v9591, %v9609
    %v9618 = vxor.u32 %v9614, 2147483648
    %v9619 = vmul.f32 %v9618, 1.442695
    %v9620 = vpow.pop %v9619
    %v9621 = vadd.f32 %v9620, 1.0
    %v9622 = vrcp.pop %v9621
    %v9623 = vmul.f32 1.0, %v9622
    %v9624 = vxor.u32 %v9615, 2147483648
    %v9625 = vmul.f32 %v9624, 1.442695
    %v9626 = vpow.pop %v9625
    %v9627 = vadd.f32 %v9626, 1.0
    %v9628 = vrcp.pop %v9627
    %v9629 = vmul.f32 1.0, %v9628
    %v9630 = vtanh.pop %v9616
    %v9631 = vxor.u32 %v9617, 2147483648
    %v9632 = vmul.f32 %v9631, 1.442695
    %v9633 = vpow.pop %v9632
    %v9634 = vadd.f32 %v9633, 1.0
    %v9635 = vrcp.pop %v9634
    %v9636 = vmul.f32 1.0, %v9635
    %v9637 = vmul.f32 %v9629, %v7619
    %v9638 = vmul.f32 %v9623, %v9630
    %v9639 = vadd.f32 %v9637, %v9638
    %v9640 = vtanh.pop %v9639
    %v9641 = vmul.f32 %v9636, %v9640
    %v9642 = vld [vmem:[%s10] sm:$0xff]
    %v9643 = vld [vmem:[%s10 + $0x8] sm:$0xff]
    %v9644 = vld [vmem:[%s10 + $0x10] sm:$0xff]
    %v9645 = vld [vmem:[%s10 + $0x18] sm:$0xff]
    %v9646 = vld [vmem:[%s10 + $0x20] sm:$0xff]
    %v9647 = vld [vmem:[%s10 + $0x28] sm:$0xff]
    %v9648 = vld [vmem:[%s10 + $0x30] sm:$0xff]
    %v9649 = vld [vmem:[%s10 + $0x38] sm:$0xff]
    %v9650 = vld [vmem:[%s10 + $0x40] sm:$0xff]
    %v9651 = vld [vmem:[%s10 + $0x48] sm:$0xff]
    %v9652 = vld [vmem:[%s10 + $0x50] sm:$0xff]
    %v9653 = vld [vmem:[%s10 + $0x58] sm:$0xff]
    %v9654 = vld [vmem:[%s10 + $0x60] sm:$0xff]
    %v9655 = vld [vmem:[%s10 + $0x68] sm:$0xff]
    %v9656 = vld [vmem:[%s10 + $0x70] sm:$0xff]
    %v9657 = vld [vmem:[%s10 + $0x78] sm:$0xff]
    %v9658 = vld [vmem:[%s10 + $0x80] sm:$0xff]
    %v9659 = vld [vmem:[%s10 + $0x88] sm:$0xff]
    %v9660 = vld [vmem:[%s10 + $0x90] sm:$0xff]
    %v9661 = vld [vmem:[%s10 + $0x98] sm:$0xff]
    %v9662 = vld [vmem:[%s10 + $0xa0] sm:$0xff]
    %v9663 = vld [vmem:[%s10 + $0xa8] sm:$0xff]
    %v9664 = vld [vmem:[%s10 + $0xb0] sm:$0xff]
    %v9665 = vld [vmem:[%s10 + $0xb8] sm:$0xff]
    %v9666 = vld [vmem:[%s10 + $0xc0] sm:$0xff]
    %v9667 = vld [vmem:[%s10 + $0xc8] sm:$0xff]
    %v9668 = vld [vmem:[%s10 + $0xd0] sm:$0xff]
    %v9669 = vld [vmem:[%s10 + $0xd8] sm:$0xff]
    %v9670 = vld [vmem:[%s10 + $0xe0] sm:$0xff]
    %v9671 = vld [vmem:[%s10 + $0xe8] sm:$0xff]
    %v9672 = vld [vmem:[%s10 + $0xf0] sm:$0xff]
    %v9673 = vld [vmem:[%s10 + $0xf8] sm:$0xff]
    %v9674 = vld [vmem:[%s10 + $0x100] sm:$0xff]
    %v9675 = vld [vmem:[%s10 + $0x108] sm:$0xff]
    %v9676 = vld [vmem:[%s10 + $0x110] sm:$0xff]
    %v9677 = vld [vmem:[%s10 + $0x118] sm:$0xff]
    %v9678 = vld [vmem:[%s10 + $0x120] sm:$0xff]
    %v9679 = vld [vmem:[%s10 + $0x128] sm:$0xff]
    %v9680 = vld [vmem:[%s10 + $0x130] sm:$0xff]
    %v9681 = vld [vmem:[%s10 + $0x138] sm:$0xff]
    %v9682 = vld [vmem:[%s10 + $0x140] sm:$0xff]
    %v9683 = vld [vmem:[%s10 + $0x148] sm:$0xff]
    %v9684 = vld [vmem:[%s10 + $0x150] sm:$0xff]
    %v9685 = vld [vmem:[%s10 + $0x158] sm:$0xff]
    %v9686 = vld [vmem:[%s10 + $0x160] sm:$0xff]
    %v9687 = vld [vmem:[%s10 + $0x168] sm:$0xff]
    %v9688 = vld [vmem:[%s10 + $0x170] sm:$0xff]
    %v9689 = vld [vmem:[%s10 + $0x178] sm:$0xff]
    %v9690 = vld [vmem:[%s10 + $0x180] sm:$0xff]
    %v9691 = vld [vmem:[%s10 + $0x188] sm:$0xff]
    %v9692 = vld [vmem:[%s10 + $0x190] sm:$0xff]
    %v9693 = vld [vmem:[%s10 + $0x198] sm:$0xff]
    %v9694 = vld [vmem:[%s10 + $0x1a0] sm:$0xff]
    %v9695 = vld [vmem:[%s10 + $0x1a8] sm:$0xff]
    %v9696 = vld [vmem:[%s10 + $0x1b0] sm:$0xff]
    %v9697 = vld [vmem:[%s10 + $0x1b8] sm:$0xff]
    %v9698 = vld [vmem:[%s10 + $0x1c0] sm:$0xff]
    %v9699 = vld [vmem:[%s10 + $0x1c8] sm:$0xff]
    %v9700 = vld [vmem:[%s10 + $0x1d0] sm:$0xff]
    %v9701 = vld [vmem:[%s10 + $0x1d8] sm:$0xff]
    %v9702 = vld [vmem:[%s10 + $0x1e0] sm:$0xff]
    %v9703 = vld [vmem:[%s10 + $0x1e8] sm:$0xff]
    %v9704 = vld [vmem:[%s10 + $0x1f0] sm:$0xff]
    %v9705 = vld [vmem:[%s10 + $0x1f8] sm:$0xff]
    %v9706 = vld [vmem:[%s13] sm:$0xf]
    %v9707 = vpack.c.bf16 %v9641, %v9641
    %v9709 = vlaneseq
    %v9710 = vshrl.u32 %v9709, 7
    %v9711 = vsub.s32 0, %v9710
    %v9712 = vrot.slane %v9706, %v9711
    %v9713 = vlaneseq
    %v9714 = vshrl.u32 %v9713, 7
    %v9715 = vsub.s32 1, %v9714
    %v9716 = vrot.slane %v9706, %v9715
    %v9717 = vlaneseq
    %v9718 = vshrl.u32 %v9717, 7
    %v9719 = vsub.s32 2, %v9718
    %v9720 = vrot.slane %v9706, %v9719
    %v9721 = vlaneseq
    %v9722 = vshrl.u32 %v9721, 7
    %v9723 = vsub.s32 3, %v9722
    %v9724 = vrot.slane %v9706, %v9723
    %v9793 = vunpack.c.l.b16 %v9642
    %v9794 = vunpack.c.h.b16 %v9642
    %v9795 = vunpack.c.l.b16 %v9643
    %v9796 = vunpack.c.h.b16 %v9643
    %v9797 = vunpack.c.l.b16 %v9644
    %v9798 = vunpack.c.h.b16 %v9644
    %v9799 = vunpack.c.l.b16 %v9645
    %v9800 = vunpack.c.h.b16 %v9645
    %v9801 = vunpack.c.l.b16 %v9646
    %v9802 = vunpack.c.h.b16 %v9646
    %v9803 = vunpack.c.l.b16 %v9647
    %v9804 = vunpack.c.h.b16 %v9647
    %v9805 = vunpack.c.l.b16 %v9648
    %v9806 = vunpack.c.h.b16 %v9648
    %v9807 = vunpack.c.l.b16 %v9649
    %v9808 = vunpack.c.h.b16 %v9649
    %v9809 = vunpack.c.l.b16 %v9650
    %v9810 = vunpack.c.h.b16 %v9650
    %v9811 = vunpack.c.l.b16 %v9651
    %v9812 = vunpack.c.h.b16 %v9651
    %v9813 = vunpack.c.l.b16 %v9652
    %v9814 = vunpack.c.h.b16 %v9652
    %v9815 = vunpack.c.l.b16 %v9653
    %v9816 = vunpack.c.h.b16 %v9653
    %v9817 = vunpack.c.l.b16 %v9654
    %v9818 = vunpack.c.h.b16 %v9654
    %v9819 = vunpack.c.l.b16 %v9655
    %v9820 = vunpack.c.h.b16 %v9655
    %v9821 = vunpack.c.l.b16 %v9656
    %v9822 = vunpack.c.h.b16 %v9656
    %v9823 = vunpack.c.l.b16 %v9657
    %v9824 = vunpack.c.h.b16 %v9657
    %v9825 = vunpack.c.l.b16 %v9658
    %v9826 = vunpack.c.h.b16 %v9658
    %v9827 = vunpack.c.l.b16 %v9659
    %v9828 = vunpack.c.h.b16 %v9659
    %v9829 = vunpack.c.l.b16 %v9660
    %v9830 = vunpack.c.h.b16 %v9660
    %v9831 = vunpack.c.l.b16 %v9661
    %v9832 = vunpack.c.h.b16 %v9661
    %v9833 = vunpack.c.l.b16 %v9662
    %v9834 = vunpack.c.h.b16 %v9662
    %v9835 = vunpack.c.l.b16 %v9663
    %v9836 = vunpack.c.h.b16 %v9663
    %v9837 = vunpack.c.l.b16 %v9664
    %v9838 = vunpack.c.h.b16 %v9664
    %v9839 = vunpack.c.l.b16 %v9665
    %v9840 = vunpack.c.h.b16 %v9665
    %v9841 = vunpack.c.l.b16 %v9666
    %v9842 = vunpack.c.h.b16 %v9666
    %v9843 = vunpack.c.l.b16 %v9667
    %v9844 = vunpack.c.h.b16 %v9667
    %v9845 = vunpack.c.l.b16 %v9668
    %v9846 = vunpack.c.h.b16 %v9668
    %v9847 = vunpack.c.l.b16 %v9669
    %v9848 = vunpack.c.h.b16 %v9669
    %v9849 = vunpack.c.l.b16 %v9670
    %v9850 = vunpack.c.h.b16 %v9670
    %v9851 = vunpack.c.l.b16 %v9671
    %v9852 = vunpack.c.h.b16 %v9671
    %v9853 = vunpack.c.l.b16 %v9672
    %v9854 = vunpack.c.h.b16 %v9672
    %v9855 = vunpack.c.l.b16 %v9673
    %v9856 = vunpack.c.h.b16 %v9673
    %v9857 = vunpack.c.l.b16 %v9674
    %v9858 = vunpack.c.h.b16 %v9674
    %v9859 = vunpack.c.l.b16 %v9675
    %v9860 = vunpack.c.h.b16 %v9675
    %v9861 = vunpack.c.l.b16 %v9676
    %v9862 = vunpack.c.h.b16 %v9676
    %v9863 = vunpack.c.l.b16 %v9677
    %v9864 = vunpack.c.h.b16 %v9677
    %v9865 = vunpack.c.l.b16 %v9678
    %v9866 = vunpack.c.h.b16 %v9678
    %v9867 = vunpack.c.l.b16 %v9679
    %v9868 = vunpack.c.h.b16 %v9679
    %v9869 = vunpack.c.l.b16 %v9680
    %v9870 = vunpack.c.h.b16 %v9680
    %v9871 = vunpack.c.l.b16 %v9681
    %v9872 = vunpack.c.h.b16 %v9681
    %v9873 = vunpack.c.l.b16 %v9682
    %v9874 = vunpack.c.h.b16 %v9682
    %v9875 = vunpack.c.l.b16 %v9683
    %v9876 = vunpack.c.h.b16 %v9683
    %v9877 = vunpack.c.l.b16 %v9684
    %v9878 = vunpack.c.h.b16 %v9684
    %v9879 = vunpack.c.l.b16 %v9685
    %v9880 = vunpack.c.h.b16 %v9685
    %v9881 = vunpack.c.l.b16 %v9686
    %v9882 = vunpack.c.h.b16 %v9686
    %v9883 = vunpack.c.l.b16 %v9687
    %v9884 = vunpack.c.h.b16 %v9687
    %v9885 = vunpack.c.l.b16 %v9688
    %v9886 = vunpack.c.h.b16 %v9688
    %v9887 = vunpack.c.l.b16 %v9689
    %v9888 = vunpack.c.h.b16 %v9689
    %v9889 = vunpack.c.l.b16 %v9690
    %v9890 = vunpack.c.h.b16 %v9690
    %v9891 = vunpack.c.l.b16 %v9691
    %v9892 = vunpack.c.h.b16 %v9691
    %v9893 = vunpack.c.l.b16 %v9692
    %v9894 = vunpack.c.h.b16 %v9692
    %v9895 = vunpack.c.l.b16 %v9693
    %v9896 = vunpack.c.h.b16 %v9693
    %v9897 = vunpack.c.l.b16 %v9694
    %v9898 = vunpack.c.h.b16 %v9694
    %v9899 = vunpack.c.l.b16 %v9695
    %v9900 = vunpack.c.h.b16 %v9695
    %v9901 = vunpack.c.l.b16 %v9696
    %v9902 = vunpack.c.h.b16 %v9696
    %v9903 = vunpack.c.l.b16 %v9697
    %v9904 = vunpack.c.h.b16 %v9697
    %v9905 = vunpack.c.l.b16 %v9698
    %v9906 = vunpack.c.h.b16 %v9698
    %v9907 = vunpack.c.l.b16 %v9699
    %v9908 = vunpack.c.h.b16 %v9699
    %v9909 = vunpack.c.l.b16 %v9700
    %v9910 = vunpack.c.h.b16 %v9700
    %v9911 = vunpack.c.l.b16 %v9701
    %v9912 = vunpack.c.h.b16 %v9701
    %v9913 = vunpack.c.l.b16 %v9702
    %v9914 = vunpack.c.h.b16 %v9702
    %v9915 = vunpack.c.l.b16 %v9703
    %v9916 = vunpack.c.h.b16 %v9703
    %v9917 = vunpack.c.l.b16 %v9704
    %v9918 = vunpack.c.h.b16 %v9704
    %v9919 = vunpack.c.l.b16 %v9705
    %v9920 = vunpack.c.h.b16 %v9705
    %v9921 = vpack.c.b16 %v9797, %v9793
    %v9922 = vpack.c.b16 %v9798, %v9794
    %v9923 = vpack.c.b16 %v9799, %v9795
    %v9924 = vpack.c.b16 %v9800, %v9796
    %v9925 = vpack.c.b16 %v9805, %v9801
    %v9926 = vpack.c.b16 %v9806, %v9802
    %v9927 = vpack.c.b16 %v9807, %v9803
    %v9928 = vpack.c.b16 %v9808, %v9804
    %v9929 = vpack.c.b16 %v9813, %v9809
    %v9930 = vpack.c.b16 %v9814, %v9810
    %v9931 = vpack.c.b16 %v9815, %v9811
    %v9932 = vpack.c.b16 %v9816, %v9812
    %v9933 = vpack.c.b16 %v9821, %v9817
    %v9934 = vpack.c.b16 %v9822, %v9818
    %v9935 = vpack.c.b16 %v9823, %v9819
    %v9936 = vpack.c.b16 %v9824, %v9820
    %v9937 = vpack.c.b16 %v9829, %v9825
    %v9938 = vpack.c.b16 %v9830, %v9826
    %v9939 = vpack.c.b16 %v9831, %v9827
    %v9940 = vpack.c.b16 %v9832, %v9828
    %v9941 = vpack.c.b16 %v9837, %v9833
    %v9942 = vpack.c.b16 %v9838, %v9834
    %v9943 = vpack.c.b16 %v9839, %v9835
    %v9944 = vpack.c.b16 %v9840, %v9836
    %v9945 = vpack.c.b16 %v9845, %v9841
    %v9946 = vpack.c.b16 %v9846, %v9842
    %v9947 = vpack.c.b16 %v9847, %v9843
    %v9948 = vpack.c.b16 %v9848, %v9844
    %v9949 = vpack.c.b16 %v9853, %v9849
    %v9950 = vpack.c.b16 %v9854, %v9850
    %v9951 = vpack.c.b16 %v9855, %v9851
    %v9952 = vpack.c.b16 %v9856, %v9852
    %v9953 = vpack.c.b16 %v9861, %v9857
    %v9954 = vpack.c.b16 %v9862, %v9858
    %v9955 = vpack.c.b16 %v9863, %v9859
    %v9956 = vpack.c.b16 %v9864, %v9860
    %v9957 = vpack.c.b16 %v9869, %v9865
    %v9958 = vpack.c.b16 %v9870, %v9866
    %v9959 = vpack.c.b16 %v9871, %v9867
    %v9960 = vpack.c.b16 %v9872, %v9868
    %v9961 = vpack.c.b16 %v9877, %v9873
    %v9962 = vpack.c.b16 %v9878, %v9874
    %v9963 = vpack.c.b16 %v9879, %v9875
    %v9964 = vpack.c.b16 %v9880, %v9876
    %v9965 = vpack.c.b16 %v9885, %v9881
    %v9966 = vpack.c.b16 %v9886, %v9882
    %v9967 = vpack.c.b16 %v9887, %v9883
    %v9968 = vpack.c.b16 %v9888, %v9884
    %v9969 = vpack.c.b16 %v9893, %v9889
    %v9970 = vpack.c.b16 %v9894, %v9890
    %v9971 = vpack.c.b16 %v9895, %v9891
    %v9972 = vpack.c.b16 %v9896, %v9892
    %v9973 = vpack.c.b16 %v9901, %v9897
    %v9974 = vpack.c.b16 %v9902, %v9898
    %v9975 = vpack.c.b16 %v9903, %v9899
    %v9976 = vpack.c.b16 %v9904, %v9900
    %v9977 = vpack.c.b16 %v9909, %v9905
    %v9978 = vpack.c.b16 %v9910, %v9906
    %v9979 = vpack.c.b16 %v9911, %v9907
    %v9980 = vpack.c.b16 %v9912, %v9908
    %v9981 = vpack.c.b16 %v9917, %v9913
    %v9982 = vpack.c.b16 %v9918, %v9914
    %v9983 = vpack.c.b16 %v9919, %v9915
    %v9984 = vpack.c.b16 %v9920, %v9916
    %10049 = vmatprep.subr.bf16.mxu0 %v9922
    %10050 = vmatpush1.bf16.msra.mxu0 %v9921
    %10051 = vmatprep.subr.bf16.mxu0 %v9926
    %10052 = vmatpush1.bf16.msra.mxu0 %v9925
    %10053 = vmatprep.subr.bf16.mxu0 %v9930
    %10054 = vmatpush1.bf16.msra.mxu0 %v9929
    %10055 = vmatprep.subr.bf16.mxu0 %v9934
    %10056 = vmatpush1.bf16.msra.mxu0 %v9933
    %10057 = vmatprep.subr.bf16.mxu0 %v9938
    %10058 = vmatpush1.bf16.msra.mxu0 %v9937
    %10059 = vmatprep.subr.bf16.mxu0 %v9942
    %10060 = vmatpush1.bf16.msra.mxu0 %v9941
    %10061 = vmatprep.subr.bf16.mxu0 %v9946
    %10062 = vmatpush1.bf16.msra.mxu0 %v9945
    %10063 = vmatprep.subr.bf16.mxu0 %v9950
    %10064 = vmatpush1.bf16.msra.mxu0 %v9949
    %10065 = vmatprep.subr.bf16.mxu0 %v9954
    %10066 = vmatpush1.bf16.msra.mxu0 %v9953
    %10067 = vmatprep.subr.bf16.mxu0 %v9958
    %10068 = vmatpush1.bf16.msra.mxu0 %v9957
    %10069 = vmatprep.subr.bf16.mxu0 %v9962
    %10070 = vmatpush1.bf16.msra.mxu0 %v9961
    %10071 = vmatprep.subr.bf16.mxu0 %v9966
    %10072 = vmatpush1.bf16.msra.mxu0 %v9965
    %10073 = vmatprep.subr.bf16.mxu0 %v9970
    %10074 = vmatpush1.bf16.msra.mxu0 %v9969
    %10075 = vmatprep.subr.bf16.mxu0 %v9974
    %10076 = vmatpush1.bf16.msra.mxu0 %v9973
    %10077 = vmatprep.subr.bf16.mxu0 %v9978
    %10078 = vmatpush1.bf16.msra.mxu0 %v9977
    %10079 = vmatprep.subr.bf16.mxu0 %v9982
    %10080 = vmatpush1.bf16.msra.mxu0 %v9981
    %10081 = vmatprep.mubr.bf16.mxu0 %v8200
    %10082 = vmatmul.mubr.bf16.gmra.mrb[0].mxu0 %v9707
    %v10083 = vpop.f32.mrb[0].mxu0
    %v10084 = vadd.f32 %v9712, %v10083
    %v10085 = vpop.f32.mrb[0].mxu0
    %v10086 = vadd.f32 %v9716, %v10085
    %v10087 = vpop.f32.mrb[0].mxu0
    %v10088 = vpop.f32.mrb[0].mxu0
    %10089 = vdwg.mxu0
    %10090 = vmatprep.subr.bf16.mxu0 %v9924
    %10091 = vmatpush1.bf16.msra.mxu0 %v9923
    %10092 = vmatprep.subr.bf16.mxu0 %v9928
    %10093 = vmatpush1.bf16.msra.mxu0 %v9927
    %10094 = vmatprep.subr.bf16.mxu0 %v9932
    %10095 = vmatpush1.bf16.msra.mxu0 %v9931
    %10096 = vmatprep.subr.bf16.mxu0 %v9936
    %10097 = vmatpush1.bf16.msra.mxu0 %v9935
    %10098 = vmatprep.subr.bf16.mxu0 %v9940
    %10099 = vmatpush1.bf16.msra.mxu0 %v9939
    %10100 = vmatprep.subr.bf16.mxu0 %v9944
    %10101 = vmatpush1.bf16.msra.mxu0 %v9943
    %10102 = vmatprep.subr.bf16.mxu0 %v9948
    %10103 = vmatpush1.bf16.msra.mxu0 %v9947
    %10104 = vmatprep.subr.bf16.mxu0 %v9952
    %10105 = vmatpush1.bf16.msra.mxu0 %v9951
    %10106 = vmatprep.subr.bf16.mxu0 %v9956
    %10107 = vmatpush1.bf16.msra.mxu0 %v9955
    %10108 = vmatprep.subr.bf16.mxu0 %v9960
    %10109 = vmatpush1.bf16.msra.mxu0 %v9959
    %10110 = vmatprep.subr.bf16.mxu0 %v9964
    %10111 = vmatpush1.bf16.msra.mxu0 %v9963
    %10112 = vmatprep.subr.bf16.mxu0 %v9968
    %10113 = vmatpush1.bf16.msra.mxu0 %v9967
    %10114 = vmatprep.subr.bf16.mxu0 %v9972
    %10115 = vmatpush1.bf16.msra.mxu0 %v9971
    %10116 = vmatprep.subr.bf16.mxu0 %v9976
    %10117 = vmatpush1.bf16.msra.mxu0 %v9975
    %10118 = vmatprep.subr.bf16.mxu0 %v9980
    %10119 = vmatpush1.bf16.msra.mxu0 %v9979
    %10120 = vmatprep.subr.bf16.mxu0 %v9984
    %10121 = vmatpush1.bf16.msra.mxu0 %v9983
    %10122 = vmatprep.mubr.bf16.mxu0 %v8200
    %10123 = vmatmul.mubr.bf16.gmra.mrb[0].mxu0 %v9707
    %v10124 = vpop.f32.mrb[0].mxu0
    %v10125 = vadd.f32 %v9720, %v10124
    %v10126 = vpop.f32.mrb[0].mxu0
    %v10127 = vadd.f32 %v9724, %v10126
    %v10128 = vpop.f32.mrb[0].mxu0
    %v10129 = vpop.f32.mrb[0].mxu0
    %10130 = vdwg.mxu0
    %v10131 = vxor.u32 %v10084, 2147483648
    %v10132 = vmul.f32 %v10131, 1.442695
    %v10133 = vpow.pop %v10132
    %v10134 = vadd.f32 %v10133, 1.0
    %v10135 = vrcp.pop %v10134
    %v10136 = vmul.f32 1.0, %v10135
    %v10137 = vxor.u32 %v10086, 2147483648
    %v10138 = vmul.f32 %v10137, 1.442695
    %v10139 = vpow.pop %v10138
    %v10140 = vadd.f32 %v10139, 1.0
    %v10141 = vrcp.pop %v10140
    %v10142 = vmul.f32 1.0, %v10141
    %v10143 = vtanh.pop %v10125
    %v10144 = vxor.u32 %v10127, 2147483648
    %v10145 = vmul.f32 %v10144, 1.442695
    %v10146 = vpow.pop %v10145
    %v10147 = vadd.f32 %v10146, 1.0
    %v10148 = vrcp.pop %v10147
    %v10149 = vmul.f32 1.0, %v10148
    %v10150 = vmul.f32 %v10142, %v8132
    %v10151 = vmul.f32 %v10136, %v10143
    %v10152 = vadd.f32 %v10150, %v10151
    %v10153 = vtanh.pop %v10152
    %v10154 = vmul.f32 %v10149, %v10153
    %v10155 = vld [vmem:[#allocation6] sm:$0xff]
    %v10156 = vld [vmem:[#allocation6 + $0x8] sm:$0xff]
    %v10157 = vld [vmem:[#allocation6 + $0x10] sm:$0xff]
    %v10158 = vld [vmem:[#allocation6 + $0x18] sm:$0xff]
    %v10159 = vld [vmem:[#allocation6 + $0x20] sm:$0xff]
    %v10160 = vld [vmem:[#allocation6 + $0x28] sm:$0xff]
    %v10161 = vld [vmem:[#allocation6 + $0x30] sm:$0xff]
    %v10162 = vld [vmem:[#allocation6 + $0x38] sm:$0xff]
    %v10163 = vld [vmem:[#allocation6 + $0x40] sm:$0xff]
    %v10164 = vld [vmem:[#allocation6 + $0x48] sm:$0xff]
    %v10165 = vld [vmem:[#allocation6 + $0x50] sm:$0xff]
    %v10166 = vld [vmem:[#allocation6 + $0x58] sm:$0xff]
    %v10167 = vld [vmem:[#allocation6 + $0x60] sm:$0xff]
    %v10168 = vld [vmem:[#allocation6 + $0x68] sm:$0xff]
    %v10169 = vld [vmem:[#allocation6 + $0x70] sm:$0xff]
    %v10170 = vld [vmem:[#allocation6 + $0x78] sm:$0xff]
    %v10171 = vld [vmem:[#allocation6 + $0x80] sm:$0xff]
    %v10172 = vld [vmem:[#allocation6 + $0x88] sm:$0xff]
    %v10173 = vld [vmem:[#allocation6 + $0x90] sm:$0xff]
    %v10174 = vld [vmem:[#allocation6 + $0x98] sm:$0xff]
    %v10175 = vld [vmem:[#allocation6 + $0xa0] sm:$0xff]
    %v10176 = vld [vmem:[#allocation6 + $0xa8] sm:$0xff]
    %v10177 = vld [vmem:[#allocation6 + $0xb0] sm:$0xff]
    %v10178 = vld [vmem:[#allocation6 + $0xb8] sm:$0xff]
    %v10179 = vld [vmem:[#allocation6 + $0xc0] sm:$0xff]
    %v10180 = vld [vmem:[#allocation6 + $0xc8] sm:$0xff]
    %v10181 = vld [vmem:[#allocation6 + $0xd0] sm:$0xff]
    %v10182 = vld [vmem:[#allocation6 + $0xd8] sm:$0xff]
    %v10183 = vld [vmem:[#allocation6 + $0xe0] sm:$0xff]
    %v10184 = vld [vmem:[#allocation6 + $0xe8] sm:$0xff]
    %v10185 = vld [vmem:[#allocation6 + $0xf0] sm:$0xff]
    %v10186 = vld [vmem:[#allocation6 + $0xf8] sm:$0xff]
    %v10187 = vld [vmem:[#allocation6 + $0x100] sm:$0xff]
    %v10188 = vld [vmem:[#allocation6 + $0x108] sm:$0xff]
    %v10189 = vld [vmem:[#allocation6 + $0x110] sm:$0xff]
    %v10190 = vld [vmem:[#allocation6 + $0x118] sm:$0xff]
    %v10191 = vld [vmem:[#allocation6 + $0x120] sm:$0xff]
    %v10192 = vld [vmem:[#allocation6 + $0x128] sm:$0xff]
    %v10193 = vld [vmem:[#allocation6 + $0x130] sm:$0xff]
    %v10194 = vld [vmem:[#allocation6 + $0x138] sm:$0xff]
    %v10195 = vld [vmem:[#allocation6 + $0x140] sm:$0xff]
    %v10196 = vld [vmem:[#allocation6 + $0x148] sm:$0xff]
    %v10197 = vld [vmem:[#allocation6 + $0x150] sm:$0xff]
    %v10198 = vld [vmem:[#allocation6 + $0x158] sm:$0xff]
    %v10199 = vld [vmem:[#allocation6 + $0x160] sm:$0xff]
    %v10200 = vld [vmem:[#allocation6 + $0x168] sm:$0xff]
    %v10201 = vld [vmem:[#allocation6 + $0x170] sm:$0xff]
    %v10202 = vld [vmem:[#allocation6 + $0x178] sm:$0xff]
    %v10203 = vld [vmem:[#allocation6 + $0x180] sm:$0xff]
    %v10204 = vld [vmem:[#allocation6 + $0x188] sm:$0xff]
    %v10205 = vld [vmem:[#allocation6 + $0x190] sm:$0xff]
    %v10206 = vld [vmem:[#allocation6 + $0x198] sm:$0xff]
    %v10207 = vld [vmem:[#allocation6 + $0x1a0] sm:$0xff]
    %v10208 = vld [vmem:[#allocation6 + $0x1a8] sm:$0xff]
    %v10209 = vld [vmem:[#allocation6 + $0x1b0] sm:$0xff]
    %v10210 = vld [vmem:[#allocation6 + $0x1b8] sm:$0xff]
    %v10211 = vld [vmem:[#allocation6 + $0x1c0] sm:$0xff]
    %v10212 = vld [vmem:[#allocation6 + $0x1c8] sm:$0xff]
    %v10213 = vld [vmem:[#allocation6 + $0x1d0] sm:$0xff]
    %v10214 = vld [vmem:[#allocation6 + $0x1d8] sm:$0xff]
    %v10215 = vld [vmem:[#allocation6 + $0x1e0] sm:$0xff]
    %v10216 = vld [vmem:[#allocation6 + $0x1e8] sm:$0xff]
    %v10217 = vld [vmem:[#allocation6 + $0x1f0] sm:$0xff]
    %v10218 = vld [vmem:[#allocation6 + $0x1f8] sm:$0xff]
    %v10219 = vld [vmem:[%s14] sm:$0xf]
    %v10220 = vpack.c.bf16 %v10154, %v10154
    %v10222 = vlaneseq
    %v10223 = vshrl.u32 %v10222, 7
    %v10224 = vsub.s32 0, %v10223
    %v10225 = vrot.slane %v10219, %v10224
    %v10226 = vlaneseq
    %v10227 = vshrl.u32 %v10226, 7
    %v10228 = vsub.s32 1, %v10227
    %v10229 = vrot.slane %v10219, %v10228
    %v10230 = vlaneseq
    %v10231 = vshrl.u32 %v10230, 7
    %v10232 = vsub.s32 2, %v10231
    %v10233 = vrot.slane %v10219, %v10232
    %v10234 = vlaneseq
    %v10235 = vshrl.u32 %v10234, 7
    %v10236 = vsub.s32 3, %v10235
    %v10237 = vrot.slane %v10219, %v10236
    %v10306 = vunpack.c.l.b16 %v10155
    %v10307 = vunpack.c.h.b16 %v10155
    %v10308 = vunpack.c.l.b16 %v10156
    %v10309 = vunpack.c.h.b16 %v10156
    %v10310 = vunpack.c.l.b16 %v10157
    %v10311 = vunpack.c.h.b16 %v10157
    %v10312 = vunpack.c.l.b16 %v10158
    %v10313 = vunpack.c.h.b16 %v10158
    %v10314 = vunpack.c.l.b16 %v10159
    %v10315 = vunpack.c.h.b16 %v10159
    %v10316 = vunpack.c.l.b16 %v10160
    %v10317 = vunpack.c.h.b16 %v10160
    %v10318 = vunpack.c.l.b16 %v10161
    %v10319 = vunpack.c.h.b16 %v10161
    %v10320 = vunpack.c.l.b16 %v10162
    %v10321 = vunpack.c.h.b16 %v10162
    %v10322 = vunpack.c.l.b16 %v10163
    %v10323 = vunpack.c.h.b16 %v10163
    %v10324 = vunpack.c.l.b16 %v10164
    %v10325 = vunpack.c.h.b16 %v10164
    %v10326 = vunpack.c.l.b16 %v10165
    %v10327 = vunpack.c.h.b16 %v10165
    %v10328 = vunpack.c.l.b16 %v10166
    %v10329 = vunpack.c.h.b16 %v10166
    %v10330 = vunpack.c.l.b16 %v10167
    %v10331 = vunpack.c.h.b16 %v10167
    %v10332 = vunpack.c.l.b16 %v10168
    %v10333 = vunpack.c.h.b16 %v10168
    %v10334 = vunpack.c.l.b16 %v10169
    %v10335 = vunpack.c.h.b16 %v10169
    %v10336 = vunpack.c.l.b16 %v10170
    %v10337 = vunpack.c.h.b16 %v10170
    %v10338 = vunpack.c.l.b16 %v10171
    %v10339 = vunpack.c.h.b16 %v10171
    %v10340 = vunpack.c.l.b16 %v10172
    %v10341 = vunpack.c.h.b16 %v10172
    %v10342 = vunpack.c.l.b16 %v10173
    %v10343 = vunpack.c.h.b16 %v10173
    %v10344 = vunpack.c.l.b16 %v10174
    %v10345 = vunpack.c.h.b16 %v10174
    %v10346 = vunpack.c.l.b16 %v10175
    %v10347 = vunpack.c.h.b16 %v10175
    %v10348 = vunpack.c.l.b16 %v10176
    %v10349 = vunpack.c.h.b16 %v10176
    %v10350 = vunpack.c.l.b16 %v10177
    %v10351 = vunpack.c.h.b16 %v10177
    %v10352 = vunpack.c.l.b16 %v10178
    %v10353 = vunpack.c.h.b16 %v10178
    %v10354 = vunpack.c.l.b16 %v10179
    %v10355 = vunpack.c.h.b16 %v10179
    %v10356 = vunpack.c.l.b16 %v10180
    %v10357 = vunpack.c.h.b16 %v10180
    %v10358 = vunpack.c.l.b16 %v10181
    %v10359 = vunpack.c.h.b16 %v10181
    %v10360 = vunpack.c.l.b16 %v10182
    %v10361 = vunpack.c.h.b16 %v10182
    %v10362 = vunpack.c.l.b16 %v10183
    %v10363 = vunpack.c.h.b16 %v10183
    %v10364 = vunpack.c.l.b16 %v10184
    %v10365 = vunpack.c.h.b16 %v10184
    %v10366 = vunpack.c.l.b16 %v10185
    %v10367 = vunpack.c.h.b16 %v10185
    %v10368 = vunpack.c.l.b16 %v10186
    %v10369 = vunpack.c.h.b16 %v10186
    %v10370 = vunpack.c.l.b16 %v10187
    %v10371 = vunpack.c.h.b16 %v10187
    %v10372 = vunpack.c.l.b16 %v10188
    %v10373 = vunpack.c.h.b16 %v10188
    %v10374 = vunpack.c.l.b16 %v10189
    %v10375 = vunpack.c.h.b16 %v10189
    %v10376 = vunpack.c.l.b16 %v10190
    %v10377 = vunpack.c.h.b16 %v10190
    %v10378 = vunpack.c.l.b16 %v10191
    %v10379 = vunpack.c.h.b16 %v10191
    %v10380 = vunpack.c.l.b16 %v10192
    %v10381 = vunpack.c.h.b16 %v10192
    %v10382 = vunpack.c.l.b16 %v10193
    %v10383 = vunpack.c.h.b16 %v10193
    %v10384 = vunpack.c.l.b16 %v10194
    %v10385 = vunpack.c.h.b16 %v10194
    %v10386 = vunpack.c.l.b16 %v10195
    %v10387 = vunpack.c.h.b16 %v10195
    %v10388 = vunpack.c.l.b16 %v10196
    %v10389 = vunpack.c.h.b16 %v10196
    %v10390 = vunpack.c.l.b16 %v10197
    %v10391 = vunpack.c.h.b16 %v10197
    %v10392 = vunpack.c.l.b16 %v10198
    %v10393 = vunpack.c.h.b16 %v10198
    %v10394 = vunpack.c.l.b16 %v10199
    %v10395 = vunpack.c.h.b16 %v10199
    %v10396 = vunpack.c.l.b16 %v10200
    %v10397 = vunpack.c.h.b16 %v10200
    %v10398 = vunpack.c.l.b16 %v10201
    %v10399 = vunpack.c.h.b16 %v10201
    %v10400 = vunpack.c.l.b16 %v10202
    %v10401 = vunpack.c.h.b16 %v10202
    %v10402 = vunpack.c.l.b16 %v10203
    %v10403 = vunpack.c.h.b16 %v10203
    %v10404 = vunpack.c.l.b16 %v10204
    %v10405 = vunpack.c.h.b16 %v10204
    %v10406 = vunpack.c.l.b16 %v10205
    %v10407 = vunpack.c.h.b16 %v10205
    %v10408 = vunpack.c.l.b16 %v10206
    %v10409 = vunpack.c.h.b16 %v10206
    %v10410 = vunpack.c.l.b16 %v10207
    %v10411 = vunpack.c.h.b16 %v10207
    %v10412 = vunpack.c.l.b16 %v10208
    %v10413 = vunpack.c.h.b16 %v10208
    %v10414 = vunpack.c.l.b16 %v10209
    %v10415 = vunpack.c.h.b16 %v10209
    %v10416 = vunpack.c.l.b16 %v10210
    %v10417 = vunpack.c.h.b16 %v10210
    %v10418 = vunpack.c.l.b16 %v10211
    %v10419 = vunpack.c.h.b16 %v10211
    %v10420 = vunpack.c.l.b16 %v10212
    %v10421 = vunpack.c.h.b16 %v10212
    %v10422 = vunpack.c.l.b16 %v10213
    %v10423 = vunpack.c.h.b16 %v10213
    %v10424 = vunpack.c.l.b16 %v10214
    %v10425 = vunpack.c.h.b16 %v10214
    %v10426 = vunpack.c.l.b16 %v10215
    %v10427 = vunpack.c.h.b16 %v10215
    %v10428 = vunpack.c.l.b16 %v10216
    %v10429 = vunpack.c.h.b16 %v10216
    %v10430 = vunpack.c.l.b16 %v10217
    %v10431 = vunpack.c.h.b16 %v10217
    %v10432 = vunpack.c.l.b16 %v10218
    %v10433 = vunpack.c.h.b16 %v10218
    %v10434 = vpack.c.b16 %v10310, %v10306
    %v10435 = vpack.c.b16 %v10311, %v10307
    %v10436 = vpack.c.b16 %v10312, %v10308
    %v10437 = vpack.c.b16 %v10313, %v10309
    %v10438 = vpack.c.b16 %v10318, %v10314
    %v10439 = vpack.c.b16 %v10319, %v10315
    %v10440 = vpack.c.b16 %v10320, %v10316
    %v10441 = vpack.c.b16 %v10321, %v10317
    %v10442 = vpack.c.b16 %v10326, %v10322
    %v10443 = vpack.c.b16 %v10327, %v10323
    %v10444 = vpack.c.b16 %v10328, %v10324
    %v10445 = vpack.c.b16 %v10329, %v10325
    %v10446 = vpack.c.b16 %v10334, %v10330
    %v10447 = vpack.c.b16 %v10335, %v10331
    %v10448 = vpack.c.b16 %v10336, %v10332
    %v10449 = vpack.c.b16 %v10337, %v10333
    %v10450 = vpack.c.b16 %v10342, %v10338
    %v10451 = vpack.c.b16 %v10343, %v10339
    %v10452 = vpack.c.b16 %v10344, %v10340
    %v10453 = vpack.c.b16 %v10345, %v10341
    %v10454 = vpack.c.b16 %v10350, %v10346
    %v10455 = vpack.c.b16 %v10351, %v10347
    %v10456 = vpack.c.b16 %v10352, %v10348
    %v10457 = vpack.c.b16 %v10353, %v10349
    %v10458 = vpack.c.b16 %v10358, %v10354
    %v10459 = vpack.c.b16 %v10359, %v10355
    %v10460 = vpack.c.b16 %v10360, %v10356
    %v10461 = vpack.c.b16 %v10361, %v10357
    %v10462 = vpack.c.b16 %v10366, %v10362
    %v10463 = vpack.c.b16 %v10367, %v10363
    %v10464 = vpack.c.b16 %v10368, %v10364
    %v10465 = vpack.c.b16 %v10369, %v10365
    %v10466 = vpack.c.b16 %v10374, %v10370
    %v10467 = vpack.c.b16 %v10375, %v10371
    %v10468 = vpack.c.b16 %v10376, %v10372
    %v10469 = vpack.c.b16 %v10377, %v10373
    %v10470 = vpack.c.b16 %v10382, %v10378
    %v10471 = vpack.c.b16 %v10383, %v10379
    %v10472 = vpack.c.b16 %v10384, %v10380
    %v10473 = vpack.c.b16 %v10385, %v10381
    %v10474 = vpack.c.b16 %v10390, %v10386
    %v10475 = vpack.c.b16 %v10391, %v10387
    %v10476 = vpack.c.b16 %v10392, %v10388
    %v10477 = vpack.c.b16 %v10393, %v10389
    %v10478 = vpack.c.b16 %v10398, %v10394
    %v10479 = vpack.c.b16 %v10399, %v10395
    %v10480 = vpack.c.b16 %v10400, %v10396
    %v10481 = vpack.c.b16 %v10401, %v10397
    %v10482 = vpack.c.b16 %v10406, %v10402
    %v10483 = vpack.c.b16 %v10407, %v10403
    %v10484 = vpack.c.b16 %v10408, %v10404
    %v10485 = vpack.c.b16 %v10409, %v10405
    %v10486 = vpack.c.b16 %v10414, %v10410
    %v10487 = vpack.c.b16 %v10415, %v10411
    %v10488 = vpack.c.b16 %v10416, %v10412
    %v10489 = vpack.c.b16 %v10417, %v10413
    %v10490 = vpack.c.b16 %v10422, %v10418
    %v10491 = vpack.c.b16 %v10423, %v10419
    %v10492 = vpack.c.b16 %v10424, %v10420
    %v10493 = vpack.c.b16 %v10425, %v10421
    %v10494 = vpack.c.b16 %v10430, %v10426
    %v10495 = vpack.c.b16 %v10431, %v10427
    %v10496 = vpack.c.b16 %v10432, %v10428
    %v10497 = vpack.c.b16 %v10433, %v10429
    %10562 = vmatprep.subr.bf16.mxu0 %v10435
    %10563 = vmatpush1.bf16.msra.mxu0 %v10434
    %10564 = vmatprep.subr.bf16.mxu0 %v10439
    %10565 = vmatpush1.bf16.msra.mxu0 %v10438
    %10566 = vmatprep.subr.bf16.mxu0 %v10443
    %10567 = vmatpush1.bf16.msra.mxu0 %v10442
    %10568 = vmatprep.subr.bf16.mxu0 %v10447
    %10569 = vmatpush1.bf16.msra.mxu0 %v10446
    %10570 = vmatprep.subr.bf16.mxu0 %v10451
    %10571 = vmatpush1.bf16.msra.mxu0 %v10450
    %10572 = vmatprep.subr.bf16.mxu0 %v10455
    %10573 = vmatpush1.bf16.msra.mxu0 %v10454
    %10574 = vmatprep.subr.bf16.mxu0 %v10459
    %10575 = vmatpush1.bf16.msra.mxu0 %v10458
    %10576 = vmatprep.subr.bf16.mxu0 %v10463
    %10577 = vmatpush1.bf16.msra.mxu0 %v10462
    %10578 = vmatprep.subr.bf16.mxu0 %v10467
    %10579 = vmatpush1.bf16.msra.mxu0 %v10466
    %10580 = vmatprep.subr.bf16.mxu0 %v10471
    %10581 = vmatpush1.bf16.msra.mxu0 %v10470
    %10582 = vmatprep.subr.bf16.mxu0 %v10475
    %10583 = vmatpush1.bf16.msra.mxu0 %v10474
    %10584 = vmatprep.subr.bf16.mxu0 %v10479
    %10585 = vmatpush1.bf16.msra.mxu0 %v10478
    %10586 = vmatprep.subr.bf16.mxu0 %v10483
    %10587 = vmatpush1.bf16.msra.mxu0 %v10482
    %10588 = vmatprep.subr.bf16.mxu0 %v10487
    %10589 = vmatpush1.bf16.msra.mxu0 %v10486
    %10590 = vmatprep.subr.bf16.mxu0 %v10491
    %10591 = vmatpush1.bf16.msra.mxu0 %v10490
    %10592 = vmatprep.subr.bf16.mxu0 %v10495
    %10593 = vmatpush1.bf16.msra.mxu0 %v10494
    %10594 = vmatprep.mubr.bf16.mxu0 %v8648
    %10595 = vmatmul.mubr.bf16.gmra.mrb[0].mxu0 %v10220
    %v10596 = vpop.f32.mrb[0].mxu0
    %v10597 = vadd.f32 %v10225, %v10596
    %v10598 = vpop.f32.mrb[0].mxu0
    %v10599 = vadd.f32 %v10229, %v10598
    %v10600 = vpop.f32.mrb[0].mxu0
    %v10601 = vpop.f32.mrb[0].mxu0
    %10602 = vdwg.mxu0
    %10603 = vmatprep.subr.bf16.mxu0 %v10437
    %10604 = vmatpush1.bf16.msra.mxu0 %v10436
    %10605 = vmatprep.subr.bf16.mxu0 %v10441
    %10606 = vmatpush1.bf16.msra.mxu0 %v10440
    %10607 = vmatprep.subr.bf16.mxu0 %v10445
    %10608 = vmatpush1.bf16.msra.mxu0 %v10444
    %10609 = vmatprep.subr.bf16.mxu0 %v10449
    %10610 = vmatpush1.bf16.msra.mxu0 %v10448
    %10611 = vmatprep.subr.bf16.mxu0 %v10453
    %10612 = vmatpush1.bf16.msra.mxu0 %v10452
    %10613 = vmatprep.subr.bf16.mxu0 %v10457
    %10614 = vmatpush1.bf16.msra.mxu0 %v10456
    %10615 = vmatprep.subr.bf16.mxu0 %v10461
    %10616 = vmatpush1.bf16.msra.mxu0 %v10460
    %10617 = vmatprep.subr.bf16.mxu0 %v10465
    %10618 = vmatpush1.bf16.msra.mxu0 %v10464
    %10619 = vmatprep.subr.bf16.mxu0 %v10469
    %10620 = vmatpush1.bf16.msra.mxu0 %v10468
    %10621 = vmatprep.subr.bf16.mxu0 %v10473
    %10622 = vmatpush1.bf16.msra.mxu0 %v10472
    %10623 = vmatprep.subr.bf16.mxu0 %v10477
    %10624 = vmatpush1.bf16.msra.mxu0 %v10476
    %10625 = vmatprep.subr.bf16.mxu0 %v10481
    %10626 = vmatpush1.bf16.msra.mxu0 %v10480
    %10627 = vmatprep.subr.bf16.mxu0 %v10485
    %10628 = vmatpush1.bf16.msra.mxu0 %v10484
    %10629 = vmatprep.subr.bf16.mxu0 %v10489
    %10630 = vmatpush1.bf16.msra.mxu0 %v10488
    %10631 = vmatprep.subr.bf16.mxu0 %v10493
    %10632 = vmatpush1.bf16.msra.mxu0 %v10492
    %10633 = vmatprep.subr.bf16.mxu0 %v10497
    %10634 = vmatpush1.bf16.msra.mxu0 %v10496
    %10635 = vmatprep.mubr.bf16.mxu0 %v8648
    %10636 = vmatmul.mubr.bf16.gmra.mrb[0].mxu0 %v10220
    %v10637 = vpop.f32.mrb[0].mxu0
    %v10638 = vadd.f32 %v10233, %v10637
    %v10639 = vpop.f32.mrb[0].mxu0
    %v10640 = vadd.f32 %v10237, %v10639
    %v10641 = vpop.f32.mrb[0].mxu0
    %v10642 = vpop.f32.mrb[0].mxu0
    %10643 = vdwg.mxu0
    %v10644 = vxor.u32 %v10597, 2147483648
    %v10645 = vmul.f32 %v10644, 1.442695
    %v10646 = vpow.pop %v10645
    %v10647 = vadd.f32 %v10646, 1.0
    %v10648 = vrcp.pop %v10647
    %v10649 = vmul.f32 1.0, %v10648
    %v10650 = vxor.u32 %v10599, 2147483648
    %v10651 = vmul.f32 %v10650, 1.442695
    %v10652 = vpow.pop %v10651
    %v10653 = vadd.f32 %v10652, 1.0
    %v10654 = vrcp.pop %v10653
    %v10655 = vmul.f32 1.0, %v10654
    %v10656 = vtanh.pop %v10638
    %v10657 = vxor.u32 %v10640, 2147483648
    %v10658 = vmul.f32 %v10657, 1.442695
    %v10659 = vpow.pop %v10658
    %v10660 = vadd.f32 %v10659, 1.0
    %v10661 = vrcp.pop %v10660
    %v10662 = vmul.f32 1.0, %v10661
    %v10663 = vmul.f32 %v10655, %v8645
    %v10664 = vmul.f32 %v10649, %v10656
    %v10665 = vadd.f32 %v10663, %v10664
    %v10666 = vtanh.pop %v10665
    %v10667 = vmul.f32 %v10662, %v10666
    %v10668 = vpack.c.bf16 %v10667, %v10667
    %v10669 = vld [vmem:[%s16] sm:$0xff]
    %v10670 = vld [vmem:[%s16 + $0x8] sm:$0xff]
    %v10671 = vld [vmem:[%s16 + $0x10] sm:$0xff]
    %v10672 = vld [vmem:[%s16 + $0x18] sm:$0xff]
    %v10673 = vld [vmem:[%s16 + $0x20] sm:$0xff]
    %v10674 = vld [vmem:[%s16 + $0x28] sm:$0xff]
    %v10675 = vld [vmem:[%s16 + $0x30] sm:$0xff]
    %v10676 = vld [vmem:[%s16 + $0x38] sm:$0xff]
    %v10677 = vld [vmem:[%s16 + $0x40] sm:$0xff]
    %v10678 = vld [vmem:[%s16 + $0x48] sm:$0xff]
    %v10679 = vld [vmem:[%s16 + $0x50] sm:$0xff]
    %v10680 = vld [vmem:[%s16 + $0x58] sm:$0xff]
    %v10681 = vld [vmem:[%s16 + $0x60] sm:$0xff]
    %v10682 = vld [vmem:[%s16 + $0x68] sm:$0xff]
    %v10683 = vld [vmem:[%s16 + $0x70] sm:$0xff]
    %v10684 = vld [vmem:[%s16 + $0x78] sm:$0xff]
    %v10685 = vld [vmem:[%s17] sm:$0x3]
    %v10687 = vlaneseq
    %v10688 = vshrl.u32 %v10687, 7
    %v10689 = vsub.s32 0, %v10688
    %v10690 = vrot.slane %v10685, %v10689
    %v10691 = vlaneseq
    %v10692 = vshrl.u32 %v10691, 7
    %v10693 = vsub.s32 1, %v10692
    %v10694 = vrot.slane %v10685, %v10693
    %v10713 = vunpack.c.l.b16 %v10669
    %v10714 = vunpack.c.h.b16 %v10669
    %v10715 = vunpack.c.l.b16 %v10670
    %v10716 = vunpack.c.h.b16 %v10670
    %v10717 = vunpack.c.l.b16 %v10671
    %v10718 = vunpack.c.h.b16 %v10671
    %v10719 = vunpack.c.l.b16 %v10672
    %v10720 = vunpack.c.h.b16 %v10672
    %v10721 = vunpack.c.l.b16 %v10673
    %v10722 = vunpack.c.h.b16 %v10673
    %v10723 = vunpack.c.l.b16 %v10674
    %v10724 = vunpack.c.h.b16 %v10674
    %v10725 = vunpack.c.l.b16 %v10675
    %v10726 = vunpack.c.h.b16 %v10675
    %v10727 = vunpack.c.l.b16 %v10676
    %v10728 = vunpack.c.h.b16 %v10676
    %v10729 = vunpack.c.l.b16 %v10677
    %v10730 = vunpack.c.h.b16 %v10677
    %v10731 = vunpack.c.l.b16 %v10678
    %v10732 = vunpack.c.h.b16 %v10678
    %v10733 = vunpack.c.l.b16 %v10679
    %v10734 = vunpack.c.h.b16 %v10679
    %v10735 = vunpack.c.l.b16 %v10680
    %v10736 = vunpack.c.h.b16 %v10680
    %v10737 = vunpack.c.l.b16 %v10681
    %v10738 = vunpack.c.h.b16 %v10681
    %v10739 = vunpack.c.l.b16 %v10682
    %v10740 = vunpack.c.h.b16 %v10682
    %v10741 = vunpack.c.l.b16 %v10683
    %v10742 = vunpack.c.h.b16 %v10683
    %v10743 = vunpack.c.l.b16 %v10684
    %v10744 = vunpack.c.h.b16 %v10684
    %v10745 = vpack.c.b16 %v10715, %v10713
    %v10746 = vpack.c.b16 %v10716, %v10714
    %v10747 = vpack.c.b16 %v10719, %v10717
    %v10748 = vpack.c.b16 %v10720, %v10718
    %v10749 = vpack.c.b16 %v10723, %v10721
    %v10750 = vpack.c.b16 %v10724, %v10722
    %v10751 = vpack.c.b16 %v10727, %v10725
    %v10752 = vpack.c.b16 %v10728, %v10726
    %v10753 = vpack.c.b16 %v10731, %v10729
    %v10754 = vpack.c.b16 %v10732, %v10730
    %v10755 = vpack.c.b16 %v10735, %v10733
    %v10756 = vpack.c.b16 %v10736, %v10734
    %v10757 = vpack.c.b16 %v10739, %v10737
    %v10758 = vpack.c.b16 %v10740, %v10738
    %v10759 = vpack.c.b16 %v10743, %v10741
    %v10760 = vpack.c.b16 %v10744, %v10742
    %10777 = vmatprep.subr.bf16.mxu0 %v10746
    %10778 = vmatpush1.bf16.msra.mxu0 %v10745
    %10779 = vmatprep.subr.bf16.mxu0 %v10748
    %10780 = vmatpush1.bf16.msra.mxu0 %v10747
    %10781 = vmatprep.subr.bf16.mxu0 %v10750
    %10782 = vmatpush1.bf16.msra.mxu0 %v10749
    %10783 = vmatprep.subr.bf16.mxu0 %v10752
    %10784 = vmatpush1.bf16.msra.mxu0 %v10751
    %10785 = vmatprep.subr.bf16.mxu0 %v10754
    %10786 = vmatpush1.bf16.msra.mxu0 %v10753
    %10787 = vmatprep.subr.bf16.mxu0 %v10756
    %10788 = vmatpush1.bf16.msra.mxu0 %v10755
    %10789 = vmatprep.subr.bf16.mxu0 %v10758
    %10790 = vmatpush1.bf16.msra.mxu0 %v10757
    %10791 = vmatprep.subr.bf16.mxu0 %v10760
    %10792 = vmatpush1.bf16.msra.mxu0 %v10759
    %10793 = vmatprep.subr.bf16.mxu0 0
    %10794 = vmatpush1.bf16.msra.mxu0 0
    %10795 = vmatprep.subr.bf16.mxu0 0
    %10796 = vmatpush1.bf16.msra.mxu0 0
    %10797 = vmatprep.subr.bf16.mxu0 0
    %10798 = vmatpush1.bf16.msra.mxu0 0
    %10799 = vmatprep.subr.bf16.mxu0 0
    %10800 = vmatpush1.bf16.msra.mxu0 0
    %10801 = vmatprep.subr.bf16.mxu0 0
    %10802 = vmatpush1.bf16.msra.mxu0 0
    %10803 = vmatprep.subr.bf16.mxu0 0
    %10804 = vmatpush1.bf16.msra.mxu0 0
    %10805 = vmatprep.subr.bf16.mxu0 0
    %10806 = vmatpush1.bf16.msra.mxu0 0
    %10807 = vmatprep.subr.bf16.mxu0 0
    %10808 = vmatpush1.bf16.msra.mxu0 0
    %10809 = vmatprep.mubr.bf16.mxu0 0
    %10810 = vmatmul.mubr.bf16.gmra.mrb[0].mxu0 %v10668
    %v10811 = vpop.f32.mrb[0].mxu0
    %v10812 = vadd.f32 %v10690, %v10811
    %v10813 = vpop.f32.mrb[0].mxu0
    %v10814 = vadd.f32 %v10694, %v10813
    %v10815 = vpop.f32.mrb[0].mxu0
    %v10816 = vpop.f32.mrb[0].mxu0
    %10817 = vdwg.mxu0
    %s10818 = scalar_lea.vmem [#allocation7], 64
    %10819 = vst [vmem:[%s10818] sm:$0xff] %v10812
    %10820 = vst [vmem:[%s10818 + $0x8] sm:$0xff] %v10814
    // Predicated region
    $region82: #{seq2seq_forward.1} parent=1 // pred_check
      _
    $region83: #{seq2seq_forward.1} parent=1 // pred_check_branch
      %10822 = sbr.rel (0) target = $region85
    $region84: #{seq2seq_forward.1} parent=1 // pred_region
      %s10824 = ssub.s32 1280, 1280
      %10825 = vsyncadd [#allocation4], %s10824
      %s10826 = sshll.u32 [#allocation7], 4
      %s10827 = int_to_ptr.vmem [resolvable:$true] %s10826
      %10832 = dma.vmem_to_hbm [thread:$0]  %s10827, 1280, %s18, [#allocation4], 256, 256, 16
    $region85: #{seq2seq_forward.1} parent=1 // pred_fallthru
      _
    // Predicated region
    $region86: #{seq2seq_forward.1} parent=1 // pred_check
      _
    $region87: #{seq2seq_forward.1} parent=1 // pred_check_branch
      %10834 = sbr.rel (0) target = $region89
    $region88: #{seq2seq_forward.1} parent=1 // pred_region
      %10835 = dma.done [#allocation4], 1280
    $region89: #{seq2seq_forward.1} parent=1 // pred_fallthru
      _
    %10836 = vsyncpa [#allocation3], 1
    %10837 = vsyncpa [#allocation4], 1
    %10838 = vsyncpa [#allocation5], 1

</llo_original>
